<compile_context>
chip_gen: v6e
topology: v6e:2x2x1
jax: 0.10.0
libtpu: 0.0.40
codegen_flags: <defaults>
</compile_context>

<pallas_src>
import math

import jax
import jax.numpy as jnp
from jax import lax
from jax.experimental import pallas as pl
from jax.experimental.pallas import tpu as pltpu

KERNEL_SIZE = 7
PAD = 3


def _gelu_exact(x):
    # nn.GELU default (erf-based, not tanh approximation)
    return 0.5 * x * (1.0 + lax.erf(x * (1.0 / math.sqrt(2.0))))


def sepconv_kernel(x_ref, w1_ref, dwk_ref, w2_ref, o_ref, ypad_ref):
    """One batch image: fused pwconv1 + GELU + depthwise 7x7 + pwconv2."""
    H, W, C = x_ref.shape                     # batch dim squeezed by BlockSpec
    med = w1_ref.shape[1]

    # Zero the padded scratch once; the 3-pixel border is never written again,
    # so it stays zero across grid steps (only the interior is refreshed).
    @pl.when(pl.program_id(0) == 0)
    def _():
        ypad_ref[...] = jnp.zeros(ypad_ref.shape, ypad_ref.dtype)

    # ---- pwconv1 (Linear dim -> med, no bias) + GELU: bf16 MXU, f32 accum ----
    x2d = x_ref[...].reshape(H * W, C).astype(jnp.bfloat16)
    y = jnp.dot(x2d, w1_ref[...], preferred_element_type=jnp.float32)   # (H*W, med) f32
    y = _gelu_exact(y)
    ypad_ref[pl.ds(PAD, H), pl.ds(PAD, W), :] = y.reshape(H, W, med)

    # ---- depthwise 7x7 conv, padding=3, groups=med, no bias (VPU) ----
    acc = jnp.zeros((H, W, med), jnp.float32)
    for dh in range(KERNEL_SIZE):
        for dw in range(KERNEL_SIZE):
            tap = dwk_ref[pl.ds(dh * KERNEL_SIZE + dw, 1), :]            # (1, med)
            win = ypad_ref[pl.ds(dh, H), pl.ds(dw, W), :]                # (H, W, med)
            acc = acc + win * tap.reshape(1, 1, med)

    # ---- pwconv2 (Linear med -> dim, no bias): bf16 MXU, f32 accum ----
    z2d = acc.reshape(H * W, med).astype(jnp.bfloat16)
    out = jnp.dot(z2d, w2_ref[...], preferred_element_type=jnp.float32)  # (H*W, C)
    o_ref[...] = out.reshape(H, W, C).astype(o_ref.dtype)


def sepconv(x_bhwc, params, *, vmem_limit_bytes=32 * 1024 * 1024):
    """x_bhwc: (B, H, W, C) channels-last input. Returns same shape/dtype."""
    B, H, W, C = x_bhwc.shape
    w_pw1 = params["pwconv1_weight"]          # (med, C)   torch Linear layout
    w_dw = params["dwconv_weight"]            # (med, 1, 7, 7)
    w_pw2 = params["pwconv2_weight"]          # (C, med)
    med = w_pw1.shape[0]

    # Pre-transpose / pre-cast so the kernel does plain row-major bf16 matmuls.
    w1 = w_pw1.T.astype(jnp.bfloat16)                                     # (C, med)
    w2 = w_pw2.T.astype(jnp.bfloat16)                                     # (med, C)
    dwk = w_dw.reshape(med, KERNEL_SIZE * KERNEL_SIZE).T.astype(jnp.float32)  # (49, med)

    n_tok = B * H * W
    flops = 2 * n_tok * (C * med + med * KERNEL_SIZE * KERNEL_SIZE + med * C)
    bytes_accessed = (2 * n_tok * C * x_bhwc.dtype.itemsize
                      + w1.size * 2 + w2.size * 2 + dwk.size * 4)
    cost = pl.CostEstimate(flops=flops,
                           transcendentals=n_tok * med,
                           bytes_accessed=bytes_accessed)

    # TODO(synk): production shapes should pad C / med to multiples of 128 in the
    # wrapper so the output slab is lane-dense (masked stores otherwise).
    out = pl.pallas_call(
        sepconv_kernel,
        out_shape=jax.ShapeDtypeStruct((B, H, W, C), x_bhwc.dtype),
        grid_spec=pltpu.PrefetchScalarGridSpec(
            num_scalar_prefetch=0,
            grid=(B,),
            in_specs=[
                pl.BlockSpec((None, H, W, C), lambda b: (b, 0, 0, 0)),        # x image
                pl.BlockSpec((C, med), lambda b: (0, 0)),                     # pwconv1 W^T (bf16)
                pl.BlockSpec((KERNEL_SIZE * KERNEL_SIZE, med), lambda b: (0, 0)),  # dw taps
                pl.BlockSpec((med, C), lambda b: (0, 0)),                     # pwconv2 W^T (bf16)
            ],
            out_specs=pl.BlockSpec((None, H, W, C), lambda b: (b, 0, 0, 0)),
            scratch_shapes=[
                pltpu.VMEM((H + 2 * PAD, W + 2 * PAD, med), jnp.float32),      # padded GELU(y)
            ],
        ),
        compiler_params=pltpu.CompilerParams(
            dimension_semantics=("parallel",),
            vmem_limit_bytes=vmem_limit_bytes),
        cost_estimate=cost,
    )(x_bhwc, w1, dwk, w2)
    return out


def init_params(key, dim, expansion_ratio=2, kernel_size=7):
    """Deterministic synthetic parameters matching the module __init__ shapes."""
    med = int(expansion_ratio * dim)
    k1, k2, k3 = jax.random.split(key, 3)
    b1 = 1.0 / math.sqrt(dim)                      # Linear kaiming-uniform bound
    b2 = 1.0 / math.sqrt(med)
    bdw = 1.0 / math.sqrt(kernel_size * kernel_size)   # depthwise fan_in = 1*k*k
    pw1 = jax.random.uniform(k1, (med, dim), jnp.float32, -b1, b1)
    dw = jax.random.uniform(k2, (med, 1, kernel_size, kernel_size), jnp.float32, -bdw, bdw)
    pw2 = jax.random.uniform(k3, (dim, med), jnp.float32, -b2, b2)
    return dict(pwconv1_weight=pw1, dwconv_weight=dw, pwconv2_weight=pw2)


def reference_forward(x_bhwc, params):
    """Pure-JAX f32 reference mirroring the PyTorch forward, for validation."""
    x = x_bhwc.astype(jnp.float32)
    med = params["pwconv1_weight"].shape[0]
    y = _gelu_exact(jnp.einsum("bhwc,mc->bhwm", x, params["pwconv1_weight"]))
    y_nchw = jnp.transpose(y, (0, 3, 1, 2))
    z = lax.conv_general_dilated(
        y_nchw, params["dwconv_weight"],
        window_strides=(1, 1), padding=((PAD, PAD), (PAD, PAD)),
        dimension_numbers=("NCHW", "OIHW", "NCHW"),
        feature_group_count=med)
    z = jnp.transpose(z, (0, 2, 3, 1))
    out = jnp.einsum("bhwm,cm->bhwc", z, params["pwconv2_weight"])
    return out.astype(x_bhwc.dtype)


if __name__ == "__main__":
    key = jax.random.PRNGKey(0)
    kx, kp = jax.random.split(key)

    B, H, W, C = 2, 16, 16, 4              # dim=4 -> med_channels=8, 7x7 dw conv
    x = jax.random.normal(kx, (B, H, W, C), jnp.float32)
    params = init_params(kp, C, expansion_ratio=2, kernel_size=KERNEL_SIZE)

    out = sepconv(x, params)
    out = jax.block_until_ready(out)

    ref = reference_forward(x, params)
    assert out.shape == x.shape and out.dtype == x.dtype
    max_err = float(jnp.max(jnp.abs(out - ref)))
    # bf16 matmul operands (f32 accumulation) vs. f32 reference -> loosened tolerance.
    assert jnp.allclose(out, ref, atol=3e-2, rtol=3e-2), f"mismatch vs reference, max|diff|={max_err}"

    print("KERNEL_OK")
</pallas_src>

<mosaic_0001>
module attributes {stable_mosaic.version = 11 : i64} {
  func.func @sepconv_kernel(%arg0: i32, %arg1: memref<1x16x16x4xf32, #tpu.memory_space<vmem>>, %arg2: memref<4x8xbf16, #tpu.memory_space<vmem>>, %arg3: memref<49x8xf32, #tpu.memory_space<vmem>>, %arg4: memref<8x4xbf16, #tpu.memory_space<vmem>>, %arg5: memref<1x16x16x4xf32, #tpu.memory_space<vmem>>, %arg6: memref<22x22x8xf32, #tpu.memory_space<vmem>>) attributes {dimension_semantics = [#tpu.dimension_semantics<parallel>], iteration_bounds = array<i64: 2>, scalar_prefetch = 0 : i64, scratch_operands = 1 : i64, tpu.core_type = #tpu.core_type<tc>, window_params = [{transform_indices = @transform_0, window_bounds = array<i64: 1, 16, 16, 4>}, {pipeline_mode = #tpu.pipeline_mode<synchronous>, transform_indices = @transform_1, window_bounds = array<i64: 4, 8>}, {pipeline_mode = #tpu.pipeline_mode<synchronous>, transform_indices = @transform_2, window_bounds = array<i64: 49, 8>}, {pipeline_mode = #tpu.pipeline_mode<synchronous>, transform_indices = @transform_3, window_bounds = array<i64: 8, 4>}, {transform_indices = @transform_4, window_bounds = array<i64: 1, 16, 16, 4>}]} {
    %c0_i32 = arith.constant 0 : i32
    %0 = arith.cmpi eq, %arg0, %c0_i32 : i32
    %1 = arith.extui %0 : i1 to i32
    %c0_i32_0 = arith.constant 0 : i32
    %2 = arith.cmpi ne, %1, %c0_i32_0 : i32
    scf.if %2 {
      %cst_217 = arith.constant 0.000000e+00 : f32
      %322 = vector.broadcast %cst_217 : f32 to vector<22x22x8xf32>
      %c0_218 = arith.constant 0 : index
      %c0_219 = arith.constant 0 : index
      %c0_220 = arith.constant 0 : index
      %323 = vector.load %arg6[%c0_218, %c0_219, %c0_220] : memref<22x22x8xf32, #tpu.memory_space<vmem>>, vector<22x22x8xf32>
      tpu.vector_store %arg6[%c0_218, %c0_219, %c0_220], %322 {strides = array<i32>} : memref<22x22x8xf32, #tpu.memory_space<vmem>>, vector<22x22x8xf32>,
    } else {
    }
    %c0 = arith.constant 0 : index
    %c0_1 = arith.constant 0 : index
    %c0_2 = arith.constant 0 : index
    %c0_3 = arith.constant 0 : index
    %3 = vector.load %arg1[%c0, %c0_1, %c0_2, %c0_3] : memref<1x16x16x4xf32, #tpu.memory_space<vmem>>, vector<1x16x16x4xf32>
    %4 = vector.shape_cast %3 : vector<1x16x16x4xf32> to vector<16x16x4xf32>
    %5 = vector.shape_cast %4 : vector<16x16x4xf32> to vector<256x4xf32>
    %6 = arith.truncf %5 : vector<256x4xf32> to vector<256x4xbf16>
    %c0_4 = arith.constant 0 : index
    %c0_5 = arith.constant 0 : index
    %7 = vector.load %arg2[%c0_4, %c0_5] : memref<4x8xbf16, #tpu.memory_space<vmem>>, vector<4x8xbf16>
    %cst = arith.constant dense<0.000000e+00> : vector<256x8xf32>
    %8 = tpu.matmul %6, %7, %cst {dimension_numbers = #tpu.dot_dimension_numbers<[1], [0], [0], [1], [0, 0, 1, 1], [], []>} : vector<256x4xbf16>, vector<4x8xbf16>, vector<256x8xf32> -> vector<256x8xf32>
    %cst_6 = arith.constant 5.000000e-01 : f32
    %9 = vector.broadcast %cst_6 : f32 to vector<256x8xf32>
    %10 = arith.mulf %9, %8 : vector<256x8xf32>
    %cst_7 = arith.constant 0.707106769 : f32
    %11 = vector.broadcast %cst_7 : f32 to vector<256x8xf32>
    %12 = arith.mulf %8, %11 : vector<256x8xf32>
    %13 = math.erf %12 : vector<256x8xf32>
    %cst_8 = arith.constant 1.000000e+00 : f32
    %14 = vector.broadcast %cst_8 : f32 to vector<256x8xf32>
    %15 = arith.addf %14, %13 : vector<256x8xf32>
    %16 = arith.mulf %10, %15 : vector<256x8xf32>
    %17 = vector.shape_cast %16 : vector<256x8xf32> to vector<16x16x8xf32>
    %c3 = arith.constant 3 : index
    %c3_9 = arith.constant 3 : index
    %c0_10 = arith.constant 0 : index
    %18 = vector.load %arg6[%c3, %c3_9, %c0_10] : memref<22x22x8xf32, #tpu.memory_space<vmem>>, vector<16x16x8xf32>
    tpu.vector_store %arg6[%c3, %c3_9, %c0_10], %17 {strides = array<i32>} : memref<22x22x8xf32, #tpu.memory_space<vmem>>, vector<16x16x8xf32>,
    %cst_11 = arith.constant 0.000000e+00 : f32
    %19 = vector.broadcast %cst_11 : f32 to vector<16x16x8xf32>
    %c0_12 = arith.constant 0 : index
    %c0_13 = arith.constant 0 : index
    %20 = vector.load %arg3[%c0_12, %c0_13] : memref<49x8xf32, #tpu.memory_space<vmem>>, vector<1x8xf32>
    %c0_14 = arith.constant 0 : index
    %c0_15 = arith.constant 0 : index
    %c0_16 = arith.constant 0 : index
    %21 = vector.load %arg6[%c0_14, %c0_15, %c0_16] : memref<22x22x8xf32, #tpu.memory_space<vmem>>, vector<16x16x8xf32>
    %22 = vector.shape_cast %20 : vector<1x8xf32> to vector<1x1x8xf32>
    %23 = vector.broadcast %22 : vector<1x1x8xf32> to vector<16x16x8xf32>
    %24 = arith.mulf %21, %23 : vector<16x16x8xf32>
    %25 = arith.addf %19, %24 : vector<16x16x8xf32>
    %c1 = arith.constant 1 : index
    %c0_17 = arith.constant 0 : index
    %26 = vector.load %arg3[%c1, %c0_17] : memref<49x8xf32, #tpu.memory_space<vmem>>, vector<1x8xf32>
    %c0_18 = arith.constant 0 : index
    %c1_19 = arith.constant 1 : index
    %c0_20 = arith.constant 0 : index
    %27 = vector.load %arg6[%c0_18, %c1_19, %c0_20] : memref<22x22x8xf32, #tpu.memory_space<vmem>>, vector<16x16x8xf32>
    %28 = vector.shape_cast %26 : vector<1x8xf32> to vector<1x1x8xf32>
    %29 = vector.broadcast %28 : vector<1x1x8xf32> to vector<16x16x8xf32>
    %30 = arith.mulf %27, %29 : vector<16x16x8xf32>
    %31 = arith.addf %25, %30 : vector<16x16x8xf32>
    %c2 = arith.constant 2 : index
    %c0_21 = arith.constant 0 : index
    %32 = vector.load %arg3[%c2, %c0_21] : memref<49x8xf32, #tpu.memory_space<vmem>>, vector<1x8xf32>
    %c0_22 = arith.constant 0 : index
    %c2_23 = arith.constant 2 : index
    %c0_24 = arith.constant 0 : index
    %33 = vector.load %arg6[%c0_22, %c2_23, %c0_24] : memref<22x22x8xf32, #tpu.memory_space<vmem>>, vector<16x16x8xf32>
    %34 = vector.shape_cast %32 : vector<1x8xf32> to vector<1x1x8xf32>
    %35 = vector.broadcast %34 : vector<1x1x8xf32> to vector<16x16x8xf32>
    %36 = arith.mulf %33, %35 : vector<16x16x8xf32>
    %37 = arith.addf %31, %36 : vector<16x16x8xf32>
    %c3_25 = arith.constant 3 : index
    %c0_26 = arith.constant 0 : index
    %38 = vector.load %arg3[%c3_25, %c0_26] : memref<49x8xf32, #tpu.memory_space<vmem>>, vector<1x8xf32>
    %c0_27 = arith.constant 0 : index
    %c3_28 = arith.constant 3 : index
    %c0_29 = arith.constant 0 : index
    %39 = vector.load %arg6[%c0_27, %c3_28, %c0_29] : memref<22x22x8xf32, #tpu.memory_space<vmem>>, vector<16x16x8xf32>
    %40 = vector.shape_cast %38 : vector<1x8xf32> to vector<1x1x8xf32>
    %41 = vector.broadcast %40 : vector<1x1x8xf32> to vector<16x16x8xf32>
    %42 = arith.mulf %39, %41 : vector<16x16x8xf32>
    %43 = arith.addf %37, %42 : vector<16x16x8xf32>
    %c4 = arith.constant 4 : index
    %c0_30 = arith.constant 0 : index
    %44 = vector.load %arg3[%c4, %c0_30] : memref<49x8xf32, #tpu.memory_space<vmem>>, vector<1x8xf32>
    %c0_31 = arith.constant 0 : index
    %c4_32 = arith.constant 4 : index
    %c0_33 = arith.constant 0 : index
    %45 = vector.load %arg6[%c0_31, %c4_32, %c0_33] : memref<22x22x8xf32, #tpu.memory_space<vmem>>, vector<16x16x8xf32>
    %46 = vector.shape_cast %44 : vector<1x8xf32> to vector<1x1x8xf32>
    %47 = vector.broadcast %46 : vector<1x1x8xf32> to vector<16x16x8xf32>
    %48 = arith.mulf %45, %47 : vector<16x16x8xf32>
    %49 = arith.addf %43, %48 : vector<16x16x8xf32>
    %c5 = arith.constant 5 : index
    %c0_34 = arith.constant 0 : index
    %50 = vector.load %arg3[%c5, %c0_34] : memref<49x8xf32, #tpu.memory_space<vmem>>, vector<1x8xf32>
    %c0_35 = arith.constant 0 : index
    %c5_36 = arith.constant 5 : index
    %c0_37 = arith.constant 0 : index
    %51 = vector.load %arg6[%c0_35, %c5_36, %c0_37] : memref<22x22x8xf32, #tpu.memory_space<vmem>>, vector<16x16x8xf32>
    %52 = vector.shape_cast %50 : vector<1x8xf32> to vector<1x1x8xf32>
    %53 = vector.broadcast %52 : vector<1x1x8xf32> to vector<16x16x8xf32>
    %54 = arith.mulf %51, %53 : vector<16x16x8xf32>
    %55 = arith.addf %49, %54 : vector<16x16x8xf32>
    %c6 = arith.constant 6 : index
    %c0_38 = arith.constant 0 : index
    %56 = vector.load %arg3[%c6, %c0_38] : memref<49x8xf32, #tpu.memory_space<vmem>>, vector<1x8xf32>
    %c0_39 = arith.constant 0 : index
    %c6_40 = arith.constant 6 : index
    %c0_41 = arith.constant 0 : index
    %57 = vector.load %arg6[%c0_39, %c6_40, %c0_41] : memref<22x22x8xf32, #tpu.memory_space<vmem>>, vector<16x16x8xf32>
    %58 = vector.shape_cast %56 : vector<1x8xf32> to vector<1x1x8xf32>
    %59 = vector.broadcast %58 : vector<1x1x8xf32> to vector<16x16x8xf32>
    %60 = arith.mulf %57, %59 : vector<16x16x8xf32>
    %61 = arith.addf %55, %60 : vector<16x16x8xf32>
    %c7 = arith.constant 7 : index
    %c0_42 = arith.constant 0 : index
    %62 = vector.load %arg3[%c7, %c0_42] : memref<49x8xf32, #tpu.memory_space<vmem>>, vector<1x8xf32>
    %c1_43 = arith.constant 1 : index
    %c0_44 = arith.constant 0 : index
    %c0_45 = arith.constant 0 : index
    %63 = vector.load %arg6[%c1_43, %c0_44, %c0_45] : memref<22x22x8xf32, #tpu.memory_space<vmem>>, vector<16x16x8xf32>
    %64 = vector.shape_cast %62 : vector<1x8xf32> to vector<1x1x8xf32>
    %65 = vector.broadcast %64 : vector<1x1x8xf32> to vector<16x16x8xf32>
    %66 = arith.mulf %63, %65 : vector<16x16x8xf32>
    %67 = arith.addf %61, %66 : vector<16x16x8xf32>
    %c8 = arith.constant 8 : index
    %c0_46 = arith.constant 0 : index
    %68 = vector.load %arg3[%c8, %c0_46] : memref<49x8xf32, #tpu.memory_space<vmem>>, vector<1x8xf32>
    %c1_47 = arith.constant 1 : index
    %c1_48 = arith.constant 1 : index
    %c0_49 = arith.constant 0 : index
    %69 = vector.load %arg6[%c1_47, %c1_48, %c0_49] : memref<22x22x8xf32, #tpu.memory_space<vmem>>, vector<16x16x8xf32>
    %70 = vector.shape_cast %68 : vector<1x8xf32> to vector<1x1x8xf32>
    %71 = vector.broadcast %70 : vector<1x1x8xf32> to vector<16x16x8xf32>
    %72 = arith.mulf %69, %71 : vector<16x16x8xf32>
    %73 = arith.addf %67, %72 : vector<16x16x8xf32>
    %c9 = arith.constant 9 : index
    %c0_50 = arith.constant 0 : index
    %74 = vector.load %arg3[%c9, %c0_50] : memref<49x8xf32, #tpu.memory_space<vmem>>, vector<1x8xf32>
    %c1_51 = arith.constant 1 : index
    %c2_52 = arith.constant 2 : index
    %c0_53 = arith.constant 0 : index
    %75 = vector.load %arg6[%c1_51, %c2_52, %c0_53] : memref<22x22x8xf32, #tpu.memory_space<vmem>>, vector<16x16x8xf32>
    %76 = vector.shape_cast %74 : vector<1x8xf32> to vector<1x1x8xf32>
    %77 = vector.broadcast %76 : vector<1x1x8xf32> to vector<16x16x8xf32>
    %78 = arith.mulf %75, %77 : vector<16x16x8xf32>
    %79 = arith.addf %73, %78 : vector<16x16x8xf32>
    %c10 = arith.constant 10 : index
    %c0_54 = arith.constant 0 : index
    %80 = vector.load %arg3[%c10, %c0_54] : memref<49x8xf32, #tpu.memory_space<vmem>>, vector<1x8xf32>
    %c1_55 = arith.constant 1 : index
    %c3_56 = arith.constant 3 : index
    %c0_57 = arith.constant 0 : index
    %81 = vector.load %arg6[%c1_55, %c3_56, %c0_57] : memref<22x22x8xf32, #tpu.memory_space<vmem>>, vector<16x16x8xf32>
    %82 = vector.shape_cast %80 : vector<1x8xf32> to vector<1x1x8xf32>
    %83 = vector.broadcast %82 : vector<1x1x8xf32> to vector<16x16x8xf32>
    %84 = arith.mulf %81, %83 : vector<16x16x8xf32>
    %85 = arith.addf %79, %84 : vector<16x16x8xf32>
    %c11 = arith.constant 11 : index
    %c0_58 = arith.constant 0 : index
    %86 = vector.load %arg3[%c11, %c0_58] : memref<49x8xf32, #tpu.memory_space<vmem>>, vector<1x8xf32>
    %c1_59 = arith.constant 1 : index
    %c4_60 = arith.constant 4 : index
    %c0_61 = arith.constant 0 : index
    %87 = vector.load %arg6[%c1_59, %c4_60, %c0_61] : memref<22x22x8xf32, #tpu.memory_space<vmem>>, vector<16x16x8xf32>
    %88 = vector.shape_cast %86 : vector<1x8xf32> to vector<1x1x8xf32>
    %89 = vector.broadcast %88 : vector<1x1x8xf32> to vector<16x16x8xf32>
    %90 = arith.mulf %87, %89 : vector<16x16x8xf32>
    %91 = arith.addf %85, %90 : vector<16x16x8xf32>
    %c12 = arith.constant 12 : index
    %c0_62 = arith.constant 0 : index
    %92 = vector.load %arg3[%c12, %c0_62] : memref<49x8xf32, #tpu.memory_space<vmem>>, vector<1x8xf32>
    %c1_63 = arith.constant 1 : index
    %c5_64 = arith.constant 5 : index
    %c0_65 = arith.constant 0 : index
    %93 = vector.load %arg6[%c1_63, %c5_64, %c0_65] : memref<22x22x8xf32, #tpu.memory_space<vmem>>, vector<16x16x8xf32>
    %94 = vector.shape_cast %92 : vector<1x8xf32> to vector<1x1x8xf32>
    %95 = vector.broadcast %94 : vector<1x1x8xf32> to vector<16x16x8xf32>
    %96 = arith.mulf %93, %95 : vector<16x16x8xf32>
    %97 = arith.addf %91, %96 : vector<16x16x8xf32>
    %c13 = arith.constant 13 : index
    %c0_66 = arith.constant 0 : index
    %98 = vector.load %arg3[%c13, %c0_66] : memref<49x8xf32, #tpu.memory_space<vmem>>, vector<1x8xf32>
    %c1_67 = arith.constant 1 : index
    %c6_68 = arith.constant 6 : index
    %c0_69 = arith.constant 0 : index
    %99 = vector.load %arg6[%c1_67, %c6_68, %c0_69] : memref<22x22x8xf32, #tpu.memory_space<vmem>>, vector<16x16x8xf32>
    %100 = vector.shape_cast %98 : vector<1x8xf32> to vector<1x1x8xf32>
    %101 = vector.broadcast %100 : vector<1x1x8xf32> to vector<16x16x8xf32>
    %102 = arith.mulf %99, %101 : vector<16x16x8xf32>
    %103 = arith.addf %97, %102 : vector<16x16x8xf32>
    %c14 = arith.constant 14 : index
    %c0_70 = arith.constant 0 : index
    %104 = vector.load %arg3[%c14, %c0_70] : memref<49x8xf32, #tpu.memory_space<vmem>>, vector<1x8xf32>
    %c2_71 = arith.constant 2 : index
    %c0_72 = arith.constant 0 : index
    %c0_73 = arith.constant 0 : index
    %105 = vector.load %arg6[%c2_71, %c0_72, %c0_73] : memref<22x22x8xf32, #tpu.memory_space<vmem>>, vector<16x16x8xf32>
    %106 = vector.shape_cast %104 : vector<1x8xf32> to vector<1x1x8xf32>
    %107 = vector.broadcast %106 : vector<1x1x8xf32> to vector<16x16x8xf32>
    %108 = arith.mulf %105, %107 : vector<16x16x8xf32>
    %109 = arith.addf %103, %108 : vector<16x16x8xf32>
    %c15 = arith.constant 15 : index
    %c0_74 = arith.constant 0 : index
    %110 = vector.load %arg3[%c15, %c0_74] : memref<49x8xf32, #tpu.memory_space<vmem>>, vector<1x8xf32>
    %c2_75 = arith.constant 2 : index
    %c1_76 = arith.constant 1 : index
    %c0_77 = arith.constant 0 : index
    %111 = vector.load %arg6[%c2_75, %c1_76, %c0_77] : memref<22x22x8xf32, #tpu.memory_space<vmem>>, vector<16x16x8xf32>
    %112 = vector.shape_cast %110 : vector<1x8xf32> to vector<1x1x8xf32>
    %113 = vector.broadcast %112 : vector<1x1x8xf32> to vector<16x16x8xf32>
    %114 = arith.mulf %111, %113 : vector<16x16x8xf32>
    %115 = arith.addf %109, %114 : vector<16x16x8xf32>
    %c16 = arith.constant 16 : index
    %c0_78 = arith.constant 0 : index
    %116 = vector.load %arg3[%c16, %c0_78] : memref<49x8xf32, #tpu.memory_space<vmem>>, vector<1x8xf32>
    %c2_79 = arith.constant 2 : index
    %c2_80 = arith.constant 2 : index
    %c0_81 = arith.constant 0 : index
    %117 = vector.load %arg6[%c2_79, %c2_80, %c0_81] : memref<22x22x8xf32, #tpu.memory_space<vmem>>, vector<16x16x8xf32>
    %118 = vector.shape_cast %116 : vector<1x8xf32> to vector<1x1x8xf32>
    %119 = vector.broadcast %118 : vector<1x1x8xf32> to vector<16x16x8xf32>
    %120 = arith.mulf %117, %119 : vector<16x16x8xf32>
    %121 = arith.addf %115, %120 : vector<16x16x8xf32>
    %c17 = arith.constant 17 : index
    %c0_82 = arith.constant 0 : index
    %122 = vector.load %arg3[%c17, %c0_82] : memref<49x8xf32, #tpu.memory_space<vmem>>, vector<1x8xf32>
    %c2_83 = arith.constant 2 : index
    %c3_84 = arith.constant 3 : index
    %c0_85 = arith.constant 0 : index
    %123 = vector.load %arg6[%c2_83, %c3_84, %c0_85] : memref<22x22x8xf32, #tpu.memory_space<vmem>>, vector<16x16x8xf32>
    %124 = vector.shape_cast %122 : vector<1x8xf32> to vector<1x1x8xf32>
    %125 = vector.broadcast %124 : vector<1x1x8xf32> to vector<16x16x8xf32>
    %126 = arith.mulf %123, %125 : vector<16x16x8xf32>
    %127 = arith.addf %121, %126 : vector<16x16x8xf32>
    %c18 = arith.constant 18 : index
    %c0_86 = arith.constant 0 : index
    %128 = vector.load %arg3[%c18, %c0_86] : memref<49x8xf32, #tpu.memory_space<vmem>>, vector<1x8xf32>
    %c2_87 = arith.constant 2 : index
    %c4_88 = arith.constant 4 : index
    %c0_89 = arith.constant 0 : index
    %129 = vector.load %arg6[%c2_87, %c4_88, %c0_89] : memref<22x22x8xf32, #tpu.memory_space<vmem>>, vector<16x16x8xf32>
    %130 = vector.shape_cast %128 : vector<1x8xf32> to vector<1x1x8xf32>
    %131 = vector.broadcast %130 : vector<1x1x8xf32> to vector<16x16x8xf32>
    %132 = arith.mulf %129, %131 : vector<16x16x8xf32>
    %133 = arith.addf %127, %132 : vector<16x16x8xf32>
    %c19 = arith.constant 19 : index
    %c0_90 = arith.constant 0 : index
    %134 = vector.load %arg3[%c19, %c0_90] : memref<49x8xf32, #tpu.memory_space<vmem>>, vector<1x8xf32>
    %c2_91 = arith.constant 2 : index
    %c5_92 = arith.constant 5 : index
    %c0_93 = arith.constant 0 : index
    %135 = vector.load %arg6[%c2_91, %c5_92, %c0_93] : memref<22x22x8xf32, #tpu.memory_space<vmem>>, vector<16x16x8xf32>
    %136 = vector.shape_cast %134 : vector<1x8xf32> to vector<1x1x8xf32>
    %137 = vector.broadcast %136 : vector<1x1x8xf32> to vector<16x16x8xf32>
    %138 = arith.mulf %135, %137 : vector<16x16x8xf32>
    %139 = arith.addf %133, %138 : vector<16x16x8xf32>
    %c20 = arith.constant 20 : index
    %c0_94 = arith.constant 0 : index
    %140 = vector.load %arg3[%c20, %c0_94] : memref<49x8xf32, #tpu.memory_space<vmem>>, vector<1x8xf32>
    %c2_95 = arith.constant 2 : index
    %c6_96 = arith.constant 6 : index
    %c0_97 = arith.constant 0 : index
    %141 = vector.load %arg6[%c2_95, %c6_96, %c0_97] : memref<22x22x8xf32, #tpu.memory_space<vmem>>, vector<16x16x8xf32>
    %142 = vector.shape_cast %140 : vector<1x8xf32> to vector<1x1x8xf32>
    %143 = vector.broadcast %142 : vector<1x1x8xf32> to vector<16x16x8xf32>
    %144 = arith.mulf %141, %143 : vector<16x16x8xf32>
    %145 = arith.addf %139, %144 : vector<16x16x8xf32>
    %c21 = arith.constant 21 : index
    %c0_98 = arith.constant 0 : index
    %146 = vector.load %arg3[%c21, %c0_98] : memref<49x8xf32, #tpu.memory_space<vmem>>, vector<1x8xf32>
    %c3_99 = arith.constant 3 : index
    %c0_100 = arith.constant 0 : index
    %c0_101 = arith.constant 0 : index
    %147 = vector.load %arg6[%c3_99, %c0_100, %c0_101] : memref<22x22x8xf32, #tpu.memory_space<vmem>>, vector<16x16x8xf32>
    %148 = vector.shape_cast %146 : vector<1x8xf32> to vector<1x1x8xf32>
    %149 = vector.broadcast %148 : vector<1x1x8xf32> to vector<16x16x8xf32>
    %150 = arith.mulf %147, %149 : vector<16x16x8xf32>
    %151 = arith.addf %145, %150 : vector<16x16x8xf32>
    %c22 = arith.constant 22 : index
    %c0_102 = arith.constant 0 : index
    %152 = vector.load %arg3[%c22, %c0_102] : memref<49x8xf32, #tpu.memory_space<vmem>>, vector<1x8xf32>
    %c3_103 = arith.constant 3 : index
    %c1_104 = arith.constant 1 : index
    %c0_105 = arith.constant 0 : index
    %153 = vector.load %arg6[%c3_103, %c1_104, %c0_105] : memref<22x22x8xf32, #tpu.memory_space<vmem>>, vector<16x16x8xf32>
    %154 = vector.shape_cast %152 : vector<1x8xf32> to vector<1x1x8xf32>
    %155 = vector.broadcast %154 : vector<1x1x8xf32> to vector<16x16x8xf32>
    %156 = arith.mulf %153, %155 : vector<16x16x8xf32>
    %157 = arith.addf %151, %156 : vector<16x16x8xf32>
    %c23 = arith.constant 23 : index
    %c0_106 = arith.constant 0 : index
    %158 = vector.load %arg3[%c23, %c0_106] : memref<49x8xf32, #tpu.memory_space<vmem>>, vector<1x8xf32>
    %c3_107 = arith.constant 3 : index
    %c2_108 = arith.constant 2 : index
    %c0_109 = arith.constant 0 : index
    %159 = vector.load %arg6[%c3_107, %c2_108, %c0_109] : memref<22x22x8xf32, #tpu.memory_space<vmem>>, vector<16x16x8xf32>
    %160 = vector.shape_cast %158 : vector<1x8xf32> to vector<1x1x8xf32>
    %161 = vector.broadcast %160 : vector<1x1x8xf32> to vector<16x16x8xf32>
    %162 = arith.mulf %159, %161 : vector<16x16x8xf32>
    %163 = arith.addf %157, %162 : vector<16x16x8xf32>
    %c24 = arith.constant 24 : index
    %c0_110 = arith.constant 0 : index
    %164 = vector.load %arg3[%c24, %c0_110] : memref<49x8xf32, #tpu.memory_space<vmem>>, vector<1x8xf32>
    %c3_111 = arith.constant 3 : index
    %c3_112 = arith.constant 3 : index
    %c0_113 = arith.constant 0 : index
    %165 = vector.load %arg6[%c3_111, %c3_112, %c0_113] : memref<22x22x8xf32, #tpu.memory_space<vmem>>, vector<16x16x8xf32>
    %166 = vector.shape_cast %164 : vector<1x8xf32> to vector<1x1x8xf32>
    %167 = vector.broadcast %166 : vector<1x1x8xf32> to vector<16x16x8xf32>
    %168 = arith.mulf %165, %167 : vector<16x16x8xf32>
    %169 = arith.addf %163, %168 : vector<16x16x8xf32>
    %c25 = arith.constant 25 : index
    %c0_114 = arith.constant 0 : index
    %170 = vector.load %arg3[%c25, %c0_114] : memref<49x8xf32, #tpu.memory_space<vmem>>, vector<1x8xf32>
    %c3_115 = arith.constant 3 : index
    %c4_116 = arith.constant 4 : index
    %c0_117 = arith.constant 0 : index
    %171 = vector.load %arg6[%c3_115, %c4_116, %c0_117] : memref<22x22x8xf32, #tpu.memory_space<vmem>>, vector<16x16x8xf32>
    %172 = vector.shape_cast %170 : vector<1x8xf32> to vector<1x1x8xf32>
    %173 = vector.broadcast %172 : vector<1x1x8xf32> to vector<16x16x8xf32>
    %174 = arith.mulf %171, %173 : vector<16x16x8xf32>
    %175 = arith.addf %169, %174 : vector<16x16x8xf32>
    %c26 = arith.constant 26 : index
    %c0_118 = arith.constant 0 : index
    %176 = vector.load %arg3[%c26, %c0_118] : memref<49x8xf32, #tpu.memory_space<vmem>>, vector<1x8xf32>
    %c3_119 = arith.constant 3 : index
    %c5_120 = arith.constant 5 : index
    %c0_121 = arith.constant 0 : index
    %177 = vector.load %arg6[%c3_119, %c5_120, %c0_121] : memref<22x22x8xf32, #tpu.memory_space<vmem>>, vector<16x16x8xf32>
    %178 = vector.shape_cast %176 : vector<1x8xf32> to vector<1x1x8xf32>
    %179 = vector.broadcast %178 : vector<1x1x8xf32> to vector<16x16x8xf32>
    %180 = arith.mulf %177, %179 : vector<16x16x8xf32>
    %181 = arith.addf %175, %180 : vector<16x16x8xf32>
    %c27 = arith.constant 27 : index
    %c0_122 = arith.constant 0 : index
    %182 = vector.load %arg3[%c27, %c0_122] : memref<49x8xf32, #tpu.memory_space<vmem>>, vector<1x8xf32>
    %c3_123 = arith.constant 3 : index
    %c6_124 = arith.constant 6 : index
    %c0_125 = arith.constant 0 : index
    %183 = vector.load %arg6[%c3_123, %c6_124, %c0_125] : memref<22x22x8xf32, #tpu.memory_space<vmem>>, vector<16x16x8xf32>
    %184 = vector.shape_cast %182 : vector<1x8xf32> to vector<1x1x8xf32>
    %185 = vector.broadcast %184 : vector<1x1x8xf32> to vector<16x16x8xf32>
    %186 = arith.mulf %183, %185 : vector<16x16x8xf32>
    %187 = arith.addf %181, %186 : vector<16x16x8xf32>
    %c28 = arith.constant 28 : index
    %c0_126 = arith.constant 0 : index
    %188 = vector.load %arg3[%c28, %c0_126] : memref<49x8xf32, #tpu.memory_space<vmem>>, vector<1x8xf32>
    %c4_127 = arith.constant 4 : index
    %c0_128 = arith.constant 0 : index
    %c0_129 = arith.constant 0 : index
    %189 = vector.load %arg6[%c4_127, %c0_128, %c0_129] : memref<22x22x8xf32, #tpu.memory_space<vmem>>, vector<16x16x8xf32>
    %190 = vector.shape_cast %188 : vector<1x8xf32> to vector<1x1x8xf32>
    %191 = vector.broadcast %190 : vector<1x1x8xf32> to vector<16x16x8xf32>
    %192 = arith.mulf %189, %191 : vector<16x16x8xf32>
    %193 = arith.addf %187, %192 : vector<16x16x8xf32>
    %c29 = arith.constant 29 : index
    %c0_130 = arith.constant 0 : index
    %194 = vector.load %arg3[%c29, %c0_130] : memref<49x8xf32, #tpu.memory_space<vmem>>, vector<1x8xf32>
    %c4_131 = arith.constant 4 : index
    %c1_132 = arith.constant 1 : index
    %c0_133 = arith.constant 0 : index
    %195 = vector.load %arg6[%c4_131, %c1_132, %c0_133] : memref<22x22x8xf32, #tpu.memory_space<vmem>>, vector<16x16x8xf32>
    %196 = vector.shape_cast %194 : vector<1x8xf32> to vector<1x1x8xf32>
    %197 = vector.broadcast %196 : vector<1x1x8xf32> to vector<16x16x8xf32>
    %198 = arith.mulf %195, %197 : vector<16x16x8xf32>
    %199 = arith.addf %193, %198 : vector<16x16x8xf32>
    %c30 = arith.constant 30 : index
    %c0_134 = arith.constant 0 : index
    %200 = vector.load %arg3[%c30, %c0_134] : memref<49x8xf32, #tpu.memory_space<vmem>>, vector<1x8xf32>
    %c4_135 = arith.constant 4 : index
    %c2_136 = arith.constant 2 : index
    %c0_137 = arith.constant 0 : index
    %201 = vector.load %arg6[%c4_135, %c2_136, %c0_137] : memref<22x22x8xf32, #tpu.memory_space<vmem>>, vector<16x16x8xf32>
    %202 = vector.shape_cast %200 : vector<1x8xf32> to vector<1x1x8xf32>
    %203 = vector.broadcast %202 : vector<1x1x8xf32> to vector<16x16x8xf32>
    %204 = arith.mulf %201, %203 : vector<16x16x8xf32>
    %205 = arith.addf %199, %204 : vector<16x16x8xf32>
    %c31 = arith.constant 31 : index
    %c0_138 = arith.constant 0 : index
    %206 = vector.load %arg3[%c31, %c0_138] : memref<49x8xf32, #tpu.memory_space<vmem>>, vector<1x8xf32>
    %c4_139 = arith.constant 4 : index
    %c3_140 = arith.constant 3 : index
    %c0_141 = arith.constant 0 : index
    %207 = vector.load %arg6[%c4_139, %c3_140, %c0_141] : memref<22x22x8xf32, #tpu.memory_space<vmem>>, vector<16x16x8xf32>
    %208 = vector.shape_cast %206 : vector<1x8xf32> to vector<1x1x8xf32>
    %209 = vector.broadcast %208 : vector<1x1x8xf32> to vector<16x16x8xf32>
    %210 = arith.mulf %207, %209 : vector<16x16x8xf32>
    %211 = arith.addf %205, %210 : vector<16x16x8xf32>
    %c32 = arith.constant 32 : index
    %c0_142 = arith.constant 0 : index
    %212 = vector.load %arg3[%c32, %c0_142] : memref<49x8xf32, #tpu.memory_space<vmem>>, vector<1x8xf32>
    %c4_143 = arith.constant 4 : index
    %c4_144 = arith.constant 4 : index
    %c0_145 = arith.constant 0 : index
    %213 = vector.load %arg6[%c4_143, %c4_144, %c0_145] : memref<22x22x8xf32, #tpu.memory_space<vmem>>, vector<16x16x8xf32>
    %214 = vector.shape_cast %212 : vector<1x8xf32> to vector<1x1x8xf32>
    %215 = vector.broadcast %214 : vector<1x1x8xf32> to vector<16x16x8xf32>
    %216 = arith.mulf %213, %215 : vector<16x16x8xf32>
    %217 = arith.addf %211, %216 : vector<16x16x8xf32>
    %c33 = arith.constant 33 : index
    %c0_146 = arith.constant 0 : index
    %218 = vector.load %arg3[%c33, %c0_146] : memref<49x8xf32, #tpu.memory_space<vmem>>, vector<1x8xf32>
    %c4_147 = arith.constant 4 : index
    %c5_148 = arith.constant 5 : index
    %c0_149 = arith.constant 0 : index
    %219 = vector.load %arg6[%c4_147, %c5_148, %c0_149] : memref<22x22x8xf32, #tpu.memory_space<vmem>>, vector<16x16x8xf32>
    %220 = vector.shape_cast %218 : vector<1x8xf32> to vector<1x1x8xf32>
    %221 = vector.broadcast %220 : vector<1x1x8xf32> to vector<16x16x8xf32>
    %222 = arith.mulf %219, %221 : vector<16x16x8xf32>
    %223 = arith.addf %217, %222 : vector<16x16x8xf32>
    %c34 = arith.constant 34 : index
    %c0_150 = arith.constant 0 : index
    %224 = vector.load %arg3[%c34, %c0_150] : memref<49x8xf32, #tpu.memory_space<vmem>>, vector<1x8xf32>
    %c4_151 = arith.constant 4 : index
    %c6_152 = arith.constant 6 : index
    %c0_153 = arith.constant 0 : index
    %225 = vector.load %arg6[%c4_151, %c6_152, %c0_153] : memref<22x22x8xf32, #tpu.memory_space<vmem>>, vector<16x16x8xf32>
    %226 = vector.shape_cast %224 : vector<1x8xf32> to vector<1x1x8xf32>
    %227 = vector.broadcast %226 : vector<1x1x8xf32> to vector<16x16x8xf32>
    %228 = arith.mulf %225, %227 : vector<16x16x8xf32>
    %229 = arith.addf %223, %228 : vector<16x16x8xf32>
    %c35 = arith.constant 35 : index
    %c0_154 = arith.constant 0 : index
    %230 = vector.load %arg3[%c35, %c0_154] : memref<49x8xf32, #tpu.memory_space<vmem>>, vector<1x8xf32>
    %c5_155 = arith.constant 5 : index
    %c0_156 = arith.constant 0 : index
    %c0_157 = arith.constant 0 : index
    %231 = vector.load %arg6[%c5_155, %c0_156, %c0_157] : memref<22x22x8xf32, #tpu.memory_space<vmem>>, vector<16x16x8xf32>
    %232 = vector.shape_cast %230 : vector<1x8xf32> to vector<1x1x8xf32>
    %233 = vector.broadcast %232 : vector<1x1x8xf32> to vector<16x16x8xf32>
    %234 = arith.mulf %231, %233 : vector<16x16x8xf32>
    %235 = arith.addf %229, %234 : vector<16x16x8xf32>
    %c36 = arith.constant 36 : index
    %c0_158 = arith.constant 0 : index
    %236 = vector.load %arg3[%c36, %c0_158] : memref<49x8xf32, #tpu.memory_space<vmem>>, vector<1x8xf32>
    %c5_159 = arith.constant 5 : index
    %c1_160 = arith.constant 1 : index
    %c0_161 = arith.constant 0 : index
    %237 = vector.load %arg6[%c5_159, %c1_160, %c0_161] : memref<22x22x8xf32, #tpu.memory_space<vmem>>, vector<16x16x8xf32>
    %238 = vector.shape_cast %236 : vector<1x8xf32> to vector<1x1x8xf32>
    %239 = vector.broadcast %238 : vector<1x1x8xf32> to vector<16x16x8xf32>
    %240 = arith.mulf %237, %239 : vector<16x16x8xf32>
    %241 = arith.addf %235, %240 : vector<16x16x8xf32>
    %c37 = arith.constant 37 : index
    %c0_162 = arith.constant 0 : index
    %242 = vector.load %arg3[%c37, %c0_162] : memref<49x8xf32, #tpu.memory_space<vmem>>, vector<1x8xf32>
    %c5_163 = arith.constant 5 : index
    %c2_164 = arith.constant 2 : index
    %c0_165 = arith.constant 0 : index
    %243 = vector.load %arg6[%c5_163, %c2_164, %c0_165] : memref<22x22x8xf32, #tpu.memory_space<vmem>>, vector<16x16x8xf32>
    %244 = vector.shape_cast %242 : vector<1x8xf32> to vector<1x1x8xf32>
    %245 = vector.broadcast %244 : vector<1x1x8xf32> to vector<16x16x8xf32>
    %246 = arith.mulf %243, %245 : vector<16x16x8xf32>
    %247 = arith.addf %241, %246 : vector<16x16x8xf32>
    %c38 = arith.constant 38 : index
    %c0_166 = arith.constant 0 : index
    %248 = vector.load %arg3[%c38, %c0_166] : memref<49x8xf32, #tpu.memory_space<vmem>>, vector<1x8xf32>
    %c5_167 = arith.constant 5 : index
    %c3_168 = arith.constant 3 : index
    %c0_169 = arith.constant 0 : index
    %249 = vector.load %arg6[%c5_167, %c3_168, %c0_169] : memref<22x22x8xf32, #tpu.memory_space<vmem>>, vector<16x16x8xf32>
    %250 = vector.shape_cast %248 : vector<1x8xf32> to vector<1x1x8xf32>
    %251 = vector.broadcast %250 : vector<1x1x8xf32> to vector<16x16x8xf32>
    %252 = arith.mulf %249, %251 : vector<16x16x8xf32>
    %253 = arith.addf %247, %252 : vector<16x16x8xf32>
    %c39 = arith.constant 39 : index
    %c0_170 = arith.constant 0 : index
    %254 = vector.load %arg3[%c39, %c0_170] : memref<49x8xf32, #tpu.memory_space<vmem>>, vector<1x8xf32>
    %c5_171 = arith.constant 5 : index
    %c4_172 = arith.constant 4 : index
    %c0_173 = arith.constant 0 : index
    %255 = vector.load %arg6[%c5_171, %c4_172, %c0_173] : memref<22x22x8xf32, #tpu.memory_space<vmem>>, vector<16x16x8xf32>
    %256 = vector.shape_cast %254 : vector<1x8xf32> to vector<1x1x8xf32>
    %257 = vector.broadcast %256 : vector<1x1x8xf32> to vector<16x16x8xf32>
    %258 = arith.mulf %255, %257 : vector<16x16x8xf32>
    %259 = arith.addf %253, %258 : vector<16x16x8xf32>
    %c40 = arith.constant 40 : index
    %c0_174 = arith.constant 0 : index
    %260 = vector.load %arg3[%c40, %c0_174] : memref<49x8xf32, #tpu.memory_space<vmem>>, vector<1x8xf32>
    %c5_175 = arith.constant 5 : index
    %c5_176 = arith.constant 5 : index
    %c0_177 = arith.constant 0 : index
    %261 = vector.load %arg6[%c5_175, %c5_176, %c0_177] : memref<22x22x8xf32, #tpu.memory_space<vmem>>, vector<16x16x8xf32>
    %262 = vector.shape_cast %260 : vector<1x8xf32> to vector<1x1x8xf32>
    %263 = vector.broadcast %262 : vector<1x1x8xf32> to vector<16x16x8xf32>
    %264 = arith.mulf %261, %263 : vector<16x16x8xf32>
    %265 = arith.addf %259, %264 : vector<16x16x8xf32>
    %c41 = arith.constant 41 : index
    %c0_178 = arith.constant 0 : index
    %266 = vector.load %arg3[%c41, %c0_178] : memref<49x8xf32, #tpu.memory_space<vmem>>, vector<1x8xf32>
    %c5_179 = arith.constant 5 : index
    %c6_180 = arith.constant 6 : index
    %c0_181 = arith.constant 0 : index
    %267 = vector.load %arg6[%c5_179, %c6_180, %c0_181] : memref<22x22x8xf32, #tpu.memory_space<vmem>>, vector<16x16x8xf32>
    %268 = vector.shape_cast %266 : vector<1x8xf32> to vector<1x1x8xf32>
    %269 = vector.broadcast %268 : vector<1x1x8xf32> to vector<16x16x8xf32>
    %270 = arith.mulf %267, %269 : vector<16x16x8xf32>
    %271 = arith.addf %265, %270 : vector<16x16x8xf32>
    %c42 = arith.constant 42 : index
    %c0_182 = arith.constant 0 : index
    %272 = vector.load %arg3[%c42, %c0_182] : memref<49x8xf32, #tpu.memory_space<vmem>>, vector<1x8xf32>
    %c6_183 = arith.constant 6 : index
    %c0_184 = arith.constant 0 : index
    %c0_185 = arith.constant 0 : index
    %273 = vector.load %arg6[%c6_183, %c0_184, %c0_185] : memref<22x22x8xf32, #tpu.memory_space<vmem>>, vector<16x16x8xf32>
    %274 = vector.shape_cast %272 : vector<1x8xf32> to vector<1x1x8xf32>
    %275 = vector.broadcast %274 : vector<1x1x8xf32> to vector<16x16x8xf32>
    %276 = arith.mulf %273, %275 : vector<16x16x8xf32>
    %277 = arith.addf %271, %276 : vector<16x16x8xf32>
    %c43 = arith.constant 43 : index
    %c0_186 = arith.constant 0 : index
    %278 = vector.load %arg3[%c43, %c0_186] : memref<49x8xf32, #tpu.memory_space<vmem>>, vector<1x8xf32>
    %c6_187 = arith.constant 6 : index
    %c1_188 = arith.constant 1 : index
    %c0_189 = arith.constant 0 : index
    %279 = vector.load %arg6[%c6_187, %c1_188, %c0_189] : memref<22x22x8xf32, #tpu.memory_space<vmem>>, vector<16x16x8xf32>
    %280 = vector.shape_cast %278 : vector<1x8xf32> to vector<1x1x8xf32>
    %281 = vector.broadcast %280 : vector<1x1x8xf32> to vector<16x16x8xf32>
    %282 = arith.mulf %279, %281 : vector<16x16x8xf32>
    %283 = arith.addf %277, %282 : vector<16x16x8xf32>
    %c44 = arith.constant 44 : index
    %c0_190 = arith.constant 0 : index
    %284 = vector.load %arg3[%c44, %c0_190] : memref<49x8xf32, #tpu.memory_space<vmem>>, vector<1x8xf32>
    %c6_191 = arith.constant 6 : index
    %c2_192 = arith.constant 2 : index
    %c0_193 = arith.constant 0 : index
    %285 = vector.load %arg6[%c6_191, %c2_192, %c0_193] : memref<22x22x8xf32, #tpu.memory_space<vmem>>, vector<16x16x8xf32>
    %286 = vector.shape_cast %284 : vector<1x8xf32> to vector<1x1x8xf32>
    %287 = vector.broadcast %286 : vector<1x1x8xf32> to vector<16x16x8xf32>
    %288 = arith.mulf %285, %287 : vector<16x16x8xf32>
    %289 = arith.addf %283, %288 : vector<16x16x8xf32>
    %c45 = arith.constant 45 : index
    %c0_194 = arith.constant 0 : index
    %290 = vector.load %arg3[%c45, %c0_194] : memref<49x8xf32, #tpu.memory_space<vmem>>, vector<1x8xf32>
    %c6_195 = arith.constant 6 : index
    %c3_196 = arith.constant 3 : index
    %c0_197 = arith.constant 0 : index
    %291 = vector.load %arg6[%c6_195, %c3_196, %c0_197] : memref<22x22x8xf32, #tpu.memory_space<vmem>>, vector<16x16x8xf32>
    %292 = vector.shape_cast %290 : vector<1x8xf32> to vector<1x1x8xf32>
    %293 = vector.broadcast %292 : vector<1x1x8xf32> to vector<16x16x8xf32>
    %294 = arith.mulf %291, %293 : vector<16x16x8xf32>
    %295 = arith.addf %289, %294 : vector<16x16x8xf32>
    %c46 = arith.constant 46 : index
    %c0_198 = arith.constant 0 : index
    %296 = vector.load %arg3[%c46, %c0_198] : memref<49x8xf32, #tpu.memory_space<vmem>>, vector<1x8xf32>
    %c6_199 = arith.constant 6 : index
    %c4_200 = arith.constant 4 : index
    %c0_201 = arith.constant 0 : index
    %297 = vector.load %arg6[%c6_199, %c4_200, %c0_201] : memref<22x22x8xf32, #tpu.memory_space<vmem>>, vector<16x16x8xf32>
    %298 = vector.shape_cast %296 : vector<1x8xf32> to vector<1x1x8xf32>
    %299 = vector.broadcast %298 : vector<1x1x8xf32> to vector<16x16x8xf32>
    %300 = arith.mulf %297, %299 : vector<16x16x8xf32>
    %301 = arith.addf %295, %300 : vector<16x16x8xf32>
    %c47 = arith.constant 47 : index
    %c0_202 = arith.constant 0 : index
    %302 = vector.load %arg3[%c47, %c0_202] : memref<49x8xf32, #tpu.memory_space<vmem>>, vector<1x8xf32>
    %c6_203 = arith.constant 6 : index
    %c5_204 = arith.constant 5 : index
    %c0_205 = arith.constant 0 : index
    %303 = vector.load %arg6[%c6_203, %c5_204, %c0_205] : memref<22x22x8xf32, #tpu.memory_space<vmem>>, vector<16x16x8xf32>
    %304 = vector.shape_cast %302 : vector<1x8xf32> to vector<1x1x8xf32>
    %305 = vector.broadcast %304 : vector<1x1x8xf32> to vector<16x16x8xf32>
    %306 = arith.mulf %303, %305 : vector<16x16x8xf32>
    %307 = arith.addf %301, %306 : vector<16x16x8xf32>
    %c48 = arith.constant 48 : index
    %c0_206 = arith.constant 0 : index
    %308 = vector.load %arg3[%c48, %c0_206] : memref<49x8xf32, #tpu.memory_space<vmem>>, vector<1x8xf32>
    %c6_207 = arith.constant 6 : index
    %c6_208 = arith.constant 6 : index
    %c0_209 = arith.constant 0 : index
    %309 = vector.load %arg6[%c6_207, %c6_208, %c0_209] : memref<22x22x8xf32, #tpu.memory_space<vmem>>, vector<16x16x8xf32>
    %310 = vector.shape_cast %308 : vector<1x8xf32> to vector<1x1x8xf32>
    %311 = vector.broadcast %310 : vector<1x1x8xf32> to vector<16x16x8xf32>
    %312 = arith.mulf %309, %311 : vector<16x16x8xf32>
    %313 = arith.addf %307, %312 : vector<16x16x8xf32>
    %314 = vector.shape_cast %313 : vector<16x16x8xf32> to vector<256x8xf32>
    %315 = arith.truncf %314 : vector<256x8xf32> to vector<256x8xbf16>
    %c0_210 = arith.constant 0 : index
    %c0_211 = arith.constant 0 : index
    %316 = vector.load %arg4[%c0_210, %c0_211] : memref<8x4xbf16, #tpu.memory_space<vmem>>, vector<8x4xbf16>
    %cst_212 = arith.constant dense<0.000000e+00> : vector<256x4xf32>
    %317 = tpu.matmul %315, %316, %cst_212 {dimension_numbers = #tpu.dot_dimension_numbers<[1], [0], [0], [1], [0, 0, 1, 1], [], []>} : vector<256x8xbf16>, vector<8x4xbf16>, vector<256x4xf32> -> vector<256x4xf32>
    %318 = vector.shape_cast %317 : vector<256x4xf32> to vector<16x16x4xf32>
    %c0_213 = arith.constant 0 : index
    %c0_214 = arith.constant 0 : index
    %c0_215 = arith.constant 0 : index
    %c0_216 = arith.constant 0 : index
    %319 = vector.load %arg5[%c0_213, %c0_214, %c0_215, %c0_216] : memref<1x16x16x4xf32, #tpu.memory_space<vmem>>, vector<1x16x16x4xf32>
    %320 = vector.shape_cast %319 : vector<1x16x16x4xf32> to vector<16x16x4xf32>
    %321 = vector.shape_cast %318 : vector<16x16x4xf32> to vector<1x16x16x4xf32>
    tpu.vector_store %arg5[%c0_213, %c0_214, %c0_215, %c0_216], %321 {strides = array<i32>} : memref<1x16x16x4xf32, #tpu.memory_space<vmem>>, vector<1x16x16x4xf32>,
    return
  }
  func.func @transform_0(%arg0: i32) -> (i32, i32, i32, i32) {
    %c0_i32 = arith.constant 0 : i32
    %c0_i32_0 = arith.constant 0 : i32
    %c0_i32_1 = arith.constant 0 : i32
    %c0_i32_2 = arith.constant 0 : i32
    return %arg0, %c0_i32, %c0_i32_0, %c0_i32_1 : i32, i32, i32, i32
  }
  func.func @transform_1(%arg0: i32) -> (i32, i32) {
    %c0_i32 = arith.constant 0 : i32
    %c0_i32_0 = arith.constant 0 : i32
    %c0_i32_1 = arith.constant 0 : i32
    return %c0_i32, %c0_i32_0 : i32, i32
  }
  func.func @transform_2(%arg0: i32) -> (i32, i32) {
    %c0_i32 = arith.constant 0 : i32
    %c0_i32_0 = arith.constant 0 : i32
    %c0_i32_1 = arith.constant 0 : i32
    return %c0_i32, %c0_i32_0 : i32, i32
  }
  func.func @transform_3(%arg0: i32) -> (i32, i32) {
    %c0_i32 = arith.constant 0 : i32
    %c0_i32_0 = arith.constant 0 : i32
    %c0_i32_1 = arith.constant 0 : i32
    return %c0_i32, %c0_i32_0 : i32, i32
  }
  func.func @transform_4(%arg0: i32) -> (i32, i32, i32, i32) {
    %c0_i32 = arith.constant 0 : i32
    %c0_i32_0 = arith.constant 0 : i32
    %c0_i32_1 = arith.constant 0 : i32
    %c0_i32_2 = arith.constant 0 : i32
    return %arg0, %c0_i32, %c0_i32_0, %c0_i32_1 : i32, i32, i32, i32
  }
}

</mosaic_0001>

<llo_original>
// kernel: tpu_custom_call.1
$region0: #{tpu_custom_call.1}
  #allocation0 [shape = 'u32[]', space=smem, size = 0x4, offset = 0x4, fixed_abs, tag = 'smem constant byte address 0x4 - core index']
  #allocation1 [shape = 'u32[144,128]{1,0:T(1,128)}', space=vmem, size = 0x12000, scoped, tag = 'internal scratch']
  #allocation2 [shape = 'f32[22,22,8]{2,1,0:T(8,128)}', space=vmem, size = 0x42000, scoped, tag = 'scratch operand']
  %s0 = inlined_call_operand.vmem [shape: f32[2,16,16,4], index: 0, kind: input, shape index: {}]
  %s1 = inlined_call_operand.vmem [shape: bf16[4,8], index: 1, kind: input, shape index: {}]
  %s2 = inlined_call_operand.vmem [shape: f32[49,8], index: 2, kind: input, shape index: {}]
  %s3 = inlined_call_operand.vmem [shape: bf16[8,4], index: 3, kind: input, shape index: {}]
  %s4 = inlined_call_operand.vmem [shape: f32[2,16,16,4], index: 4, kind: output, shape index: {}]
  %s5 = sld [smem:[#allocation0]]
  $region53: #{tpu_custom_call.1} parent=0
    _
  %s7 = ssub.s32 1, %s5
  %s8 = scalar_select 0, %s7, %s5
  loop: start=0, step=1, limit=4
  $region2: #{tpu_custom_call.1} parent=0 // loop_pre_header
    _
  $region3: #{tpu_custom_call.1} parent=0 // loop_header
    %s10 = sphi 0, %s14
    %p11 = scmp.ge.s32.totalorder %s10, 4
    %s20 = sphi 0, %s22
    %s23 = sphi 0, %s20
    %s24 = sphi 0, %s23
    %s40 = sphi 0, %s24
    %s44 = sphi 0, %s44
    %s46 = sphi 0, %s44
    %s47 = sphi 0, %s46
    %s61 = sphi 0, %s47
    %s65 = sphi 0, %s65
    %s67 = sphi 0, %s65
    %s68 = sphi 0, %s67
    %s82 = sphi 0, %s68
    %s86 = sphi 0, %s86
    %s88 = sphi 0, %s86
    %s89 = sphi 0, %s88
    %s103 = sphi 0, %s89
    %s109 = sphi 0, %s111
    %s112 = sphi 0, %s109
    %s113 = sphi 0, %s112
    %s129 = sphi 0, %s113
  $region4: #{tpu_custom_call.1} parent=0 // loop_header_branch
    %13 = sbr.rel (%p11) target = $region8
  $region5: #{tpu_custom_call.1} parent=0 // loop_body
    %s15 = ssub.s32 %s10, 1
    %s16 = ssub.s32 %s10, 2
    %s17 = sadd.s32 %s10, 1
    %s18 = ssub.s32 %s10, %s17
    %p19 = scmp.eq.s32.totalorder %s18, 0
    %s21 = sadd.s32 %s20, 1
    %s22 = scalar_select %p19, %s20, %s21
    %p25 = pneg %p19
    %p26 = scmp.eq.s32.totalorder %s10, 1
    %p27 = por %p25, %p26
    %p28 = scmp.ne.s32.totalorder %s20, %s23
    %p29 = scmp.eq.s32.totalorder %s10, 0
    %p30 = por %p28, %p29
    %p31 = scmp.ne.s32.totalorder %s20, %s23
    %p32 = scmp.eq.s32.totalorder %s15, 1
    %p33 = por %p31, %p32
    %p34 = scmp.ne.s32.totalorder %s23, %s24
    %p35 = scmp.eq.s32.totalorder %s15, 0
    %p36 = por %p34, %p35
    %p37 = scmp.ne.s32.totalorder %s23, %s24
    %p38 = scmp.eq.s32.totalorder %s16, 1
    %p39 = por %p37, %p38
    %p41 = scmp.ne.s32.totalorder %s24, %s40
    %p42 = scmp.eq.s32.totalorder %s16, 0
    %p43 = por %p41, %p42
    %s45 = sadd.s32 %s44, 1
    %p48 = scmp.eq.s32.totalorder %s10, 1
    %p49 = scmp.ne.s32.totalorder %s44, %s46
    %p50 = scmp.eq.s32.totalorder %s10, 0
    %p51 = por %p49, %p50
    %p52 = scmp.ne.s32.totalorder %s44, %s46
    %p53 = scmp.eq.s32.totalorder %s15, 1
    %p54 = por %p52, %p53
    %p55 = scmp.ne.s32.totalorder %s46, %s47
    %p56 = scmp.eq.s32.totalorder %s15, 0
    %p57 = por %p55, %p56
    %p58 = scmp.ne.s32.totalorder %s46, %s47
    %p59 = scmp.eq.s32.totalorder %s16, 1
    %p60 = por %p58, %p59
    %p62 = scmp.ne.s32.totalorder %s47, %s61
    %p63 = scmp.eq.s32.totalorder %s16, 0
    %p64 = por %p62, %p63
    %s66 = sadd.s32 %s65, 1
    %p69 = scmp.eq.s32.totalorder %s10, 1
    %p70 = scmp.ne.s32.totalorder %s65, %s67
    %p71 = scmp.eq.s32.totalorder %s10, 0
    %p72 = por %p70, %p71
    %p73 = scmp.ne.s32.totalorder %s65, %s67
    %p74 = scmp.eq.s32.totalorder %s15, 1
    %p75 = por %p73, %p74
    %p76 = scmp.ne.s32.totalorder %s67, %s68
    %p77 = scmp.eq.s32.totalorder %s15, 0
    %p78 = por %p76, %p77
    %p79 = scmp.ne.s32.totalorder %s67, %s68
    %p80 = scmp.eq.s32.totalorder %s16, 1
    %p81 = por %p79, %p80
    %p83 = scmp.ne.s32.totalorder %s68, %s82
    %p84 = scmp.eq.s32.totalorder %s16, 0
    %p85 = por %p83, %p84
    %s87 = sadd.s32 %s86, 1
    %p90 = scmp.eq.s32.totalorder %s10, 1
    %p91 = scmp.ne.s32.totalorder %s86, %s88
    %p92 = scmp.eq.s32.totalorder %s10, 0
    %p93 = por %p91, %p92
    %p94 = scmp.ne.s32.totalorder %s86, %s88
    %p95 = scmp.eq.s32.totalorder %s15, 1
    %p96 = por %p94, %p95
    %p97 = scmp.ne.s32.totalorder %s88, %s89
    %p98 = scmp.eq.s32.totalorder %s15, 0
    %p99 = por %p97, %p98
    %p100 = scmp.ne.s32.totalorder %s88, %s89
    %p101 = scmp.eq.s32.totalorder %s16, 1
    %p102 = por %p100, %p101
    %p104 = scmp.ne.s32.totalorder %s89, %s103
    %p105 = scmp.eq.s32.totalorder %s16, 0
    %p106 = por %p104, %p105
    %s107 = ssub.s32 %s10, %s17
    %p108 = scmp.eq.s32.totalorder %s107, 0
    %s110 = sadd.s32 %s109, 1
    %s111 = scalar_select %p108, %s109, %s110
    %p114 = pneg %p108
    %p115 = scmp.eq.s32.totalorder %s10, 1
    %p116 = por %p114, %p115
    %p117 = scmp.ne.s32.totalorder %s109, %s112
    %p118 = scmp.eq.s32.totalorder %s10, 0
    %p119 = por %p117, %p118
    %p120 = scmp.ne.s32.totalorder %s109, %s112
    %p121 = scmp.eq.s32.totalorder %s15, 1
    %p122 = por %p120, %p121
    %p123 = scmp.ne.s32.totalorder %s112, %s113
    %p124 = scmp.eq.s32.totalorder %s15, 0
    %p125 = por %p123, %p124
    %p126 = scmp.ne.s32.totalorder %s112, %s113
    %p127 = scmp.eq.s32.totalorder %s16, 1
    %p128 = por %p126, %p127
    %p130 = scmp.ne.s32.totalorder %s113, %s129
    %p131 = scmp.eq.s32.totalorder %s16, 0
    %p132 = por %p130, %p131
    %p133 = scmp.le.s32.totalorder 1, %s10
    %p134 = scmp.lt.s32.totalorder %s10, 3
    %p135 = pnand %p133, %p134
    %p136 = pneg %p135
    // Predicated region
    $region9: #{tpu_custom_call.1} parent=5 // pred_check
      _
    $region10: #{tpu_custom_call.1} parent=5 // pred_check_branch
      %138 = sbr.rel (%p135) target = $region12
    $region11: #{tpu_custom_call.1} parent=5 // pred_region
      %s139 = ssub.s32 %s10, 1
      // Predicated region
      $region13: #{tpu_custom_call.1} parent=11 // pred_check
        %p140 = pneg %p57
      $region14: #{tpu_custom_call.1} parent=11 // pred_check_branch
        %142 = sbr.rel (%p140) target = $region16
      $region15: #{tpu_custom_call.1} parent=11 // pred_region
        _
      $region16: #{tpu_custom_call.1} parent=11 // pred_fallthru
        _
      // Predicated region
      $region17: #{tpu_custom_call.1} parent=11 // pred_check
        %p143 = pneg %p78
      $region18: #{tpu_custom_call.1} parent=11 // pred_check_branch
        %145 = sbr.rel (%p143) target = $region20
      $region19: #{tpu_custom_call.1} parent=11 // pred_region
        _
      $region20: #{tpu_custom_call.1} parent=11 // pred_fallthru
        _
      // Predicated region
      $region21: #{tpu_custom_call.1} parent=11 // pred_check
        %p146 = pneg %p99
      $region22: #{tpu_custom_call.1} parent=11 // pred_check_branch
        %148 = sbr.rel (%p146) target = $region24
      $region23: #{tpu_custom_call.1} parent=11 // pred_region
        _
      $region24: #{tpu_custom_call.1} parent=11 // pred_fallthru
        _
    $region12: #{tpu_custom_call.1} parent=5 // pred_fallthru
      _
    %p149 = scmp.lt.s32.totalorder %s10, 2
    // Predicated region
    $region25: #{tpu_custom_call.1} parent=5 // pred_check
      %p150 = pneg %p149
    $region26: #{tpu_custom_call.1} parent=5 // pred_check_branch
      %152 = sbr.rel (%p150) target = $region28
    $region27: #{tpu_custom_call.1} parent=5 // pred_region
      // Predicated region
      $region29: #{tpu_custom_call.1} parent=27 // pred_check
        %p153 = pneg %p30
      $region30: #{tpu_custom_call.1} parent=27 // pred_check_branch
        %155 = sbr.rel (%p153) target = $region32
      $region31: #{tpu_custom_call.1} parent=27 // pred_region
        %p156 = scmp.lt.s32.totalorder %s10, 1
        %s157 = scalar_select %p156, %s10, 1
        %s158 = smul.addr %s157, 32
        %s159 = smul.addr %s158, 8
        %s160 = scalar_lea.vmem %s0, %s159
      $region32: #{tpu_custom_call.1} parent=27 // pred_fallthru
        _
    $region28: #{tpu_custom_call.1} parent=5 // pred_fallthru
      _
    %p161 = scmp.le.s32.totalorder 1, %s10
    %p162 = scmp.lt.s32.totalorder %s10, 3
    %p163 = pnand %p161, %p162
    %p164 = pneg %p163
    // Predicated region
    $region33: #{tpu_custom_call.1} parent=5 // pred_check
      _
    $region34: #{tpu_custom_call.1} parent=5 // pred_check_branch
      %166 = sbr.rel (%p163) target = $region36
    $region35: #{tpu_custom_call.1} parent=5 // pred_region
      %s167 = ssub.s32 %s10, 1
      %p168 = scmp.lt.s32.totalorder %s15, 1
      %s169 = scalar_select %p168, %s15, 1
      %s170 = smul.addr %s169, 32
      %s171 = smul.addr %s170, 8
      %s172 = scalar_lea.vmem %s0, %s171
      %p173 = pneg %p36
      %p174 = pneg %p33
      %p175 = pneg %p57
      %p176 = pneg %p54
      %p177 = pneg %p78
      %p178 = pneg %p75
      %p179 = pneg %p99
      %p180 = pneg %p96
      %p181 = pneg %p125
      %p182 = pneg %p122
      %p183 = scmp.lt.s32.totalorder %s15, 1
      %s184 = scalar_select %p183, %s15, 1
      %s185 = smul.addr %s184, 32
      %s186 = smul.addr %s185, 8
      %s187 = scalar_lea.vmem %s4, %s186
      %p188 = scmp.lt.s32.totalorder %s15, 1
      %s189 = scalar_select %p188, %s15, 1
      %s190 = smul.addr %s189, 32
      %s191 = smul.addr %s190, 8
      %s192 = scalar_lea.vmem %s0, %s191
      %p193 = scmp.lt.s32.totalorder %s15, 1
      %s194 = scalar_select %p193, %s15, 1
      %s195 = smul.addr %s194, 32
      %s196 = smul.addr %s195, 8
      %s197 = scalar_lea.vmem %s4, %s196
      %p199 = scmp.eq.s32.totalorder %s15, 0
      // Predicated region
      $region37: #{tpu_custom_call.1} parent=35 // pred_check
        %p200 = pneg %p199
      $region38: #{tpu_custom_call.1} parent=35 // pred_check_branch
        %202 = sbr.rel (%p200) target = $region40
      $region39: #{tpu_custom_call.1} parent=35 // pred_region
        %vm203 = vcmask 64512
        %204 = vst.msk [vmem:[#allocation2] sm:$0xff] %vm203, 0.0
        %205 = vst.msk [vmem:[#allocation2 + $0x8] sm:$0xff] %vm203, 0.0
        %vm206 = vcmask 62464
        %207 = vst.msk [vmem:[#allocation2 + $0x10] sm:$0x3f] %vm206, 0.0
        %208 = vst.msk [vmem:[#allocation2 + $0x18] sm:$0xff] %vm203, 0.0
        %209 = vst.msk [vmem:[#allocation2 + $0x20] sm:$0xff] %vm203, 0.0
        %210 = vst.msk [vmem:[#allocation2 + $0x28] sm:$0x3f] %vm206, 0.0
        %211 = vst.msk [vmem:[#allocation2 + $0x30] sm:$0xff] %vm203, 0.0
        %212 = vst.msk [vmem:[#allocation2 + $0x38] sm:$0xff] %vm203, 0.0
        %213 = vst.msk [vmem:[#allocation2 + $0x40] sm:$0x3f] %vm206, 0.0
        %214 = vst.msk [vmem:[#allocation2 + $0x48] sm:$0xff] %vm203, 0.0
        %215 = vst.msk [vmem:[#allocation2 + $0x50] sm:$0xff] %vm203, 0.0
        %216 = vst.msk [vmem:[#allocation2 + $0x58] sm:$0x3f] %vm206, 0.0
        %217 = vst.msk [vmem:[#allocation2 + $0x60] sm:$0xff] %vm203, 0.0
        %218 = vst.msk [vmem:[#allocation2 + $0x68] sm:$0xff] %vm203, 0.0
        %219 = vst.msk [vmem:[#allocation2 + $0x70] sm:$0x3f] %vm206, 0.0
        %220 = vst.msk [vmem:[#allocation2 + $0x78] sm:$0xff] %vm203, 0.0
        %221 = vst.msk [vmem:[#allocation2 + $0x80] sm:$0xff] %vm203, 0.0
        %222 = vst.msk [vmem:[#allocation2 + $0x88] sm:$0x3f] %vm206, 0.0
        %223 = vst.msk [vmem:[#allocation2 + $0x90] sm:$0xff] %vm203, 0.0
        %224 = vst.msk [vmem:[#allocation2 + $0x98] sm:$0xff] %vm203, 0.0
        %225 = vst.msk [vmem:[#allocation2 + $0xa0] sm:$0x3f] %vm206, 0.0
        %226 = vst.msk [vmem:[#allocation2 + $0xa8] sm:$0xff] %vm203, 0.0
        %227 = vst.msk [vmem:[#allocation2 + $0xb0] sm:$0xff] %vm203, 0.0
        %228 = vst.msk [vmem:[#allocation2 + $0xb8] sm:$0x3f] %vm206, 0.0
        %229 = vst.msk [vmem:[#allocation2 + $0xc0] sm:$0xff] %vm203, 0.0
        %230 = vst.msk [vmem:[#allocation2 + $0xc8] sm:$0xff] %vm203, 0.0
        %231 = vst.msk [vmem:[#allocation2 + $0xd0] sm:$0x3f] %vm206, 0.0
        %232 = vst.msk [vmem:[#allocation2 + $0xd8] sm:$0xff] %vm203, 0.0
        %233 = vst.msk [vmem:[#allocation2 + $0xe0] sm:$0xff] %vm203, 0.0
        %234 = vst.msk [vmem:[#allocation2 + $0xe8] sm:$0x3f] %vm206, 0.0
        %235 = vst.msk [vmem:[#allocation2 + $0xf0] sm:$0xff] %vm203, 0.0
        %236 = vst.msk [vmem:[#allocation2 + $0xf8] sm:$0xff] %vm203, 0.0
        %237 = vst.msk [vmem:[#allocation2 + $0x100] sm:$0x3f] %vm206, 0.0
        %238 = vst.msk [vmem:[#allocation2 + $0x108] sm:$0xff] %vm203, 0.0
        %239 = vst.msk [vmem:[#allocation2 + $0x110] sm:$0xff] %vm203, 0.0
        %240 = vst.msk [vmem:[#allocation2 + $0x118] sm:$0x3f] %vm206, 0.0
        %241 = vst.msk [vmem:[#allocation2 + $0x120] sm:$0xff] %vm203, 0.0
        %242 = vst.msk [vmem:[#allocation2 + $0x128] sm:$0xff] %vm203, 0.0
        %243 = vst.msk [vmem:[#allocation2 + $0x130] sm:$0x3f] %vm206, 0.0
        %244 = vst.msk [vmem:[#allocation2 + $0x138] sm:$0xff] %vm203, 0.0
        %245 = vst.msk [vmem:[#allocation2 + $0x140] sm:$0xff] %vm203, 0.0
        %246 = vst.msk [vmem:[#allocation2 + $0x148] sm:$0x3f] %vm206, 0.0
        %247 = vst.msk [vmem:[#allocation2 + $0x150] sm:$0xff] %vm203, 0.0
        %248 = vst.msk [vmem:[#allocation2 + $0x158] sm:$0xff] %vm203, 0.0
        %249 = vst.msk [vmem:[#allocation2 + $0x160] sm:$0x3f] %vm206, 0.0
        %250 = vst.msk [vmem:[#allocation2 + $0x168] sm:$0xff] %vm203, 0.0
        %251 = vst.msk [vmem:[#allocation2 + $0x170] sm:$0xff] %vm203, 0.0
        %252 = vst.msk [vmem:[#allocation2 + $0x178] sm:$0x3f] %vm206, 0.0
        %253 = vst.msk [vmem:[#allocation2 + $0x180] sm:$0xff] %vm203, 0.0
        %254 = vst.msk [vmem:[#allocation2 + $0x188] sm:$0xff] %vm203, 0.0
        %255 = vst.msk [vmem:[#allocation2 + $0x190] sm:$0x3f] %vm206, 0.0
        %256 = vst.msk [vmem:[#allocation2 + $0x198] sm:$0xff] %vm203, 0.0
        %257 = vst.msk [vmem:[#allocation2 + $0x1a0] sm:$0xff] %vm203, 0.0
        %258 = vst.msk [vmem:[#allocation2 + $0x1a8] sm:$0x3f] %vm206, 0.0
        %259 = vst.msk [vmem:[#allocation2 + $0x1b0] sm:$0xff] %vm203, 0.0
        %260 = vst.msk [vmem:[#allocation2 + $0x1b8] sm:$0xff] %vm203, 0.0
        %261 = vst.msk [vmem:[#allocation2 + $0x1c0] sm:$0x3f] %vm206, 0.0
        %262 = vst.msk [vmem:[#allocation2 + $0x1c8] sm:$0xff] %vm203, 0.0
        %263 = vst.msk [vmem:[#allocation2 + $0x1d0] sm:$0xff] %vm203, 0.0
        %264 = vst.msk [vmem:[#allocation2 + $0x1d8] sm:$0x3f] %vm206, 0.0
        %265 = vst.msk [vmem:[#allocation2 + $0x1e0] sm:$0xff] %vm203, 0.0
        %266 = vst.msk [vmem:[#allocation2 + $0x1e8] sm:$0xff] %vm203, 0.0
        %267 = vst.msk [vmem:[#allocation2 + $0x1f0] sm:$0x3f] %vm206, 0.0
        %268 = vst.msk [vmem:[#allocation2 + $0x1f8] sm:$0xff] %vm203, 0.0
        %269 = vst.msk [vmem:[#allocation2 + $0x200] sm:$0xff] %vm203, 0.0
        %270 = vst.msk [vmem:[#allocation2 + $0x208] sm:$0x3f] %vm206, 0.0
      $region40: #{tpu_custom_call.1} parent=35 // pred_fallthru
        _
      %v271 = vld [vmem:[%s192] sm:$0xff]
      %v272 = vld [vmem:[%s192 + $0x8] sm:$0xff]
      %v273 = vld [vmem:[%s192 + $0x10] sm:$0xff]
      %v274 = vld [vmem:[%s192 + $0x18] sm:$0xff]
      %v275 = vld [vmem:[%s192 + $0x20] sm:$0xff]
      %v276 = vld [vmem:[%s192 + $0x28] sm:$0xff]
      %v277 = vld [vmem:[%s192 + $0x30] sm:$0xff]
      %v278 = vld [vmem:[%s192 + $0x38] sm:$0xff]
      %v279 = vld [vmem:[%s192 + $0x40] sm:$0xff]
      %v280 = vld [vmem:[%s192 + $0x48] sm:$0xff]
      %v281 = vld [vmem:[%s192 + $0x50] sm:$0xff]
      %v282 = vld [vmem:[%s192 + $0x58] sm:$0xff]
      %v283 = vld [vmem:[%s192 + $0x60] sm:$0xff]
      %v284 = vld [vmem:[%s192 + $0x68] sm:$0xff]
      %v285 = vld [vmem:[%s192 + $0x70] sm:$0xff]
      %v286 = vld [vmem:[%s192 + $0x78] sm:$0xff]
      %v287 = vld [vmem:[%s192 + $0x80] sm:$0xff]
      %v288 = vld [vmem:[%s192 + $0x88] sm:$0xff]
      %v289 = vld [vmem:[%s192 + $0x90] sm:$0xff]
      %v290 = vld [vmem:[%s192 + $0x98] sm:$0xff]
      %v291 = vld [vmem:[%s192 + $0xa0] sm:$0xff]
      %v292 = vld [vmem:[%s192 + $0xa8] sm:$0xff]
      %v293 = vld [vmem:[%s192 + $0xb0] sm:$0xff]
      %v294 = vld [vmem:[%s192 + $0xb8] sm:$0xff]
      %v295 = vld [vmem:[%s192 + $0xc0] sm:$0xff]
      %v296 = vld [vmem:[%s192 + $0xc8] sm:$0xff]
      %v297 = vld [vmem:[%s192 + $0xd0] sm:$0xff]
      %v298 = vld [vmem:[%s192 + $0xd8] sm:$0xff]
      %v299 = vld [vmem:[%s192 + $0xe0] sm:$0xff]
      %v300 = vld [vmem:[%s192 + $0xe8] sm:$0xff]
      %v301 = vld [vmem:[%s192 + $0xf0] sm:$0xff]
      %v302 = vld [vmem:[%s192 + $0xf8] sm:$0xff]
      %v303 = vpack.c.bf16 %v272, %v271
      %v304 = vpack.c.bf16 %v274, %v273
      %v305 = vpack.c.bf16 %v276, %v275
      %v306 = vpack.c.bf16 %v278, %v277
      %v307 = vpack.c.bf16 %v280, %v279
      %v308 = vpack.c.bf16 %v282, %v281
      %v309 = vpack.c.bf16 %v284, %v283
      %v310 = vpack.c.bf16 %v286, %v285
      %v311 = vpack.c.bf16 %v288, %v287
      %v312 = vpack.c.bf16 %v290, %v289
      %v313 = vpack.c.bf16 %v292, %v291
      %v314 = vpack.c.bf16 %v294, %v293
      %v315 = vpack.c.bf16 %v296, %v295
      %v316 = vpack.c.bf16 %v298, %v297
      %v317 = vpack.c.bf16 %v300, %v299
      %v318 = vpack.c.bf16 %v302, %v301
      %v319 = vld [vmem:[%s1] sm:$0x3]
      %vm320 = vcmask 31744
      %v322 = vsel %vm320, %v303, 0
      %v325 = vsel %vm320, %v304, 0
      %v328 = vsel %vm320, %v305, 0
      %v331 = vsel %vm320, %v306, 0
      %v334 = vsel %vm320, %v307, 0
      %v337 = vsel %vm320, %v308, 0
      %v340 = vsel %vm320, %v309, 0
      %v343 = vsel %vm320, %v310, 0
      %v346 = vsel %vm320, %v311, 0
      %v349 = vsel %vm320, %v312, 0
      %v352 = vsel %vm320, %v313, 0
      %v355 = vsel %vm320, %v314, 0
      %v358 = vsel %vm320, %v315, 0
      %v361 = vsel %vm320, %v316, 0
      %v364 = vsel %vm320, %v317, 0
      %v367 = vsel %vm320, %v318, 0
      %vm369 = vcmask 1041408
      %v371 = vsel %vm369, %v319, 0
      %373 = vmatprep.subr.bf16.mxu0 0
      %374 = vmatpush1.bf16.msra.mxu0 0
      %375 = vmatprep.subr.bf16.mxu0 0
      %376 = vmatpush1.bf16.msra.mxu0 0
      %377 = vmatprep.subr.bf16.mxu0 0
      %378 = vmatpush1.bf16.msra.mxu0 0
      %379 = vmatprep.subr.bf16.mxu0 0
      %380 = vmatpush1.bf16.msra.mxu0 0
      %381 = vmatprep.subr.bf16.mxu0 0
      %382 = vmatpush1.bf16.msra.mxu0 0
      %383 = vmatprep.subr.bf16.mxu0 0
      %384 = vmatpush1.bf16.msra.mxu0 0
      %385 = vmatprep.subr.bf16.mxu0 0
      %386 = vmatpush1.bf16.msra.mxu0 0
      %387 = vmatprep.subr.bf16.mxu0 0
      %388 = vmatpush1.bf16.msra.mxu0 %v371
      %389 = vmatprep.subr.bf16.mxu0 0
      %390 = vmatpush2.bf16.msra.mxu0 0
      %391 = vmatprep.subr.bf16.mxu0 0
      %392 = vmatpush2.bf16.msra.mxu0 0
      %393 = vmatprep.subr.bf16.mxu0 0
      %394 = vmatpush2.bf16.msra.mxu0 0
      %395 = vmatprep.subr.bf16.mxu0 0
      %396 = vmatpush2.bf16.msra.mxu0 0
      %397 = vmatprep.subr.bf16.mxu0 0
      %398 = vmatpush2.bf16.msra.mxu0 0
      %399 = vmatprep.subr.bf16.mxu0 0
      %400 = vmatpush2.bf16.msra.mxu0 0
      %401 = vmatprep.subr.bf16.mxu0 0
      %402 = vmatpush2.bf16.msra.mxu0 0
      %403 = vmatprep.subr.bf16.mxu0 0
      %404 = vmatpush2.bf16.msra.mxu0 0
      %405 = vmatprep.mubr.bf16.mxu0 0
      %406 = vmatmul.mubr.bf16.gmra.mxu0 %v322
      %v407 = vpop.f32.mrf.mxu0
      %v408 = vadd.f32 0.0, %v407
      %v409 = vpop.f32.mrf.mxu0
      %v410 = vpop.f32.mrf.mxu0
      %v411 = vadd.f32 0.0, %v410
      %v412 = vpop.f32.mrf.mxu0
      %413 = vmatprep.mubr.bf16.mxu0 0
      %414 = vmatmul.mubr.bf16.gmra.mxu0 %v325
      %v415 = vpop.f32.mrf.mxu0
      %v416 = vadd.f32 0.0, %v415
      %v417 = vpop.f32.mrf.mxu0
      %v418 = vpop.f32.mrf.mxu0
      %v419 = vadd.f32 0.0, %v418
      %v420 = vpop.f32.mrf.mxu0
      %421 = vmatprep.mubr.bf16.mxu0 0
      %422 = vmatmul.mubr.bf16.gmra.mxu0 %v328
      %v423 = vpop.f32.mrf.mxu0
      %v424 = vadd.f32 0.0, %v423
      %v425 = vpop.f32.mrf.mxu0
      %v426 = vpop.f32.mrf.mxu0
      %v427 = vadd.f32 0.0, %v426
      %v428 = vpop.f32.mrf.mxu0
      %429 = vmatprep.mubr.bf16.mxu0 0
      %430 = vmatmul.mubr.bf16.gmra.mxu0 %v331
      %v431 = vpop.f32.mrf.mxu0
      %v432 = vadd.f32 0.0, %v431
      %v433 = vpop.f32.mrf.mxu0
      %v434 = vpop.f32.mrf.mxu0
      %v435 = vadd.f32 0.0, %v434
      %v436 = vpop.f32.mrf.mxu0
      %437 = vmatprep.mubr.bf16.mxu0 0
      %438 = vmatmul.mubr.bf16.gmra.mxu0 %v334
      %v439 = vpop.f32.mrf.mxu0
      %v440 = vadd.f32 0.0, %v439
      %v441 = vpop.f32.mrf.mxu0
      %v442 = vpop.f32.mrf.mxu0
      %v443 = vadd.f32 0.0, %v442
      %v444 = vpop.f32.mrf.mxu0
      %445 = vmatprep.mubr.bf16.mxu0 0
      %446 = vmatmul.mubr.bf16.gmra.mxu0 %v337
      %v447 = vpop.f32.mrf.mxu0
      %v448 = vadd.f32 0.0, %v447
      %v449 = vpop.f32.mrf.mxu0
      %v450 = vpop.f32.mrf.mxu0
      %v451 = vadd.f32 0.0, %v450
      %v452 = vpop.f32.mrf.mxu0
      %453 = vmatprep.mubr.bf16.mxu0 0
      %454 = vmatmul.mubr.bf16.gmra.mxu0 %v340
      %v455 = vpop.f32.mrf.mxu0
      %v456 = vadd.f32 0.0, %v455
      %v457 = vpop.f32.mrf.mxu0
      %v458 = vpop.f32.mrf.mxu0
      %v459 = vadd.f32 0.0, %v458
      %v460 = vpop.f32.mrf.mxu0
      %461 = vmatprep.mubr.bf16.mxu0 0
      %462 = vmatmul.mubr.bf16.gmra.mxu0 %v343
      %v463 = vpop.f32.mrf.mxu0
      %v464 = vadd.f32 0.0, %v463
      %v465 = vpop.f32.mrf.mxu0
      %v466 = vpop.f32.mrf.mxu0
      %v467 = vadd.f32 0.0, %v466
      %v468 = vpop.f32.mrf.mxu0
      %469 = vmatprep.mubr.bf16.mxu0 0
      %470 = vmatmul.mubr.bf16.gmra.mxu0 %v346
      %v471 = vpop.f32.mrf.mxu0
      %v472 = vadd.f32 0.0, %v471
      %v473 = vpop.f32.mrf.mxu0
      %v474 = vpop.f32.mrf.mxu0
      %v475 = vadd.f32 0.0, %v474
      %v476 = vpop.f32.mrf.mxu0
      %477 = vmatprep.mubr.bf16.mxu0 0
      %478 = vmatmul.mubr.bf16.gmra.mxu0 %v349
      %v479 = vpop.f32.mrf.mxu0
      %v480 = vadd.f32 0.0, %v479
      %v481 = vpop.f32.mrf.mxu0
      %v482 = vpop.f32.mrf.mxu0
      %v483 = vadd.f32 0.0, %v482
      %v484 = vpop.f32.mrf.mxu0
      %485 = vmatprep.mubr.bf16.mxu0 0
      %486 = vmatmul.mubr.bf16.gmra.mxu0 %v352
      %v487 = vpop.f32.mrf.mxu0
      %v488 = vadd.f32 0.0, %v487
      %v489 = vpop.f32.mrf.mxu0
      %v490 = vpop.f32.mrf.mxu0
      %v491 = vadd.f32 0.0, %v490
      %v492 = vpop.f32.mrf.mxu0
      %493 = vmatprep.mubr.bf16.mxu0 0
      %494 = vmatmul.mubr.bf16.gmra.mxu0 %v355
      %v495 = vpop.f32.mrf.mxu0
      %v496 = vadd.f32 0.0, %v495
      %v497 = vpop.f32.mrf.mxu0
      %v498 = vpop.f32.mrf.mxu0
      %v499 = vadd.f32 0.0, %v498
      %v500 = vpop.f32.mrf.mxu0
      %501 = vmatprep.mubr.bf16.mxu0 0
      %502 = vmatmul.mubr.bf16.gmra.mxu0 %v358
      %v503 = vpop.f32.mrf.mxu0
      %v504 = vadd.f32 0.0, %v503
      %v505 = vpop.f32.mrf.mxu0
      %v506 = vpop.f32.mrf.mxu0
      %v507 = vadd.f32 0.0, %v506
      %v508 = vpop.f32.mrf.mxu0
      %509 = vmatprep.mubr.bf16.mxu0 0
      %510 = vmatmul.mubr.bf16.gmra.mxu0 %v361
      %v511 = vpop.f32.mrf.mxu0
      %v512 = vadd.f32 0.0, %v511
      %v513 = vpop.f32.mrf.mxu0
      %v514 = vpop.f32.mrf.mxu0
      %v515 = vadd.f32 0.0, %v514
      %v516 = vpop.f32.mrf.mxu0
      %517 = vmatprep.mubr.bf16.mxu0 0
      %518 = vmatmul.mubr.bf16.gmra.mxu0 %v364
      %v519 = vpop.f32.mrf.mxu0
      %v520 = vadd.f32 0.0, %v519
      %v521 = vpop.f32.mrf.mxu0
      %v522 = vpop.f32.mrf.mxu0
      %v523 = vadd.f32 0.0, %v522
      %v524 = vpop.f32.mrf.mxu0
      %525 = vmatprep.mubr.bf16.mxu0 0
      %526 = vmatmul.mubr.bf16.gmra.mxu0 %v367
      %v527 = vpop.f32.mrf.mxu0
      %v528 = vadd.f32 0.0, %v527
      %v529 = vpop.f32.mrf.mxu0
      %v530 = vpop.f32.mrf.mxu0
      %v531 = vadd.f32 0.0, %v530
      %v532 = vpop.f32.mrf.mxu0
      %533 = vdwg.mxu0
      %v534 = vmul.f32 %v408, 0.5
      %v535 = vmul.f32 %v411, 0.5
      %v536 = vmul.f32 %v416, 0.5
      %v537 = vmul.f32 %v419, 0.5
      %v538 = vmul.f32 %v424, 0.5
      %v539 = vmul.f32 %v427, 0.5
      %v540 = vmul.f32 %v432, 0.5
      %v541 = vmul.f32 %v435, 0.5
      %v542 = vmul.f32 %v440, 0.5
      %v543 = vmul.f32 %v443, 0.5
      %v544 = vmul.f32 %v448, 0.5
      %v545 = vmul.f32 %v451, 0.5
      %v546 = vmul.f32 %v456, 0.5
      %v547 = vmul.f32 %v459, 0.5
      %v548 = vmul.f32 %v464, 0.5
      %v549 = vmul.f32 %v467, 0.5
      %v550 = vmul.f32 %v472, 0.5
      %v551 = vmul.f32 %v475, 0.5
      %v552 = vmul.f32 %v480, 0.5
      %v553 = vmul.f32 %v483, 0.5
      %v554 = vmul.f32 %v488, 0.5
      %v555 = vmul.f32 %v491, 0.5
      %v556 = vmul.f32 %v496, 0.5
      %v557 = vmul.f32 %v499, 0.5
      %v558 = vmul.f32 %v504, 0.5
      %v559 = vmul.f32 %v507, 0.5
      %v560 = vmul.f32 %v512, 0.5
      %v561 = vmul.f32 %v515, 0.5
      %v562 = vmul.f32 %v520, 0.5
      %v563 = vmul.f32 %v523, 0.5
      %v564 = vmul.f32 %v528, 0.5
      %v565 = vmul.f32 %v531, 0.5
      %v566 = vmul.f32 %v408, 0.70710677
      %v567 = vmul.f32 %v411, 0.70710677
      %v568 = vmul.f32 %v416, 0.70710677
      %v569 = vmul.f32 %v419, 0.70710677
      %v570 = vmul.f32 %v424, 0.70710677
      %v571 = vmul.f32 %v427, 0.70710677
      %v572 = vmul.f32 %v432, 0.70710677
      %v573 = vmul.f32 %v435, 0.70710677
      %v574 = vmul.f32 %v440, 0.70710677
      %v575 = vmul.f32 %v443, 0.70710677
      %v576 = vmul.f32 %v448, 0.70710677
      %v577 = vmul.f32 %v451, 0.70710677
      %v578 = vmul.f32 %v456, 0.70710677
      %v579 = vmul.f32 %v459, 0.70710677
      %v580 = vmul.f32 %v464, 0.70710677
      %v581 = vmul.f32 %v467, 0.70710677
      %v582 = vmul.f32 %v472, 0.70710677
      %v583 = vmul.f32 %v475, 0.70710677
      %v584 = vmul.f32 %v480, 0.70710677
      %v585 = vmul.f32 %v483, 0.70710677
      %v586 = vmul.f32 %v488, 0.70710677
      %v587 = vmul.f32 %v491, 0.70710677
      %v588 = vmul.f32 %v496, 0.70710677
      %v589 = vmul.f32 %v499, 0.70710677
      %v590 = vmul.f32 %v504, 0.70710677
      %v591 = vmul.f32 %v507, 0.70710677
      %v592 = vmul.f32 %v512, 0.70710677
      %v593 = vmul.f32 %v515, 0.70710677
      %v594 = vmul.f32 %v520, 0.70710677
      %v595 = vmul.f32 %v523, 0.70710677
      %v596 = vmul.f32 %v528, 0.70710677
      %v597 = vmul.f32 %v531, 0.70710677
      %v598 = verf.f32.pop %v566
      %v599 = verf.f32.pop %v567
      %v600 = verf.f32.pop %v568
      %v601 = verf.f32.pop %v569
      %v602 = verf.f32.pop %v570
      %v603 = verf.f32.pop %v571
      %v604 = verf.f32.pop %v572
      %v605 = verf.f32.pop %v573
      %v606 = verf.f32.pop %v574
      %v607 = verf.f32.pop %v575
      %v608 = verf.f32.pop %v576
      %v609 = verf.f32.pop %v577
      %v610 = verf.f32.pop %v578
      %v611 = verf.f32.pop %v579
      %v612 = verf.f32.pop %v580
      %v613 = verf.f32.pop %v581
      %v614 = verf.f32.pop %v582
      %v615 = verf.f32.pop %v583
      %v616 = verf.f32.pop %v584
      %v617 = verf.f32.pop %v585
      %v618 = verf.f32.pop %v586
      %v619 = verf.f32.pop %v587
      %v620 = verf.f32.pop %v588
      %v621 = verf.f32.pop %v589
      %v622 = verf.f32.pop %v590
      %v623 = verf.f32.pop %v591
      %v624 = verf.f32.pop %v592
      %v625 = verf.f32.pop %v593
      %v626 = verf.f32.pop %v594
      %v627 = verf.f32.pop %v595
      %v628 = verf.f32.pop %v596
      %v629 = verf.f32.pop %v597
      %v630 = vadd.f32 %v598, 1.0
      %v631 = vadd.f32 %v599, 1.0
      %v632 = vadd.f32 %v600, 1.0
      %v633 = vadd.f32 %v601, 1.0
      %v634 = vadd.f32 %v602, 1.0
      %v635 = vadd.f32 %v603, 1.0
      %v636 = vadd.f32 %v604, 1.0
      %v637 = vadd.f32 %v605, 1.0
      %v638 = vadd.f32 %v606, 1.0
      %v639 = vadd.f32 %v607, 1.0
      %v640 = vadd.f32 %v608, 1.0
      %v641 = vadd.f32 %v609, 1.0
      %v642 = vadd.f32 %v610, 1.0
      %v643 = vadd.f32 %v611, 1.0
      %v644 = vadd.f32 %v612, 1.0
      %v645 = vadd.f32 %v613, 1.0
      %v646 = vadd.f32 %v614, 1.0
      %v647 = vadd.f32 %v615, 1.0
      %v648 = vadd.f32 %v616, 1.0
      %v649 = vadd.f32 %v617, 1.0
      %v650 = vadd.f32 %v618, 1.0
      %v651 = vadd.f32 %v619, 1.0
      %v652 = vadd.f32 %v620, 1.0
      %v653 = vadd.f32 %v621, 1.0
      %v654 = vadd.f32 %v622, 1.0
      %v655 = vadd.f32 %v623, 1.0
      %v656 = vadd.f32 %v624, 1.0
      %v657 = vadd.f32 %v625, 1.0
      %v658 = vadd.f32 %v626, 1.0
      %v659 = vadd.f32 %v627, 1.0
      %v660 = vadd.f32 %v628, 1.0
      %v661 = vadd.f32 %v629, 1.0
      %v662 = vmul.f32 %v534, %v630
      %v663 = vmul.f32 %v535, %v631
      %v664 = vmul.f32 %v536, %v632
      %v665 = vmul.f32 %v537, %v633
      %v666 = vmul.f32 %v538, %v634
      %v667 = vmul.f32 %v539, %v635
      %v668 = vmul.f32 %v540, %v636
      %v669 = vmul.f32 %v541, %v637
      %v670 = vmul.f32 %v542, %v638
      %v671 = vmul.f32 %v543, %v639
      %v672 = vmul.f32 %v544, %v640
      %v673 = vmul.f32 %v545, %v641
      %v674 = vmul.f32 %v546, %v642
      %v675 = vmul.f32 %v547, %v643
      %v676 = vmul.f32 %v548, %v644
      %v677 = vmul.f32 %v549, %v645
      %v678 = vmul.f32 %v550, %v646
      %v679 = vmul.f32 %v551, %v647
      %v680 = vmul.f32 %v552, %v648
      %v681 = vmul.f32 %v553, %v649
      %v682 = vmul.f32 %v554, %v650
      %v683 = vmul.f32 %v555, %v651
      %v684 = vmul.f32 %v556, %v652
      %v685 = vmul.f32 %v557, %v653
      %v686 = vmul.f32 %v558, %v654
      %v687 = vmul.f32 %v559, %v655
      %v688 = vmul.f32 %v560, %v656
      %v689 = vmul.f32 %v561, %v657
      %v690 = vmul.f32 %v562, %v658
      %v691 = vmul.f32 %v563, %v659
      %v692 = vmul.f32 %v564, %v660
      %v693 = vmul.f32 %v565, %v661
      %s694 = scalar_lea.vmem [#allocation2], 72
      %vm695 = vcmask 64512
      %696 = vst.msk [vmem:[%s694 + $0x3] sm:$0xff] %vm695, %v662
      %697 = vst.msk [vmem:[%s694 + $0xb] sm:$0xff] %vm695, %v663
      %698 = vst.msk [vmem:[%s694 + $0x1b] sm:$0xff] %vm695, %v664
      %699 = vst.msk [vmem:[%s694 + $0x23] sm:$0xff] %vm695, %v665
      %700 = vst.msk [vmem:[%s694 + $0x33] sm:$0xff] %vm695, %v666
      %701 = vst.msk [vmem:[%s694 + $0x3b] sm:$0xff] %vm695, %v667
      %702 = vst.msk [vmem:[%s694 + $0x4b] sm:$0xff] %vm695, %v668
      %703 = vst.msk [vmem:[%s694 + $0x53] sm:$0xff] %vm695, %v669
      %704 = vst.msk [vmem:[%s694 + $0x63] sm:$0xff] %vm695, %v670
      %705 = vst.msk [vmem:[%s694 + $0x6b] sm:$0xff] %vm695, %v671
      %706 = vst.msk [vmem:[%s694 + $0x7b] sm:$0xff] %vm695, %v672
      %707 = vst.msk [vmem:[%s694 + $0x83] sm:$0xff] %vm695, %v673
      %708 = vst.msk [vmem:[%s694 + $0x93] sm:$0xff] %vm695, %v674
      %709 = vst.msk [vmem:[%s694 + $0x9b] sm:$0xff] %vm695, %v675
      %710 = vst.msk [vmem:[%s694 + $0xab] sm:$0xff] %vm695, %v676
      %711 = vst.msk [vmem:[%s694 + $0xb3] sm:$0xff] %vm695, %v677
      %712 = vst.msk [vmem:[%s694 + $0xc3] sm:$0xff] %vm695, %v678
      %713 = vst.msk [vmem:[%s694 + $0xcb] sm:$0xff] %vm695, %v679
      %714 = vst.msk [vmem:[%s694 + $0xdb] sm:$0xff] %vm695, %v680
      %715 = vst.msk [vmem:[%s694 + $0xe3] sm:$0xff] %vm695, %v681
      %716 = vst.msk [vmem:[%s694 + $0xf3] sm:$0xff] %vm695, %v682
      %717 = vst.msk [vmem:[%s694 + $0xfb] sm:$0xff] %vm695, %v683
      %718 = vst.msk [vmem:[%s694 + $0x10b] sm:$0xff] %vm695, %v684
      %719 = vst.msk [vmem:[%s694 + $0x113] sm:$0xff] %vm695, %v685
      %720 = vst.msk [vmem:[%s694 + $0x123] sm:$0xff] %vm695, %v686
      %721 = vst.msk [vmem:[%s694 + $0x12b] sm:$0xff] %vm695, %v687
      %722 = vst.msk [vmem:[%s694 + $0x13b] sm:$0xff] %vm695, %v688
      %723 = vst.msk [vmem:[%s694 + $0x143] sm:$0xff] %vm695, %v689
      %724 = vst.msk [vmem:[%s694 + $0x153] sm:$0xff] %vm695, %v690
      %725 = vst.msk [vmem:[%s694 + $0x15b] sm:$0xff] %vm695, %v691
      %726 = vst.msk [vmem:[%s694 + $0x16b] sm:$0xff] %vm695, %v692
      %727 = vst.msk [vmem:[%s694 + $0x173] sm:$0xff] %vm695, %v693
      %v728 = vld [vmem:[%s2] sm:$0x1]
      %v729 = vld [vmem:[#allocation2] sm:$0xff]
      %v730 = vld [vmem:[#allocation2 + $0x8] sm:$0xff]
      %v731 = vld [vmem:[#allocation2 + $0x18] sm:$0xff]
      %v732 = vld [vmem:[#allocation2 + $0x20] sm:$0xff]
      %v733 = vld [vmem:[#allocation2 + $0x30] sm:$0xff]
      %v734 = vld [vmem:[#allocation2 + $0x38] sm:$0xff]
      %v735 = vld [vmem:[#allocation2 + $0x48] sm:$0xff]
      %v736 = vld [vmem:[#allocation2 + $0x50] sm:$0xff]
      %v737 = vld [vmem:[#allocation2 + $0x60] sm:$0xff]
      %v738 = vld [vmem:[#allocation2 + $0x68] sm:$0xff]
      %v739 = vld [vmem:[#allocation2 + $0x78] sm:$0xff]
      %v740 = vld [vmem:[#allocation2 + $0x80] sm:$0xff]
      %v741 = vld [vmem:[#allocation2 + $0x90] sm:$0xff]
      %v742 = vld [vmem:[#allocation2 + $0x98] sm:$0xff]
      %v743 = vld [vmem:[#allocation2 + $0xa8] sm:$0xff]
      %v744 = vld [vmem:[#allocation2 + $0xb0] sm:$0xff]
      %v745 = vld [vmem:[#allocation2 + $0xc0] sm:$0xff]
      %v746 = vld [vmem:[#allocation2 + $0xc8] sm:$0xff]
      %v747 = vld [vmem:[#allocation2 + $0xd8] sm:$0xff]
      %v748 = vld [vmem:[#allocation2 + $0xe0] sm:$0xff]
      %v749 = vld [vmem:[#allocation2 + $0xf0] sm:$0xff]
      %v750 = vld [vmem:[#allocation2 + $0xf8] sm:$0xff]
      %v751 = vld [vmem:[#allocation2 + $0x108] sm:$0xff]
      %v752 = vld [vmem:[#allocation2 + $0x110] sm:$0xff]
      %v753 = vld [vmem:[#allocation2 + $0x120] sm:$0xff]
      %v754 = vld [vmem:[#allocation2 + $0x128] sm:$0xff]
      %v755 = vld [vmem:[#allocation2 + $0x138] sm:$0xff]
      %v756 = vld [vmem:[#allocation2 + $0x140] sm:$0xff]
      %v757 = vld [vmem:[#allocation2 + $0x150] sm:$0xff]
      %v758 = vld [vmem:[#allocation2 + $0x158] sm:$0xff]
      %v759 = vld [vmem:[#allocation2 + $0x168] sm:$0xff]
      %v760 = vld [vmem:[#allocation2 + $0x170] sm:$0xff]
      %v761 = vlaneseq
      %v762 = vshrl.u32 %v761, 7
      %v763 = vsub.s32 0, %v762
      %v764 = vrot.slane %v728, %v763
      %v765 = vmul.f32 %v729, %v764
      %v766 = vmul.f32 %v730, %v764
      %v767 = vmul.f32 %v731, %v764
      %v768 = vmul.f32 %v732, %v764
      %v769 = vmul.f32 %v733, %v764
      %v770 = vmul.f32 %v734, %v764
      %v771 = vmul.f32 %v735, %v764
      %v772 = vmul.f32 %v736, %v764
      %v773 = vmul.f32 %v737, %v764
      %v774 = vmul.f32 %v738, %v764
      %v775 = vmul.f32 %v739, %v764
      %v776 = vmul.f32 %v740, %v764
      %v777 = vmul.f32 %v741, %v764
      %v778 = vmul.f32 %v742, %v764
      %v779 = vmul.f32 %v743, %v764
      %v780 = vmul.f32 %v744, %v764
      %v781 = vmul.f32 %v745, %v764
      %v782 = vmul.f32 %v746, %v764
      %v783 = vmul.f32 %v747, %v764
      %v784 = vmul.f32 %v748, %v764
      %v785 = vmul.f32 %v749, %v764
      %v786 = vmul.f32 %v750, %v764
      %v787 = vmul.f32 %v751, %v764
      %v788 = vmul.f32 %v752, %v764
      %v789 = vmul.f32 %v753, %v764
      %v790 = vmul.f32 %v754, %v764
      %v791 = vmul.f32 %v755, %v764
      %v792 = vmul.f32 %v756, %v764
      %v793 = vmul.f32 %v757, %v764
      %v794 = vmul.f32 %v758, %v764
      %v795 = vmul.f32 %v759, %v764
      %v796 = vmul.f32 %v760, %v764
      %v797 = vadd.f32 %v765, 0.0
      %v798 = vadd.f32 %v766, 0.0
      %v799 = vadd.f32 %v767, 0.0
      %v800 = vadd.f32 %v768, 0.0
      %v801 = vadd.f32 %v769, 0.0
      %v802 = vadd.f32 %v770, 0.0
      %v803 = vadd.f32 %v771, 0.0
      %v804 = vadd.f32 %v772, 0.0
      %v805 = vadd.f32 %v773, 0.0
      %v806 = vadd.f32 %v774, 0.0
      %v807 = vadd.f32 %v775, 0.0
      %v808 = vadd.f32 %v776, 0.0
      %v809 = vadd.f32 %v777, 0.0
      %v810 = vadd.f32 %v778, 0.0
      %v811 = vadd.f32 %v779, 0.0
      %v812 = vadd.f32 %v780, 0.0
      %v813 = vadd.f32 %v781, 0.0
      %v814 = vadd.f32 %v782, 0.0
      %v815 = vadd.f32 %v783, 0.0
      %v816 = vadd.f32 %v784, 0.0
      %v817 = vadd.f32 %v785, 0.0
      %v818 = vadd.f32 %v786, 0.0
      %v819 = vadd.f32 %v787, 0.0
      %v820 = vadd.f32 %v788, 0.0
      %v821 = vadd.f32 %v789, 0.0
      %v822 = vadd.f32 %v790, 0.0
      %v823 = vadd.f32 %v791, 0.0
      %v824 = vadd.f32 %v792, 0.0
      %v825 = vadd.f32 %v793, 0.0
      %v826 = vadd.f32 %v794, 0.0
      %v827 = vadd.f32 %v795, 0.0
      %v828 = vadd.f32 %v796, 0.0
      %v829 = vld [vmem:[%s2 + $0x1] sm:$0x1]
      %v830 = vld [vmem:[#allocation2 + $0x1] sm:$0xff]
      %v831 = vld [vmem:[#allocation2 + $0x9] sm:$0xff]
      %v832 = vld [vmem:[#allocation2 + $0x19] sm:$0xff]
      %v833 = vld [vmem:[#allocation2 + $0x21] sm:$0xff]
      %v834 = vld [vmem:[#allocation2 + $0x31] sm:$0xff]
      %v835 = vld [vmem:[#allocation2 + $0x39] sm:$0xff]
      %v836 = vld [vmem:[#allocation2 + $0x49] sm:$0xff]
      %v837 = vld [vmem:[#allocation2 + $0x51] sm:$0xff]
      %v838 = vld [vmem:[#allocation2 + $0x61] sm:$0xff]
      %v839 = vld [vmem:[#allocation2 + $0x69] sm:$0xff]
      %v840 = vld [vmem:[#allocation2 + $0x79] sm:$0xff]
      %v841 = vld [vmem:[#allocation2 + $0x81] sm:$0xff]
      %v842 = vld [vmem:[#allocation2 + $0x91] sm:$0xff]
      %v843 = vld [vmem:[#allocation2 + $0x99] sm:$0xff]
      %v844 = vld [vmem:[#allocation2 + $0xa9] sm:$0xff]
      %v845 = vld [vmem:[#allocation2 + $0xb1] sm:$0xff]
      %v846 = vld [vmem:[#allocation2 + $0xc1] sm:$0xff]
      %v847 = vld [vmem:[#allocation2 + $0xc9] sm:$0xff]
      %v848 = vld [vmem:[#allocation2 + $0xd9] sm:$0xff]
      %v849 = vld [vmem:[#allocation2 + $0xe1] sm:$0xff]
      %v850 = vld [vmem:[#allocation2 + $0xf1] sm:$0xff]
      %v851 = vld [vmem:[#allocation2 + $0xf9] sm:$0xff]
      %v852 = vld [vmem:[#allocation2 + $0x109] sm:$0xff]
      %v853 = vld [vmem:[#allocation2 + $0x111] sm:$0xff]
      %v854 = vld [vmem:[#allocation2 + $0x121] sm:$0xff]
      %v855 = vld [vmem:[#allocation2 + $0x129] sm:$0xff]
      %v856 = vld [vmem:[#allocation2 + $0x139] sm:$0xff]
      %v857 = vld [vmem:[#allocation2 + $0x141] sm:$0xff]
      %v858 = vld [vmem:[#allocation2 + $0x151] sm:$0xff]
      %v859 = vld [vmem:[#allocation2 + $0x159] sm:$0xff]
      %v860 = vld [vmem:[#allocation2 + $0x169] sm:$0xff]
      %v861 = vld [vmem:[#allocation2 + $0x171] sm:$0xff]
      %v862 = vlaneseq
      %v863 = vshrl.u32 %v862, 7
      %v864 = vsub.s32 0, %v863
      %v865 = vrot.slane %v829, %v864
      %v866 = vmul.f32 %v830, %v865
      %v867 = vmul.f32 %v831, %v865
      %v868 = vmul.f32 %v832, %v865
      %v869 = vmul.f32 %v833, %v865
      %v870 = vmul.f32 %v834, %v865
      %v871 = vmul.f32 %v835, %v865
      %v872 = vmul.f32 %v836, %v865
      %v873 = vmul.f32 %v837, %v865
      %v874 = vmul.f32 %v838, %v865
      %v875 = vmul.f32 %v839, %v865
      %v876 = vmul.f32 %v840, %v865
      %v877 = vmul.f32 %v841, %v865
      %v878 = vmul.f32 %v842, %v865
      %v879 = vmul.f32 %v843, %v865
      %v880 = vmul.f32 %v844, %v865
      %v881 = vmul.f32 %v845, %v865
      %v882 = vmul.f32 %v846, %v865
      %v883 = vmul.f32 %v847, %v865
      %v884 = vmul.f32 %v848, %v865
      %v885 = vmul.f32 %v849, %v865
      %v886 = vmul.f32 %v850, %v865
      %v887 = vmul.f32 %v851, %v865
      %v888 = vmul.f32 %v852, %v865
      %v889 = vmul.f32 %v853, %v865
      %v890 = vmul.f32 %v854, %v865
      %v891 = vmul.f32 %v855, %v865
      %v892 = vmul.f32 %v856, %v865
      %v893 = vmul.f32 %v857, %v865
      %v894 = vmul.f32 %v858, %v865
      %v895 = vmul.f32 %v859, %v865
      %v896 = vmul.f32 %v860, %v865
      %v897 = vmul.f32 %v861, %v865
      %v898 = vadd.f32 %v797, %v866
      %v899 = vadd.f32 %v798, %v867
      %v900 = vadd.f32 %v799, %v868
      %v901 = vadd.f32 %v800, %v869
      %v902 = vadd.f32 %v801, %v870
      %v903 = vadd.f32 %v802, %v871
      %v904 = vadd.f32 %v803, %v872
      %v905 = vadd.f32 %v804, %v873
      %v906 = vadd.f32 %v805, %v874
      %v907 = vadd.f32 %v806, %v875
      %v908 = vadd.f32 %v807, %v876
      %v909 = vadd.f32 %v808, %v877
      %v910 = vadd.f32 %v809, %v878
      %v911 = vadd.f32 %v810, %v879
      %v912 = vadd.f32 %v811, %v880
      %v913 = vadd.f32 %v812, %v881
      %v914 = vadd.f32 %v813, %v882
      %v915 = vadd.f32 %v814, %v883
      %v916 = vadd.f32 %v815, %v884
      %v917 = vadd.f32 %v816, %v885
      %v918 = vadd.f32 %v817, %v886
      %v919 = vadd.f32 %v818, %v887
      %v920 = vadd.f32 %v819, %v888
      %v921 = vadd.f32 %v820, %v889
      %v922 = vadd.f32 %v821, %v890
      %v923 = vadd.f32 %v822, %v891
      %v924 = vadd.f32 %v823, %v892
      %v925 = vadd.f32 %v824, %v893
      %v926 = vadd.f32 %v825, %v894
      %v927 = vadd.f32 %v826, %v895
      %v928 = vadd.f32 %v827, %v896
      %v929 = vadd.f32 %v828, %v897
      %v930 = vld [vmem:[%s2 + $0x2] sm:$0x1]
      %v931 = vld [vmem:[#allocation2 + $0x2] sm:$0xff]
      %v932 = vld [vmem:[#allocation2 + $0xa] sm:$0xff]
      %v933 = vld [vmem:[#allocation2 + $0x1a] sm:$0xff]
      %v934 = vld [vmem:[#allocation2 + $0x22] sm:$0xff]
      %v935 = vld [vmem:[#allocation2 + $0x32] sm:$0xff]
      %v936 = vld [vmem:[#allocation2 + $0x3a] sm:$0xff]
      %v937 = vld [vmem:[#allocation2 + $0x4a] sm:$0xff]
      %v938 = vld [vmem:[#allocation2 + $0x52] sm:$0xff]
      %v939 = vld [vmem:[#allocation2 + $0x62] sm:$0xff]
      %v940 = vld [vmem:[#allocation2 + $0x6a] sm:$0xff]
      %v941 = vld [vmem:[#allocation2 + $0x7a] sm:$0xff]
      %v942 = vld [vmem:[#allocation2 + $0x82] sm:$0xff]
      %v943 = vld [vmem:[#allocation2 + $0x92] sm:$0xff]
      %v944 = vld [vmem:[#allocation2 + $0x9a] sm:$0xff]
      %v945 = vld [vmem:[#allocation2 + $0xaa] sm:$0xff]
      %v946 = vld [vmem:[#allocation2 + $0xb2] sm:$0xff]
      %v947 = vld [vmem:[#allocation2 + $0xc2] sm:$0xff]
      %v948 = vld [vmem:[#allocation2 + $0xca] sm:$0xff]
      %v949 = vld [vmem:[#allocation2 + $0xda] sm:$0xff]
      %v950 = vld [vmem:[#allocation2 + $0xe2] sm:$0xff]
      %v951 = vld [vmem:[#allocation2 + $0xf2] sm:$0xff]
      %v952 = vld [vmem:[#allocation2 + $0xfa] sm:$0xff]
      %v953 = vld [vmem:[#allocation2 + $0x10a] sm:$0xff]
      %v954 = vld [vmem:[#allocation2 + $0x112] sm:$0xff]
      %v955 = vld [vmem:[#allocation2 + $0x122] sm:$0xff]
      %v956 = vld [vmem:[#allocation2 + $0x12a] sm:$0xff]
      %v957 = vld [vmem:[#allocation2 + $0x13a] sm:$0xff]
      %v958 = vld [vmem:[#allocation2 + $0x142] sm:$0xff]
      %v959 = vld [vmem:[#allocation2 + $0x152] sm:$0xff]
      %v960 = vld [vmem:[#allocation2 + $0x15a] sm:$0xff]
      %v961 = vld [vmem:[#allocation2 + $0x16a] sm:$0xff]
      %v962 = vld [vmem:[#allocation2 + $0x172] sm:$0xff]
      %v963 = vlaneseq
      %v964 = vshrl.u32 %v963, 7
      %v965 = vsub.s32 0, %v964
      %v966 = vrot.slane %v930, %v965
      %v967 = vmul.f32 %v931, %v966
      %v968 = vmul.f32 %v932, %v966
      %v969 = vmul.f32 %v933, %v966
      %v970 = vmul.f32 %v934, %v966
      %v971 = vmul.f32 %v935, %v966
      %v972 = vmul.f32 %v936, %v966
      %v973 = vmul.f32 %v937, %v966
      %v974 = vmul.f32 %v938, %v966
      %v975 = vmul.f32 %v939, %v966
      %v976 = vmul.f32 %v940, %v966
      %v977 = vmul.f32 %v941, %v966
      %v978 = vmul.f32 %v942, %v966
      %v979 = vmul.f32 %v943, %v966
      %v980 = vmul.f32 %v944, %v966
      %v981 = vmul.f32 %v945, %v966
      %v982 = vmul.f32 %v946, %v966
      %v983 = vmul.f32 %v947, %v966
      %v984 = vmul.f32 %v948, %v966
      %v985 = vmul.f32 %v949, %v966
      %v986 = vmul.f32 %v950, %v966
      %v987 = vmul.f32 %v951, %v966
      %v988 = vmul.f32 %v952, %v966
      %v989 = vmul.f32 %v953, %v966
      %v990 = vmul.f32 %v954, %v966
      %v991 = vmul.f32 %v955, %v966
      %v992 = vmul.f32 %v956, %v966
      %v993 = vmul.f32 %v957, %v966
      %v994 = vmul.f32 %v958, %v966
      %v995 = vmul.f32 %v959, %v966
      %v996 = vmul.f32 %v960, %v966
      %v997 = vmul.f32 %v961, %v966
      %v998 = vmul.f32 %v962, %v966
      %v999 = vadd.f32 %v898, %v967
      %v1000 = vadd.f32 %v899, %v968
      %v1001 = vadd.f32 %v900, %v969
      %v1002 = vadd.f32 %v901, %v970
      %v1003 = vadd.f32 %v902, %v971
      %v1004 = vadd.f32 %v903, %v972
      %v1005 = vadd.f32 %v904, %v973
      %v1006 = vadd.f32 %v905, %v974
      %v1007 = vadd.f32 %v906, %v975
      %v1008 = vadd.f32 %v907, %v976
      %v1009 = vadd.f32 %v908, %v977
      %v1010 = vadd.f32 %v909, %v978
      %v1011 = vadd.f32 %v910, %v979
      %v1012 = vadd.f32 %v911, %v980
      %v1013 = vadd.f32 %v912, %v981
      %v1014 = vadd.f32 %v913, %v982
      %v1015 = vadd.f32 %v914, %v983
      %v1016 = vadd.f32 %v915, %v984
      %v1017 = vadd.f32 %v916, %v985
      %v1018 = vadd.f32 %v917, %v986
      %v1019 = vadd.f32 %v918, %v987
      %v1020 = vadd.f32 %v919, %v988
      %v1021 = vadd.f32 %v920, %v989
      %v1022 = vadd.f32 %v921, %v990
      %v1023 = vadd.f32 %v922, %v991
      %v1024 = vadd.f32 %v923, %v992
      %v1025 = vadd.f32 %v924, %v993
      %v1026 = vadd.f32 %v925, %v994
      %v1027 = vadd.f32 %v926, %v995
      %v1028 = vadd.f32 %v927, %v996
      %v1029 = vadd.f32 %v928, %v997
      %v1030 = vadd.f32 %v929, %v998
      %v1031 = vld [vmem:[%s2 + $0x3] sm:$0x1]
      %v1032 = vld [vmem:[#allocation2 + $0x3] sm:$0xff]
      %v1033 = vld [vmem:[#allocation2 + $0xb] sm:$0xff]
      %v1034 = vld [vmem:[#allocation2 + $0x1b] sm:$0xff]
      %v1035 = vld [vmem:[#allocation2 + $0x23] sm:$0xff]
      %v1036 = vld [vmem:[#allocation2 + $0x33] sm:$0xff]
      %v1037 = vld [vmem:[#allocation2 + $0x3b] sm:$0xff]
      %v1038 = vld [vmem:[#allocation2 + $0x4b] sm:$0xff]
      %v1039 = vld [vmem:[#allocation2 + $0x53] sm:$0xff]
      %v1040 = vld [vmem:[#allocation2 + $0x63] sm:$0xff]
      %v1041 = vld [vmem:[#allocation2 + $0x6b] sm:$0xff]
      %v1042 = vld [vmem:[#allocation2 + $0x7b] sm:$0xff]
      %v1043 = vld [vmem:[#allocation2 + $0x83] sm:$0xff]
      %v1044 = vld [vmem:[#allocation2 + $0x93] sm:$0xff]
      %v1045 = vld [vmem:[#allocation2 + $0x9b] sm:$0xff]
      %v1046 = vld [vmem:[#allocation2 + $0xab] sm:$0xff]
      %v1047 = vld [vmem:[#allocation2 + $0xb3] sm:$0xff]
      %v1048 = vld [vmem:[#allocation2 + $0xc3] sm:$0xff]
      %v1049 = vld [vmem:[#allocation2 + $0xcb] sm:$0xff]
      %v1050 = vld [vmem:[#allocation2 + $0xdb] sm:$0xff]
      %v1051 = vld [vmem:[#allocation2 + $0xe3] sm:$0xff]
      %v1052 = vld [vmem:[#allocation2 + $0xf3] sm:$0xff]
      %v1053 = vld [vmem:[#allocation2 + $0xfb] sm:$0xff]
      %v1054 = vld [vmem:[#allocation2 + $0x10b] sm:$0xff]
      %v1055 = vld [vmem:[#allocation2 + $0x113] sm:$0xff]
      %v1056 = vld [vmem:[#allocation2 + $0x123] sm:$0xff]
      %v1057 = vld [vmem:[#allocation2 + $0x12b] sm:$0xff]
      %v1058 = vld [vmem:[#allocation2 + $0x13b] sm:$0xff]
      %v1059 = vld [vmem:[#allocation2 + $0x143] sm:$0xff]
      %v1060 = vld [vmem:[#allocation2 + $0x153] sm:$0xff]
      %v1061 = vld [vmem:[#allocation2 + $0x15b] sm:$0xff]
      %v1062 = vld [vmem:[#allocation2 + $0x16b] sm:$0xff]
      %v1063 = vld [vmem:[#allocation2 + $0x173] sm:$0xff]
      %v1064 = vlaneseq
      %v1065 = vshrl.u32 %v1064, 7
      %v1066 = vsub.s32 0, %v1065
      %v1067 = vrot.slane %v1031, %v1066
      %v1068 = vmul.f32 %v1032, %v1067
      %v1069 = vmul.f32 %v1033, %v1067
      %v1070 = vmul.f32 %v1034, %v1067
      %v1071 = vmul.f32 %v1035, %v1067
      %v1072 = vmul.f32 %v1036, %v1067
      %v1073 = vmul.f32 %v1037, %v1067
      %v1074 = vmul.f32 %v1038, %v1067
      %v1075 = vmul.f32 %v1039, %v1067
      %v1076 = vmul.f32 %v1040, %v1067
      %v1077 = vmul.f32 %v1041, %v1067
      %v1078 = vmul.f32 %v1042, %v1067
      %v1079 = vmul.f32 %v1043, %v1067
      %v1080 = vmul.f32 %v1044, %v1067
      %v1081 = vmul.f32 %v1045, %v1067
      %v1082 = vmul.f32 %v1046, %v1067
      %v1083 = vmul.f32 %v1047, %v1067
      %v1084 = vmul.f32 %v1048, %v1067
      %v1085 = vmul.f32 %v1049, %v1067
      %v1086 = vmul.f32 %v1050, %v1067
      %v1087 = vmul.f32 %v1051, %v1067
      %v1088 = vmul.f32 %v1052, %v1067
      %v1089 = vmul.f32 %v1053, %v1067
      %v1090 = vmul.f32 %v1054, %v1067
      %v1091 = vmul.f32 %v1055, %v1067
      %v1092 = vmul.f32 %v1056, %v1067
      %v1093 = vmul.f32 %v1057, %v1067
      %v1094 = vmul.f32 %v1058, %v1067
      %v1095 = vmul.f32 %v1059, %v1067
      %v1096 = vmul.f32 %v1060, %v1067
      %v1097 = vmul.f32 %v1061, %v1067
      %v1098 = vmul.f32 %v1062, %v1067
      %v1099 = vmul.f32 %v1063, %v1067
      %v1100 = vadd.f32 %v999, %v1068
      %v1101 = vadd.f32 %v1000, %v1069
      %v1102 = vadd.f32 %v1001, %v1070
      %v1103 = vadd.f32 %v1002, %v1071
      %v1104 = vadd.f32 %v1003, %v1072
      %v1105 = vadd.f32 %v1004, %v1073
      %v1106 = vadd.f32 %v1005, %v1074
      %v1107 = vadd.f32 %v1006, %v1075
      %v1108 = vadd.f32 %v1007, %v1076
      %v1109 = vadd.f32 %v1008, %v1077
      %v1110 = vadd.f32 %v1009, %v1078
      %v1111 = vadd.f32 %v1010, %v1079
      %v1112 = vadd.f32 %v1011, %v1080
      %v1113 = vadd.f32 %v1012, %v1081
      %v1114 = vadd.f32 %v1013, %v1082
      %v1115 = vadd.f32 %v1014, %v1083
      %v1116 = vadd.f32 %v1015, %v1084
      %v1117 = vadd.f32 %v1016, %v1085
      %v1118 = vadd.f32 %v1017, %v1086
      %v1119 = vadd.f32 %v1018, %v1087
      %v1120 = vadd.f32 %v1019, %v1088
      %v1121 = vadd.f32 %v1020, %v1089
      %v1122 = vadd.f32 %v1021, %v1090
      %v1123 = vadd.f32 %v1022, %v1091
      %v1124 = vadd.f32 %v1023, %v1092
      %v1125 = vadd.f32 %v1024, %v1093
      %v1126 = vadd.f32 %v1025, %v1094
      %v1127 = vadd.f32 %v1026, %v1095
      %v1128 = vadd.f32 %v1027, %v1096
      %v1129 = vadd.f32 %v1028, %v1097
      %v1130 = vadd.f32 %v1029, %v1098
      %v1131 = vadd.f32 %v1030, %v1099
      %v1132 = vld [vmem:[%s2 + $0x4] sm:$0x1]
      %v1133 = vld [vmem:[#allocation2 + $0x4] sm:$0xff]
      %v1134 = vld [vmem:[#allocation2 + $0xc] sm:$0xff]
      %v1135 = vld [vmem:[#allocation2 + $0x1c] sm:$0xff]
      %v1136 = vld [vmem:[#allocation2 + $0x24] sm:$0xff]
      %v1137 = vld [vmem:[#allocation2 + $0x34] sm:$0xff]
      %v1138 = vld [vmem:[#allocation2 + $0x3c] sm:$0xff]
      %v1139 = vld [vmem:[#allocation2 + $0x4c] sm:$0xff]
      %v1140 = vld [vmem:[#allocation2 + $0x54] sm:$0xff]
      %v1141 = vld [vmem:[#allocation2 + $0x64] sm:$0xff]
      %v1142 = vld [vmem:[#allocation2 + $0x6c] sm:$0xff]
      %v1143 = vld [vmem:[#allocation2 + $0x7c] sm:$0xff]
      %v1144 = vld [vmem:[#allocation2 + $0x84] sm:$0xff]
      %v1145 = vld [vmem:[#allocation2 + $0x94] sm:$0xff]
      %v1146 = vld [vmem:[#allocation2 + $0x9c] sm:$0xff]
      %v1147 = vld [vmem:[#allocation2 + $0xac] sm:$0xff]
      %v1148 = vld [vmem:[#allocation2 + $0xb4] sm:$0xff]
      %v1149 = vld [vmem:[#allocation2 + $0xc4] sm:$0xff]
      %v1150 = vld [vmem:[#allocation2 + $0xcc] sm:$0xff]
      %v1151 = vld [vmem:[#allocation2 + $0xdc] sm:$0xff]
      %v1152 = vld [vmem:[#allocation2 + $0xe4] sm:$0xff]
      %v1153 = vld [vmem:[#allocation2 + $0xf4] sm:$0xff]
      %v1154 = vld [vmem:[#allocation2 + $0xfc] sm:$0xff]
      %v1155 = vld [vmem:[#allocation2 + $0x10c] sm:$0xff]
      %v1156 = vld [vmem:[#allocation2 + $0x114] sm:$0xff]
      %v1157 = vld [vmem:[#allocation2 + $0x124] sm:$0xff]
      %v1158 = vld [vmem:[#allocation2 + $0x12c] sm:$0xff]
      %v1159 = vld [vmem:[#allocation2 + $0x13c] sm:$0xff]
      %v1160 = vld [vmem:[#allocation2 + $0x144] sm:$0xff]
      %v1161 = vld [vmem:[#allocation2 + $0x154] sm:$0xff]
      %v1162 = vld [vmem:[#allocation2 + $0x15c] sm:$0xff]
      %v1163 = vld [vmem:[#allocation2 + $0x16c] sm:$0xff]
      %v1164 = vld [vmem:[#allocation2 + $0x174] sm:$0xff]
      %v1165 = vlaneseq
      %v1166 = vshrl.u32 %v1165, 7
      %v1167 = vsub.s32 0, %v1166
      %v1168 = vrot.slane %v1132, %v1167
      %v1169 = vmul.f32 %v1133, %v1168
      %v1170 = vmul.f32 %v1134, %v1168
      %v1171 = vmul.f32 %v1135, %v1168
      %v1172 = vmul.f32 %v1136, %v1168
      %v1173 = vmul.f32 %v1137, %v1168
      %v1174 = vmul.f32 %v1138, %v1168
      %v1175 = vmul.f32 %v1139, %v1168
      %v1176 = vmul.f32 %v1140, %v1168
      %v1177 = vmul.f32 %v1141, %v1168
      %v1178 = vmul.f32 %v1142, %v1168
      %v1179 = vmul.f32 %v1143, %v1168
      %v1180 = vmul.f32 %v1144, %v1168
      %v1181 = vmul.f32 %v1145, %v1168
      %v1182 = vmul.f32 %v1146, %v1168
      %v1183 = vmul.f32 %v1147, %v1168
      %v1184 = vmul.f32 %v1148, %v1168
      %v1185 = vmul.f32 %v1149, %v1168
      %v1186 = vmul.f32 %v1150, %v1168
      %v1187 = vmul.f32 %v1151, %v1168
      %v1188 = vmul.f32 %v1152, %v1168
      %v1189 = vmul.f32 %v1153, %v1168
      %v1190 = vmul.f32 %v1154, %v1168
      %v1191 = vmul.f32 %v1155, %v1168
      %v1192 = vmul.f32 %v1156, %v1168
      %v1193 = vmul.f32 %v1157, %v1168
      %v1194 = vmul.f32 %v1158, %v1168
      %v1195 = vmul.f32 %v1159, %v1168
      %v1196 = vmul.f32 %v1160, %v1168
      %v1197 = vmul.f32 %v1161, %v1168
      %v1198 = vmul.f32 %v1162, %v1168
      %v1199 = vmul.f32 %v1163, %v1168
      %v1200 = vmul.f32 %v1164, %v1168
      %v1201 = vadd.f32 %v1100, %v1169
      %v1202 = vadd.f32 %v1101, %v1170
      %v1203 = vadd.f32 %v1102, %v1171
      %v1204 = vadd.f32 %v1103, %v1172
      %v1205 = vadd.f32 %v1104, %v1173
      %v1206 = vadd.f32 %v1105, %v1174
      %v1207 = vadd.f32 %v1106, %v1175
      %v1208 = vadd.f32 %v1107, %v1176
      %v1209 = vadd.f32 %v1108, %v1177
      %v1210 = vadd.f32 %v1109, %v1178
      %v1211 = vadd.f32 %v1110, %v1179
      %v1212 = vadd.f32 %v1111, %v1180
      %v1213 = vadd.f32 %v1112, %v1181
      %v1214 = vadd.f32 %v1113, %v1182
      %v1215 = vadd.f32 %v1114, %v1183
      %v1216 = vadd.f32 %v1115, %v1184
      %v1217 = vadd.f32 %v1116, %v1185
      %v1218 = vadd.f32 %v1117, %v1186
      %v1219 = vadd.f32 %v1118, %v1187
      %v1220 = vadd.f32 %v1119, %v1188
      %v1221 = vadd.f32 %v1120, %v1189
      %v1222 = vadd.f32 %v1121, %v1190
      %v1223 = vadd.f32 %v1122, %v1191
      %v1224 = vadd.f32 %v1123, %v1192
      %v1225 = vadd.f32 %v1124, %v1193
      %v1226 = vadd.f32 %v1125, %v1194
      %v1227 = vadd.f32 %v1126, %v1195
      %v1228 = vadd.f32 %v1127, %v1196
      %v1229 = vadd.f32 %v1128, %v1197
      %v1230 = vadd.f32 %v1129, %v1198
      %v1231 = vadd.f32 %v1130, %v1199
      %v1232 = vadd.f32 %v1131, %v1200
      %v1233 = vld [vmem:[%s2 + $0x5] sm:$0x1]
      %v1234 = vld [vmem:[#allocation2 + $0x5] sm:$0xff]
      %v1235 = vld [vmem:[#allocation2 + $0xd] sm:$0xff]
      %v1236 = vld [vmem:[#allocation2 + $0x1d] sm:$0xff]
      %v1237 = vld [vmem:[#allocation2 + $0x25] sm:$0xff]
      %v1238 = vld [vmem:[#allocation2 + $0x35] sm:$0xff]
      %v1239 = vld [vmem:[#allocation2 + $0x3d] sm:$0xff]
      %v1240 = vld [vmem:[#allocation2 + $0x4d] sm:$0xff]
      %v1241 = vld [vmem:[#allocation2 + $0x55] sm:$0xff]
      %v1242 = vld [vmem:[#allocation2 + $0x65] sm:$0xff]
      %v1243 = vld [vmem:[#allocation2 + $0x6d] sm:$0xff]
      %v1244 = vld [vmem:[#allocation2 + $0x7d] sm:$0xff]
      %v1245 = vld [vmem:[#allocation2 + $0x85] sm:$0xff]
      %v1246 = vld [vmem:[#allocation2 + $0x95] sm:$0xff]
      %v1247 = vld [vmem:[#allocation2 + $0x9d] sm:$0xff]
      %v1248 = vld [vmem:[#allocation2 + $0xad] sm:$0xff]
      %v1249 = vld [vmem:[#allocation2 + $0xb5] sm:$0xff]
      %v1250 = vld [vmem:[#allocation2 + $0xc5] sm:$0xff]
      %v1251 = vld [vmem:[#allocation2 + $0xcd] sm:$0xff]
      %v1252 = vld [vmem:[#allocation2 + $0xdd] sm:$0xff]
      %v1253 = vld [vmem:[#allocation2 + $0xe5] sm:$0xff]
      %v1254 = vld [vmem:[#allocation2 + $0xf5] sm:$0xff]
      %v1255 = vld [vmem:[#allocation2 + $0xfd] sm:$0xff]
      %v1256 = vld [vmem:[#allocation2 + $0x10d] sm:$0xff]
      %v1257 = vld [vmem:[#allocation2 + $0x115] sm:$0xff]
      %v1258 = vld [vmem:[#allocation2 + $0x125] sm:$0xff]
      %v1259 = vld [vmem:[#allocation2 + $0x12d] sm:$0xff]
      %v1260 = vld [vmem:[#allocation2 + $0x13d] sm:$0xff]
      %v1261 = vld [vmem:[#allocation2 + $0x145] sm:$0xff]
      %v1262 = vld [vmem:[#allocation2 + $0x155] sm:$0xff]
      %v1263 = vld [vmem:[#allocation2 + $0x15d] sm:$0xff]
      %v1264 = vld [vmem:[#allocation2 + $0x16d] sm:$0xff]
      %v1265 = vld [vmem:[#allocation2 + $0x175] sm:$0xff]
      %v1266 = vlaneseq
      %v1267 = vshrl.u32 %v1266, 7
      %v1268 = vsub.s32 0, %v1267
      %v1269 = vrot.slane %v1233, %v1268
      %v1270 = vmul.f32 %v1234, %v1269
      %v1271 = vmul.f32 %v1235, %v1269
      %v1272 = vmul.f32 %v1236, %v1269
      %v1273 = vmul.f32 %v1237, %v1269
      %v1274 = vmul.f32 %v1238, %v1269
      %v1275 = vmul.f32 %v1239, %v1269
      %v1276 = vmul.f32 %v1240, %v1269
      %v1277 = vmul.f32 %v1241, %v1269
      %v1278 = vmul.f32 %v1242, %v1269
      %v1279 = vmul.f32 %v1243, %v1269
      %v1280 = vmul.f32 %v1244, %v1269
      %v1281 = vmul.f32 %v1245, %v1269
      %v1282 = vmul.f32 %v1246, %v1269
      %v1283 = vmul.f32 %v1247, %v1269
      %v1284 = vmul.f32 %v1248, %v1269
      %v1285 = vmul.f32 %v1249, %v1269
      %v1286 = vmul.f32 %v1250, %v1269
      %v1287 = vmul.f32 %v1251, %v1269
      %v1288 = vmul.f32 %v1252, %v1269
      %v1289 = vmul.f32 %v1253, %v1269
      %v1290 = vmul.f32 %v1254, %v1269
      %v1291 = vmul.f32 %v1255, %v1269
      %v1292 = vmul.f32 %v1256, %v1269
      %v1293 = vmul.f32 %v1257, %v1269
      %v1294 = vmul.f32 %v1258, %v1269
      %v1295 = vmul.f32 %v1259, %v1269
      %v1296 = vmul.f32 %v1260, %v1269
      %v1297 = vmul.f32 %v1261, %v1269
      %v1298 = vmul.f32 %v1262, %v1269
      %v1299 = vmul.f32 %v1263, %v1269
      %v1300 = vmul.f32 %v1264, %v1269
      %v1301 = vmul.f32 %v1265, %v1269
      %v1302 = vadd.f32 %v1201, %v1270
      %v1303 = vadd.f32 %v1202, %v1271
      %v1304 = vadd.f32 %v1203, %v1272
      %v1305 = vadd.f32 %v1204, %v1273
      %v1306 = vadd.f32 %v1205, %v1274
      %v1307 = vadd.f32 %v1206, %v1275
      %v1308 = vadd.f32 %v1207, %v1276
      %v1309 = vadd.f32 %v1208, %v1277
      %v1310 = vadd.f32 %v1209, %v1278
      %v1311 = vadd.f32 %v1210, %v1279
      %v1312 = vadd.f32 %v1211, %v1280
      %v1313 = vadd.f32 %v1212, %v1281
      %v1314 = vadd.f32 %v1213, %v1282
      %v1315 = vadd.f32 %v1214, %v1283
      %v1316 = vadd.f32 %v1215, %v1284
      %v1317 = vadd.f32 %v1216, %v1285
      %v1318 = vadd.f32 %v1217, %v1286
      %v1319 = vadd.f32 %v1218, %v1287
      %v1320 = vadd.f32 %v1219, %v1288
      %v1321 = vadd.f32 %v1220, %v1289
      %v1322 = vadd.f32 %v1221, %v1290
      %v1323 = vadd.f32 %v1222, %v1291
      %v1324 = vadd.f32 %v1223, %v1292
      %v1325 = vadd.f32 %v1224, %v1293
      %v1326 = vadd.f32 %v1225, %v1294
      %v1327 = vadd.f32 %v1226, %v1295
      %v1328 = vadd.f32 %v1227, %v1296
      %v1329 = vadd.f32 %v1228, %v1297
      %v1330 = vadd.f32 %v1229, %v1298
      %v1331 = vadd.f32 %v1230, %v1299
      %v1332 = vadd.f32 %v1231, %v1300
      %v1333 = vadd.f32 %v1232, %v1301
      %v1334 = vld [vmem:[%s2 + $0x6] sm:$0x1]
      %v1335 = vld [vmem:[#allocation2 + $0x6] sm:$0xff]
      %v1336 = vld [vmem:[#allocation2 + $0xe] sm:$0xff]
      %v1337 = vld [vmem:[#allocation2 + $0x1e] sm:$0xff]
      %v1338 = vld [vmem:[#allocation2 + $0x26] sm:$0xff]
      %v1339 = vld [vmem:[#allocation2 + $0x36] sm:$0xff]
      %v1340 = vld [vmem:[#allocation2 + $0x3e] sm:$0xff]
      %v1341 = vld [vmem:[#allocation2 + $0x4e] sm:$0xff]
      %v1342 = vld [vmem:[#allocation2 + $0x56] sm:$0xff]
      %v1343 = vld [vmem:[#allocation2 + $0x66] sm:$0xff]
      %v1344 = vld [vmem:[#allocation2 + $0x6e] sm:$0xff]
      %v1345 = vld [vmem:[#allocation2 + $0x7e] sm:$0xff]
      %v1346 = vld [vmem:[#allocation2 + $0x86] sm:$0xff]
      %v1347 = vld [vmem:[#allocation2 + $0x96] sm:$0xff]
      %v1348 = vld [vmem:[#allocation2 + $0x9e] sm:$0xff]
      %v1349 = vld [vmem:[#allocation2 + $0xae] sm:$0xff]
      %v1350 = vld [vmem:[#allocation2 + $0xb6] sm:$0xff]
      %v1351 = vld [vmem:[#allocation2 + $0xc6] sm:$0xff]
      %v1352 = vld [vmem:[#allocation2 + $0xce] sm:$0xff]
      %v1353 = vld [vmem:[#allocation2 + $0xde] sm:$0xff]
      %v1354 = vld [vmem:[#allocation2 + $0xe6] sm:$0xff]
      %v1355 = vld [vmem:[#allocation2 + $0xf6] sm:$0xff]
      %v1356 = vld [vmem:[#allocation2 + $0xfe] sm:$0xff]
      %v1357 = vld [vmem:[#allocation2 + $0x10e] sm:$0xff]
      %v1358 = vld [vmem:[#allocation2 + $0x116] sm:$0xff]
      %v1359 = vld [vmem:[#allocation2 + $0x126] sm:$0xff]
      %v1360 = vld [vmem:[#allocation2 + $0x12e] sm:$0xff]
      %v1361 = vld [vmem:[#allocation2 + $0x13e] sm:$0xff]
      %v1362 = vld [vmem:[#allocation2 + $0x146] sm:$0xff]
      %v1363 = vld [vmem:[#allocation2 + $0x156] sm:$0xff]
      %v1364 = vld [vmem:[#allocation2 + $0x15e] sm:$0xff]
      %v1365 = vld [vmem:[#allocation2 + $0x16e] sm:$0xff]
      %v1366 = vld [vmem:[#allocation2 + $0x176] sm:$0xff]
      %v1367 = vlaneseq
      %v1368 = vshrl.u32 %v1367, 7
      %v1369 = vsub.s32 0, %v1368
      %v1370 = vrot.slane %v1334, %v1369
      %v1371 = vmul.f32 %v1335, %v1370
      %v1372 = vmul.f32 %v1336, %v1370
      %v1373 = vmul.f32 %v1337, %v1370
      %v1374 = vmul.f32 %v1338, %v1370
      %v1375 = vmul.f32 %v1339, %v1370
      %v1376 = vmul.f32 %v1340, %v1370
      %v1377 = vmul.f32 %v1341, %v1370
      %v1378 = vmul.f32 %v1342, %v1370
      %v1379 = vmul.f32 %v1343, %v1370
      %v1380 = vmul.f32 %v1344, %v1370
      %v1381 = vmul.f32 %v1345, %v1370
      %v1382 = vmul.f32 %v1346, %v1370
      %v1383 = vmul.f32 %v1347, %v1370
      %v1384 = vmul.f32 %v1348, %v1370
      %v1385 = vmul.f32 %v1349, %v1370
      %v1386 = vmul.f32 %v1350, %v1370
      %v1387 = vmul.f32 %v1351, %v1370
      %v1388 = vmul.f32 %v1352, %v1370
      %v1389 = vmul.f32 %v1353, %v1370
      %v1390 = vmul.f32 %v1354, %v1370
      %v1391 = vmul.f32 %v1355, %v1370
      %v1392 = vmul.f32 %v1356, %v1370
      %v1393 = vmul.f32 %v1357, %v1370
      %v1394 = vmul.f32 %v1358, %v1370
      %v1395 = vmul.f32 %v1359, %v1370
      %v1396 = vmul.f32 %v1360, %v1370
      %v1397 = vmul.f32 %v1361, %v1370
      %v1398 = vmul.f32 %v1362, %v1370
      %v1399 = vmul.f32 %v1363, %v1370
      %v1400 = vmul.f32 %v1364, %v1370
      %v1401 = vmul.f32 %v1365, %v1370
      %v1402 = vmul.f32 %v1366, %v1370
      %v1403 = vadd.f32 %v1302, %v1371
      %v1404 = vadd.f32 %v1303, %v1372
      %v1405 = vadd.f32 %v1304, %v1373
      %v1406 = vadd.f32 %v1305, %v1374
      %v1407 = vadd.f32 %v1306, %v1375
      %v1408 = vadd.f32 %v1307, %v1376
      %v1409 = vadd.f32 %v1308, %v1377
      %v1410 = vadd.f32 %v1309, %v1378
      %v1411 = vadd.f32 %v1310, %v1379
      %v1412 = vadd.f32 %v1311, %v1380
      %v1413 = vadd.f32 %v1312, %v1381
      %v1414 = vadd.f32 %v1313, %v1382
      %v1415 = vadd.f32 %v1314, %v1383
      %v1416 = vadd.f32 %v1315, %v1384
      %v1417 = vadd.f32 %v1316, %v1385
      %v1418 = vadd.f32 %v1317, %v1386
      %v1419 = vadd.f32 %v1318, %v1387
      %v1420 = vadd.f32 %v1319, %v1388
      %v1421 = vadd.f32 %v1320, %v1389
      %v1422 = vadd.f32 %v1321, %v1390
      %v1423 = vadd.f32 %v1322, %v1391
      %v1424 = vadd.f32 %v1323, %v1392
      %v1425 = vadd.f32 %v1324, %v1393
      %v1426 = vadd.f32 %v1325, %v1394
      %v1427 = vadd.f32 %v1326, %v1395
      %v1428 = vadd.f32 %v1327, %v1396
      %v1429 = vadd.f32 %v1328, %v1397
      %v1430 = vadd.f32 %v1329, %v1398
      %v1431 = vadd.f32 %v1330, %v1399
      %v1432 = vadd.f32 %v1331, %v1400
      %v1433 = vadd.f32 %v1332, %v1401
      %v1434 = vadd.f32 %v1333, %v1402
      %v1435 = vld [vmem:[%s2 + $0x7] sm:$0x1]
      %s1436 = scalar_lea.vmem [#allocation2], 24
      %v1437 = vld [vmem:[%s1436] sm:$0xff]
      %v1438 = vld [vmem:[%s1436 + $0x8] sm:$0xff]
      %v1439 = vld [vmem:[%s1436 + $0x18] sm:$0xff]
      %v1440 = vld [vmem:[%s1436 + $0x20] sm:$0xff]
      %v1441 = vld [vmem:[%s1436 + $0x30] sm:$0xff]
      %v1442 = vld [vmem:[%s1436 + $0x38] sm:$0xff]
      %v1443 = vld [vmem:[%s1436 + $0x48] sm:$0xff]
      %v1444 = vld [vmem:[%s1436 + $0x50] sm:$0xff]
      %v1445 = vld [vmem:[%s1436 + $0x60] sm:$0xff]
      %v1446 = vld [vmem:[%s1436 + $0x68] sm:$0xff]
      %v1447 = vld [vmem:[%s1436 + $0x78] sm:$0xff]
      %v1448 = vld [vmem:[%s1436 + $0x80] sm:$0xff]
      %v1449 = vld [vmem:[%s1436 + $0x90] sm:$0xff]
      %v1450 = vld [vmem:[%s1436 + $0x98] sm:$0xff]
      %v1451 = vld [vmem:[%s1436 + $0xa8] sm:$0xff]
      %v1452 = vld [vmem:[%s1436 + $0xb0] sm:$0xff]
      %v1453 = vld [vmem:[%s1436 + $0xc0] sm:$0xff]
      %v1454 = vld [vmem:[%s1436 + $0xc8] sm:$0xff]
      %v1455 = vld [vmem:[%s1436 + $0xd8] sm:$0xff]
      %v1456 = vld [vmem:[%s1436 + $0xe0] sm:$0xff]
      %v1457 = vld [vmem:[%s1436 + $0xf0] sm:$0xff]
      %v1458 = vld [vmem:[%s1436 + $0xf8] sm:$0xff]
      %v1459 = vld [vmem:[%s1436 + $0x108] sm:$0xff]
      %v1460 = vld [vmem:[%s1436 + $0x110] sm:$0xff]
      %v1461 = vld [vmem:[%s1436 + $0x120] sm:$0xff]
      %v1462 = vld [vmem:[%s1436 + $0x128] sm:$0xff]
      %v1463 = vld [vmem:[%s1436 + $0x138] sm:$0xff]
      %v1464 = vld [vmem:[%s1436 + $0x140] sm:$0xff]
      %v1465 = vld [vmem:[%s1436 + $0x150] sm:$0xff]
      %v1466 = vld [vmem:[%s1436 + $0x158] sm:$0xff]
      %v1467 = vld [vmem:[%s1436 + $0x168] sm:$0xff]
      %v1468 = vld [vmem:[%s1436 + $0x170] sm:$0xff]
      %v1469 = vlaneseq
      %v1470 = vshrl.u32 %v1469, 7
      %v1471 = vsub.s32 0, %v1470
      %v1472 = vrot.slane %v1435, %v1471
      %v1473 = vmul.f32 %v1437, %v1472
      %v1474 = vmul.f32 %v1438, %v1472
      %v1475 = vmul.f32 %v1439, %v1472
      %v1476 = vmul.f32 %v1440, %v1472
      %v1477 = vmul.f32 %v1441, %v1472
      %v1478 = vmul.f32 %v1442, %v1472
      %v1479 = vmul.f32 %v1443, %v1472
      %v1480 = vmul.f32 %v1444, %v1472
      %v1481 = vmul.f32 %v1445, %v1472
      %v1482 = vmul.f32 %v1446, %v1472
      %v1483 = vmul.f32 %v1447, %v1472
      %v1484 = vmul.f32 %v1448, %v1472
      %v1485 = vmul.f32 %v1449, %v1472
      %v1486 = vmul.f32 %v1450, %v1472
      %v1487 = vmul.f32 %v1451, %v1472
      %v1488 = vmul.f32 %v1452, %v1472
      %v1489 = vmul.f32 %v1453, %v1472
      %v1490 = vmul.f32 %v1454, %v1472
      %v1491 = vmul.f32 %v1455, %v1472
      %v1492 = vmul.f32 %v1456, %v1472
      %v1493 = vmul.f32 %v1457, %v1472
      %v1494 = vmul.f32 %v1458, %v1472
      %v1495 = vmul.f32 %v1459, %v1472
      %v1496 = vmul.f32 %v1460, %v1472
      %v1497 = vmul.f32 %v1461, %v1472
      %v1498 = vmul.f32 %v1462, %v1472
      %v1499 = vmul.f32 %v1463, %v1472
      %v1500 = vmul.f32 %v1464, %v1472
      %v1501 = vmul.f32 %v1465, %v1472
      %v1502 = vmul.f32 %v1466, %v1472
      %v1503 = vmul.f32 %v1467, %v1472
      %v1504 = vmul.f32 %v1468, %v1472
      %v1505 = vadd.f32 %v1403, %v1473
      %v1506 = vadd.f32 %v1404, %v1474
      %v1507 = vadd.f32 %v1405, %v1475
      %v1508 = vadd.f32 %v1406, %v1476
      %v1509 = vadd.f32 %v1407, %v1477
      %v1510 = vadd.f32 %v1408, %v1478
      %v1511 = vadd.f32 %v1409, %v1479
      %v1512 = vadd.f32 %v1410, %v1480
      %v1513 = vadd.f32 %v1411, %v1481
      %v1514 = vadd.f32 %v1412, %v1482
      %v1515 = vadd.f32 %v1413, %v1483
      %v1516 = vadd.f32 %v1414, %v1484
      %v1517 = vadd.f32 %v1415, %v1485
      %v1518 = vadd.f32 %v1416, %v1486
      %v1519 = vadd.f32 %v1417, %v1487
      %v1520 = vadd.f32 %v1418, %v1488
      %v1521 = vadd.f32 %v1419, %v1489
      %v1522 = vadd.f32 %v1420, %v1490
      %v1523 = vadd.f32 %v1421, %v1491
      %v1524 = vadd.f32 %v1422, %v1492
      %v1525 = vadd.f32 %v1423, %v1493
      %v1526 = vadd.f32 %v1424, %v1494
      %v1527 = vadd.f32 %v1425, %v1495
      %v1528 = vadd.f32 %v1426, %v1496
      %v1529 = vadd.f32 %v1427, %v1497
      %v1530 = vadd.f32 %v1428, %v1498
      %v1531 = vadd.f32 %v1429, %v1499
      %v1532 = vadd.f32 %v1430, %v1500
      %v1533 = vadd.f32 %v1431, %v1501
      %v1534 = vadd.f32 %v1432, %v1502
      %v1535 = vadd.f32 %v1433, %v1503
      %v1536 = vadd.f32 %v1434, %v1504
      %v1537 = vld [vmem:[%s2 + $0x8] sm:$0x1]
      %v1538 = vld [vmem:[%s1436 + $0x1] sm:$0xff]
      %v1539 = vld [vmem:[%s1436 + $0x9] sm:$0xff]
      %v1540 = vld [vmem:[%s1436 + $0x19] sm:$0xff]
      %v1541 = vld [vmem:[%s1436 + $0x21] sm:$0xff]
      %v1542 = vld [vmem:[%s1436 + $0x31] sm:$0xff]
      %v1543 = vld [vmem:[%s1436 + $0x39] sm:$0xff]
      %v1544 = vld [vmem:[%s1436 + $0x49] sm:$0xff]
      %v1545 = vld [vmem:[%s1436 + $0x51] sm:$0xff]
      %v1546 = vld [vmem:[%s1436 + $0x61] sm:$0xff]
      %v1547 = vld [vmem:[%s1436 + $0x69] sm:$0xff]
      %v1548 = vld [vmem:[%s1436 + $0x79] sm:$0xff]
      %v1549 = vld [vmem:[%s1436 + $0x81] sm:$0xff]
      %v1550 = vld [vmem:[%s1436 + $0x91] sm:$0xff]
      %v1551 = vld [vmem:[%s1436 + $0x99] sm:$0xff]
      %v1552 = vld [vmem:[%s1436 + $0xa9] sm:$0xff]
      %v1553 = vld [vmem:[%s1436 + $0xb1] sm:$0xff]
      %v1554 = vld [vmem:[%s1436 + $0xc1] sm:$0xff]
      %v1555 = vld [vmem:[%s1436 + $0xc9] sm:$0xff]
      %v1556 = vld [vmem:[%s1436 + $0xd9] sm:$0xff]
      %v1557 = vld [vmem:[%s1436 + $0xe1] sm:$0xff]
      %v1558 = vld [vmem:[%s1436 + $0xf1] sm:$0xff]
      %v1559 = vld [vmem:[%s1436 + $0xf9] sm:$0xff]
      %v1560 = vld [vmem:[%s1436 + $0x109] sm:$0xff]
      %v1561 = vld [vmem:[%s1436 + $0x111] sm:$0xff]
      %v1562 = vld [vmem:[%s1436 + $0x121] sm:$0xff]
      %v1563 = vld [vmem:[%s1436 + $0x129] sm:$0xff]
      %v1564 = vld [vmem:[%s1436 + $0x139] sm:$0xff]
      %v1565 = vld [vmem:[%s1436 + $0x141] sm:$0xff]
      %v1566 = vld [vmem:[%s1436 + $0x151] sm:$0xff]
      %v1567 = vld [vmem:[%s1436 + $0x159] sm:$0xff]
      %v1568 = vld [vmem:[%s1436 + $0x169] sm:$0xff]
      %v1569 = vld [vmem:[%s1436 + $0x171] sm:$0xff]
      %v1570 = vlaneseq
      %v1571 = vshrl.u32 %v1570, 7
      %v1572 = vsub.s32 0, %v1571
      %v1573 = vrot.slane %v1537, %v1572
      %v1574 = vmul.f32 %v1538, %v1573
      %v1575 = vmul.f32 %v1539, %v1573
      %v1576 = vmul.f32 %v1540, %v1573
      %v1577 = vmul.f32 %v1541, %v1573
      %v1578 = vmul.f32 %v1542, %v1573
      %v1579 = vmul.f32 %v1543, %v1573
      %v1580 = vmul.f32 %v1544, %v1573
      %v1581 = vmul.f32 %v1545, %v1573
      %v1582 = vmul.f32 %v1546, %v1573
      %v1583 = vmul.f32 %v1547, %v1573
      %v1584 = vmul.f32 %v1548, %v1573
      %v1585 = vmul.f32 %v1549, %v1573
      %v1586 = vmul.f32 %v1550, %v1573
      %v1587 = vmul.f32 %v1551, %v1573
      %v1588 = vmul.f32 %v1552, %v1573
      %v1589 = vmul.f32 %v1553, %v1573
      %v1590 = vmul.f32 %v1554, %v1573
      %v1591 = vmul.f32 %v1555, %v1573
      %v1592 = vmul.f32 %v1556, %v1573
      %v1593 = vmul.f32 %v1557, %v1573
      %v1594 = vmul.f32 %v1558, %v1573
      %v1595 = vmul.f32 %v1559, %v1573
      %v1596 = vmul.f32 %v1560, %v1573
      %v1597 = vmul.f32 %v1561, %v1573
      %v1598 = vmul.f32 %v1562, %v1573
      %v1599 = vmul.f32 %v1563, %v1573
      %v1600 = vmul.f32 %v1564, %v1573
      %v1601 = vmul.f32 %v1565, %v1573
      %v1602 = vmul.f32 %v1566, %v1573
      %v1603 = vmul.f32 %v1567, %v1573
      %v1604 = vmul.f32 %v1568, %v1573
      %v1605 = vmul.f32 %v1569, %v1573
      %v1606 = vadd.f32 %v1505, %v1574
      %v1607 = vadd.f32 %v1506, %v1575
      %v1608 = vadd.f32 %v1507, %v1576
      %v1609 = vadd.f32 %v1508, %v1577
      %v1610 = vadd.f32 %v1509, %v1578
      %v1611 = vadd.f32 %v1510, %v1579
      %v1612 = vadd.f32 %v1511, %v1580
      %v1613 = vadd.f32 %v1512, %v1581
      %v1614 = vadd.f32 %v1513, %v1582
      %v1615 = vadd.f32 %v1514, %v1583
      %v1616 = vadd.f32 %v1515, %v1584
      %v1617 = vadd.f32 %v1516, %v1585
      %v1618 = vadd.f32 %v1517, %v1586
      %v1619 = vadd.f32 %v1518, %v1587
      %v1620 = vadd.f32 %v1519, %v1588
      %v1621 = vadd.f32 %v1520, %v1589
      %v1622 = vadd.f32 %v1521, %v1590
      %v1623 = vadd.f32 %v1522, %v1591
      %v1624 = vadd.f32 %v1523, %v1592
      %v1625 = vadd.f32 %v1524, %v1593
      %v1626 = vadd.f32 %v1525, %v1594
      %v1627 = vadd.f32 %v1526, %v1595
      %v1628 = vadd.f32 %v1527, %v1596
      %v1629 = vadd.f32 %v1528, %v1597
      %v1630 = vadd.f32 %v1529, %v1598
      %v1631 = vadd.f32 %v1530, %v1599
      %v1632 = vadd.f32 %v1531, %v1600
      %v1633 = vadd.f32 %v1532, %v1601
      %v1634 = vadd.f32 %v1533, %v1602
      %v1635 = vadd.f32 %v1534, %v1603
      %v1636 = vadd.f32 %v1535, %v1604
      %v1637 = vadd.f32 %v1536, %v1605
      %v1638 = vld [vmem:[%s2 + $0x9] sm:$0x1]
      %v1639 = vld [vmem:[%s1436 + $0x2] sm:$0xff]
      %v1640 = vld [vmem:[%s1436 + $0xa] sm:$0xff]
      %v1641 = vld [vmem:[%s1436 + $0x1a] sm:$0xff]
      %v1642 = vld [vmem:[%s1436 + $0x22] sm:$0xff]
      %v1643 = vld [vmem:[%s1436 + $0x32] sm:$0xff]
      %v1644 = vld [vmem:[%s1436 + $0x3a] sm:$0xff]
      %v1645 = vld [vmem:[%s1436 + $0x4a] sm:$0xff]
      %v1646 = vld [vmem:[%s1436 + $0x52] sm:$0xff]
      %v1647 = vld [vmem:[%s1436 + $0x62] sm:$0xff]
      %v1648 = vld [vmem:[%s1436 + $0x6a] sm:$0xff]
      %v1649 = vld [vmem:[%s1436 + $0x7a] sm:$0xff]
      %v1650 = vld [vmem:[%s1436 + $0x82] sm:$0xff]
      %v1651 = vld [vmem:[%s1436 + $0x92] sm:$0xff]
      %v1652 = vld [vmem:[%s1436 + $0x9a] sm:$0xff]
      %v1653 = vld [vmem:[%s1436 + $0xaa] sm:$0xff]
      %v1654 = vld [vmem:[%s1436 + $0xb2] sm:$0xff]
      %v1655 = vld [vmem:[%s1436 + $0xc2] sm:$0xff]
      %v1656 = vld [vmem:[%s1436 + $0xca] sm:$0xff]
      %v1657 = vld [vmem:[%s1436 + $0xda] sm:$0xff]
      %v1658 = vld [vmem:[%s1436 + $0xe2] sm:$0xff]
      %v1659 = vld [vmem:[%s1436 + $0xf2] sm:$0xff]
      %v1660 = vld [vmem:[%s1436 + $0xfa] sm:$0xff]
      %v1661 = vld [vmem:[%s1436 + $0x10a] sm:$0xff]
      %v1662 = vld [vmem:[%s1436 + $0x112] sm:$0xff]
      %v1663 = vld [vmem:[%s1436 + $0x122] sm:$0xff]
      %v1664 = vld [vmem:[%s1436 + $0x12a] sm:$0xff]
      %v1665 = vld [vmem:[%s1436 + $0x13a] sm:$0xff]
      %v1666 = vld [vmem:[%s1436 + $0x142] sm:$0xff]
      %v1667 = vld [vmem:[%s1436 + $0x152] sm:$0xff]
      %v1668 = vld [vmem:[%s1436 + $0x15a] sm:$0xff]
      %v1669 = vld [vmem:[%s1436 + $0x16a] sm:$0xff]
      %v1670 = vld [vmem:[%s1436 + $0x172] sm:$0xff]
      %v1671 = vlaneseq
      %v1672 = vshrl.u32 %v1671, 7
      %v1673 = vsub.s32 0, %v1672
      %v1674 = vrot.slane %v1638, %v1673
      %v1675 = vmul.f32 %v1639, %v1674
      %v1676 = vmul.f32 %v1640, %v1674
      %v1677 = vmul.f32 %v1641, %v1674
      %v1678 = vmul.f32 %v1642, %v1674
      %v1679 = vmul.f32 %v1643, %v1674
      %v1680 = vmul.f32 %v1644, %v1674
      %v1681 = vmul.f32 %v1645, %v1674
      %v1682 = vmul.f32 %v1646, %v1674
      %v1683 = vmul.f32 %v1647, %v1674
      %v1684 = vmul.f32 %v1648, %v1674
      %v1685 = vmul.f32 %v1649, %v1674
      %v1686 = vmul.f32 %v1650, %v1674
      %v1687 = vmul.f32 %v1651, %v1674
      %v1688 = vmul.f32 %v1652, %v1674
      %v1689 = vmul.f32 %v1653, %v1674
      %v1690 = vmul.f32 %v1654, %v1674
      %v1691 = vmul.f32 %v1655, %v1674
      %v1692 = vmul.f32 %v1656, %v1674
      %v1693 = vmul.f32 %v1657, %v1674
      %v1694 = vmul.f32 %v1658, %v1674
      %v1695 = vmul.f32 %v1659, %v1674
      %v1696 = vmul.f32 %v1660, %v1674
      %v1697 = vmul.f32 %v1661, %v1674
      %v1698 = vmul.f32 %v1662, %v1674
      %v1699 = vmul.f32 %v1663, %v1674
      %v1700 = vmul.f32 %v1664, %v1674
      %v1701 = vmul.f32 %v1665, %v1674
      %v1702 = vmul.f32 %v1666, %v1674
      %v1703 = vmul.f32 %v1667, %v1674
      %v1704 = vmul.f32 %v1668, %v1674
      %v1705 = vmul.f32 %v1669, %v1674
      %v1706 = vmul.f32 %v1670, %v1674
      %v1707 = vadd.f32 %v1606, %v1675
      %v1708 = vadd.f32 %v1607, %v1676
      %v1709 = vadd.f32 %v1608, %v1677
      %v1710 = vadd.f32 %v1609, %v1678
      %v1711 = vadd.f32 %v1610, %v1679
      %v1712 = vadd.f32 %v1611, %v1680
      %v1713 = vadd.f32 %v1612, %v1681
      %v1714 = vadd.f32 %v1613, %v1682
      %v1715 = vadd.f32 %v1614, %v1683
      %v1716 = vadd.f32 %v1615, %v1684
      %v1717 = vadd.f32 %v1616, %v1685
      %v1718 = vadd.f32 %v1617, %v1686
      %v1719 = vadd.f32 %v1618, %v1687
      %v1720 = vadd.f32 %v1619, %v1688
      %v1721 = vadd.f32 %v1620, %v1689
      %v1722 = vadd.f32 %v1621, %v1690
      %v1723 = vadd.f32 %v1622, %v1691
      %v1724 = vadd.f32 %v1623, %v1692
      %v1725 = vadd.f32 %v1624, %v1693
      %v1726 = vadd.f32 %v1625, %v1694
      %v1727 = vadd.f32 %v1626, %v1695
      %v1728 = vadd.f32 %v1627, %v1696
      %v1729 = vadd.f32 %v1628, %v1697
      %v1730 = vadd.f32 %v1629, %v1698
      %v1731 = vadd.f32 %v1630, %v1699
      %v1732 = vadd.f32 %v1631, %v1700
      %v1733 = vadd.f32 %v1632, %v1701
      %v1734 = vadd.f32 %v1633, %v1702
      %v1735 = vadd.f32 %v1634, %v1703
      %v1736 = vadd.f32 %v1635, %v1704
      %v1737 = vadd.f32 %v1636, %v1705
      %v1738 = vadd.f32 %v1637, %v1706
      %v1739 = vld [vmem:[%s2 + $0xa] sm:$0x1]
      %v1740 = vld [vmem:[%s1436 + $0x3] sm:$0xff]
      %v1741 = vld [vmem:[%s1436 + $0xb] sm:$0xff]
      %v1742 = vld [vmem:[%s1436 + $0x1b] sm:$0xff]
      %v1743 = vld [vmem:[%s1436 + $0x23] sm:$0xff]
      %v1744 = vld [vmem:[%s1436 + $0x33] sm:$0xff]
      %v1745 = vld [vmem:[%s1436 + $0x3b] sm:$0xff]
      %v1746 = vld [vmem:[%s1436 + $0x4b] sm:$0xff]
      %v1747 = vld [vmem:[%s1436 + $0x53] sm:$0xff]
      %v1748 = vld [vmem:[%s1436 + $0x63] sm:$0xff]
      %v1749 = vld [vmem:[%s1436 + $0x6b] sm:$0xff]
      %v1750 = vld [vmem:[%s1436 + $0x7b] sm:$0xff]
      %v1751 = vld [vmem:[%s1436 + $0x83] sm:$0xff]
      %v1752 = vld [vmem:[%s1436 + $0x93] sm:$0xff]
      %v1753 = vld [vmem:[%s1436 + $0x9b] sm:$0xff]
      %v1754 = vld [vmem:[%s1436 + $0xab] sm:$0xff]
      %v1755 = vld [vmem:[%s1436 + $0xb3] sm:$0xff]
      %v1756 = vld [vmem:[%s1436 + $0xc3] sm:$0xff]
      %v1757 = vld [vmem:[%s1436 + $0xcb] sm:$0xff]
      %v1758 = vld [vmem:[%s1436 + $0xdb] sm:$0xff]
      %v1759 = vld [vmem:[%s1436 + $0xe3] sm:$0xff]
      %v1760 = vld [vmem:[%s1436 + $0xf3] sm:$0xff]
      %v1761 = vld [vmem:[%s1436 + $0xfb] sm:$0xff]
      %v1762 = vld [vmem:[%s1436 + $0x10b] sm:$0xff]
      %v1763 = vld [vmem:[%s1436 + $0x113] sm:$0xff]
      %v1764 = vld [vmem:[%s1436 + $0x123] sm:$0xff]
      %v1765 = vld [vmem:[%s1436 + $0x12b] sm:$0xff]
      %v1766 = vld [vmem:[%s1436 + $0x13b] sm:$0xff]
      %v1767 = vld [vmem:[%s1436 + $0x143] sm:$0xff]
      %v1768 = vld [vmem:[%s1436 + $0x153] sm:$0xff]
      %v1769 = vld [vmem:[%s1436 + $0x15b] sm:$0xff]
      %v1770 = vld [vmem:[%s1436 + $0x16b] sm:$0xff]
      %v1771 = vld [vmem:[%s1436 + $0x173] sm:$0xff]
      %v1772 = vlaneseq
      %v1773 = vshrl.u32 %v1772, 7
      %v1774 = vsub.s32 0, %v1773
      %v1775 = vrot.slane %v1739, %v1774
      %v1776 = vmul.f32 %v1740, %v1775
      %v1777 = vmul.f32 %v1741, %v1775
      %v1778 = vmul.f32 %v1742, %v1775
      %v1779 = vmul.f32 %v1743, %v1775
      %v1780 = vmul.f32 %v1744, %v1775
      %v1781 = vmul.f32 %v1745, %v1775
      %v1782 = vmul.f32 %v1746, %v1775
      %v1783 = vmul.f32 %v1747, %v1775
      %v1784 = vmul.f32 %v1748, %v1775
      %v1785 = vmul.f32 %v1749, %v1775
      %v1786 = vmul.f32 %v1750, %v1775
      %v1787 = vmul.f32 %v1751, %v1775
      %v1788 = vmul.f32 %v1752, %v1775
      %v1789 = vmul.f32 %v1753, %v1775
      %v1790 = vmul.f32 %v1754, %v1775
      %v1791 = vmul.f32 %v1755, %v1775
      %v1792 = vmul.f32 %v1756, %v1775
      %v1793 = vmul.f32 %v1757, %v1775
      %v1794 = vmul.f32 %v1758, %v1775
      %v1795 = vmul.f32 %v1759, %v1775
      %v1796 = vmul.f32 %v1760, %v1775
      %v1797 = vmul.f32 %v1761, %v1775
      %v1798 = vmul.f32 %v1762, %v1775
      %v1799 = vmul.f32 %v1763, %v1775
      %v1800 = vmul.f32 %v1764, %v1775
      %v1801 = vmul.f32 %v1765, %v1775
      %v1802 = vmul.f32 %v1766, %v1775
      %v1803 = vmul.f32 %v1767, %v1775
      %v1804 = vmul.f32 %v1768, %v1775
      %v1805 = vmul.f32 %v1769, %v1775
      %v1806 = vmul.f32 %v1770, %v1775
      %v1807 = vmul.f32 %v1771, %v1775
      %v1808 = vadd.f32 %v1707, %v1776
      %v1809 = vadd.f32 %v1708, %v1777
      %v1810 = vadd.f32 %v1709, %v1778
      %v1811 = vadd.f32 %v1710, %v1779
      %v1812 = vadd.f32 %v1711, %v1780
      %v1813 = vadd.f32 %v1712, %v1781
      %v1814 = vadd.f32 %v1713, %v1782
      %v1815 = vadd.f32 %v1714, %v1783
      %v1816 = vadd.f32 %v1715, %v1784
      %v1817 = vadd.f32 %v1716, %v1785
      %v1818 = vadd.f32 %v1717, %v1786
      %v1819 = vadd.f32 %v1718, %v1787
      %v1820 = vadd.f32 %v1719, %v1788
      %v1821 = vadd.f32 %v1720, %v1789
      %v1822 = vadd.f32 %v1721, %v1790
      %v1823 = vadd.f32 %v1722, %v1791
      %v1824 = vadd.f32 %v1723, %v1792
      %v1825 = vadd.f32 %v1724, %v1793
      %v1826 = vadd.f32 %v1725, %v1794
      %v1827 = vadd.f32 %v1726, %v1795
      %v1828 = vadd.f32 %v1727, %v1796
      %v1829 = vadd.f32 %v1728, %v1797
      %v1830 = vadd.f32 %v1729, %v1798
      %v1831 = vadd.f32 %v1730, %v1799
      %v1832 = vadd.f32 %v1731, %v1800
      %v1833 = vadd.f32 %v1732, %v1801
      %v1834 = vadd.f32 %v1733, %v1802
      %v1835 = vadd.f32 %v1734, %v1803
      %v1836 = vadd.f32 %v1735, %v1804
      %v1837 = vadd.f32 %v1736, %v1805
      %v1838 = vadd.f32 %v1737, %v1806
      %v1839 = vadd.f32 %v1738, %v1807
      %v1840 = vld [vmem:[%s2 + $0xb] sm:$0x1]
      %v1841 = vld [vmem:[%s1436 + $0x4] sm:$0xff]
      %v1842 = vld [vmem:[%s1436 + $0xc] sm:$0xff]
      %v1843 = vld [vmem:[%s1436 + $0x1c] sm:$0xff]
      %v1844 = vld [vmem:[%s1436 + $0x24] sm:$0xff]
      %v1845 = vld [vmem:[%s1436 + $0x34] sm:$0xff]
      %v1846 = vld [vmem:[%s1436 + $0x3c] sm:$0xff]
      %v1847 = vld [vmem:[%s1436 + $0x4c] sm:$0xff]
      %v1848 = vld [vmem:[%s1436 + $0x54] sm:$0xff]
      %v1849 = vld [vmem:[%s1436 + $0x64] sm:$0xff]
      %v1850 = vld [vmem:[%s1436 + $0x6c] sm:$0xff]
      %v1851 = vld [vmem:[%s1436 + $0x7c] sm:$0xff]
      %v1852 = vld [vmem:[%s1436 + $0x84] sm:$0xff]
      %v1853 = vld [vmem:[%s1436 + $0x94] sm:$0xff]
      %v1854 = vld [vmem:[%s1436 + $0x9c] sm:$0xff]
      %v1855 = vld [vmem:[%s1436 + $0xac] sm:$0xff]
      %v1856 = vld [vmem:[%s1436 + $0xb4] sm:$0xff]
      %v1857 = vld [vmem:[%s1436 + $0xc4] sm:$0xff]
      %v1858 = vld [vmem:[%s1436 + $0xcc] sm:$0xff]
      %v1859 = vld [vmem:[%s1436 + $0xdc] sm:$0xff]
      %v1860 = vld [vmem:[%s1436 + $0xe4] sm:$0xff]
      %v1861 = vld [vmem:[%s1436 + $0xf4] sm:$0xff]
      %v1862 = vld [vmem:[%s1436 + $0xfc] sm:$0xff]
      %v1863 = vld [vmem:[%s1436 + $0x10c] sm:$0xff]
      %v1864 = vld [vmem:[%s1436 + $0x114] sm:$0xff]
      %v1865 = vld [vmem:[%s1436 + $0x124] sm:$0xff]
      %v1866 = vld [vmem:[%s1436 + $0x12c] sm:$0xff]
      %v1867 = vld [vmem:[%s1436 + $0x13c] sm:$0xff]
      %v1868 = vld [vmem:[%s1436 + $0x144] sm:$0xff]
      %v1869 = vld [vmem:[%s1436 + $0x154] sm:$0xff]
      %v1870 = vld [vmem:[%s1436 + $0x15c] sm:$0xff]
      %v1871 = vld [vmem:[%s1436 + $0x16c] sm:$0xff]
      %v1872 = vld [vmem:[%s1436 + $0x174] sm:$0xff]
      %v1873 = vlaneseq
      %v1874 = vshrl.u32 %v1873, 7
      %v1875 = vsub.s32 0, %v1874
      %v1876 = vrot.slane %v1840, %v1875
      %v1877 = vmul.f32 %v1841, %v1876
      %v1878 = vmul.f32 %v1842, %v1876
      %v1879 = vmul.f32 %v1843, %v1876
      %v1880 = vmul.f32 %v1844, %v1876
      %v1881 = vmul.f32 %v1845, %v1876
      %v1882 = vmul.f32 %v1846, %v1876
      %v1883 = vmul.f32 %v1847, %v1876
      %v1884 = vmul.f32 %v1848, %v1876
      %v1885 = vmul.f32 %v1849, %v1876
      %v1886 = vmul.f32 %v1850, %v1876
      %v1887 = vmul.f32 %v1851, %v1876
      %v1888 = vmul.f32 %v1852, %v1876
      %v1889 = vmul.f32 %v1853, %v1876
      %v1890 = vmul.f32 %v1854, %v1876
      %v1891 = vmul.f32 %v1855, %v1876
      %v1892 = vmul.f32 %v1856, %v1876
      %v1893 = vmul.f32 %v1857, %v1876
      %v1894 = vmul.f32 %v1858, %v1876
      %v1895 = vmul.f32 %v1859, %v1876
      %v1896 = vmul.f32 %v1860, %v1876
      %v1897 = vmul.f32 %v1861, %v1876
      %v1898 = vmul.f32 %v1862, %v1876
      %v1899 = vmul.f32 %v1863, %v1876
      %v1900 = vmul.f32 %v1864, %v1876
      %v1901 = vmul.f32 %v1865, %v1876
      %v1902 = vmul.f32 %v1866, %v1876
      %v1903 = vmul.f32 %v1867, %v1876
      %v1904 = vmul.f32 %v1868, %v1876
      %v1905 = vmul.f32 %v1869, %v1876
      %v1906 = vmul.f32 %v1870, %v1876
      %v1907 = vmul.f32 %v1871, %v1876
      %v1908 = vmul.f32 %v1872, %v1876
      %v1909 = vadd.f32 %v1808, %v1877
      %v1910 = vadd.f32 %v1809, %v1878
      %v1911 = vadd.f32 %v1810, %v1879
      %v1912 = vadd.f32 %v1811, %v1880
      %v1913 = vadd.f32 %v1812, %v1881
      %v1914 = vadd.f32 %v1813, %v1882
      %v1915 = vadd.f32 %v1814, %v1883
      %v1916 = vadd.f32 %v1815, %v1884
      %v1917 = vadd.f32 %v1816, %v1885
      %v1918 = vadd.f32 %v1817, %v1886
      %v1919 = vadd.f32 %v1818, %v1887
      %v1920 = vadd.f32 %v1819, %v1888
      %v1921 = vadd.f32 %v1820, %v1889
      %v1922 = vadd.f32 %v1821, %v1890
      %v1923 = vadd.f32 %v1822, %v1891
      %v1924 = vadd.f32 %v1823, %v1892
      %v1925 = vadd.f32 %v1824, %v1893
      %v1926 = vadd.f32 %v1825, %v1894
      %v1927 = vadd.f32 %v1826, %v1895
      %v1928 = vadd.f32 %v1827, %v1896
      %v1929 = vadd.f32 %v1828, %v1897
      %v1930 = vadd.f32 %v1829, %v1898
      %v1931 = vadd.f32 %v1830, %v1899
      %v1932 = vadd.f32 %v1831, %v1900
      %v1933 = vadd.f32 %v1832, %v1901
      %v1934 = vadd.f32 %v1833, %v1902
      %v1935 = vadd.f32 %v1834, %v1903
      %v1936 = vadd.f32 %v1835, %v1904
      %v1937 = vadd.f32 %v1836, %v1905
      %v1938 = vadd.f32 %v1837, %v1906
      %v1939 = vadd.f32 %v1838, %v1907
      %v1940 = vadd.f32 %v1839, %v1908
      %v1941 = vld [vmem:[%s2 + $0xc] sm:$0x1]
      %v1942 = vld [vmem:[%s1436 + $0x5] sm:$0xff]
      %v1943 = vld [vmem:[%s1436 + $0xd] sm:$0xff]
      %v1944 = vld [vmem:[%s1436 + $0x1d] sm:$0xff]
      %v1945 = vld [vmem:[%s1436 + $0x25] sm:$0xff]
      %v1946 = vld [vmem:[%s1436 + $0x35] sm:$0xff]
      %v1947 = vld [vmem:[%s1436 + $0x3d] sm:$0xff]
      %v1948 = vld [vmem:[%s1436 + $0x4d] sm:$0xff]
      %v1949 = vld [vmem:[%s1436 + $0x55] sm:$0xff]
      %v1950 = vld [vmem:[%s1436 + $0x65] sm:$0xff]
      %v1951 = vld [vmem:[%s1436 + $0x6d] sm:$0xff]
      %v1952 = vld [vmem:[%s1436 + $0x7d] sm:$0xff]
      %v1953 = vld [vmem:[%s1436 + $0x85] sm:$0xff]
      %v1954 = vld [vmem:[%s1436 + $0x95] sm:$0xff]
      %v1955 = vld [vmem:[%s1436 + $0x9d] sm:$0xff]
      %v1956 = vld [vmem:[%s1436 + $0xad] sm:$0xff]
      %v1957 = vld [vmem:[%s1436 + $0xb5] sm:$0xff]
      %v1958 = vld [vmem:[%s1436 + $0xc5] sm:$0xff]
      %v1959 = vld [vmem:[%s1436 + $0xcd] sm:$0xff]
      %v1960 = vld [vmem:[%s1436 + $0xdd] sm:$0xff]
      %v1961 = vld [vmem:[%s1436 + $0xe5] sm:$0xff]
      %v1962 = vld [vmem:[%s1436 + $0xf5] sm:$0xff]
      %v1963 = vld [vmem:[%s1436 + $0xfd] sm:$0xff]
      %v1964 = vld [vmem:[%s1436 + $0x10d] sm:$0xff]
      %v1965 = vld [vmem:[%s1436 + $0x115] sm:$0xff]
      %v1966 = vld [vmem:[%s1436 + $0x125] sm:$0xff]
      %v1967 = vld [vmem:[%s1436 + $0x12d] sm:$0xff]
      %v1968 = vld [vmem:[%s1436 + $0x13d] sm:$0xff]
      %v1969 = vld [vmem:[%s1436 + $0x145] sm:$0xff]
      %v1970 = vld [vmem:[%s1436 + $0x155] sm:$0xff]
      %v1971 = vld [vmem:[%s1436 + $0x15d] sm:$0xff]
      %v1972 = vld [vmem:[%s1436 + $0x16d] sm:$0xff]
      %v1973 = vld [vmem:[%s1436 + $0x175] sm:$0xff]
      %v1974 = vlaneseq
      %v1975 = vshrl.u32 %v1974, 7
      %v1976 = vsub.s32 0, %v1975
      %v1977 = vrot.slane %v1941, %v1976
      %v1978 = vmul.f32 %v1942, %v1977
      %v1979 = vmul.f32 %v1943, %v1977
      %v1980 = vmul.f32 %v1944, %v1977
      %v1981 = vmul.f32 %v1945, %v1977
      %v1982 = vmul.f32 %v1946, %v1977
      %v1983 = vmul.f32 %v1947, %v1977
      %v1984 = vmul.f32 %v1948, %v1977
      %v1985 = vmul.f32 %v1949, %v1977
      %v1986 = vmul.f32 %v1950, %v1977
      %v1987 = vmul.f32 %v1951, %v1977
      %v1988 = vmul.f32 %v1952, %v1977
      %v1989 = vmul.f32 %v1953, %v1977
      %v1990 = vmul.f32 %v1954, %v1977
      %v1991 = vmul.f32 %v1955, %v1977
      %v1992 = vmul.f32 %v1956, %v1977
      %v1993 = vmul.f32 %v1957, %v1977
      %v1994 = vmul.f32 %v1958, %v1977
      %v1995 = vmul.f32 %v1959, %v1977
      %v1996 = vmul.f32 %v1960, %v1977
      %v1997 = vmul.f32 %v1961, %v1977
      %v1998 = vmul.f32 %v1962, %v1977
      %v1999 = vmul.f32 %v1963, %v1977
      %v2000 = vmul.f32 %v1964, %v1977
      %v2001 = vmul.f32 %v1965, %v1977
      %v2002 = vmul.f32 %v1966, %v1977
      %v2003 = vmul.f32 %v1967, %v1977
      %v2004 = vmul.f32 %v1968, %v1977
      %v2005 = vmul.f32 %v1969, %v1977
      %v2006 = vmul.f32 %v1970, %v1977
      %v2007 = vmul.f32 %v1971, %v1977
      %v2008 = vmul.f32 %v1972, %v1977
      %v2009 = vmul.f32 %v1973, %v1977
      %v2010 = vadd.f32 %v1909, %v1978
      %v2011 = vadd.f32 %v1910, %v1979
      %v2012 = vadd.f32 %v1911, %v1980
      %v2013 = vadd.f32 %v1912, %v1981
      %v2014 = vadd.f32 %v1913, %v1982
      %v2015 = vadd.f32 %v1914, %v1983
      %v2016 = vadd.f32 %v1915, %v1984
      %v2017 = vadd.f32 %v1916, %v1985
      %v2018 = vadd.f32 %v1917, %v1986
      %v2019 = vadd.f32 %v1918, %v1987
      %v2020 = vadd.f32 %v1919, %v1988
      %v2021 = vadd.f32 %v1920, %v1989
      %v2022 = vadd.f32 %v1921, %v1990
      %v2023 = vadd.f32 %v1922, %v1991
      %v2024 = vadd.f32 %v1923, %v1992
      %v2025 = vadd.f32 %v1924, %v1993
      %v2026 = vadd.f32 %v1925, %v1994
      %v2027 = vadd.f32 %v1926, %v1995
      %v2028 = vadd.f32 %v1927, %v1996
      %v2029 = vadd.f32 %v1928, %v1997
      %v2030 = vadd.f32 %v1929, %v1998
      %v2031 = vadd.f32 %v1930, %v1999
      %v2032 = vadd.f32 %v1931, %v2000
      %v2033 = vadd.f32 %v1932, %v2001
      %v2034 = vadd.f32 %v1933, %v2002
      %v2035 = vadd.f32 %v1934, %v2003
      %v2036 = vadd.f32 %v1935, %v2004
      %v2037 = vadd.f32 %v1936, %v2005
      %v2038 = vadd.f32 %v1937, %v2006
      %v2039 = vadd.f32 %v1938, %v2007
      %v2040 = vadd.f32 %v1939, %v2008
      %v2041 = vadd.f32 %v1940, %v2009
      %v2042 = vld [vmem:[%s2 + $0xd] sm:$0x1]
      %v2043 = vld [vmem:[%s1436 + $0x6] sm:$0xff]
      %v2044 = vld [vmem:[%s1436 + $0xe] sm:$0xff]
      %v2045 = vld [vmem:[%s1436 + $0x1e] sm:$0xff]
      %v2046 = vld [vmem:[%s1436 + $0x26] sm:$0xff]
      %v2047 = vld [vmem:[%s1436 + $0x36] sm:$0xff]
      %v2048 = vld [vmem:[%s1436 + $0x3e] sm:$0xff]
      %v2049 = vld [vmem:[%s1436 + $0x4e] sm:$0xff]
      %v2050 = vld [vmem:[%s1436 + $0x56] sm:$0xff]
      %v2051 = vld [vmem:[%s1436 + $0x66] sm:$0xff]
      %v2052 = vld [vmem:[%s1436 + $0x6e] sm:$0xff]
      %v2053 = vld [vmem:[%s1436 + $0x7e] sm:$0xff]
      %v2054 = vld [vmem:[%s1436 + $0x86] sm:$0xff]
      %v2055 = vld [vmem:[%s1436 + $0x96] sm:$0xff]
      %v2056 = vld [vmem:[%s1436 + $0x9e] sm:$0xff]
      %v2057 = vld [vmem:[%s1436 + $0xae] sm:$0xff]
      %v2058 = vld [vmem:[%s1436 + $0xb6] sm:$0xff]
      %v2059 = vld [vmem:[%s1436 + $0xc6] sm:$0xff]
      %v2060 = vld [vmem:[%s1436 + $0xce] sm:$0xff]
      %v2061 = vld [vmem:[%s1436 + $0xde] sm:$0xff]
      %v2062 = vld [vmem:[%s1436 + $0xe6] sm:$0xff]
      %v2063 = vld [vmem:[%s1436 + $0xf6] sm:$0xff]
      %v2064 = vld [vmem:[%s1436 + $0xfe] sm:$0xff]
      %v2065 = vld [vmem:[%s1436 + $0x10e] sm:$0xff]
      %v2066 = vld [vmem:[%s1436 + $0x116] sm:$0xff]
      %v2067 = vld [vmem:[%s1436 + $0x126] sm:$0xff]
      %v2068 = vld [vmem:[%s1436 + $0x12e] sm:$0xff]
      %v2069 = vld [vmem:[%s1436 + $0x13e] sm:$0xff]
      %v2070 = vld [vmem:[%s1436 + $0x146] sm:$0xff]
      %v2071 = vld [vmem:[%s1436 + $0x156] sm:$0xff]
      %v2072 = vld [vmem:[%s1436 + $0x15e] sm:$0xff]
      %v2073 = vld [vmem:[%s1436 + $0x16e] sm:$0xff]
      %v2074 = vld [vmem:[%s1436 + $0x176] sm:$0xff]
      %v2075 = vlaneseq
      %v2076 = vshrl.u32 %v2075, 7
      %v2077 = vsub.s32 0, %v2076
      %v2078 = vrot.slane %v2042, %v2077
      %v2079 = vmul.f32 %v2043, %v2078
      %v2080 = vmul.f32 %v2044, %v2078
      %v2081 = vmul.f32 %v2045, %v2078
      %v2082 = vmul.f32 %v2046, %v2078
      %v2083 = vmul.f32 %v2047, %v2078
      %v2084 = vmul.f32 %v2048, %v2078
      %v2085 = vmul.f32 %v2049, %v2078
      %v2086 = vmul.f32 %v2050, %v2078
      %v2087 = vmul.f32 %v2051, %v2078
      %v2088 = vmul.f32 %v2052, %v2078
      %v2089 = vmul.f32 %v2053, %v2078
      %v2090 = vmul.f32 %v2054, %v2078
      %v2091 = vmul.f32 %v2055, %v2078
      %v2092 = vmul.f32 %v2056, %v2078
      %v2093 = vmul.f32 %v2057, %v2078
      %v2094 = vmul.f32 %v2058, %v2078
      %v2095 = vmul.f32 %v2059, %v2078
      %v2096 = vmul.f32 %v2060, %v2078
      %v2097 = vmul.f32 %v2061, %v2078
      %v2098 = vmul.f32 %v2062, %v2078
      %v2099 = vmul.f32 %v2063, %v2078
      %v2100 = vmul.f32 %v2064, %v2078
      %v2101 = vmul.f32 %v2065, %v2078
      %v2102 = vmul.f32 %v2066, %v2078
      %v2103 = vmul.f32 %v2067, %v2078
      %v2104 = vmul.f32 %v2068, %v2078
      %v2105 = vmul.f32 %v2069, %v2078
      %v2106 = vmul.f32 %v2070, %v2078
      %v2107 = vmul.f32 %v2071, %v2078
      %v2108 = vmul.f32 %v2072, %v2078
      %v2109 = vmul.f32 %v2073, %v2078
      %v2110 = vmul.f32 %v2074, %v2078
      %v2111 = vadd.f32 %v2010, %v2079
      %v2112 = vadd.f32 %v2011, %v2080
      %v2113 = vadd.f32 %v2012, %v2081
      %v2114 = vadd.f32 %v2013, %v2082
      %v2115 = vadd.f32 %v2014, %v2083
      %v2116 = vadd.f32 %v2015, %v2084
      %v2117 = vadd.f32 %v2016, %v2085
      %v2118 = vadd.f32 %v2017, %v2086
      %v2119 = vadd.f32 %v2018, %v2087
      %v2120 = vadd.f32 %v2019, %v2088
      %v2121 = vadd.f32 %v2020, %v2089
      %v2122 = vadd.f32 %v2021, %v2090
      %v2123 = vadd.f32 %v2022, %v2091
      %v2124 = vadd.f32 %v2023, %v2092
      %v2125 = vadd.f32 %v2024, %v2093
      %v2126 = vadd.f32 %v2025, %v2094
      %v2127 = vadd.f32 %v2026, %v2095
      %v2128 = vadd.f32 %v2027, %v2096
      %v2129 = vadd.f32 %v2028, %v2097
      %v2130 = vadd.f32 %v2029, %v2098
      %v2131 = vadd.f32 %v2030, %v2099
      %v2132 = vadd.f32 %v2031, %v2100
      %v2133 = vadd.f32 %v2032, %v2101
      %v2134 = vadd.f32 %v2033, %v2102
      %v2135 = vadd.f32 %v2034, %v2103
      %v2136 = vadd.f32 %v2035, %v2104
      %v2137 = vadd.f32 %v2036, %v2105
      %v2138 = vadd.f32 %v2037, %v2106
      %v2139 = vadd.f32 %v2038, %v2107
      %v2140 = vadd.f32 %v2039, %v2108
      %v2141 = vadd.f32 %v2040, %v2109
      %v2142 = vadd.f32 %v2041, %v2110
      %v2143 = vld [vmem:[%s2 + $0xe] sm:$0x1]
      %s2144 = scalar_lea.vmem [#allocation2], 48
      %v2145 = vld [vmem:[%s2144] sm:$0xff]
      %v2146 = vld [vmem:[%s2144 + $0x8] sm:$0xff]
      %v2147 = vld [vmem:[%s2144 + $0x18] sm:$0xff]
      %v2148 = vld [vmem:[%s2144 + $0x20] sm:$0xff]
      %v2149 = vld [vmem:[%s2144 + $0x30] sm:$0xff]
      %v2150 = vld [vmem:[%s2144 + $0x38] sm:$0xff]
      %v2151 = vld [vmem:[%s2144 + $0x48] sm:$0xff]
      %v2152 = vld [vmem:[%s2144 + $0x50] sm:$0xff]
      %v2153 = vld [vmem:[%s2144 + $0x60] sm:$0xff]
      %v2154 = vld [vmem:[%s2144 + $0x68] sm:$0xff]
      %v2155 = vld [vmem:[%s2144 + $0x78] sm:$0xff]
      %v2156 = vld [vmem:[%s2144 + $0x80] sm:$0xff]
      %v2157 = vld [vmem:[%s2144 + $0x90] sm:$0xff]
      %v2158 = vld [vmem:[%s2144 + $0x98] sm:$0xff]
      %v2159 = vld [vmem:[%s2144 + $0xa8] sm:$0xff]
      %v2160 = vld [vmem:[%s2144 + $0xb0] sm:$0xff]
      %v2161 = vld [vmem:[%s2144 + $0xc0] sm:$0xff]
      %v2162 = vld [vmem:[%s2144 + $0xc8] sm:$0xff]
      %v2163 = vld [vmem:[%s2144 + $0xd8] sm:$0xff]
      %v2164 = vld [vmem:[%s2144 + $0xe0] sm:$0xff]
      %v2165 = vld [vmem:[%s2144 + $0xf0] sm:$0xff]
      %v2166 = vld [vmem:[%s2144 + $0xf8] sm:$0xff]
      %v2167 = vld [vmem:[%s2144 + $0x108] sm:$0xff]
      %v2168 = vld [vmem:[%s2144 + $0x110] sm:$0xff]
      %v2169 = vld [vmem:[%s2144 + $0x120] sm:$0xff]
      %v2170 = vld [vmem:[%s2144 + $0x128] sm:$0xff]
      %v2171 = vld [vmem:[%s2144 + $0x138] sm:$0xff]
      %v2172 = vld [vmem:[%s2144 + $0x140] sm:$0xff]
      %v2173 = vld [vmem:[%s2144 + $0x150] sm:$0xff]
      %v2174 = vld [vmem:[%s2144 + $0x158] sm:$0xff]
      %v2175 = vld [vmem:[%s2144 + $0x168] sm:$0xff]
      %v2176 = vld [vmem:[%s2144 + $0x170] sm:$0xff]
      %v2177 = vlaneseq
      %v2178 = vshrl.u32 %v2177, 7
      %v2179 = vsub.s32 0, %v2178
      %v2180 = vrot.slane %v2143, %v2179
      %v2181 = vmul.f32 %v2145, %v2180
      %v2182 = vmul.f32 %v2146, %v2180
      %v2183 = vmul.f32 %v2147, %v2180
      %v2184 = vmul.f32 %v2148, %v2180
      %v2185 = vmul.f32 %v2149, %v2180
      %v2186 = vmul.f32 %v2150, %v2180
      %v2187 = vmul.f32 %v2151, %v2180
      %v2188 = vmul.f32 %v2152, %v2180
      %v2189 = vmul.f32 %v2153, %v2180
      %v2190 = vmul.f32 %v2154, %v2180
      %v2191 = vmul.f32 %v2155, %v2180
      %v2192 = vmul.f32 %v2156, %v2180
      %v2193 = vmul.f32 %v2157, %v2180
      %v2194 = vmul.f32 %v2158, %v2180
      %v2195 = vmul.f32 %v2159, %v2180
      %v2196 = vmul.f32 %v2160, %v2180
      %v2197 = vmul.f32 %v2161, %v2180
      %v2198 = vmul.f32 %v2162, %v2180
      %v2199 = vmul.f32 %v2163, %v2180
      %v2200 = vmul.f32 %v2164, %v2180
      %v2201 = vmul.f32 %v2165, %v2180
      %v2202 = vmul.f32 %v2166, %v2180
      %v2203 = vmul.f32 %v2167, %v2180
      %v2204 = vmul.f32 %v2168, %v2180
      %v2205 = vmul.f32 %v2169, %v2180
      %v2206 = vmul.f32 %v2170, %v2180
      %v2207 = vmul.f32 %v2171, %v2180
      %v2208 = vmul.f32 %v2172, %v2180
      %v2209 = vmul.f32 %v2173, %v2180
      %v2210 = vmul.f32 %v2174, %v2180
      %v2211 = vmul.f32 %v2175, %v2180
      %v2212 = vmul.f32 %v2176, %v2180
      %v2213 = vadd.f32 %v2111, %v2181
      %v2214 = vadd.f32 %v2112, %v2182
      %v2215 = vadd.f32 %v2113, %v2183
      %v2216 = vadd.f32 %v2114, %v2184
      %v2217 = vadd.f32 %v2115, %v2185
      %v2218 = vadd.f32 %v2116, %v2186
      %v2219 = vadd.f32 %v2117, %v2187
      %v2220 = vadd.f32 %v2118, %v2188
      %v2221 = vadd.f32 %v2119, %v2189
      %v2222 = vadd.f32 %v2120, %v2190
      %v2223 = vadd.f32 %v2121, %v2191
      %v2224 = vadd.f32 %v2122, %v2192
      %v2225 = vadd.f32 %v2123, %v2193
      %v2226 = vadd.f32 %v2124, %v2194
      %v2227 = vadd.f32 %v2125, %v2195
      %v2228 = vadd.f32 %v2126, %v2196
      %v2229 = vadd.f32 %v2127, %v2197
      %v2230 = vadd.f32 %v2128, %v2198
      %v2231 = vadd.f32 %v2129, %v2199
      %v2232 = vadd.f32 %v2130, %v2200
      %v2233 = vadd.f32 %v2131, %v2201
      %v2234 = vadd.f32 %v2132, %v2202
      %v2235 = vadd.f32 %v2133, %v2203
      %v2236 = vadd.f32 %v2134, %v2204
      %v2237 = vadd.f32 %v2135, %v2205
      %v2238 = vadd.f32 %v2136, %v2206
      %v2239 = vadd.f32 %v2137, %v2207
      %v2240 = vadd.f32 %v2138, %v2208
      %v2241 = vadd.f32 %v2139, %v2209
      %v2242 = vadd.f32 %v2140, %v2210
      %v2243 = vadd.f32 %v2141, %v2211
      %v2244 = vadd.f32 %v2142, %v2212
      %v2245 = vld [vmem:[%s2 + $0xf] sm:$0x1]
      %v2246 = vld [vmem:[%s2144 + $0x1] sm:$0xff]
      %v2247 = vld [vmem:[%s2144 + $0x9] sm:$0xff]
      %v2248 = vld [vmem:[%s2144 + $0x19] sm:$0xff]
      %v2249 = vld [vmem:[%s2144 + $0x21] sm:$0xff]
      %v2250 = vld [vmem:[%s2144 + $0x31] sm:$0xff]
      %v2251 = vld [vmem:[%s2144 + $0x39] sm:$0xff]
      %v2252 = vld [vmem:[%s2144 + $0x49] sm:$0xff]
      %v2253 = vld [vmem:[%s2144 + $0x51] sm:$0xff]
      %v2254 = vld [vmem:[%s2144 + $0x61] sm:$0xff]
      %v2255 = vld [vmem:[%s2144 + $0x69] sm:$0xff]
      %v2256 = vld [vmem:[%s2144 + $0x79] sm:$0xff]
      %v2257 = vld [vmem:[%s2144 + $0x81] sm:$0xff]
      %v2258 = vld [vmem:[%s2144 + $0x91] sm:$0xff]
      %v2259 = vld [vmem:[%s2144 + $0x99] sm:$0xff]
      %v2260 = vld [vmem:[%s2144 + $0xa9] sm:$0xff]
      %v2261 = vld [vmem:[%s2144 + $0xb1] sm:$0xff]
      %v2262 = vld [vmem:[%s2144 + $0xc1] sm:$0xff]
      %v2263 = vld [vmem:[%s2144 + $0xc9] sm:$0xff]
      %v2264 = vld [vmem:[%s2144 + $0xd9] sm:$0xff]
      %v2265 = vld [vmem:[%s2144 + $0xe1] sm:$0xff]
      %v2266 = vld [vmem:[%s2144 + $0xf1] sm:$0xff]
      %v2267 = vld [vmem:[%s2144 + $0xf9] sm:$0xff]
      %v2268 = vld [vmem:[%s2144 + $0x109] sm:$0xff]
      %v2269 = vld [vmem:[%s2144 + $0x111] sm:$0xff]
      %v2270 = vld [vmem:[%s2144 + $0x121] sm:$0xff]
      %v2271 = vld [vmem:[%s2144 + $0x129] sm:$0xff]
      %v2272 = vld [vmem:[%s2144 + $0x139] sm:$0xff]
      %v2273 = vld [vmem:[%s2144 + $0x141] sm:$0xff]
      %v2274 = vld [vmem:[%s2144 + $0x151] sm:$0xff]
      %v2275 = vld [vmem:[%s2144 + $0x159] sm:$0xff]
      %v2276 = vld [vmem:[%s2144 + $0x169] sm:$0xff]
      %v2277 = vld [vmem:[%s2144 + $0x171] sm:$0xff]
      %v2278 = vlaneseq
      %v2279 = vshrl.u32 %v2278, 7
      %v2280 = vsub.s32 0, %v2279
      %v2281 = vrot.slane %v2245, %v2280
      %v2282 = vmul.f32 %v2246, %v2281
      %v2283 = vmul.f32 %v2247, %v2281
      %v2284 = vmul.f32 %v2248, %v2281
      %v2285 = vmul.f32 %v2249, %v2281
      %v2286 = vmul.f32 %v2250, %v2281
      %v2287 = vmul.f32 %v2251, %v2281
      %v2288 = vmul.f32 %v2252, %v2281
      %v2289 = vmul.f32 %v2253, %v2281
      %v2290 = vmul.f32 %v2254, %v2281
      %v2291 = vmul.f32 %v2255, %v2281
      %v2292 = vmul.f32 %v2256, %v2281
      %v2293 = vmul.f32 %v2257, %v2281
      %v2294 = vmul.f32 %v2258, %v2281
      %v2295 = vmul.f32 %v2259, %v2281
      %v2296 = vmul.f32 %v2260, %v2281
      %v2297 = vmul.f32 %v2261, %v2281
      %v2298 = vmul.f32 %v2262, %v2281
      %v2299 = vmul.f32 %v2263, %v2281
      %v2300 = vmul.f32 %v2264, %v2281
      %v2301 = vmul.f32 %v2265, %v2281
      %v2302 = vmul.f32 %v2266, %v2281
      %v2303 = vmul.f32 %v2267, %v2281
      %v2304 = vmul.f32 %v2268, %v2281
      %v2305 = vmul.f32 %v2269, %v2281
      %v2306 = vmul.f32 %v2270, %v2281
      %v2307 = vmul.f32 %v2271, %v2281
      %v2308 = vmul.f32 %v2272, %v2281
      %v2309 = vmul.f32 %v2273, %v2281
      %v2310 = vmul.f32 %v2274, %v2281
      %v2311 = vmul.f32 %v2275, %v2281
      %v2312 = vmul.f32 %v2276, %v2281
      %v2313 = vmul.f32 %v2277, %v2281
      %v2314 = vadd.f32 %v2213, %v2282
      %v2315 = vadd.f32 %v2214, %v2283
      %v2316 = vadd.f32 %v2215, %v2284
      %v2317 = vadd.f32 %v2216, %v2285
      %v2318 = vadd.f32 %v2217, %v2286
      %v2319 = vadd.f32 %v2218, %v2287
      %v2320 = vadd.f32 %v2219, %v2288
      %v2321 = vadd.f32 %v2220, %v2289
      %v2322 = vadd.f32 %v2221, %v2290
      %v2323 = vadd.f32 %v2222, %v2291
      %v2324 = vadd.f32 %v2223, %v2292
      %v2325 = vadd.f32 %v2224, %v2293
      %v2326 = vadd.f32 %v2225, %v2294
      %v2327 = vadd.f32 %v2226, %v2295
      %v2328 = vadd.f32 %v2227, %v2296
      %v2329 = vadd.f32 %v2228, %v2297
      %v2330 = vadd.f32 %v2229, %v2298
      %v2331 = vadd.f32 %v2230, %v2299
      %v2332 = vadd.f32 %v2231, %v2300
      %v2333 = vadd.f32 %v2232, %v2301
      %v2334 = vadd.f32 %v2233, %v2302
      %v2335 = vadd.f32 %v2234, %v2303
      %v2336 = vadd.f32 %v2235, %v2304
      %v2337 = vadd.f32 %v2236, %v2305
      %v2338 = vadd.f32 %v2237, %v2306
      %v2339 = vadd.f32 %v2238, %v2307
      %v2340 = vadd.f32 %v2239, %v2308
      %v2341 = vadd.f32 %v2240, %v2309
      %v2342 = vadd.f32 %v2241, %v2310
      %v2343 = vadd.f32 %v2242, %v2311
      %v2344 = vadd.f32 %v2243, %v2312
      %v2345 = vadd.f32 %v2244, %v2313
      %v2346 = vld [vmem:[%s2 + $0x10] sm:$0x1]
      %v2347 = vld [vmem:[%s2144 + $0x2] sm:$0xff]
      %v2348 = vld [vmem:[%s2144 + $0xa] sm:$0xff]
      %v2349 = vld [vmem:[%s2144 + $0x1a] sm:$0xff]
      %v2350 = vld [vmem:[%s2144 + $0x22] sm:$0xff]
      %v2351 = vld [vmem:[%s2144 + $0x32] sm:$0xff]
      %v2352 = vld [vmem:[%s2144 + $0x3a] sm:$0xff]
      %v2353 = vld [vmem:[%s2144 + $0x4a] sm:$0xff]
      %v2354 = vld [vmem:[%s2144 + $0x52] sm:$0xff]
      %v2355 = vld [vmem:[%s2144 + $0x62] sm:$0xff]
      %v2356 = vld [vmem:[%s2144 + $0x6a] sm:$0xff]
      %v2357 = vld [vmem:[%s2144 + $0x7a] sm:$0xff]
      %v2358 = vld [vmem:[%s2144 + $0x82] sm:$0xff]
      %v2359 = vld [vmem:[%s2144 + $0x92] sm:$0xff]
      %v2360 = vld [vmem:[%s2144 + $0x9a] sm:$0xff]
      %v2361 = vld [vmem:[%s2144 + $0xaa] sm:$0xff]
      %v2362 = vld [vmem:[%s2144 + $0xb2] sm:$0xff]
      %v2363 = vld [vmem:[%s2144 + $0xc2] sm:$0xff]
      %v2364 = vld [vmem:[%s2144 + $0xca] sm:$0xff]
      %v2365 = vld [vmem:[%s2144 + $0xda] sm:$0xff]
      %v2366 = vld [vmem:[%s2144 + $0xe2] sm:$0xff]
      %v2367 = vld [vmem:[%s2144 + $0xf2] sm:$0xff]
      %v2368 = vld [vmem:[%s2144 + $0xfa] sm:$0xff]
      %v2369 = vld [vmem:[%s2144 + $0x10a] sm:$0xff]
      %v2370 = vld [vmem:[%s2144 + $0x112] sm:$0xff]
      %v2371 = vld [vmem:[%s2144 + $0x122] sm:$0xff]
      %v2372 = vld [vmem:[%s2144 + $0x12a] sm:$0xff]
      %v2373 = vld [vmem:[%s2144 + $0x13a] sm:$0xff]
      %v2374 = vld [vmem:[%s2144 + $0x142] sm:$0xff]
      %v2375 = vld [vmem:[%s2144 + $0x152] sm:$0xff]
      %v2376 = vld [vmem:[%s2144 + $0x15a] sm:$0xff]
      %v2377 = vld [vmem:[%s2144 + $0x16a] sm:$0xff]
      %v2378 = vld [vmem:[%s2144 + $0x172] sm:$0xff]
      %v2379 = vlaneseq
      %v2380 = vshrl.u32 %v2379, 7
      %v2381 = vsub.s32 0, %v2380
      %v2382 = vrot.slane %v2346, %v2381
      %v2383 = vmul.f32 %v2347, %v2382
      %v2384 = vmul.f32 %v2348, %v2382
      %v2385 = vmul.f32 %v2349, %v2382
      %v2386 = vmul.f32 %v2350, %v2382
      %v2387 = vmul.f32 %v2351, %v2382
      %v2388 = vmul.f32 %v2352, %v2382
      %v2389 = vmul.f32 %v2353, %v2382
      %v2390 = vmul.f32 %v2354, %v2382
      %v2391 = vmul.f32 %v2355, %v2382
      %v2392 = vmul.f32 %v2356, %v2382
      %v2393 = vmul.f32 %v2357, %v2382
      %v2394 = vmul.f32 %v2358, %v2382
      %v2395 = vmul.f32 %v2359, %v2382
      %v2396 = vmul.f32 %v2360, %v2382
      %v2397 = vmul.f32 %v2361, %v2382
      %v2398 = vmul.f32 %v2362, %v2382
      %v2399 = vmul.f32 %v2363, %v2382
      %v2400 = vmul.f32 %v2364, %v2382
      %v2401 = vmul.f32 %v2365, %v2382
      %v2402 = vmul.f32 %v2366, %v2382
      %v2403 = vmul.f32 %v2367, %v2382
      %v2404 = vmul.f32 %v2368, %v2382
      %v2405 = vmul.f32 %v2369, %v2382
      %v2406 = vmul.f32 %v2370, %v2382
      %v2407 = vmul.f32 %v2371, %v2382
      %v2408 = vmul.f32 %v2372, %v2382
      %v2409 = vmul.f32 %v2373, %v2382
      %v2410 = vmul.f32 %v2374, %v2382
      %v2411 = vmul.f32 %v2375, %v2382
      %v2412 = vmul.f32 %v2376, %v2382
      %v2413 = vmul.f32 %v2377, %v2382
      %v2414 = vmul.f32 %v2378, %v2382
      %v2415 = vadd.f32 %v2314, %v2383
      %v2416 = vadd.f32 %v2315, %v2384
      %v2417 = vadd.f32 %v2316, %v2385
      %v2418 = vadd.f32 %v2317, %v2386
      %v2419 = vadd.f32 %v2318, %v2387
      %v2420 = vadd.f32 %v2319, %v2388
      %v2421 = vadd.f32 %v2320, %v2389
      %v2422 = vadd.f32 %v2321, %v2390
      %v2423 = vadd.f32 %v2322, %v2391
      %v2424 = vadd.f32 %v2323, %v2392
      %v2425 = vadd.f32 %v2324, %v2393
      %v2426 = vadd.f32 %v2325, %v2394
      %v2427 = vadd.f32 %v2326, %v2395
      %v2428 = vadd.f32 %v2327, %v2396
      %v2429 = vadd.f32 %v2328, %v2397
      %v2430 = vadd.f32 %v2329, %v2398
      %v2431 = vadd.f32 %v2330, %v2399
      %v2432 = vadd.f32 %v2331, %v2400
      %v2433 = vadd.f32 %v2332, %v2401
      %v2434 = vadd.f32 %v2333, %v2402
      %v2435 = vadd.f32 %v2334, %v2403
      %v2436 = vadd.f32 %v2335, %v2404
      %v2437 = vadd.f32 %v2336, %v2405
      %v2438 = vadd.f32 %v2337, %v2406
      %v2439 = vadd.f32 %v2338, %v2407
      %v2440 = vadd.f32 %v2339, %v2408
      %v2441 = vadd.f32 %v2340, %v2409
      %v2442 = vadd.f32 %v2341, %v2410
      %v2443 = vadd.f32 %v2342, %v2411
      %v2444 = vadd.f32 %v2343, %v2412
      %v2445 = vadd.f32 %v2344, %v2413
      %v2446 = vadd.f32 %v2345, %v2414
      %v2447 = vld [vmem:[%s2 + $0x11] sm:$0x1]
      %v2448 = vld [vmem:[%s2144 + $0x3] sm:$0xff]
      %v2449 = vld [vmem:[%s2144 + $0xb] sm:$0xff]
      %v2450 = vld [vmem:[%s2144 + $0x1b] sm:$0xff]
      %v2451 = vld [vmem:[%s2144 + $0x23] sm:$0xff]
      %v2452 = vld [vmem:[%s2144 + $0x33] sm:$0xff]
      %v2453 = vld [vmem:[%s2144 + $0x3b] sm:$0xff]
      %v2454 = vld [vmem:[%s2144 + $0x4b] sm:$0xff]
      %v2455 = vld [vmem:[%s2144 + $0x53] sm:$0xff]
      %v2456 = vld [vmem:[%s2144 + $0x63] sm:$0xff]
      %v2457 = vld [vmem:[%s2144 + $0x6b] sm:$0xff]
      %v2458 = vld [vmem:[%s2144 + $0x7b] sm:$0xff]
      %v2459 = vld [vmem:[%s2144 + $0x83] sm:$0xff]
      %v2460 = vld [vmem:[%s2144 + $0x93] sm:$0xff]
      %v2461 = vld [vmem:[%s2144 + $0x9b] sm:$0xff]
      %v2462 = vld [vmem:[%s2144 + $0xab] sm:$0xff]
      %v2463 = vld [vmem:[%s2144 + $0xb3] sm:$0xff]
      %v2464 = vld [vmem:[%s2144 + $0xc3] sm:$0xff]
      %v2465 = vld [vmem:[%s2144 + $0xcb] sm:$0xff]
      %v2466 = vld [vmem:[%s2144 + $0xdb] sm:$0xff]
      %v2467 = vld [vmem:[%s2144 + $0xe3] sm:$0xff]
      %v2468 = vld [vmem:[%s2144 + $0xf3] sm:$0xff]
      %v2469 = vld [vmem:[%s2144 + $0xfb] sm:$0xff]
      %v2470 = vld [vmem:[%s2144 + $0x10b] sm:$0xff]
      %v2471 = vld [vmem:[%s2144 + $0x113] sm:$0xff]
      %v2472 = vld [vmem:[%s2144 + $0x123] sm:$0xff]
      %v2473 = vld [vmem:[%s2144 + $0x12b] sm:$0xff]
      %v2474 = vld [vmem:[%s2144 + $0x13b] sm:$0xff]
      %v2475 = vld [vmem:[%s2144 + $0x143] sm:$0xff]
      %v2476 = vld [vmem:[%s2144 + $0x153] sm:$0xff]
      %v2477 = vld [vmem:[%s2144 + $0x15b] sm:$0xff]
      %v2478 = vld [vmem:[%s2144 + $0x16b] sm:$0xff]
      %v2479 = vld [vmem:[%s2144 + $0x173] sm:$0xff]
      %v2480 = vlaneseq
      %v2481 = vshrl.u32 %v2480, 7
      %v2482 = vsub.s32 0, %v2481
      %v2483 = vrot.slane %v2447, %v2482
      %v2484 = vmul.f32 %v2448, %v2483
      %v2485 = vmul.f32 %v2449, %v2483
      %v2486 = vmul.f32 %v2450, %v2483
      %v2487 = vmul.f32 %v2451, %v2483
      %v2488 = vmul.f32 %v2452, %v2483
      %v2489 = vmul.f32 %v2453, %v2483
      %v2490 = vmul.f32 %v2454, %v2483
      %v2491 = vmul.f32 %v2455, %v2483
      %v2492 = vmul.f32 %v2456, %v2483
      %v2493 = vmul.f32 %v2457, %v2483
      %v2494 = vmul.f32 %v2458, %v2483
      %v2495 = vmul.f32 %v2459, %v2483
      %v2496 = vmul.f32 %v2460, %v2483
      %v2497 = vmul.f32 %v2461, %v2483
      %v2498 = vmul.f32 %v2462, %v2483
      %v2499 = vmul.f32 %v2463, %v2483
      %v2500 = vmul.f32 %v2464, %v2483
      %v2501 = vmul.f32 %v2465, %v2483
      %v2502 = vmul.f32 %v2466, %v2483
      %v2503 = vmul.f32 %v2467, %v2483
      %v2504 = vmul.f32 %v2468, %v2483
      %v2505 = vmul.f32 %v2469, %v2483
      %v2506 = vmul.f32 %v2470, %v2483
      %v2507 = vmul.f32 %v2471, %v2483
      %v2508 = vmul.f32 %v2472, %v2483
      %v2509 = vmul.f32 %v2473, %v2483
      %v2510 = vmul.f32 %v2474, %v2483
      %v2511 = vmul.f32 %v2475, %v2483
      %v2512 = vmul.f32 %v2476, %v2483
      %v2513 = vmul.f32 %v2477, %v2483
      %v2514 = vmul.f32 %v2478, %v2483
      %v2515 = vmul.f32 %v2479, %v2483
      %v2516 = vadd.f32 %v2415, %v2484
      %v2517 = vadd.f32 %v2416, %v2485
      %v2518 = vadd.f32 %v2417, %v2486
      %v2519 = vadd.f32 %v2418, %v2487
      %v2520 = vadd.f32 %v2419, %v2488
      %v2521 = vadd.f32 %v2420, %v2489
      %v2522 = vadd.f32 %v2421, %v2490
      %v2523 = vadd.f32 %v2422, %v2491
      %v2524 = vadd.f32 %v2423, %v2492
      %v2525 = vadd.f32 %v2424, %v2493
      %v2526 = vadd.f32 %v2425, %v2494
      %v2527 = vadd.f32 %v2426, %v2495
      %v2528 = vadd.f32 %v2427, %v2496
      %v2529 = vadd.f32 %v2428, %v2497
      %v2530 = vadd.f32 %v2429, %v2498
      %v2531 = vadd.f32 %v2430, %v2499
      %v2532 = vadd.f32 %v2431, %v2500
      %v2533 = vadd.f32 %v2432, %v2501
      %v2534 = vadd.f32 %v2433, %v2502
      %v2535 = vadd.f32 %v2434, %v2503
      %v2536 = vadd.f32 %v2435, %v2504
      %v2537 = vadd.f32 %v2436, %v2505
      %v2538 = vadd.f32 %v2437, %v2506
      %v2539 = vadd.f32 %v2438, %v2507
      %v2540 = vadd.f32 %v2439, %v2508
      %v2541 = vadd.f32 %v2440, %v2509
      %v2542 = vadd.f32 %v2441, %v2510
      %v2543 = vadd.f32 %v2442, %v2511
      %v2544 = vadd.f32 %v2443, %v2512
      %v2545 = vadd.f32 %v2444, %v2513
      %v2546 = vadd.f32 %v2445, %v2514
      %v2547 = vadd.f32 %v2446, %v2515
      %v2548 = vld [vmem:[%s2 + $0x12] sm:$0x1]
      %v2549 = vld [vmem:[%s2144 + $0x4] sm:$0xff]
      %v2550 = vld [vmem:[%s2144 + $0xc] sm:$0xff]
      %v2551 = vld [vmem:[%s2144 + $0x1c] sm:$0xff]
      %v2552 = vld [vmem:[%s2144 + $0x24] sm:$0xff]
      %v2553 = vld [vmem:[%s2144 + $0x34] sm:$0xff]
      %v2554 = vld [vmem:[%s2144 + $0x3c] sm:$0xff]
      %v2555 = vld [vmem:[%s2144 + $0x4c] sm:$0xff]
      %v2556 = vld [vmem:[%s2144 + $0x54] sm:$0xff]
      %v2557 = vld [vmem:[%s2144 + $0x64] sm:$0xff]
      %v2558 = vld [vmem:[%s2144 + $0x6c] sm:$0xff]
      %v2559 = vld [vmem:[%s2144 + $0x7c] sm:$0xff]
      %v2560 = vld [vmem:[%s2144 + $0x84] sm:$0xff]
      %v2561 = vld [vmem:[%s2144 + $0x94] sm:$0xff]
      %v2562 = vld [vmem:[%s2144 + $0x9c] sm:$0xff]
      %v2563 = vld [vmem:[%s2144 + $0xac] sm:$0xff]
      %v2564 = vld [vmem:[%s2144 + $0xb4] sm:$0xff]
      %v2565 = vld [vmem:[%s2144 + $0xc4] sm:$0xff]
      %v2566 = vld [vmem:[%s2144 + $0xcc] sm:$0xff]
      %v2567 = vld [vmem:[%s2144 + $0xdc] sm:$0xff]
      %v2568 = vld [vmem:[%s2144 + $0xe4] sm:$0xff]
      %v2569 = vld [vmem:[%s2144 + $0xf4] sm:$0xff]
      %v2570 = vld [vmem:[%s2144 + $0xfc] sm:$0xff]
      %v2571 = vld [vmem:[%s2144 + $0x10c] sm:$0xff]
      %v2572 = vld [vmem:[%s2144 + $0x114] sm:$0xff]
      %v2573 = vld [vmem:[%s2144 + $0x124] sm:$0xff]
      %v2574 = vld [vmem:[%s2144 + $0x12c] sm:$0xff]
      %v2575 = vld [vmem:[%s2144 + $0x13c] sm:$0xff]
      %v2576 = vld [vmem:[%s2144 + $0x144] sm:$0xff]
      %v2577 = vld [vmem:[%s2144 + $0x154] sm:$0xff]
      %v2578 = vld [vmem:[%s2144 + $0x15c] sm:$0xff]
      %v2579 = vld [vmem:[%s2144 + $0x16c] sm:$0xff]
      %v2580 = vld [vmem:[%s2144 + $0x174] sm:$0xff]
      %v2581 = vlaneseq
      %v2582 = vshrl.u32 %v2581, 7
      %v2583 = vsub.s32 0, %v2582
      %v2584 = vrot.slane %v2548, %v2583
      %v2585 = vmul.f32 %v2549, %v2584
      %v2586 = vmul.f32 %v2550, %v2584
      %v2587 = vmul.f32 %v2551, %v2584
      %v2588 = vmul.f32 %v2552, %v2584
      %v2589 = vmul.f32 %v2553, %v2584
      %v2590 = vmul.f32 %v2554, %v2584
      %v2591 = vmul.f32 %v2555, %v2584
      %v2592 = vmul.f32 %v2556, %v2584
      %v2593 = vmul.f32 %v2557, %v2584
      %v2594 = vmul.f32 %v2558, %v2584
      %v2595 = vmul.f32 %v2559, %v2584
      %v2596 = vmul.f32 %v2560, %v2584
      %v2597 = vmul.f32 %v2561, %v2584
      %v2598 = vmul.f32 %v2562, %v2584
      %v2599 = vmul.f32 %v2563, %v2584
      %v2600 = vmul.f32 %v2564, %v2584
      %v2601 = vmul.f32 %v2565, %v2584
      %v2602 = vmul.f32 %v2566, %v2584
      %v2603 = vmul.f32 %v2567, %v2584
      %v2604 = vmul.f32 %v2568, %v2584
      %v2605 = vmul.f32 %v2569, %v2584
      %v2606 = vmul.f32 %v2570, %v2584
      %v2607 = vmul.f32 %v2571, %v2584
      %v2608 = vmul.f32 %v2572, %v2584
      %v2609 = vmul.f32 %v2573, %v2584
      %v2610 = vmul.f32 %v2574, %v2584
      %v2611 = vmul.f32 %v2575, %v2584
      %v2612 = vmul.f32 %v2576, %v2584
      %v2613 = vmul.f32 %v2577, %v2584
      %v2614 = vmul.f32 %v2578, %v2584
      %v2615 = vmul.f32 %v2579, %v2584
      %v2616 = vmul.f32 %v2580, %v2584
      %v2617 = vadd.f32 %v2516, %v2585
      %v2618 = vadd.f32 %v2517, %v2586
      %v2619 = vadd.f32 %v2518, %v2587
      %v2620 = vadd.f32 %v2519, %v2588
      %v2621 = vadd.f32 %v2520, %v2589
      %v2622 = vadd.f32 %v2521, %v2590
      %v2623 = vadd.f32 %v2522, %v2591
      %v2624 = vadd.f32 %v2523, %v2592
      %v2625 = vadd.f32 %v2524, %v2593
      %v2626 = vadd.f32 %v2525, %v2594
      %v2627 = vadd.f32 %v2526, %v2595
      %v2628 = vadd.f32 %v2527, %v2596
      %v2629 = vadd.f32 %v2528, %v2597
      %v2630 = vadd.f32 %v2529, %v2598
      %v2631 = vadd.f32 %v2530, %v2599
      %v2632 = vadd.f32 %v2531, %v2600
      %v2633 = vadd.f32 %v2532, %v2601
      %v2634 = vadd.f32 %v2533, %v2602
      %v2635 = vadd.f32 %v2534, %v2603
      %v2636 = vadd.f32 %v2535, %v2604
      %v2637 = vadd.f32 %v2536, %v2605
      %v2638 = vadd.f32 %v2537, %v2606
      %v2639 = vadd.f32 %v2538, %v2607
      %v2640 = vadd.f32 %v2539, %v2608
      %v2641 = vadd.f32 %v2540, %v2609
      %v2642 = vadd.f32 %v2541, %v2610
      %v2643 = vadd.f32 %v2542, %v2611
      %v2644 = vadd.f32 %v2543, %v2612
      %v2645 = vadd.f32 %v2544, %v2613
      %v2646 = vadd.f32 %v2545, %v2614
      %v2647 = vadd.f32 %v2546, %v2615
      %v2648 = vadd.f32 %v2547, %v2616
      %v2649 = vld [vmem:[%s2 + $0x13] sm:$0x1]
      %v2650 = vld [vmem:[%s2144 + $0x5] sm:$0xff]
      %v2651 = vld [vmem:[%s2144 + $0xd] sm:$0xff]
      %v2652 = vld [vmem:[%s2144 + $0x1d] sm:$0xff]
      %v2653 = vld [vmem:[%s2144 + $0x25] sm:$0xff]
      %v2654 = vld [vmem:[%s2144 + $0x35] sm:$0xff]
      %v2655 = vld [vmem:[%s2144 + $0x3d] sm:$0xff]
      %v2656 = vld [vmem:[%s2144 + $0x4d] sm:$0xff]
      %v2657 = vld [vmem:[%s2144 + $0x55] sm:$0xff]
      %v2658 = vld [vmem:[%s2144 + $0x65] sm:$0xff]
      %v2659 = vld [vmem:[%s2144 + $0x6d] sm:$0xff]
      %v2660 = vld [vmem:[%s2144 + $0x7d] sm:$0xff]
      %v2661 = vld [vmem:[%s2144 + $0x85] sm:$0xff]
      %v2662 = vld [vmem:[%s2144 + $0x95] sm:$0xff]
      %v2663 = vld [vmem:[%s2144 + $0x9d] sm:$0xff]
      %v2664 = vld [vmem:[%s2144 + $0xad] sm:$0xff]
      %v2665 = vld [vmem:[%s2144 + $0xb5] sm:$0xff]
      %v2666 = vld [vmem:[%s2144 + $0xc5] sm:$0xff]
      %v2667 = vld [vmem:[%s2144 + $0xcd] sm:$0xff]
      %v2668 = vld [vmem:[%s2144 + $0xdd] sm:$0xff]
      %v2669 = vld [vmem:[%s2144 + $0xe5] sm:$0xff]
      %v2670 = vld [vmem:[%s2144 + $0xf5] sm:$0xff]
      %v2671 = vld [vmem:[%s2144 + $0xfd] sm:$0xff]
      %v2672 = vld [vmem:[%s2144 + $0x10d] sm:$0xff]
      %v2673 = vld [vmem:[%s2144 + $0x115] sm:$0xff]
      %v2674 = vld [vmem:[%s2144 + $0x125] sm:$0xff]
      %v2675 = vld [vmem:[%s2144 + $0x12d] sm:$0xff]
      %v2676 = vld [vmem:[%s2144 + $0x13d] sm:$0xff]
      %v2677 = vld [vmem:[%s2144 + $0x145] sm:$0xff]
      %v2678 = vld [vmem:[%s2144 + $0x155] sm:$0xff]
      %v2679 = vld [vmem:[%s2144 + $0x15d] sm:$0xff]
      %v2680 = vld [vmem:[%s2144 + $0x16d] sm:$0xff]
      %v2681 = vld [vmem:[%s2144 + $0x175] sm:$0xff]
      %v2682 = vlaneseq
      %v2683 = vshrl.u32 %v2682, 7
      %v2684 = vsub.s32 0, %v2683
      %v2685 = vrot.slane %v2649, %v2684
      %v2686 = vmul.f32 %v2650, %v2685
      %v2687 = vmul.f32 %v2651, %v2685
      %v2688 = vmul.f32 %v2652, %v2685
      %v2689 = vmul.f32 %v2653, %v2685
      %v2690 = vmul.f32 %v2654, %v2685
      %v2691 = vmul.f32 %v2655, %v2685
      %v2692 = vmul.f32 %v2656, %v2685
      %v2693 = vmul.f32 %v2657, %v2685
      %v2694 = vmul.f32 %v2658, %v2685
      %v2695 = vmul.f32 %v2659, %v2685
      %v2696 = vmul.f32 %v2660, %v2685
      %v2697 = vmul.f32 %v2661, %v2685
      %v2698 = vmul.f32 %v2662, %v2685
      %v2699 = vmul.f32 %v2663, %v2685
      %v2700 = vmul.f32 %v2664, %v2685
      %v2701 = vmul.f32 %v2665, %v2685
      %v2702 = vmul.f32 %v2666, %v2685
      %v2703 = vmul.f32 %v2667, %v2685
      %v2704 = vmul.f32 %v2668, %v2685
      %v2705 = vmul.f32 %v2669, %v2685
      %v2706 = vmul.f32 %v2670, %v2685
      %v2707 = vmul.f32 %v2671, %v2685
      %v2708 = vmul.f32 %v2672, %v2685
      %v2709 = vmul.f32 %v2673, %v2685
      %v2710 = vmul.f32 %v2674, %v2685
      %v2711 = vmul.f32 %v2675, %v2685
      %v2712 = vmul.f32 %v2676, %v2685
      %v2713 = vmul.f32 %v2677, %v2685
      %v2714 = vmul.f32 %v2678, %v2685
      %v2715 = vmul.f32 %v2679, %v2685
      %v2716 = vmul.f32 %v2680, %v2685
      %v2717 = vmul.f32 %v2681, %v2685
      %v2718 = vadd.f32 %v2617, %v2686
      %v2719 = vadd.f32 %v2618, %v2687
      %v2720 = vadd.f32 %v2619, %v2688
      %v2721 = vadd.f32 %v2620, %v2689
      %v2722 = vadd.f32 %v2621, %v2690
      %v2723 = vadd.f32 %v2622, %v2691
      %v2724 = vadd.f32 %v2623, %v2692
      %v2725 = vadd.f32 %v2624, %v2693
      %v2726 = vadd.f32 %v2625, %v2694
      %v2727 = vadd.f32 %v2626, %v2695
      %v2728 = vadd.f32 %v2627, %v2696
      %v2729 = vadd.f32 %v2628, %v2697
      %v2730 = vadd.f32 %v2629, %v2698
      %v2731 = vadd.f32 %v2630, %v2699
      %v2732 = vadd.f32 %v2631, %v2700
      %v2733 = vadd.f32 %v2632, %v2701
      %v2734 = vadd.f32 %v2633, %v2702
      %v2735 = vadd.f32 %v2634, %v2703
      %v2736 = vadd.f32 %v2635, %v2704
      %v2737 = vadd.f32 %v2636, %v2705
      %v2738 = vadd.f32 %v2637, %v2706
      %v2739 = vadd.f32 %v2638, %v2707
      %v2740 = vadd.f32 %v2639, %v2708
      %v2741 = vadd.f32 %v2640, %v2709
      %v2742 = vadd.f32 %v2641, %v2710
      %v2743 = vadd.f32 %v2642, %v2711
      %v2744 = vadd.f32 %v2643, %v2712
      %v2745 = vadd.f32 %v2644, %v2713
      %v2746 = vadd.f32 %v2645, %v2714
      %v2747 = vadd.f32 %v2646, %v2715
      %v2748 = vadd.f32 %v2647, %v2716
      %v2749 = vadd.f32 %v2648, %v2717
      %v2750 = vld [vmem:[%s2 + $0x14] sm:$0x1]
      %v2751 = vld [vmem:[%s2144 + $0x6] sm:$0xff]
      %v2752 = vld [vmem:[%s2144 + $0xe] sm:$0xff]
      %v2753 = vld [vmem:[%s2144 + $0x1e] sm:$0xff]
      %v2754 = vld [vmem:[%s2144 + $0x26] sm:$0xff]
      %v2755 = vld [vmem:[%s2144 + $0x36] sm:$0xff]
      %v2756 = vld [vmem:[%s2144 + $0x3e] sm:$0xff]
      %v2757 = vld [vmem:[%s2144 + $0x4e] sm:$0xff]
      %v2758 = vld [vmem:[%s2144 + $0x56] sm:$0xff]
      %v2759 = vld [vmem:[%s2144 + $0x66] sm:$0xff]
      %v2760 = vld [vmem:[%s2144 + $0x6e] sm:$0xff]
      %v2761 = vld [vmem:[%s2144 + $0x7e] sm:$0xff]
      %v2762 = vld [vmem:[%s2144 + $0x86] sm:$0xff]
      %v2763 = vld [vmem:[%s2144 + $0x96] sm:$0xff]
      %v2764 = vld [vmem:[%s2144 + $0x9e] sm:$0xff]
      %v2765 = vld [vmem:[%s2144 + $0xae] sm:$0xff]
      %v2766 = vld [vmem:[%s2144 + $0xb6] sm:$0xff]
      %v2767 = vld [vmem:[%s2144 + $0xc6] sm:$0xff]
      %v2768 = vld [vmem:[%s2144 + $0xce] sm:$0xff]
      %v2769 = vld [vmem:[%s2144 + $0xde] sm:$0xff]
      %v2770 = vld [vmem:[%s2144 + $0xe6] sm:$0xff]
      %v2771 = vld [vmem:[%s2144 + $0xf6] sm:$0xff]
      %v2772 = vld [vmem:[%s2144 + $0xfe] sm:$0xff]
      %v2773 = vld [vmem:[%s2144 + $0x10e] sm:$0xff]
      %v2774 = vld [vmem:[%s2144 + $0x116] sm:$0xff]
      %v2775 = vld [vmem:[%s2144 + $0x126] sm:$0xff]
      %v2776 = vld [vmem:[%s2144 + $0x12e] sm:$0xff]
      %v2777 = vld [vmem:[%s2144 + $0x13e] sm:$0xff]
      %v2778 = vld [vmem:[%s2144 + $0x146] sm:$0xff]
      %v2779 = vld [vmem:[%s2144 + $0x156] sm:$0xff]
      %v2780 = vld [vmem:[%s2144 + $0x15e] sm:$0xff]
      %v2781 = vld [vmem:[%s2144 + $0x16e] sm:$0xff]
      %v2782 = vld [vmem:[%s2144 + $0x176] sm:$0xff]
      %v2783 = vlaneseq
      %v2784 = vshrl.u32 %v2783, 7
      %v2785 = vsub.s32 0, %v2784
      %v2786 = vrot.slane %v2750, %v2785
      %v2787 = vmul.f32 %v2751, %v2786
      %v2788 = vmul.f32 %v2752, %v2786
      %v2789 = vmul.f32 %v2753, %v2786
      %v2790 = vmul.f32 %v2754, %v2786
      %v2791 = vmul.f32 %v2755, %v2786
      %v2792 = vmul.f32 %v2756, %v2786
      %v2793 = vmul.f32 %v2757, %v2786
      %v2794 = vmul.f32 %v2758, %v2786
      %v2795 = vmul.f32 %v2759, %v2786
      %v2796 = vmul.f32 %v2760, %v2786
      %v2797 = vmul.f32 %v2761, %v2786
      %v2798 = vmul.f32 %v2762, %v2786
      %v2799 = vmul.f32 %v2763, %v2786
      %v2800 = vmul.f32 %v2764, %v2786
      %v2801 = vmul.f32 %v2765, %v2786
      %v2802 = vmul.f32 %v2766, %v2786
      %v2803 = vmul.f32 %v2767, %v2786
      %v2804 = vmul.f32 %v2768, %v2786
      %v2805 = vmul.f32 %v2769, %v2786
      %v2806 = vmul.f32 %v2770, %v2786
      %v2807 = vmul.f32 %v2771, %v2786
      %v2808 = vmul.f32 %v2772, %v2786
      %v2809 = vmul.f32 %v2773, %v2786
      %v2810 = vmul.f32 %v2774, %v2786
      %v2811 = vmul.f32 %v2775, %v2786
      %v2812 = vmul.f32 %v2776, %v2786
      %v2813 = vmul.f32 %v2777, %v2786
      %v2814 = vmul.f32 %v2778, %v2786
      %v2815 = vmul.f32 %v2779, %v2786
      %v2816 = vmul.f32 %v2780, %v2786
      %v2817 = vmul.f32 %v2781, %v2786
      %v2818 = vmul.f32 %v2782, %v2786
      %v2819 = vadd.f32 %v2718, %v2787
      %v2820 = vadd.f32 %v2719, %v2788
      %v2821 = vadd.f32 %v2720, %v2789
      %v2822 = vadd.f32 %v2721, %v2790
      %v2823 = vadd.f32 %v2722, %v2791
      %v2824 = vadd.f32 %v2723, %v2792
      %v2825 = vadd.f32 %v2724, %v2793
      %v2826 = vadd.f32 %v2725, %v2794
      %v2827 = vadd.f32 %v2726, %v2795
      %v2828 = vadd.f32 %v2727, %v2796
      %v2829 = vadd.f32 %v2728, %v2797
      %v2830 = vadd.f32 %v2729, %v2798
      %v2831 = vadd.f32 %v2730, %v2799
      %v2832 = vadd.f32 %v2731, %v2800
      %v2833 = vadd.f32 %v2732, %v2801
      %v2834 = vadd.f32 %v2733, %v2802
      %v2835 = vadd.f32 %v2734, %v2803
      %v2836 = vadd.f32 %v2735, %v2804
      %v2837 = vadd.f32 %v2736, %v2805
      %v2838 = vadd.f32 %v2737, %v2806
      %v2839 = vadd.f32 %v2738, %v2807
      %v2840 = vadd.f32 %v2739, %v2808
      %v2841 = vadd.f32 %v2740, %v2809
      %v2842 = vadd.f32 %v2741, %v2810
      %v2843 = vadd.f32 %v2742, %v2811
      %v2844 = vadd.f32 %v2743, %v2812
      %v2845 = vadd.f32 %v2744, %v2813
      %v2846 = vadd.f32 %v2745, %v2814
      %v2847 = vadd.f32 %v2746, %v2815
      %v2848 = vadd.f32 %v2747, %v2816
      %v2849 = vadd.f32 %v2748, %v2817
      %v2850 = vadd.f32 %v2749, %v2818
      %v2851 = vld [vmem:[%s2 + $0x15] sm:$0x1]
      %v2852 = vld [vmem:[%s694] sm:$0xff]
      %v2853 = vld [vmem:[%s694 + $0x8] sm:$0xff]
      %v2854 = vld [vmem:[%s694 + $0x18] sm:$0xff]
      %v2855 = vld [vmem:[%s694 + $0x20] sm:$0xff]
      %v2856 = vld [vmem:[%s694 + $0x30] sm:$0xff]
      %v2857 = vld [vmem:[%s694 + $0x38] sm:$0xff]
      %v2858 = vld [vmem:[%s694 + $0x48] sm:$0xff]
      %v2859 = vld [vmem:[%s694 + $0x50] sm:$0xff]
      %v2860 = vld [vmem:[%s694 + $0x60] sm:$0xff]
      %v2861 = vld [vmem:[%s694 + $0x68] sm:$0xff]
      %v2862 = vld [vmem:[%s694 + $0x78] sm:$0xff]
      %v2863 = vld [vmem:[%s694 + $0x80] sm:$0xff]
      %v2864 = vld [vmem:[%s694 + $0x90] sm:$0xff]
      %v2865 = vld [vmem:[%s694 + $0x98] sm:$0xff]
      %v2866 = vld [vmem:[%s694 + $0xa8] sm:$0xff]
      %v2867 = vld [vmem:[%s694 + $0xb0] sm:$0xff]
      %v2868 = vld [vmem:[%s694 + $0xc0] sm:$0xff]
      %v2869 = vld [vmem:[%s694 + $0xc8] sm:$0xff]
      %v2870 = vld [vmem:[%s694 + $0xd8] sm:$0xff]
      %v2871 = vld [vmem:[%s694 + $0xe0] sm:$0xff]
      %v2872 = vld [vmem:[%s694 + $0xf0] sm:$0xff]
      %v2873 = vld [vmem:[%s694 + $0xf8] sm:$0xff]
      %v2874 = vld [vmem:[%s694 + $0x108] sm:$0xff]
      %v2875 = vld [vmem:[%s694 + $0x110] sm:$0xff]
      %v2876 = vld [vmem:[%s694 + $0x120] sm:$0xff]
      %v2877 = vld [vmem:[%s694 + $0x128] sm:$0xff]
      %v2878 = vld [vmem:[%s694 + $0x138] sm:$0xff]
      %v2879 = vld [vmem:[%s694 + $0x140] sm:$0xff]
      %v2880 = vld [vmem:[%s694 + $0x150] sm:$0xff]
      %v2881 = vld [vmem:[%s694 + $0x158] sm:$0xff]
      %v2882 = vld [vmem:[%s694 + $0x168] sm:$0xff]
      %v2883 = vld [vmem:[%s694 + $0x170] sm:$0xff]
      %v2884 = vlaneseq
      %v2885 = vshrl.u32 %v2884, 7
      %v2886 = vsub.s32 0, %v2885
      %v2887 = vrot.slane %v2851, %v2886
      %v2888 = vmul.f32 %v2852, %v2887
      %v2889 = vmul.f32 %v2853, %v2887
      %v2890 = vmul.f32 %v2854, %v2887
      %v2891 = vmul.f32 %v2855, %v2887
      %v2892 = vmul.f32 %v2856, %v2887
      %v2893 = vmul.f32 %v2857, %v2887
      %v2894 = vmul.f32 %v2858, %v2887
      %v2895 = vmul.f32 %v2859, %v2887
      %v2896 = vmul.f32 %v2860, %v2887
      %v2897 = vmul.f32 %v2861, %v2887
      %v2898 = vmul.f32 %v2862, %v2887
      %v2899 = vmul.f32 %v2863, %v2887
      %v2900 = vmul.f32 %v2864, %v2887
      %v2901 = vmul.f32 %v2865, %v2887
      %v2902 = vmul.f32 %v2866, %v2887
      %v2903 = vmul.f32 %v2867, %v2887
      %v2904 = vmul.f32 %v2868, %v2887
      %v2905 = vmul.f32 %v2869, %v2887
      %v2906 = vmul.f32 %v2870, %v2887
      %v2907 = vmul.f32 %v2871, %v2887
      %v2908 = vmul.f32 %v2872, %v2887
      %v2909 = vmul.f32 %v2873, %v2887
      %v2910 = vmul.f32 %v2874, %v2887
      %v2911 = vmul.f32 %v2875, %v2887
      %v2912 = vmul.f32 %v2876, %v2887
      %v2913 = vmul.f32 %v2877, %v2887
      %v2914 = vmul.f32 %v2878, %v2887
      %v2915 = vmul.f32 %v2879, %v2887
      %v2916 = vmul.f32 %v2880, %v2887
      %v2917 = vmul.f32 %v2881, %v2887
      %v2918 = vmul.f32 %v2882, %v2887
      %v2919 = vmul.f32 %v2883, %v2887
      %v2920 = vadd.f32 %v2819, %v2888
      %v2921 = vadd.f32 %v2820, %v2889
      %v2922 = vadd.f32 %v2821, %v2890
      %v2923 = vadd.f32 %v2822, %v2891
      %v2924 = vadd.f32 %v2823, %v2892
      %v2925 = vadd.f32 %v2824, %v2893
      %v2926 = vadd.f32 %v2825, %v2894
      %v2927 = vadd.f32 %v2826, %v2895
      %v2928 = vadd.f32 %v2827, %v2896
      %v2929 = vadd.f32 %v2828, %v2897
      %v2930 = vadd.f32 %v2829, %v2898
      %v2931 = vadd.f32 %v2830, %v2899
      %v2932 = vadd.f32 %v2831, %v2900
      %v2933 = vadd.f32 %v2832, %v2901
      %v2934 = vadd.f32 %v2833, %v2902
      %v2935 = vadd.f32 %v2834, %v2903
      %v2936 = vadd.f32 %v2835, %v2904
      %v2937 = vadd.f32 %v2836, %v2905
      %v2938 = vadd.f32 %v2837, %v2906
      %v2939 = vadd.f32 %v2838, %v2907
      %v2940 = vadd.f32 %v2839, %v2908
      %v2941 = vadd.f32 %v2840, %v2909
      %v2942 = vadd.f32 %v2841, %v2910
      %v2943 = vadd.f32 %v2842, %v2911
      %v2944 = vadd.f32 %v2843, %v2912
      %v2945 = vadd.f32 %v2844, %v2913
      %v2946 = vadd.f32 %v2845, %v2914
      %v2947 = vadd.f32 %v2846, %v2915
      %v2948 = vadd.f32 %v2847, %v2916
      %v2949 = vadd.f32 %v2848, %v2917
      %v2950 = vadd.f32 %v2849, %v2918
      %v2951 = vadd.f32 %v2850, %v2919
      %v2952 = vld [vmem:[%s2 + $0x16] sm:$0x1]
      %v2953 = vld [vmem:[%s694 + $0x1] sm:$0xff]
      %v2954 = vld [vmem:[%s694 + $0x9] sm:$0xff]
      %v2955 = vld [vmem:[%s694 + $0x19] sm:$0xff]
      %v2956 = vld [vmem:[%s694 + $0x21] sm:$0xff]
      %v2957 = vld [vmem:[%s694 + $0x31] sm:$0xff]
      %v2958 = vld [vmem:[%s694 + $0x39] sm:$0xff]
      %v2959 = vld [vmem:[%s694 + $0x49] sm:$0xff]
      %v2960 = vld [vmem:[%s694 + $0x51] sm:$0xff]
      %v2961 = vld [vmem:[%s694 + $0x61] sm:$0xff]
      %v2962 = vld [vmem:[%s694 + $0x69] sm:$0xff]
      %v2963 = vld [vmem:[%s694 + $0x79] sm:$0xff]
      %v2964 = vld [vmem:[%s694 + $0x81] sm:$0xff]
      %v2965 = vld [vmem:[%s694 + $0x91] sm:$0xff]
      %v2966 = vld [vmem:[%s694 + $0x99] sm:$0xff]
      %v2967 = vld [vmem:[%s694 + $0xa9] sm:$0xff]
      %v2968 = vld [vmem:[%s694 + $0xb1] sm:$0xff]
      %v2969 = vld [vmem:[%s694 + $0xc1] sm:$0xff]
      %v2970 = vld [vmem:[%s694 + $0xc9] sm:$0xff]
      %v2971 = vld [vmem:[%s694 + $0xd9] sm:$0xff]
      %v2972 = vld [vmem:[%s694 + $0xe1] sm:$0xff]
      %v2973 = vld [vmem:[%s694 + $0xf1] sm:$0xff]
      %v2974 = vld [vmem:[%s694 + $0xf9] sm:$0xff]
      %v2975 = vld [vmem:[%s694 + $0x109] sm:$0xff]
      %v2976 = vld [vmem:[%s694 + $0x111] sm:$0xff]
      %v2977 = vld [vmem:[%s694 + $0x121] sm:$0xff]
      %v2978 = vld [vmem:[%s694 + $0x129] sm:$0xff]
      %v2979 = vld [vmem:[%s694 + $0x139] sm:$0xff]
      %v2980 = vld [vmem:[%s694 + $0x141] sm:$0xff]
      %v2981 = vld [vmem:[%s694 + $0x151] sm:$0xff]
      %v2982 = vld [vmem:[%s694 + $0x159] sm:$0xff]
      %v2983 = vld [vmem:[%s694 + $0x169] sm:$0xff]
      %v2984 = vld [vmem:[%s694 + $0x171] sm:$0xff]
      %v2985 = vlaneseq
      %v2986 = vshrl.u32 %v2985, 7
      %v2987 = vsub.s32 0, %v2986
      %v2988 = vrot.slane %v2952, %v2987
      %v2989 = vmul.f32 %v2953, %v2988
      %v2990 = vmul.f32 %v2954, %v2988
      %v2991 = vmul.f32 %v2955, %v2988
      %v2992 = vmul.f32 %v2956, %v2988
      %v2993 = vmul.f32 %v2957, %v2988
      %v2994 = vmul.f32 %v2958, %v2988
      %v2995 = vmul.f32 %v2959, %v2988
      %v2996 = vmul.f32 %v2960, %v2988
      %v2997 = vmul.f32 %v2961, %v2988
      %v2998 = vmul.f32 %v2962, %v2988
      %v2999 = vmul.f32 %v2963, %v2988
      %v3000 = vmul.f32 %v2964, %v2988
      %v3001 = vmul.f32 %v2965, %v2988
      %v3002 = vmul.f32 %v2966, %v2988
      %v3003 = vmul.f32 %v2967, %v2988
      %v3004 = vmul.f32 %v2968, %v2988
      %v3005 = vmul.f32 %v2969, %v2988
      %v3006 = vmul.f32 %v2970, %v2988
      %v3007 = vmul.f32 %v2971, %v2988
      %v3008 = vmul.f32 %v2972, %v2988
      %v3009 = vmul.f32 %v2973, %v2988
      %v3010 = vmul.f32 %v2974, %v2988
      %v3011 = vmul.f32 %v2975, %v2988
      %v3012 = vmul.f32 %v2976, %v2988
      %v3013 = vmul.f32 %v2977, %v2988
      %v3014 = vmul.f32 %v2978, %v2988
      %v3015 = vmul.f32 %v2979, %v2988
      %v3016 = vmul.f32 %v2980, %v2988
      %v3017 = vmul.f32 %v2981, %v2988
      %v3018 = vmul.f32 %v2982, %v2988
      %v3019 = vmul.f32 %v2983, %v2988
      %v3020 = vmul.f32 %v2984, %v2988
      %v3021 = vadd.f32 %v2920, %v2989
      %v3022 = vadd.f32 %v2921, %v2990
      %v3023 = vadd.f32 %v2922, %v2991
      %v3024 = vadd.f32 %v2923, %v2992
      %v3025 = vadd.f32 %v2924, %v2993
      %v3026 = vadd.f32 %v2925, %v2994
      %v3027 = vadd.f32 %v2926, %v2995
      %v3028 = vadd.f32 %v2927, %v2996
      %v3029 = vadd.f32 %v2928, %v2997
      %v3030 = vadd.f32 %v2929, %v2998
      %v3031 = vadd.f32 %v2930, %v2999
      %v3032 = vadd.f32 %v2931, %v3000
      %v3033 = vadd.f32 %v2932, %v3001
      %v3034 = vadd.f32 %v2933, %v3002
      %v3035 = vadd.f32 %v2934, %v3003
      %v3036 = vadd.f32 %v2935, %v3004
      %v3037 = vadd.f32 %v2936, %v3005
      %v3038 = vadd.f32 %v2937, %v3006
      %v3039 = vadd.f32 %v2938, %v3007
      %v3040 = vadd.f32 %v2939, %v3008
      %v3041 = vadd.f32 %v2940, %v3009
      %v3042 = vadd.f32 %v2941, %v3010
      %v3043 = vadd.f32 %v2942, %v3011
      %v3044 = vadd.f32 %v2943, %v3012
      %v3045 = vadd.f32 %v2944, %v3013
      %v3046 = vadd.f32 %v2945, %v3014
      %v3047 = vadd.f32 %v2946, %v3015
      %v3048 = vadd.f32 %v2947, %v3016
      %v3049 = vadd.f32 %v2948, %v3017
      %v3050 = vadd.f32 %v2949, %v3018
      %v3051 = vadd.f32 %v2950, %v3019
      %v3052 = vadd.f32 %v2951, %v3020
      %v3053 = vld [vmem:[%s2 + $0x17] sm:$0x1]
      %v3054 = vld [vmem:[%s694 + $0x2] sm:$0xff]
      %v3055 = vld [vmem:[%s694 + $0xa] sm:$0xff]
      %v3056 = vld [vmem:[%s694 + $0x1a] sm:$0xff]
      %v3057 = vld [vmem:[%s694 + $0x22] sm:$0xff]
      %v3058 = vld [vmem:[%s694 + $0x32] sm:$0xff]
      %v3059 = vld [vmem:[%s694 + $0x3a] sm:$0xff]
      %v3060 = vld [vmem:[%s694 + $0x4a] sm:$0xff]
      %v3061 = vld [vmem:[%s694 + $0x52] sm:$0xff]
      %v3062 = vld [vmem:[%s694 + $0x62] sm:$0xff]
      %v3063 = vld [vmem:[%s694 + $0x6a] sm:$0xff]
      %v3064 = vld [vmem:[%s694 + $0x7a] sm:$0xff]
      %v3065 = vld [vmem:[%s694 + $0x82] sm:$0xff]
      %v3066 = vld [vmem:[%s694 + $0x92] sm:$0xff]
      %v3067 = vld [vmem:[%s694 + $0x9a] sm:$0xff]
      %v3068 = vld [vmem:[%s694 + $0xaa] sm:$0xff]
      %v3069 = vld [vmem:[%s694 + $0xb2] sm:$0xff]
      %v3070 = vld [vmem:[%s694 + $0xc2] sm:$0xff]
      %v3071 = vld [vmem:[%s694 + $0xca] sm:$0xff]
      %v3072 = vld [vmem:[%s694 + $0xda] sm:$0xff]
      %v3073 = vld [vmem:[%s694 + $0xe2] sm:$0xff]
      %v3074 = vld [vmem:[%s694 + $0xf2] sm:$0xff]
      %v3075 = vld [vmem:[%s694 + $0xfa] sm:$0xff]
      %v3076 = vld [vmem:[%s694 + $0x10a] sm:$0xff]
      %v3077 = vld [vmem:[%s694 + $0x112] sm:$0xff]
      %v3078 = vld [vmem:[%s694 + $0x122] sm:$0xff]
      %v3079 = vld [vmem:[%s694 + $0x12a] sm:$0xff]
      %v3080 = vld [vmem:[%s694 + $0x13a] sm:$0xff]
      %v3081 = vld [vmem:[%s694 + $0x142] sm:$0xff]
      %v3082 = vld [vmem:[%s694 + $0x152] sm:$0xff]
      %v3083 = vld [vmem:[%s694 + $0x15a] sm:$0xff]
      %v3084 = vld [vmem:[%s694 + $0x16a] sm:$0xff]
      %v3085 = vld [vmem:[%s694 + $0x172] sm:$0xff]
      %v3086 = vlaneseq
      %v3087 = vshrl.u32 %v3086, 7
      %v3088 = vsub.s32 0, %v3087
      %v3089 = vrot.slane %v3053, %v3088
      %v3090 = vmul.f32 %v3054, %v3089
      %v3091 = vmul.f32 %v3055, %v3089
      %v3092 = vmul.f32 %v3056, %v3089
      %v3093 = vmul.f32 %v3057, %v3089
      %v3094 = vmul.f32 %v3058, %v3089
      %v3095 = vmul.f32 %v3059, %v3089
      %v3096 = vmul.f32 %v3060, %v3089
      %v3097 = vmul.f32 %v3061, %v3089
      %v3098 = vmul.f32 %v3062, %v3089
      %v3099 = vmul.f32 %v3063, %v3089
      %v3100 = vmul.f32 %v3064, %v3089
      %v3101 = vmul.f32 %v3065, %v3089
      %v3102 = vmul.f32 %v3066, %v3089
      %v3103 = vmul.f32 %v3067, %v3089
      %v3104 = vmul.f32 %v3068, %v3089
      %v3105 = vmul.f32 %v3069, %v3089
      %v3106 = vmul.f32 %v3070, %v3089
      %v3107 = vmul.f32 %v3071, %v3089
      %v3108 = vmul.f32 %v3072, %v3089
      %v3109 = vmul.f32 %v3073, %v3089
      %v3110 = vmul.f32 %v3074, %v3089
      %v3111 = vmul.f32 %v3075, %v3089
      %v3112 = vmul.f32 %v3076, %v3089
      %v3113 = vmul.f32 %v3077, %v3089
      %v3114 = vmul.f32 %v3078, %v3089
      %v3115 = vmul.f32 %v3079, %v3089
      %v3116 = vmul.f32 %v3080, %v3089
      %v3117 = vmul.f32 %v3081, %v3089
      %v3118 = vmul.f32 %v3082, %v3089
      %v3119 = vmul.f32 %v3083, %v3089
      %v3120 = vmul.f32 %v3084, %v3089
      %v3121 = vmul.f32 %v3085, %v3089
      %v3122 = vadd.f32 %v3021, %v3090
      %v3123 = vadd.f32 %v3022, %v3091
      %v3124 = vadd.f32 %v3023, %v3092
      %v3125 = vadd.f32 %v3024, %v3093
      %v3126 = vadd.f32 %v3025, %v3094
      %v3127 = vadd.f32 %v3026, %v3095
      %v3128 = vadd.f32 %v3027, %v3096
      %v3129 = vadd.f32 %v3028, %v3097
      %v3130 = vadd.f32 %v3029, %v3098
      %v3131 = vadd.f32 %v3030, %v3099
      %v3132 = vadd.f32 %v3031, %v3100
      %v3133 = vadd.f32 %v3032, %v3101
      %v3134 = vadd.f32 %v3033, %v3102
      %v3135 = vadd.f32 %v3034, %v3103
      %v3136 = vadd.f32 %v3035, %v3104
      %v3137 = vadd.f32 %v3036, %v3105
      %v3138 = vadd.f32 %v3037, %v3106
      %v3139 = vadd.f32 %v3038, %v3107
      %v3140 = vadd.f32 %v3039, %v3108
      %v3141 = vadd.f32 %v3040, %v3109
      %v3142 = vadd.f32 %v3041, %v3110
      %v3143 = vadd.f32 %v3042, %v3111
      %v3144 = vadd.f32 %v3043, %v3112
      %v3145 = vadd.f32 %v3044, %v3113
      %v3146 = vadd.f32 %v3045, %v3114
      %v3147 = vadd.f32 %v3046, %v3115
      %v3148 = vadd.f32 %v3047, %v3116
      %v3149 = vadd.f32 %v3048, %v3117
      %v3150 = vadd.f32 %v3049, %v3118
      %v3151 = vadd.f32 %v3050, %v3119
      %v3152 = vadd.f32 %v3051, %v3120
      %v3153 = vadd.f32 %v3052, %v3121
      %v3154 = vld [vmem:[%s2 + $0x18] sm:$0x1]
      %v3155 = vld [vmem:[%s694 + $0x3] sm:$0xff]
      %v3156 = vld [vmem:[%s694 + $0xb] sm:$0xff]
      %v3157 = vld [vmem:[%s694 + $0x1b] sm:$0xff]
      %v3158 = vld [vmem:[%s694 + $0x23] sm:$0xff]
      %v3159 = vld [vmem:[%s694 + $0x33] sm:$0xff]
      %v3160 = vld [vmem:[%s694 + $0x3b] sm:$0xff]
      %v3161 = vld [vmem:[%s694 + $0x4b] sm:$0xff]
      %v3162 = vld [vmem:[%s694 + $0x53] sm:$0xff]
      %v3163 = vld [vmem:[%s694 + $0x63] sm:$0xff]
      %v3164 = vld [vmem:[%s694 + $0x6b] sm:$0xff]
      %v3165 = vld [vmem:[%s694 + $0x7b] sm:$0xff]
      %v3166 = vld [vmem:[%s694 + $0x83] sm:$0xff]
      %v3167 = vld [vmem:[%s694 + $0x93] sm:$0xff]
      %v3168 = vld [vmem:[%s694 + $0x9b] sm:$0xff]
      %v3169 = vld [vmem:[%s694 + $0xab] sm:$0xff]
      %v3170 = vld [vmem:[%s694 + $0xb3] sm:$0xff]
      %v3171 = vld [vmem:[%s694 + $0xc3] sm:$0xff]
      %v3172 = vld [vmem:[%s694 + $0xcb] sm:$0xff]
      %v3173 = vld [vmem:[%s694 + $0xdb] sm:$0xff]
      %v3174 = vld [vmem:[%s694 + $0xe3] sm:$0xff]
      %v3175 = vld [vmem:[%s694 + $0xf3] sm:$0xff]
      %v3176 = vld [vmem:[%s694 + $0xfb] sm:$0xff]
      %v3177 = vld [vmem:[%s694 + $0x10b] sm:$0xff]
      %v3178 = vld [vmem:[%s694 + $0x113] sm:$0xff]
      %v3179 = vld [vmem:[%s694 + $0x123] sm:$0xff]
      %v3180 = vld [vmem:[%s694 + $0x12b] sm:$0xff]
      %v3181 = vld [vmem:[%s694 + $0x13b] sm:$0xff]
      %v3182 = vld [vmem:[%s694 + $0x143] sm:$0xff]
      %v3183 = vld [vmem:[%s694 + $0x153] sm:$0xff]
      %v3184 = vld [vmem:[%s694 + $0x15b] sm:$0xff]
      %v3185 = vld [vmem:[%s694 + $0x16b] sm:$0xff]
      %v3186 = vld [vmem:[%s694 + $0x173] sm:$0xff]
      %v3187 = vlaneseq
      %v3188 = vshrl.u32 %v3187, 7
      %v3189 = vsub.s32 0, %v3188
      %v3190 = vrot.slane %v3154, %v3189
      %v3191 = vmul.f32 %v3155, %v3190
      %v3192 = vmul.f32 %v3156, %v3190
      %v3193 = vmul.f32 %v3157, %v3190
      %v3194 = vmul.f32 %v3158, %v3190
      %v3195 = vmul.f32 %v3159, %v3190
      %v3196 = vmul.f32 %v3160, %v3190
      %v3197 = vmul.f32 %v3161, %v3190
      %v3198 = vmul.f32 %v3162, %v3190
      %v3199 = vmul.f32 %v3163, %v3190
      %v3200 = vmul.f32 %v3164, %v3190
      %v3201 = vmul.f32 %v3165, %v3190
      %v3202 = vmul.f32 %v3166, %v3190
      %v3203 = vmul.f32 %v3167, %v3190
      %v3204 = vmul.f32 %v3168, %v3190
      %v3205 = vmul.f32 %v3169, %v3190
      %v3206 = vmul.f32 %v3170, %v3190
      %v3207 = vmul.f32 %v3171, %v3190
      %v3208 = vmul.f32 %v3172, %v3190
      %v3209 = vmul.f32 %v3173, %v3190
      %v3210 = vmul.f32 %v3174, %v3190
      %v3211 = vmul.f32 %v3175, %v3190
      %v3212 = vmul.f32 %v3176, %v3190
      %v3213 = vmul.f32 %v3177, %v3190
      %v3214 = vmul.f32 %v3178, %v3190
      %v3215 = vmul.f32 %v3179, %v3190
      %v3216 = vmul.f32 %v3180, %v3190
      %v3217 = vmul.f32 %v3181, %v3190
      %v3218 = vmul.f32 %v3182, %v3190
      %v3219 = vmul.f32 %v3183, %v3190
      %v3220 = vmul.f32 %v3184, %v3190
      %v3221 = vmul.f32 %v3185, %v3190
      %v3222 = vmul.f32 %v3186, %v3190
      %v3223 = vadd.f32 %v3122, %v3191
      %v3224 = vadd.f32 %v3123, %v3192
      %v3225 = vadd.f32 %v3124, %v3193
      %v3226 = vadd.f32 %v3125, %v3194
      %v3227 = vadd.f32 %v3126, %v3195
      %v3228 = vadd.f32 %v3127, %v3196
      %v3229 = vadd.f32 %v3128, %v3197
      %v3230 = vadd.f32 %v3129, %v3198
      %v3231 = vadd.f32 %v3130, %v3199
      %v3232 = vadd.f32 %v3131, %v3200
      %v3233 = vadd.f32 %v3132, %v3201
      %v3234 = vadd.f32 %v3133, %v3202
      %v3235 = vadd.f32 %v3134, %v3203
      %v3236 = vadd.f32 %v3135, %v3204
      %v3237 = vadd.f32 %v3136, %v3205
      %v3238 = vadd.f32 %v3137, %v3206
      %v3239 = vadd.f32 %v3138, %v3207
      %v3240 = vadd.f32 %v3139, %v3208
      %v3241 = vadd.f32 %v3140, %v3209
      %v3242 = vadd.f32 %v3141, %v3210
      %v3243 = vadd.f32 %v3142, %v3211
      %v3244 = vadd.f32 %v3143, %v3212
      %v3245 = vadd.f32 %v3144, %v3213
      %v3246 = vadd.f32 %v3145, %v3214
      %v3247 = vadd.f32 %v3146, %v3215
      %v3248 = vadd.f32 %v3147, %v3216
      %v3249 = vadd.f32 %v3148, %v3217
      %v3250 = vadd.f32 %v3149, %v3218
      %v3251 = vadd.f32 %v3150, %v3219
      %v3252 = vadd.f32 %v3151, %v3220
      %v3253 = vadd.f32 %v3152, %v3221
      %v3254 = vadd.f32 %v3153, %v3222
      %v3255 = vld [vmem:[%s2 + $0x19] sm:$0x1]
      %v3256 = vld [vmem:[%s694 + $0x4] sm:$0xff]
      %v3257 = vld [vmem:[%s694 + $0xc] sm:$0xff]
      %v3258 = vld [vmem:[%s694 + $0x1c] sm:$0xff]
      %v3259 = vld [vmem:[%s694 + $0x24] sm:$0xff]
      %v3260 = vld [vmem:[%s694 + $0x34] sm:$0xff]
      %v3261 = vld [vmem:[%s694 + $0x3c] sm:$0xff]
      %v3262 = vld [vmem:[%s694 + $0x4c] sm:$0xff]
      %v3263 = vld [vmem:[%s694 + $0x54] sm:$0xff]
      %v3264 = vld [vmem:[%s694 + $0x64] sm:$0xff]
      %v3265 = vld [vmem:[%s694 + $0x6c] sm:$0xff]
      %v3266 = vld [vmem:[%s694 + $0x7c] sm:$0xff]
      %v3267 = vld [vmem:[%s694 + $0x84] sm:$0xff]
      %v3268 = vld [vmem:[%s694 + $0x94] sm:$0xff]
      %v3269 = vld [vmem:[%s694 + $0x9c] sm:$0xff]
      %v3270 = vld [vmem:[%s694 + $0xac] sm:$0xff]
      %v3271 = vld [vmem:[%s694 + $0xb4] sm:$0xff]
      %v3272 = vld [vmem:[%s694 + $0xc4] sm:$0xff]
      %v3273 = vld [vmem:[%s694 + $0xcc] sm:$0xff]
      %v3274 = vld [vmem:[%s694 + $0xdc] sm:$0xff]
      %v3275 = vld [vmem:[%s694 + $0xe4] sm:$0xff]
      %v3276 = vld [vmem:[%s694 + $0xf4] sm:$0xff]
      %v3277 = vld [vmem:[%s694 + $0xfc] sm:$0xff]
      %v3278 = vld [vmem:[%s694 + $0x10c] sm:$0xff]
      %v3279 = vld [vmem:[%s694 + $0x114] sm:$0xff]
      %v3280 = vld [vmem:[%s694 + $0x124] sm:$0xff]
      %v3281 = vld [vmem:[%s694 + $0x12c] sm:$0xff]
      %v3282 = vld [vmem:[%s694 + $0x13c] sm:$0xff]
      %v3283 = vld [vmem:[%s694 + $0x144] sm:$0xff]
      %v3284 = vld [vmem:[%s694 + $0x154] sm:$0xff]
      %v3285 = vld [vmem:[%s694 + $0x15c] sm:$0xff]
      %v3286 = vld [vmem:[%s694 + $0x16c] sm:$0xff]
      %v3287 = vld [vmem:[%s694 + $0x174] sm:$0xff]
      %v3288 = vlaneseq
      %v3289 = vshrl.u32 %v3288, 7
      %v3290 = vsub.s32 0, %v3289
      %v3291 = vrot.slane %v3255, %v3290
      %v3292 = vmul.f32 %v3256, %v3291
      %v3293 = vmul.f32 %v3257, %v3291
      %v3294 = vmul.f32 %v3258, %v3291
      %v3295 = vmul.f32 %v3259, %v3291
      %v3296 = vmul.f32 %v3260, %v3291
      %v3297 = vmul.f32 %v3261, %v3291
      %v3298 = vmul.f32 %v3262, %v3291
      %v3299 = vmul.f32 %v3263, %v3291
      %v3300 = vmul.f32 %v3264, %v3291
      %v3301 = vmul.f32 %v3265, %v3291
      %v3302 = vmul.f32 %v3266, %v3291
      %v3303 = vmul.f32 %v3267, %v3291
      %v3304 = vmul.f32 %v3268, %v3291
      %v3305 = vmul.f32 %v3269, %v3291
      %v3306 = vmul.f32 %v3270, %v3291
      %v3307 = vmul.f32 %v3271, %v3291
      %v3308 = vmul.f32 %v3272, %v3291
      %v3309 = vmul.f32 %v3273, %v3291
      %v3310 = vmul.f32 %v3274, %v3291
      %v3311 = vmul.f32 %v3275, %v3291
      %v3312 = vmul.f32 %v3276, %v3291
      %v3313 = vmul.f32 %v3277, %v3291
      %v3314 = vmul.f32 %v3278, %v3291
      %v3315 = vmul.f32 %v3279, %v3291
      %v3316 = vmul.f32 %v3280, %v3291
      %v3317 = vmul.f32 %v3281, %v3291
      %v3318 = vmul.f32 %v3282, %v3291
      %v3319 = vmul.f32 %v3283, %v3291
      %v3320 = vmul.f32 %v3284, %v3291
      %v3321 = vmul.f32 %v3285, %v3291
      %v3322 = vmul.f32 %v3286, %v3291
      %v3323 = vmul.f32 %v3287, %v3291
      %v3324 = vadd.f32 %v3223, %v3292
      %v3325 = vadd.f32 %v3224, %v3293
      %v3326 = vadd.f32 %v3225, %v3294
      %v3327 = vadd.f32 %v3226, %v3295
      %v3328 = vadd.f32 %v3227, %v3296
      %v3329 = vadd.f32 %v3228, %v3297
      %v3330 = vadd.f32 %v3229, %v3298
      %v3331 = vadd.f32 %v3230, %v3299
      %v3332 = vadd.f32 %v3231, %v3300
      %v3333 = vadd.f32 %v3232, %v3301
      %v3334 = vadd.f32 %v3233, %v3302
      %v3335 = vadd.f32 %v3234, %v3303
      %v3336 = vadd.f32 %v3235, %v3304
      %v3337 = vadd.f32 %v3236, %v3305
      %v3338 = vadd.f32 %v3237, %v3306
      %v3339 = vadd.f32 %v3238, %v3307
      %v3340 = vadd.f32 %v3239, %v3308
      %v3341 = vadd.f32 %v3240, %v3309
      %v3342 = vadd.f32 %v3241, %v3310
      %v3343 = vadd.f32 %v3242, %v3311
      %v3344 = vadd.f32 %v3243, %v3312
      %v3345 = vadd.f32 %v3244, %v3313
      %v3346 = vadd.f32 %v3245, %v3314
      %v3347 = vadd.f32 %v3246, %v3315
      %v3348 = vadd.f32 %v3247, %v3316
      %v3349 = vadd.f32 %v3248, %v3317
      %v3350 = vadd.f32 %v3249, %v3318
      %v3351 = vadd.f32 %v3250, %v3319
      %v3352 = vadd.f32 %v3251, %v3320
      %v3353 = vadd.f32 %v3252, %v3321
      %v3354 = vadd.f32 %v3253, %v3322
      %v3355 = vadd.f32 %v3254, %v3323
      %v3356 = vld [vmem:[%s2 + $0x1a] sm:$0x1]
      %v3357 = vld [vmem:[%s694 + $0x5] sm:$0xff]
      %v3358 = vld [vmem:[%s694 + $0xd] sm:$0xff]
      %v3359 = vld [vmem:[%s694 + $0x1d] sm:$0xff]
      %v3360 = vld [vmem:[%s694 + $0x25] sm:$0xff]
      %v3361 = vld [vmem:[%s694 + $0x35] sm:$0xff]
      %v3362 = vld [vmem:[%s694 + $0x3d] sm:$0xff]
      %v3363 = vld [vmem:[%s694 + $0x4d] sm:$0xff]
      %v3364 = vld [vmem:[%s694 + $0x55] sm:$0xff]
      %v3365 = vld [vmem:[%s694 + $0x65] sm:$0xff]
      %v3366 = vld [vmem:[%s694 + $0x6d] sm:$0xff]
      %v3367 = vld [vmem:[%s694 + $0x7d] sm:$0xff]
      %v3368 = vld [vmem:[%s694 + $0x85] sm:$0xff]
      %v3369 = vld [vmem:[%s694 + $0x95] sm:$0xff]
      %v3370 = vld [vmem:[%s694 + $0x9d] sm:$0xff]
      %v3371 = vld [vmem:[%s694 + $0xad] sm:$0xff]
      %v3372 = vld [vmem:[%s694 + $0xb5] sm:$0xff]
      %v3373 = vld [vmem:[%s694 + $0xc5] sm:$0xff]
      %v3374 = vld [vmem:[%s694 + $0xcd] sm:$0xff]
      %v3375 = vld [vmem:[%s694 + $0xdd] sm:$0xff]
      %v3376 = vld [vmem:[%s694 + $0xe5] sm:$0xff]
      %v3377 = vld [vmem:[%s694 + $0xf5] sm:$0xff]
      %v3378 = vld [vmem:[%s694 + $0xfd] sm:$0xff]
      %v3379 = vld [vmem:[%s694 + $0x10d] sm:$0xff]
      %v3380 = vld [vmem:[%s694 + $0x115] sm:$0xff]
      %v3381 = vld [vmem:[%s694 + $0x125] sm:$0xff]
      %v3382 = vld [vmem:[%s694 + $0x12d] sm:$0xff]
      %v3383 = vld [vmem:[%s694 + $0x13d] sm:$0xff]
      %v3384 = vld [vmem:[%s694 + $0x145] sm:$0xff]
      %v3385 = vld [vmem:[%s694 + $0x155] sm:$0xff]
      %v3386 = vld [vmem:[%s694 + $0x15d] sm:$0xff]
      %v3387 = vld [vmem:[%s694 + $0x16d] sm:$0xff]
      %v3388 = vld [vmem:[%s694 + $0x175] sm:$0xff]
      %v3389 = vlaneseq
      %v3390 = vshrl.u32 %v3389, 7
      %v3391 = vsub.s32 0, %v3390
      %v3392 = vrot.slane %v3356, %v3391
      %v3393 = vmul.f32 %v3357, %v3392
      %v3394 = vmul.f32 %v3358, %v3392
      %v3395 = vmul.f32 %v3359, %v3392
      %v3396 = vmul.f32 %v3360, %v3392
      %v3397 = vmul.f32 %v3361, %v3392
      %v3398 = vmul.f32 %v3362, %v3392
      %v3399 = vmul.f32 %v3363, %v3392
      %v3400 = vmul.f32 %v3364, %v3392
      %v3401 = vmul.f32 %v3365, %v3392
      %v3402 = vmul.f32 %v3366, %v3392
      %v3403 = vmul.f32 %v3367, %v3392
      %v3404 = vmul.f32 %v3368, %v3392
      %v3405 = vmul.f32 %v3369, %v3392
      %v3406 = vmul.f32 %v3370, %v3392
      %v3407 = vmul.f32 %v3371, %v3392
      %v3408 = vmul.f32 %v3372, %v3392
      %v3409 = vmul.f32 %v3373, %v3392
      %v3410 = vmul.f32 %v3374, %v3392
      %v3411 = vmul.f32 %v3375, %v3392
      %v3412 = vmul.f32 %v3376, %v3392
      %v3413 = vmul.f32 %v3377, %v3392
      %v3414 = vmul.f32 %v3378, %v3392
      %v3415 = vmul.f32 %v3379, %v3392
      %v3416 = vmul.f32 %v3380, %v3392
      %v3417 = vmul.f32 %v3381, %v3392
      %v3418 = vmul.f32 %v3382, %v3392
      %v3419 = vmul.f32 %v3383, %v3392
      %v3420 = vmul.f32 %v3384, %v3392
      %v3421 = vmul.f32 %v3385, %v3392
      %v3422 = vmul.f32 %v3386, %v3392
      %v3423 = vmul.f32 %v3387, %v3392
      %v3424 = vmul.f32 %v3388, %v3392
      %v3425 = vadd.f32 %v3324, %v3393
      %v3426 = vadd.f32 %v3325, %v3394
      %v3427 = vadd.f32 %v3326, %v3395
      %v3428 = vadd.f32 %v3327, %v3396
      %v3429 = vadd.f32 %v3328, %v3397
      %v3430 = vadd.f32 %v3329, %v3398
      %v3431 = vadd.f32 %v3330, %v3399
      %v3432 = vadd.f32 %v3331, %v3400
      %v3433 = vadd.f32 %v3332, %v3401
      %v3434 = vadd.f32 %v3333, %v3402
      %v3435 = vadd.f32 %v3334, %v3403
      %v3436 = vadd.f32 %v3335, %v3404
      %v3437 = vadd.f32 %v3336, %v3405
      %v3438 = vadd.f32 %v3337, %v3406
      %v3439 = vadd.f32 %v3338, %v3407
      %v3440 = vadd.f32 %v3339, %v3408
      %v3441 = vadd.f32 %v3340, %v3409
      %v3442 = vadd.f32 %v3341, %v3410
      %v3443 = vadd.f32 %v3342, %v3411
      %v3444 = vadd.f32 %v3343, %v3412
      %v3445 = vadd.f32 %v3344, %v3413
      %v3446 = vadd.f32 %v3345, %v3414
      %v3447 = vadd.f32 %v3346, %v3415
      %v3448 = vadd.f32 %v3347, %v3416
      %v3449 = vadd.f32 %v3348, %v3417
      %v3450 = vadd.f32 %v3349, %v3418
      %v3451 = vadd.f32 %v3350, %v3419
      %v3452 = vadd.f32 %v3351, %v3420
      %v3453 = vadd.f32 %v3352, %v3421
      %v3454 = vadd.f32 %v3353, %v3422
      %v3455 = vadd.f32 %v3354, %v3423
      %v3456 = vadd.f32 %v3355, %v3424
      %v3457 = vld [vmem:[%s2 + $0x1b] sm:$0x1]
      %v3458 = vld [vmem:[%s694 + $0x6] sm:$0xff]
      %v3459 = vld [vmem:[%s694 + $0xe] sm:$0xff]
      %v3460 = vld [vmem:[%s694 + $0x1e] sm:$0xff]
      %v3461 = vld [vmem:[%s694 + $0x26] sm:$0xff]
      %v3462 = vld [vmem:[%s694 + $0x36] sm:$0xff]
      %v3463 = vld [vmem:[%s694 + $0x3e] sm:$0xff]
      %v3464 = vld [vmem:[%s694 + $0x4e] sm:$0xff]
      %v3465 = vld [vmem:[%s694 + $0x56] sm:$0xff]
      %v3466 = vld [vmem:[%s694 + $0x66] sm:$0xff]
      %v3467 = vld [vmem:[%s694 + $0x6e] sm:$0xff]
      %v3468 = vld [vmem:[%s694 + $0x7e] sm:$0xff]
      %v3469 = vld [vmem:[%s694 + $0x86] sm:$0xff]
      %v3470 = vld [vmem:[%s694 + $0x96] sm:$0xff]
      %v3471 = vld [vmem:[%s694 + $0x9e] sm:$0xff]
      %v3472 = vld [vmem:[%s694 + $0xae] sm:$0xff]
      %v3473 = vld [vmem:[%s694 + $0xb6] sm:$0xff]
      %v3474 = vld [vmem:[%s694 + $0xc6] sm:$0xff]
      %v3475 = vld [vmem:[%s694 + $0xce] sm:$0xff]
      %v3476 = vld [vmem:[%s694 + $0xde] sm:$0xff]
      %v3477 = vld [vmem:[%s694 + $0xe6] sm:$0xff]
      %v3478 = vld [vmem:[%s694 + $0xf6] sm:$0xff]
      %v3479 = vld [vmem:[%s694 + $0xfe] sm:$0xff]
      %v3480 = vld [vmem:[%s694 + $0x10e] sm:$0xff]
      %v3481 = vld [vmem:[%s694 + $0x116] sm:$0xff]
      %v3482 = vld [vmem:[%s694 + $0x126] sm:$0xff]
      %v3483 = vld [vmem:[%s694 + $0x12e] sm:$0xff]
      %v3484 = vld [vmem:[%s694 + $0x13e] sm:$0xff]
      %v3485 = vld [vmem:[%s694 + $0x146] sm:$0xff]
      %v3486 = vld [vmem:[%s694 + $0x156] sm:$0xff]
      %v3487 = vld [vmem:[%s694 + $0x15e] sm:$0xff]
      %v3488 = vld [vmem:[%s694 + $0x16e] sm:$0xff]
      %v3489 = vld [vmem:[%s694 + $0x176] sm:$0xff]
      %v3490 = vlaneseq
      %v3491 = vshrl.u32 %v3490, 7
      %v3492 = vsub.s32 0, %v3491
      %v3493 = vrot.slane %v3457, %v3492
      %v3494 = vmul.f32 %v3458, %v3493
      %v3495 = vmul.f32 %v3459, %v3493
      %v3496 = vmul.f32 %v3460, %v3493
      %v3497 = vmul.f32 %v3461, %v3493
      %v3498 = vmul.f32 %v3462, %v3493
      %v3499 = vmul.f32 %v3463, %v3493
      %v3500 = vmul.f32 %v3464, %v3493
      %v3501 = vmul.f32 %v3465, %v3493
      %v3502 = vmul.f32 %v3466, %v3493
      %v3503 = vmul.f32 %v3467, %v3493
      %v3504 = vmul.f32 %v3468, %v3493
      %v3505 = vmul.f32 %v3469, %v3493
      %v3506 = vmul.f32 %v3470, %v3493
      %v3507 = vmul.f32 %v3471, %v3493
      %v3508 = vmul.f32 %v3472, %v3493
      %v3509 = vmul.f32 %v3473, %v3493
      %v3510 = vmul.f32 %v3474, %v3493
      %v3511 = vmul.f32 %v3475, %v3493
      %v3512 = vmul.f32 %v3476, %v3493
      %v3513 = vmul.f32 %v3477, %v3493
      %v3514 = vmul.f32 %v3478, %v3493
      %v3515 = vmul.f32 %v3479, %v3493
      %v3516 = vmul.f32 %v3480, %v3493
      %v3517 = vmul.f32 %v3481, %v3493
      %v3518 = vmul.f32 %v3482, %v3493
      %v3519 = vmul.f32 %v3483, %v3493
      %v3520 = vmul.f32 %v3484, %v3493
      %v3521 = vmul.f32 %v3485, %v3493
      %v3522 = vmul.f32 %v3486, %v3493
      %v3523 = vmul.f32 %v3487, %v3493
      %v3524 = vmul.f32 %v3488, %v3493
      %v3525 = vmul.f32 %v3489, %v3493
      %v3526 = vadd.f32 %v3425, %v3494
      %v3527 = vadd.f32 %v3426, %v3495
      %v3528 = vadd.f32 %v3427, %v3496
      %v3529 = vadd.f32 %v3428, %v3497
      %v3530 = vadd.f32 %v3429, %v3498
      %v3531 = vadd.f32 %v3430, %v3499
      %v3532 = vadd.f32 %v3431, %v3500
      %v3533 = vadd.f32 %v3432, %v3501
      %v3534 = vadd.f32 %v3433, %v3502
      %v3535 = vadd.f32 %v3434, %v3503
      %v3536 = vadd.f32 %v3435, %v3504
      %v3537 = vadd.f32 %v3436, %v3505
      %v3538 = vadd.f32 %v3437, %v3506
      %v3539 = vadd.f32 %v3438, %v3507
      %v3540 = vadd.f32 %v3439, %v3508
      %v3541 = vadd.f32 %v3440, %v3509
      %v3542 = vadd.f32 %v3441, %v3510
      %v3543 = vadd.f32 %v3442, %v3511
      %v3544 = vadd.f32 %v3443, %v3512
      %v3545 = vadd.f32 %v3444, %v3513
      %v3546 = vadd.f32 %v3445, %v3514
      %v3547 = vadd.f32 %v3446, %v3515
      %v3548 = vadd.f32 %v3447, %v3516
      %v3549 = vadd.f32 %v3448, %v3517
      %v3550 = vadd.f32 %v3449, %v3518
      %v3551 = vadd.f32 %v3450, %v3519
      %v3552 = vadd.f32 %v3451, %v3520
      %v3553 = vadd.f32 %v3452, %v3521
      %v3554 = vadd.f32 %v3453, %v3522
      %v3555 = vadd.f32 %v3454, %v3523
      %v3556 = vadd.f32 %v3455, %v3524
      %v3557 = vadd.f32 %v3456, %v3525
      %v3558 = vld [vmem:[%s2 + $0x1c] sm:$0x1]
      %s3559 = scalar_lea.vmem [#allocation2], 96
      %v3560 = vld [vmem:[%s3559] sm:$0xff]
      %v3561 = vld [vmem:[%s3559 + $0x8] sm:$0xff]
      %v3562 = vld [vmem:[%s3559 + $0x18] sm:$0xff]
      %v3563 = vld [vmem:[%s3559 + $0x20] sm:$0xff]
      %v3564 = vld [vmem:[%s3559 + $0x30] sm:$0xff]
      %v3565 = vld [vmem:[%s3559 + $0x38] sm:$0xff]
      %v3566 = vld [vmem:[%s3559 + $0x48] sm:$0xff]
      %v3567 = vld [vmem:[%s3559 + $0x50] sm:$0xff]
      %v3568 = vld [vmem:[%s3559 + $0x60] sm:$0xff]
      %v3569 = vld [vmem:[%s3559 + $0x68] sm:$0xff]
      %v3570 = vld [vmem:[%s3559 + $0x78] sm:$0xff]
      %v3571 = vld [vmem:[%s3559 + $0x80] sm:$0xff]
      %v3572 = vld [vmem:[%s3559 + $0x90] sm:$0xff]
      %v3573 = vld [vmem:[%s3559 + $0x98] sm:$0xff]
      %v3574 = vld [vmem:[%s3559 + $0xa8] sm:$0xff]
      %v3575 = vld [vmem:[%s3559 + $0xb0] sm:$0xff]
      %v3576 = vld [vmem:[%s3559 + $0xc0] sm:$0xff]
      %v3577 = vld [vmem:[%s3559 + $0xc8] sm:$0xff]
      %v3578 = vld [vmem:[%s3559 + $0xd8] sm:$0xff]
      %v3579 = vld [vmem:[%s3559 + $0xe0] sm:$0xff]
      %v3580 = vld [vmem:[%s3559 + $0xf0] sm:$0xff]
      %v3581 = vld [vmem:[%s3559 + $0xf8] sm:$0xff]
      %v3582 = vld [vmem:[%s3559 + $0x108] sm:$0xff]
      %v3583 = vld [vmem:[%s3559 + $0x110] sm:$0xff]
      %v3584 = vld [vmem:[%s3559 + $0x120] sm:$0xff]
      %v3585 = vld [vmem:[%s3559 + $0x128] sm:$0xff]
      %v3586 = vld [vmem:[%s3559 + $0x138] sm:$0xff]
      %v3587 = vld [vmem:[%s3559 + $0x140] sm:$0xff]
      %v3588 = vld [vmem:[%s3559 + $0x150] sm:$0xff]
      %v3589 = vld [vmem:[%s3559 + $0x158] sm:$0xff]
      %v3590 = vld [vmem:[%s3559 + $0x168] sm:$0xff]
      %v3591 = vld [vmem:[%s3559 + $0x170] sm:$0xff]
      %v3592 = vlaneseq
      %v3593 = vshrl.u32 %v3592, 7
      %v3594 = vsub.s32 0, %v3593
      %v3595 = vrot.slane %v3558, %v3594
      %v3596 = vmul.f32 %v3560, %v3595
      %v3597 = vmul.f32 %v3561, %v3595
      %v3598 = vmul.f32 %v3562, %v3595
      %v3599 = vmul.f32 %v3563, %v3595
      %v3600 = vmul.f32 %v3564, %v3595
      %v3601 = vmul.f32 %v3565, %v3595
      %v3602 = vmul.f32 %v3566, %v3595
      %v3603 = vmul.f32 %v3567, %v3595
      %v3604 = vmul.f32 %v3568, %v3595
      %v3605 = vmul.f32 %v3569, %v3595
      %v3606 = vmul.f32 %v3570, %v3595
      %v3607 = vmul.f32 %v3571, %v3595
      %v3608 = vmul.f32 %v3572, %v3595
      %v3609 = vmul.f32 %v3573, %v3595
      %v3610 = vmul.f32 %v3574, %v3595
      %v3611 = vmul.f32 %v3575, %v3595
      %v3612 = vmul.f32 %v3576, %v3595
      %v3613 = vmul.f32 %v3577, %v3595
      %v3614 = vmul.f32 %v3578, %v3595
      %v3615 = vmul.f32 %v3579, %v3595
      %v3616 = vmul.f32 %v3580, %v3595
      %v3617 = vmul.f32 %v3581, %v3595
      %v3618 = vmul.f32 %v3582, %v3595
      %v3619 = vmul.f32 %v3583, %v3595
      %v3620 = vmul.f32 %v3584, %v3595
      %v3621 = vmul.f32 %v3585, %v3595
      %v3622 = vmul.f32 %v3586, %v3595
      %v3623 = vmul.f32 %v3587, %v3595
      %v3624 = vmul.f32 %v3588, %v3595
      %v3625 = vmul.f32 %v3589, %v3595
      %v3626 = vmul.f32 %v3590, %v3595
      %v3627 = vmul.f32 %v3591, %v3595
      %v3628 = vadd.f32 %v3526, %v3596
      %v3629 = vadd.f32 %v3527, %v3597
      %v3630 = vadd.f32 %v3528, %v3598
      %v3631 = vadd.f32 %v3529, %v3599
      %v3632 = vadd.f32 %v3530, %v3600
      %v3633 = vadd.f32 %v3531, %v3601
      %v3634 = vadd.f32 %v3532, %v3602
      %v3635 = vadd.f32 %v3533, %v3603
      %v3636 = vadd.f32 %v3534, %v3604
      %v3637 = vadd.f32 %v3535, %v3605
      %v3638 = vadd.f32 %v3536, %v3606
      %v3639 = vadd.f32 %v3537, %v3607
      %v3640 = vadd.f32 %v3538, %v3608
      %v3641 = vadd.f32 %v3539, %v3609
      %v3642 = vadd.f32 %v3540, %v3610
      %v3643 = vadd.f32 %v3541, %v3611
      %v3644 = vadd.f32 %v3542, %v3612
      %v3645 = vadd.f32 %v3543, %v3613
      %v3646 = vadd.f32 %v3544, %v3614
      %v3647 = vadd.f32 %v3545, %v3615
      %v3648 = vadd.f32 %v3546, %v3616
      %v3649 = vadd.f32 %v3547, %v3617
      %v3650 = vadd.f32 %v3548, %v3618
      %v3651 = vadd.f32 %v3549, %v3619
      %v3652 = vadd.f32 %v3550, %v3620
      %v3653 = vadd.f32 %v3551, %v3621
      %v3654 = vadd.f32 %v3552, %v3622
      %v3655 = vadd.f32 %v3553, %v3623
      %v3656 = vadd.f32 %v3554, %v3624
      %v3657 = vadd.f32 %v3555, %v3625
      %v3658 = vadd.f32 %v3556, %v3626
      %v3659 = vadd.f32 %v3557, %v3627
      %v3660 = vld [vmem:[%s2 + $0x1d] sm:$0x1]
      %v3661 = vld [vmem:[%s3559 + $0x1] sm:$0xff]
      %v3662 = vld [vmem:[%s3559 + $0x9] sm:$0xff]
      %v3663 = vld [vmem:[%s3559 + $0x19] sm:$0xff]
      %v3664 = vld [vmem:[%s3559 + $0x21] sm:$0xff]
      %v3665 = vld [vmem:[%s3559 + $0x31] sm:$0xff]
      %v3666 = vld [vmem:[%s3559 + $0x39] sm:$0xff]
      %v3667 = vld [vmem:[%s3559 + $0x49] sm:$0xff]
      %v3668 = vld [vmem:[%s3559 + $0x51] sm:$0xff]
      %v3669 = vld [vmem:[%s3559 + $0x61] sm:$0xff]
      %v3670 = vld [vmem:[%s3559 + $0x69] sm:$0xff]
      %v3671 = vld [vmem:[%s3559 + $0x79] sm:$0xff]
      %v3672 = vld [vmem:[%s3559 + $0x81] sm:$0xff]
      %v3673 = vld [vmem:[%s3559 + $0x91] sm:$0xff]
      %v3674 = vld [vmem:[%s3559 + $0x99] sm:$0xff]
      %v3675 = vld [vmem:[%s3559 + $0xa9] sm:$0xff]
      %v3676 = vld [vmem:[%s3559 + $0xb1] sm:$0xff]
      %v3677 = vld [vmem:[%s3559 + $0xc1] sm:$0xff]
      %v3678 = vld [vmem:[%s3559 + $0xc9] sm:$0xff]
      %v3679 = vld [vmem:[%s3559 + $0xd9] sm:$0xff]
      %v3680 = vld [vmem:[%s3559 + $0xe1] sm:$0xff]
      %v3681 = vld [vmem:[%s3559 + $0xf1] sm:$0xff]
      %v3682 = vld [vmem:[%s3559 + $0xf9] sm:$0xff]
      %v3683 = vld [vmem:[%s3559 + $0x109] sm:$0xff]
      %v3684 = vld [vmem:[%s3559 + $0x111] sm:$0xff]
      %v3685 = vld [vmem:[%s3559 + $0x121] sm:$0xff]
      %v3686 = vld [vmem:[%s3559 + $0x129] sm:$0xff]
      %v3687 = vld [vmem:[%s3559 + $0x139] sm:$0xff]
      %v3688 = vld [vmem:[%s3559 + $0x141] sm:$0xff]
      %v3689 = vld [vmem:[%s3559 + $0x151] sm:$0xff]
      %v3690 = vld [vmem:[%s3559 + $0x159] sm:$0xff]
      %v3691 = vld [vmem:[%s3559 + $0x169] sm:$0xff]
      %v3692 = vld [vmem:[%s3559 + $0x171] sm:$0xff]
      %v3693 = vlaneseq
      %v3694 = vshrl.u32 %v3693, 7
      %v3695 = vsub.s32 0, %v3694
      %v3696 = vrot.slane %v3660, %v3695
      %v3697 = vmul.f32 %v3661, %v3696
      %v3698 = vmul.f32 %v3662, %v3696
      %v3699 = vmul.f32 %v3663, %v3696
      %v3700 = vmul.f32 %v3664, %v3696
      %v3701 = vmul.f32 %v3665, %v3696
      %v3702 = vmul.f32 %v3666, %v3696
      %v3703 = vmul.f32 %v3667, %v3696
      %v3704 = vmul.f32 %v3668, %v3696
      %v3705 = vmul.f32 %v3669, %v3696
      %v3706 = vmul.f32 %v3670, %v3696
      %v3707 = vmul.f32 %v3671, %v3696
      %v3708 = vmul.f32 %v3672, %v3696
      %v3709 = vmul.f32 %v3673, %v3696
      %v3710 = vmul.f32 %v3674, %v3696
      %v3711 = vmul.f32 %v3675, %v3696
      %v3712 = vmul.f32 %v3676, %v3696
      %v3713 = vmul.f32 %v3677, %v3696
      %v3714 = vmul.f32 %v3678, %v3696
      %v3715 = vmul.f32 %v3679, %v3696
      %v3716 = vmul.f32 %v3680, %v3696
      %v3717 = vmul.f32 %v3681, %v3696
      %v3718 = vmul.f32 %v3682, %v3696
      %v3719 = vmul.f32 %v3683, %v3696
      %v3720 = vmul.f32 %v3684, %v3696
      %v3721 = vmul.f32 %v3685, %v3696
      %v3722 = vmul.f32 %v3686, %v3696
      %v3723 = vmul.f32 %v3687, %v3696
      %v3724 = vmul.f32 %v3688, %v3696
      %v3725 = vmul.f32 %v3689, %v3696
      %v3726 = vmul.f32 %v3690, %v3696
      %v3727 = vmul.f32 %v3691, %v3696
      %v3728 = vmul.f32 %v3692, %v3696
      %v3729 = vadd.f32 %v3628, %v3697
      %v3730 = vadd.f32 %v3629, %v3698
      %v3731 = vadd.f32 %v3630, %v3699
      %v3732 = vadd.f32 %v3631, %v3700
      %v3733 = vadd.f32 %v3632, %v3701
      %v3734 = vadd.f32 %v3633, %v3702
      %v3735 = vadd.f32 %v3634, %v3703
      %v3736 = vadd.f32 %v3635, %v3704
      %v3737 = vadd.f32 %v3636, %v3705
      %v3738 = vadd.f32 %v3637, %v3706
      %v3739 = vadd.f32 %v3638, %v3707
      %v3740 = vadd.f32 %v3639, %v3708
      %v3741 = vadd.f32 %v3640, %v3709
      %v3742 = vadd.f32 %v3641, %v3710
      %v3743 = vadd.f32 %v3642, %v3711
      %v3744 = vadd.f32 %v3643, %v3712
      %v3745 = vadd.f32 %v3644, %v3713
      %v3746 = vadd.f32 %v3645, %v3714
      %v3747 = vadd.f32 %v3646, %v3715
      %v3748 = vadd.f32 %v3647, %v3716
      %v3749 = vadd.f32 %v3648, %v3717
      %v3750 = vadd.f32 %v3649, %v3718
      %v3751 = vadd.f32 %v3650, %v3719
      %v3752 = vadd.f32 %v3651, %v3720
      %v3753 = vadd.f32 %v3652, %v3721
      %v3754 = vadd.f32 %v3653, %v3722
      %v3755 = vadd.f32 %v3654, %v3723
      %v3756 = vadd.f32 %v3655, %v3724
      %v3757 = vadd.f32 %v3656, %v3725
      %v3758 = vadd.f32 %v3657, %v3726
      %v3759 = vadd.f32 %v3658, %v3727
      %v3760 = vadd.f32 %v3659, %v3728
      %v3761 = vld [vmem:[%s2 + $0x1e] sm:$0x1]
      %v3762 = vld [vmem:[%s3559 + $0x2] sm:$0xff]
      %v3763 = vld [vmem:[%s3559 + $0xa] sm:$0xff]
      %v3764 = vld [vmem:[%s3559 + $0x1a] sm:$0xff]
      %v3765 = vld [vmem:[%s3559 + $0x22] sm:$0xff]
      %v3766 = vld [vmem:[%s3559 + $0x32] sm:$0xff]
      %v3767 = vld [vmem:[%s3559 + $0x3a] sm:$0xff]
      %v3768 = vld [vmem:[%s3559 + $0x4a] sm:$0xff]
      %v3769 = vld [vmem:[%s3559 + $0x52] sm:$0xff]
      %v3770 = vld [vmem:[%s3559 + $0x62] sm:$0xff]
      %v3771 = vld [vmem:[%s3559 + $0x6a] sm:$0xff]
      %v3772 = vld [vmem:[%s3559 + $0x7a] sm:$0xff]
      %v3773 = vld [vmem:[%s3559 + $0x82] sm:$0xff]
      %v3774 = vld [vmem:[%s3559 + $0x92] sm:$0xff]
      %v3775 = vld [vmem:[%s3559 + $0x9a] sm:$0xff]
      %v3776 = vld [vmem:[%s3559 + $0xaa] sm:$0xff]
      %v3777 = vld [vmem:[%s3559 + $0xb2] sm:$0xff]
      %v3778 = vld [vmem:[%s3559 + $0xc2] sm:$0xff]
      %v3779 = vld [vmem:[%s3559 + $0xca] sm:$0xff]
      %v3780 = vld [vmem:[%s3559 + $0xda] sm:$0xff]
      %v3781 = vld [vmem:[%s3559 + $0xe2] sm:$0xff]
      %v3782 = vld [vmem:[%s3559 + $0xf2] sm:$0xff]
      %v3783 = vld [vmem:[%s3559 + $0xfa] sm:$0xff]
      %v3784 = vld [vmem:[%s3559 + $0x10a] sm:$0xff]
      %v3785 = vld [vmem:[%s3559 + $0x112] sm:$0xff]
      %v3786 = vld [vmem:[%s3559 + $0x122] sm:$0xff]
      %v3787 = vld [vmem:[%s3559 + $0x12a] sm:$0xff]
      %v3788 = vld [vmem:[%s3559 + $0x13a] sm:$0xff]
      %v3789 = vld [vmem:[%s3559 + $0x142] sm:$0xff]
      %v3790 = vld [vmem:[%s3559 + $0x152] sm:$0xff]
      %v3791 = vld [vmem:[%s3559 + $0x15a] sm:$0xff]
      %v3792 = vld [vmem:[%s3559 + $0x16a] sm:$0xff]
      %v3793 = vld [vmem:[%s3559 + $0x172] sm:$0xff]
      %v3794 = vlaneseq
      %v3795 = vshrl.u32 %v3794, 7
      %v3796 = vsub.s32 0, %v3795
      %v3797 = vrot.slane %v3761, %v3796
      %v3798 = vmul.f32 %v3762, %v3797
      %v3799 = vmul.f32 %v3763, %v3797
      %v3800 = vmul.f32 %v3764, %v3797
      %v3801 = vmul.f32 %v3765, %v3797
      %v3802 = vmul.f32 %v3766, %v3797
      %v3803 = vmul.f32 %v3767, %v3797
      %v3804 = vmul.f32 %v3768, %v3797
      %v3805 = vmul.f32 %v3769, %v3797
      %v3806 = vmul.f32 %v3770, %v3797
      %v3807 = vmul.f32 %v3771, %v3797
      %v3808 = vmul.f32 %v3772, %v3797
      %v3809 = vmul.f32 %v3773, %v3797
      %v3810 = vmul.f32 %v3774, %v3797
      %v3811 = vmul.f32 %v3775, %v3797
      %v3812 = vmul.f32 %v3776, %v3797
      %v3813 = vmul.f32 %v3777, %v3797
      %v3814 = vmul.f32 %v3778, %v3797
      %v3815 = vmul.f32 %v3779, %v3797
      %v3816 = vmul.f32 %v3780, %v3797
      %v3817 = vmul.f32 %v3781, %v3797
      %v3818 = vmul.f32 %v3782, %v3797
      %v3819 = vmul.f32 %v3783, %v3797
      %v3820 = vmul.f32 %v3784, %v3797
      %v3821 = vmul.f32 %v3785, %v3797
      %v3822 = vmul.f32 %v3786, %v3797
      %v3823 = vmul.f32 %v3787, %v3797
      %v3824 = vmul.f32 %v3788, %v3797
      %v3825 = vmul.f32 %v3789, %v3797
      %v3826 = vmul.f32 %v3790, %v3797
      %v3827 = vmul.f32 %v3791, %v3797
      %v3828 = vmul.f32 %v3792, %v3797
      %v3829 = vmul.f32 %v3793, %v3797
      %v3830 = vadd.f32 %v3729, %v3798
      %v3831 = vadd.f32 %v3730, %v3799
      %v3832 = vadd.f32 %v3731, %v3800
      %v3833 = vadd.f32 %v3732, %v3801
      %v3834 = vadd.f32 %v3733, %v3802
      %v3835 = vadd.f32 %v3734, %v3803
      %v3836 = vadd.f32 %v3735, %v3804
      %v3837 = vadd.f32 %v3736, %v3805
      %v3838 = vadd.f32 %v3737, %v3806
      %v3839 = vadd.f32 %v3738, %v3807
      %v3840 = vadd.f32 %v3739, %v3808
      %v3841 = vadd.f32 %v3740, %v3809
      %v3842 = vadd.f32 %v3741, %v3810
      %v3843 = vadd.f32 %v3742, %v3811
      %v3844 = vadd.f32 %v3743, %v3812
      %v3845 = vadd.f32 %v3744, %v3813
      %v3846 = vadd.f32 %v3745, %v3814
      %v3847 = vadd.f32 %v3746, %v3815
      %v3848 = vadd.f32 %v3747, %v3816
      %v3849 = vadd.f32 %v3748, %v3817
      %v3850 = vadd.f32 %v3749, %v3818
      %v3851 = vadd.f32 %v3750, %v3819
      %v3852 = vadd.f32 %v3751, %v3820
      %v3853 = vadd.f32 %v3752, %v3821
      %v3854 = vadd.f32 %v3753, %v3822
      %v3855 = vadd.f32 %v3754, %v3823
      %v3856 = vadd.f32 %v3755, %v3824
      %v3857 = vadd.f32 %v3756, %v3825
      %v3858 = vadd.f32 %v3757, %v3826
      %v3859 = vadd.f32 %v3758, %v3827
      %v3860 = vadd.f32 %v3759, %v3828
      %v3861 = vadd.f32 %v3760, %v3829
      %v3862 = vld [vmem:[%s2 + $0x1f] sm:$0x1]
      %v3863 = vld [vmem:[%s3559 + $0x3] sm:$0xff]
      %v3864 = vld [vmem:[%s3559 + $0xb] sm:$0xff]
      %v3865 = vld [vmem:[%s3559 + $0x1b] sm:$0xff]
      %v3866 = vld [vmem:[%s3559 + $0x23] sm:$0xff]
      %v3867 = vld [vmem:[%s3559 + $0x33] sm:$0xff]
      %v3868 = vld [vmem:[%s3559 + $0x3b] sm:$0xff]
      %v3869 = vld [vmem:[%s3559 + $0x4b] sm:$0xff]
      %v3870 = vld [vmem:[%s3559 + $0x53] sm:$0xff]
      %v3871 = vld [vmem:[%s3559 + $0x63] sm:$0xff]
      %v3872 = vld [vmem:[%s3559 + $0x6b] sm:$0xff]
      %v3873 = vld [vmem:[%s3559 + $0x7b] sm:$0xff]
      %v3874 = vld [vmem:[%s3559 + $0x83] sm:$0xff]
      %v3875 = vld [vmem:[%s3559 + $0x93] sm:$0xff]
      %v3876 = vld [vmem:[%s3559 + $0x9b] sm:$0xff]
      %v3877 = vld [vmem:[%s3559 + $0xab] sm:$0xff]
      %v3878 = vld [vmem:[%s3559 + $0xb3] sm:$0xff]
      %v3879 = vld [vmem:[%s3559 + $0xc3] sm:$0xff]
      %v3880 = vld [vmem:[%s3559 + $0xcb] sm:$0xff]
      %v3881 = vld [vmem:[%s3559 + $0xdb] sm:$0xff]
      %v3882 = vld [vmem:[%s3559 + $0xe3] sm:$0xff]
      %v3883 = vld [vmem:[%s3559 + $0xf3] sm:$0xff]
      %v3884 = vld [vmem:[%s3559 + $0xfb] sm:$0xff]
      %v3885 = vld [vmem:[%s3559 + $0x10b] sm:$0xff]
      %v3886 = vld [vmem:[%s3559 + $0x113] sm:$0xff]
      %v3887 = vld [vmem:[%s3559 + $0x123] sm:$0xff]
      %v3888 = vld [vmem:[%s3559 + $0x12b] sm:$0xff]
      %v3889 = vld [vmem:[%s3559 + $0x13b] sm:$0xff]
      %v3890 = vld [vmem:[%s3559 + $0x143] sm:$0xff]
      %v3891 = vld [vmem:[%s3559 + $0x153] sm:$0xff]
      %v3892 = vld [vmem:[%s3559 + $0x15b] sm:$0xff]
      %v3893 = vld [vmem:[%s3559 + $0x16b] sm:$0xff]
      %v3894 = vld [vmem:[%s3559 + $0x173] sm:$0xff]
      %v3895 = vlaneseq
      %v3896 = vshrl.u32 %v3895, 7
      %v3897 = vsub.s32 0, %v3896
      %v3898 = vrot.slane %v3862, %v3897
      %v3899 = vmul.f32 %v3863, %v3898
      %v3900 = vmul.f32 %v3864, %v3898
      %v3901 = vmul.f32 %v3865, %v3898
      %v3902 = vmul.f32 %v3866, %v3898
      %v3903 = vmul.f32 %v3867, %v3898
      %v3904 = vmul.f32 %v3868, %v3898
      %v3905 = vmul.f32 %v3869, %v3898
      %v3906 = vmul.f32 %v3870, %v3898
      %v3907 = vmul.f32 %v3871, %v3898
      %v3908 = vmul.f32 %v3872, %v3898
      %v3909 = vmul.f32 %v3873, %v3898
      %v3910 = vmul.f32 %v3874, %v3898
      %v3911 = vmul.f32 %v3875, %v3898
      %v3912 = vmul.f32 %v3876, %v3898
      %v3913 = vmul.f32 %v3877, %v3898
      %v3914 = vmul.f32 %v3878, %v3898
      %v3915 = vmul.f32 %v3879, %v3898
      %v3916 = vmul.f32 %v3880, %v3898
      %v3917 = vmul.f32 %v3881, %v3898
      %v3918 = vmul.f32 %v3882, %v3898
      %v3919 = vmul.f32 %v3883, %v3898
      %v3920 = vmul.f32 %v3884, %v3898
      %v3921 = vmul.f32 %v3885, %v3898
      %v3922 = vmul.f32 %v3886, %v3898
      %v3923 = vmul.f32 %v3887, %v3898
      %v3924 = vmul.f32 %v3888, %v3898
      %v3925 = vmul.f32 %v3889, %v3898
      %v3926 = vmul.f32 %v3890, %v3898
      %v3927 = vmul.f32 %v3891, %v3898
      %v3928 = vmul.f32 %v3892, %v3898
      %v3929 = vmul.f32 %v3893, %v3898
      %v3930 = vmul.f32 %v3894, %v3898
      %v3931 = vadd.f32 %v3830, %v3899
      %v3932 = vadd.f32 %v3831, %v3900
      %v3933 = vadd.f32 %v3832, %v3901
      %v3934 = vadd.f32 %v3833, %v3902
      %v3935 = vadd.f32 %v3834, %v3903
      %v3936 = vadd.f32 %v3835, %v3904
      %v3937 = vadd.f32 %v3836, %v3905
      %v3938 = vadd.f32 %v3837, %v3906
      %v3939 = vadd.f32 %v3838, %v3907
      %v3940 = vadd.f32 %v3839, %v3908
      %v3941 = vadd.f32 %v3840, %v3909
      %v3942 = vadd.f32 %v3841, %v3910
      %v3943 = vadd.f32 %v3842, %v3911
      %v3944 = vadd.f32 %v3843, %v3912
      %v3945 = vadd.f32 %v3844, %v3913
      %v3946 = vadd.f32 %v3845, %v3914
      %v3947 = vadd.f32 %v3846, %v3915
      %v3948 = vadd.f32 %v3847, %v3916
      %v3949 = vadd.f32 %v3848, %v3917
      %v3950 = vadd.f32 %v3849, %v3918
      %v3951 = vadd.f32 %v3850, %v3919
      %v3952 = vadd.f32 %v3851, %v3920
      %v3953 = vadd.f32 %v3852, %v3921
      %v3954 = vadd.f32 %v3853, %v3922
      %v3955 = vadd.f32 %v3854, %v3923
      %v3956 = vadd.f32 %v3855, %v3924
      %v3957 = vadd.f32 %v3856, %v3925
      %v3958 = vadd.f32 %v3857, %v3926
      %v3959 = vadd.f32 %v3858, %v3927
      %v3960 = vadd.f32 %v3859, %v3928
      %v3961 = vadd.f32 %v3860, %v3929
      %v3962 = vadd.f32 %v3861, %v3930
      %v3963 = vld [vmem:[%s2 + $0x20] sm:$0x1]
      %v3964 = vld [vmem:[%s3559 + $0x4] sm:$0xff]
      %v3965 = vld [vmem:[%s3559 + $0xc] sm:$0xff]
      %v3966 = vld [vmem:[%s3559 + $0x1c] sm:$0xff]
      %v3967 = vld [vmem:[%s3559 + $0x24] sm:$0xff]
      %v3968 = vld [vmem:[%s3559 + $0x34] sm:$0xff]
      %v3969 = vld [vmem:[%s3559 + $0x3c] sm:$0xff]
      %v3970 = vld [vmem:[%s3559 + $0x4c] sm:$0xff]
      %v3971 = vld [vmem:[%s3559 + $0x54] sm:$0xff]
      %v3972 = vld [vmem:[%s3559 + $0x64] sm:$0xff]
      %v3973 = vld [vmem:[%s3559 + $0x6c] sm:$0xff]
      %v3974 = vld [vmem:[%s3559 + $0x7c] sm:$0xff]
      %v3975 = vld [vmem:[%s3559 + $0x84] sm:$0xff]
      %v3976 = vld [vmem:[%s3559 + $0x94] sm:$0xff]
      %v3977 = vld [vmem:[%s3559 + $0x9c] sm:$0xff]
      %v3978 = vld [vmem:[%s3559 + $0xac] sm:$0xff]
      %v3979 = vld [vmem:[%s3559 + $0xb4] sm:$0xff]
      %v3980 = vld [vmem:[%s3559 + $0xc4] sm:$0xff]
      %v3981 = vld [vmem:[%s3559 + $0xcc] sm:$0xff]
      %v3982 = vld [vmem:[%s3559 + $0xdc] sm:$0xff]
      %v3983 = vld [vmem:[%s3559 + $0xe4] sm:$0xff]
      %v3984 = vld [vmem:[%s3559 + $0xf4] sm:$0xff]
      %v3985 = vld [vmem:[%s3559 + $0xfc] sm:$0xff]
      %v3986 = vld [vmem:[%s3559 + $0x10c] sm:$0xff]
      %v3987 = vld [vmem:[%s3559 + $0x114] sm:$0xff]
      %v3988 = vld [vmem:[%s3559 + $0x124] sm:$0xff]
      %v3989 = vld [vmem:[%s3559 + $0x12c] sm:$0xff]
      %v3990 = vld [vmem:[%s3559 + $0x13c] sm:$0xff]
      %v3991 = vld [vmem:[%s3559 + $0x144] sm:$0xff]
      %v3992 = vld [vmem:[%s3559 + $0x154] sm:$0xff]
      %v3993 = vld [vmem:[%s3559 + $0x15c] sm:$0xff]
      %v3994 = vld [vmem:[%s3559 + $0x16c] sm:$0xff]
      %v3995 = vld [vmem:[%s3559 + $0x174] sm:$0xff]
      %v3996 = vlaneseq
      %v3997 = vshrl.u32 %v3996, 7
      %v3998 = vsub.s32 0, %v3997
      %v3999 = vrot.slane %v3963, %v3998
      %v4000 = vmul.f32 %v3964, %v3999
      %v4001 = vmul.f32 %v3965, %v3999
      %v4002 = vmul.f32 %v3966, %v3999
      %v4003 = vmul.f32 %v3967, %v3999
      %v4004 = vmul.f32 %v3968, %v3999
      %v4005 = vmul.f32 %v3969, %v3999
      %v4006 = vmul.f32 %v3970, %v3999
      %v4007 = vmul.f32 %v3971, %v3999
      %v4008 = vmul.f32 %v3972, %v3999
      %v4009 = vmul.f32 %v3973, %v3999
      %v4010 = vmul.f32 %v3974, %v3999
      %v4011 = vmul.f32 %v3975, %v3999
      %v4012 = vmul.f32 %v3976, %v3999
      %v4013 = vmul.f32 %v3977, %v3999
      %v4014 = vmul.f32 %v3978, %v3999
      %v4015 = vmul.f32 %v3979, %v3999
      %v4016 = vmul.f32 %v3980, %v3999
      %v4017 = vmul.f32 %v3981, %v3999
      %v4018 = vmul.f32 %v3982, %v3999
      %v4019 = vmul.f32 %v3983, %v3999
      %v4020 = vmul.f32 %v3984, %v3999
      %v4021 = vmul.f32 %v3985, %v3999
      %v4022 = vmul.f32 %v3986, %v3999
      %v4023 = vmul.f32 %v3987, %v3999
      %v4024 = vmul.f32 %v3988, %v3999
      %v4025 = vmul.f32 %v3989, %v3999
      %v4026 = vmul.f32 %v3990, %v3999
      %v4027 = vmul.f32 %v3991, %v3999
      %v4028 = vmul.f32 %v3992, %v3999
      %v4029 = vmul.f32 %v3993, %v3999
      %v4030 = vmul.f32 %v3994, %v3999
      %v4031 = vmul.f32 %v3995, %v3999
      %v4032 = vadd.f32 %v3931, %v4000
      %v4033 = vadd.f32 %v3932, %v4001
      %v4034 = vadd.f32 %v3933, %v4002
      %v4035 = vadd.f32 %v3934, %v4003
      %v4036 = vadd.f32 %v3935, %v4004
      %v4037 = vadd.f32 %v3936, %v4005
      %v4038 = vadd.f32 %v3937, %v4006
      %v4039 = vadd.f32 %v3938, %v4007
      %v4040 = vadd.f32 %v3939, %v4008
      %v4041 = vadd.f32 %v3940, %v4009
      %v4042 = vadd.f32 %v3941, %v4010
      %v4043 = vadd.f32 %v3942, %v4011
      %v4044 = vadd.f32 %v3943, %v4012
      %v4045 = vadd.f32 %v3944, %v4013
      %v4046 = vadd.f32 %v3945, %v4014
      %v4047 = vadd.f32 %v3946, %v4015
      %v4048 = vadd.f32 %v3947, %v4016
      %v4049 = vadd.f32 %v3948, %v4017
      %v4050 = vadd.f32 %v3949, %v4018
      %v4051 = vadd.f32 %v3950, %v4019
      %v4052 = vadd.f32 %v3951, %v4020
      %v4053 = vadd.f32 %v3952, %v4021
      %v4054 = vadd.f32 %v3953, %v4022
      %v4055 = vadd.f32 %v3954, %v4023
      %v4056 = vadd.f32 %v3955, %v4024
      %v4057 = vadd.f32 %v3956, %v4025
      %v4058 = vadd.f32 %v3957, %v4026
      %v4059 = vadd.f32 %v3958, %v4027
      %v4060 = vadd.f32 %v3959, %v4028
      %v4061 = vadd.f32 %v3960, %v4029
      %v4062 = vadd.f32 %v3961, %v4030
      %v4063 = vadd.f32 %v3962, %v4031
      %v4064 = vld [vmem:[%s2 + $0x21] sm:$0x1]
      %v4065 = vld [vmem:[%s3559 + $0x5] sm:$0xff]
      %v4066 = vld [vmem:[%s3559 + $0xd] sm:$0xff]
      %v4067 = vld [vmem:[%s3559 + $0x1d] sm:$0xff]
      %v4068 = vld [vmem:[%s3559 + $0x25] sm:$0xff]
      %v4069 = vld [vmem:[%s3559 + $0x35] sm:$0xff]
      %v4070 = vld [vmem:[%s3559 + $0x3d] sm:$0xff]
      %v4071 = vld [vmem:[%s3559 + $0x4d] sm:$0xff]
      %v4072 = vld [vmem:[%s3559 + $0x55] sm:$0xff]
      %v4073 = vld [vmem:[%s3559 + $0x65] sm:$0xff]
      %v4074 = vld [vmem:[%s3559 + $0x6d] sm:$0xff]
      %v4075 = vld [vmem:[%s3559 + $0x7d] sm:$0xff]
      %v4076 = vld [vmem:[%s3559 + $0x85] sm:$0xff]
      %v4077 = vld [vmem:[%s3559 + $0x95] sm:$0xff]
      %v4078 = vld [vmem:[%s3559 + $0x9d] sm:$0xff]
      %v4079 = vld [vmem:[%s3559 + $0xad] sm:$0xff]
      %v4080 = vld [vmem:[%s3559 + $0xb5] sm:$0xff]
      %v4081 = vld [vmem:[%s3559 + $0xc5] sm:$0xff]
      %v4082 = vld [vmem:[%s3559 + $0xcd] sm:$0xff]
      %v4083 = vld [vmem:[%s3559 + $0xdd] sm:$0xff]
      %v4084 = vld [vmem:[%s3559 + $0xe5] sm:$0xff]
      %v4085 = vld [vmem:[%s3559 + $0xf5] sm:$0xff]
      %v4086 = vld [vmem:[%s3559 + $0xfd] sm:$0xff]
      %v4087 = vld [vmem:[%s3559 + $0x10d] sm:$0xff]
      %v4088 = vld [vmem:[%s3559 + $0x115] sm:$0xff]
      %v4089 = vld [vmem:[%s3559 + $0x125] sm:$0xff]
      %v4090 = vld [vmem:[%s3559 + $0x12d] sm:$0xff]
      %v4091 = vld [vmem:[%s3559 + $0x13d] sm:$0xff]
      %v4092 = vld [vmem:[%s3559 + $0x145] sm:$0xff]
      %v4093 = vld [vmem:[%s3559 + $0x155] sm:$0xff]
      %v4094 = vld [vmem:[%s3559 + $0x15d] sm:$0xff]
      %v4095 = vld [vmem:[%s3559 + $0x16d] sm:$0xff]
      %v4096 = vld [vmem:[%s3559 + $0x175] sm:$0xff]
      %v4097 = vlaneseq
      %v4098 = vshrl.u32 %v4097, 7
      %v4099 = vsub.s32 0, %v4098
      %v4100 = vrot.slane %v4064, %v4099
      %v4101 = vmul.f32 %v4065, %v4100
      %v4102 = vmul.f32 %v4066, %v4100
      %v4103 = vmul.f32 %v4067, %v4100
      %v4104 = vmul.f32 %v4068, %v4100
      %v4105 = vmul.f32 %v4069, %v4100
      %v4106 = vmul.f32 %v4070, %v4100
      %v4107 = vmul.f32 %v4071, %v4100
      %v4108 = vmul.f32 %v4072, %v4100
      %v4109 = vmul.f32 %v4073, %v4100
      %v4110 = vmul.f32 %v4074, %v4100
      %v4111 = vmul.f32 %v4075, %v4100
      %v4112 = vmul.f32 %v4076, %v4100
      %v4113 = vmul.f32 %v4077, %v4100
      %v4114 = vmul.f32 %v4078, %v4100
      %v4115 = vmul.f32 %v4079, %v4100
      %v4116 = vmul.f32 %v4080, %v4100
      %v4117 = vmul.f32 %v4081, %v4100
      %v4118 = vmul.f32 %v4082, %v4100
      %v4119 = vmul.f32 %v4083, %v4100
      %v4120 = vmul.f32 %v4084, %v4100
      %v4121 = vmul.f32 %v4085, %v4100
      %v4122 = vmul.f32 %v4086, %v4100
      %v4123 = vmul.f32 %v4087, %v4100
      %v4124 = vmul.f32 %v4088, %v4100
      %v4125 = vmul.f32 %v4089, %v4100
      %v4126 = vmul.f32 %v4090, %v4100
      %v4127 = vmul.f32 %v4091, %v4100
      %v4128 = vmul.f32 %v4092, %v4100
      %v4129 = vmul.f32 %v4093, %v4100
      %v4130 = vmul.f32 %v4094, %v4100
      %v4131 = vmul.f32 %v4095, %v4100
      %v4132 = vmul.f32 %v4096, %v4100
      %v4133 = vadd.f32 %v4032, %v4101
      %v4134 = vadd.f32 %v4033, %v4102
      %v4135 = vadd.f32 %v4034, %v4103
      %v4136 = vadd.f32 %v4035, %v4104
      %v4137 = vadd.f32 %v4036, %v4105
      %v4138 = vadd.f32 %v4037, %v4106
      %v4139 = vadd.f32 %v4038, %v4107
      %v4140 = vadd.f32 %v4039, %v4108
      %v4141 = vadd.f32 %v4040, %v4109
      %v4142 = vadd.f32 %v4041, %v4110
      %v4143 = vadd.f32 %v4042, %v4111
      %v4144 = vadd.f32 %v4043, %v4112
      %v4145 = vadd.f32 %v4044, %v4113
      %v4146 = vadd.f32 %v4045, %v4114
      %v4147 = vadd.f32 %v4046, %v4115
      %v4148 = vadd.f32 %v4047, %v4116
      %v4149 = vadd.f32 %v4048, %v4117
      %v4150 = vadd.f32 %v4049, %v4118
      %v4151 = vadd.f32 %v4050, %v4119
      %v4152 = vadd.f32 %v4051, %v4120
      %v4153 = vadd.f32 %v4052, %v4121
      %v4154 = vadd.f32 %v4053, %v4122
      %v4155 = vadd.f32 %v4054, %v4123
      %v4156 = vadd.f32 %v4055, %v4124
      %v4157 = vadd.f32 %v4056, %v4125
      %v4158 = vadd.f32 %v4057, %v4126
      %v4159 = vadd.f32 %v4058, %v4127
      %v4160 = vadd.f32 %v4059, %v4128
      %v4161 = vadd.f32 %v4060, %v4129
      %v4162 = vadd.f32 %v4061, %v4130
      %v4163 = vadd.f32 %v4062, %v4131
      %v4164 = vadd.f32 %v4063, %v4132
      %v4165 = vld [vmem:[%s2 + $0x22] sm:$0x1]
      %v4166 = vld [vmem:[%s3559 + $0x6] sm:$0xff]
      %v4167 = vld [vmem:[%s3559 + $0xe] sm:$0xff]
      %v4168 = vld [vmem:[%s3559 + $0x1e] sm:$0xff]
      %v4169 = vld [vmem:[%s3559 + $0x26] sm:$0xff]
      %v4170 = vld [vmem:[%s3559 + $0x36] sm:$0xff]
      %v4171 = vld [vmem:[%s3559 + $0x3e] sm:$0xff]
      %v4172 = vld [vmem:[%s3559 + $0x4e] sm:$0xff]
      %v4173 = vld [vmem:[%s3559 + $0x56] sm:$0xff]
      %v4174 = vld [vmem:[%s3559 + $0x66] sm:$0xff]
      %v4175 = vld [vmem:[%s3559 + $0x6e] sm:$0xff]
      %v4176 = vld [vmem:[%s3559 + $0x7e] sm:$0xff]
      %v4177 = vld [vmem:[%s3559 + $0x86] sm:$0xff]
      %v4178 = vld [vmem:[%s3559 + $0x96] sm:$0xff]
      %v4179 = vld [vmem:[%s3559 + $0x9e] sm:$0xff]
      %v4180 = vld [vmem:[%s3559 + $0xae] sm:$0xff]
      %v4181 = vld [vmem:[%s3559 + $0xb6] sm:$0xff]
      %v4182 = vld [vmem:[%s3559 + $0xc6] sm:$0xff]
      %v4183 = vld [vmem:[%s3559 + $0xce] sm:$0xff]
      %v4184 = vld [vmem:[%s3559 + $0xde] sm:$0xff]
      %v4185 = vld [vmem:[%s3559 + $0xe6] sm:$0xff]
      %v4186 = vld [vmem:[%s3559 + $0xf6] sm:$0xff]
      %v4187 = vld [vmem:[%s3559 + $0xfe] sm:$0xff]
      %v4188 = vld [vmem:[%s3559 + $0x10e] sm:$0xff]
      %v4189 = vld [vmem:[%s3559 + $0x116] sm:$0xff]
      %v4190 = vld [vmem:[%s3559 + $0x126] sm:$0xff]
      %v4191 = vld [vmem:[%s3559 + $0x12e] sm:$0xff]
      %v4192 = vld [vmem:[%s3559 + $0x13e] sm:$0xff]
      %v4193 = vld [vmem:[%s3559 + $0x146] sm:$0xff]
      %v4194 = vld [vmem:[%s3559 + $0x156] sm:$0xff]
      %v4195 = vld [vmem:[%s3559 + $0x15e] sm:$0xff]
      %v4196 = vld [vmem:[%s3559 + $0x16e] sm:$0xff]
      %v4197 = vld [vmem:[%s3559 + $0x176] sm:$0xff]
      %v4198 = vlaneseq
      %v4199 = vshrl.u32 %v4198, 7
      %v4200 = vsub.s32 0, %v4199
      %v4201 = vrot.slane %v4165, %v4200
      %v4202 = vmul.f32 %v4166, %v4201
      %v4203 = vmul.f32 %v4167, %v4201
      %v4204 = vmul.f32 %v4168, %v4201
      %v4205 = vmul.f32 %v4169, %v4201
      %v4206 = vmul.f32 %v4170, %v4201
      %v4207 = vmul.f32 %v4171, %v4201
      %v4208 = vmul.f32 %v4172, %v4201
      %v4209 = vmul.f32 %v4173, %v4201
      %v4210 = vmul.f32 %v4174, %v4201
      %v4211 = vmul.f32 %v4175, %v4201
      %v4212 = vmul.f32 %v4176, %v4201
      %v4213 = vmul.f32 %v4177, %v4201
      %v4214 = vmul.f32 %v4178, %v4201
      %v4215 = vmul.f32 %v4179, %v4201
      %v4216 = vmul.f32 %v4180, %v4201
      %v4217 = vmul.f32 %v4181, %v4201
      %v4218 = vmul.f32 %v4182, %v4201
      %v4219 = vmul.f32 %v4183, %v4201
      %v4220 = vmul.f32 %v4184, %v4201
      %v4221 = vmul.f32 %v4185, %v4201
      %v4222 = vmul.f32 %v4186, %v4201
      %v4223 = vmul.f32 %v4187, %v4201
      %v4224 = vmul.f32 %v4188, %v4201
      %v4225 = vmul.f32 %v4189, %v4201
      %v4226 = vmul.f32 %v4190, %v4201
      %v4227 = vmul.f32 %v4191, %v4201
      %v4228 = vmul.f32 %v4192, %v4201
      %v4229 = vmul.f32 %v4193, %v4201
      %v4230 = vmul.f32 %v4194, %v4201
      %v4231 = vmul.f32 %v4195, %v4201
      %v4232 = vmul.f32 %v4196, %v4201
      %v4233 = vmul.f32 %v4197, %v4201
      %v4234 = vadd.f32 %v4133, %v4202
      %v4235 = vadd.f32 %v4134, %v4203
      %v4236 = vadd.f32 %v4135, %v4204
      %v4237 = vadd.f32 %v4136, %v4205
      %v4238 = vadd.f32 %v4137, %v4206
      %v4239 = vadd.f32 %v4138, %v4207
      %v4240 = vadd.f32 %v4139, %v4208
      %v4241 = vadd.f32 %v4140, %v4209
      %v4242 = vadd.f32 %v4141, %v4210
      %v4243 = vadd.f32 %v4142, %v4211
      %v4244 = vadd.f32 %v4143, %v4212
      %v4245 = vadd.f32 %v4144, %v4213
      %v4246 = vadd.f32 %v4145, %v4214
      %v4247 = vadd.f32 %v4146, %v4215
      %v4248 = vadd.f32 %v4147, %v4216
      %v4249 = vadd.f32 %v4148, %v4217
      %v4250 = vadd.f32 %v4149, %v4218
      %v4251 = vadd.f32 %v4150, %v4219
      %v4252 = vadd.f32 %v4151, %v4220
      %v4253 = vadd.f32 %v4152, %v4221
      %v4254 = vadd.f32 %v4153, %v4222
      %v4255 = vadd.f32 %v4154, %v4223
      %v4256 = vadd.f32 %v4155, %v4224
      %v4257 = vadd.f32 %v4156, %v4225
      %v4258 = vadd.f32 %v4157, %v4226
      %v4259 = vadd.f32 %v4158, %v4227
      %v4260 = vadd.f32 %v4159, %v4228
      %v4261 = vadd.f32 %v4160, %v4229
      %v4262 = vadd.f32 %v4161, %v4230
      %v4263 = vadd.f32 %v4162, %v4231
      %v4264 = vadd.f32 %v4163, %v4232
      %v4265 = vadd.f32 %v4164, %v4233
      %v4266 = vld [vmem:[%s2 + $0x23] sm:$0x1]
      %s4267 = scalar_lea.vmem [#allocation2], 120
      %v4268 = vld [vmem:[%s4267] sm:$0xff]
      %v4269 = vld [vmem:[%s4267 + $0x8] sm:$0xff]
      %v4270 = vld [vmem:[%s4267 + $0x18] sm:$0xff]
      %v4271 = vld [vmem:[%s4267 + $0x20] sm:$0xff]
      %v4272 = vld [vmem:[%s4267 + $0x30] sm:$0xff]
      %v4273 = vld [vmem:[%s4267 + $0x38] sm:$0xff]
      %v4274 = vld [vmem:[%s4267 + $0x48] sm:$0xff]
      %v4275 = vld [vmem:[%s4267 + $0x50] sm:$0xff]
      %v4276 = vld [vmem:[%s4267 + $0x60] sm:$0xff]
      %v4277 = vld [vmem:[%s4267 + $0x68] sm:$0xff]
      %v4278 = vld [vmem:[%s4267 + $0x78] sm:$0xff]
      %v4279 = vld [vmem:[%s4267 + $0x80] sm:$0xff]
      %v4280 = vld [vmem:[%s4267 + $0x90] sm:$0xff]
      %v4281 = vld [vmem:[%s4267 + $0x98] sm:$0xff]
      %v4282 = vld [vmem:[%s4267 + $0xa8] sm:$0xff]
      %v4283 = vld [vmem:[%s4267 + $0xb0] sm:$0xff]
      %v4284 = vld [vmem:[%s4267 + $0xc0] sm:$0xff]
      %v4285 = vld [vmem:[%s4267 + $0xc8] sm:$0xff]
      %v4286 = vld [vmem:[%s4267 + $0xd8] sm:$0xff]
      %v4287 = vld [vmem:[%s4267 + $0xe0] sm:$0xff]
      %v4288 = vld [vmem:[%s4267 + $0xf0] sm:$0xff]
      %v4289 = vld [vmem:[%s4267 + $0xf8] sm:$0xff]
      %v4290 = vld [vmem:[%s4267 + $0x108] sm:$0xff]
      %v4291 = vld [vmem:[%s4267 + $0x110] sm:$0xff]
      %v4292 = vld [vmem:[%s4267 + $0x120] sm:$0xff]
      %v4293 = vld [vmem:[%s4267 + $0x128] sm:$0xff]
      %v4294 = vld [vmem:[%s4267 + $0x138] sm:$0xff]
      %v4295 = vld [vmem:[%s4267 + $0x140] sm:$0xff]
      %v4296 = vld [vmem:[%s4267 + $0x150] sm:$0xff]
      %v4297 = vld [vmem:[%s4267 + $0x158] sm:$0xff]
      %v4298 = vld [vmem:[%s4267 + $0x168] sm:$0xff]
      %v4299 = vld [vmem:[%s4267 + $0x170] sm:$0xff]
      %v4300 = vlaneseq
      %v4301 = vshrl.u32 %v4300, 7
      %v4302 = vsub.s32 0, %v4301
      %v4303 = vrot.slane %v4266, %v4302
      %v4304 = vmul.f32 %v4268, %v4303
      %v4305 = vmul.f32 %v4269, %v4303
      %v4306 = vmul.f32 %v4270, %v4303
      %v4307 = vmul.f32 %v4271, %v4303
      %v4308 = vmul.f32 %v4272, %v4303
      %v4309 = vmul.f32 %v4273, %v4303
      %v4310 = vmul.f32 %v4274, %v4303
      %v4311 = vmul.f32 %v4275, %v4303
      %v4312 = vmul.f32 %v4276, %v4303
      %v4313 = vmul.f32 %v4277, %v4303
      %v4314 = vmul.f32 %v4278, %v4303
      %v4315 = vmul.f32 %v4279, %v4303
      %v4316 = vmul.f32 %v4280, %v4303
      %v4317 = vmul.f32 %v4281, %v4303
      %v4318 = vmul.f32 %v4282, %v4303
      %v4319 = vmul.f32 %v4283, %v4303
      %v4320 = vmul.f32 %v4284, %v4303
      %v4321 = vmul.f32 %v4285, %v4303
      %v4322 = vmul.f32 %v4286, %v4303
      %v4323 = vmul.f32 %v4287, %v4303
      %v4324 = vmul.f32 %v4288, %v4303
      %v4325 = vmul.f32 %v4289, %v4303
      %v4326 = vmul.f32 %v4290, %v4303
      %v4327 = vmul.f32 %v4291, %v4303
      %v4328 = vmul.f32 %v4292, %v4303
      %v4329 = vmul.f32 %v4293, %v4303
      %v4330 = vmul.f32 %v4294, %v4303
      %v4331 = vmul.f32 %v4295, %v4303
      %v4332 = vmul.f32 %v4296, %v4303
      %v4333 = vmul.f32 %v4297, %v4303
      %v4334 = vmul.f32 %v4298, %v4303
      %v4335 = vmul.f32 %v4299, %v4303
      %v4336 = vadd.f32 %v4234, %v4304
      %v4337 = vadd.f32 %v4235, %v4305
      %v4338 = vadd.f32 %v4236, %v4306
      %v4339 = vadd.f32 %v4237, %v4307
      %v4340 = vadd.f32 %v4238, %v4308
      %v4341 = vadd.f32 %v4239, %v4309
      %v4342 = vadd.f32 %v4240, %v4310
      %v4343 = vadd.f32 %v4241, %v4311
      %v4344 = vadd.f32 %v4242, %v4312
      %v4345 = vadd.f32 %v4243, %v4313
      %v4346 = vadd.f32 %v4244, %v4314
      %v4347 = vadd.f32 %v4245, %v4315
      %v4348 = vadd.f32 %v4246, %v4316
      %v4349 = vadd.f32 %v4247, %v4317
      %v4350 = vadd.f32 %v4248, %v4318
      %v4351 = vadd.f32 %v4249, %v4319
      %v4352 = vadd.f32 %v4250, %v4320
      %v4353 = vadd.f32 %v4251, %v4321
      %v4354 = vadd.f32 %v4252, %v4322
      %v4355 = vadd.f32 %v4253, %v4323
      %v4356 = vadd.f32 %v4254, %v4324
      %v4357 = vadd.f32 %v4255, %v4325
      %v4358 = vadd.f32 %v4256, %v4326
      %v4359 = vadd.f32 %v4257, %v4327
      %v4360 = vadd.f32 %v4258, %v4328
      %v4361 = vadd.f32 %v4259, %v4329
      %v4362 = vadd.f32 %v4260, %v4330
      %v4363 = vadd.f32 %v4261, %v4331
      %v4364 = vadd.f32 %v4262, %v4332
      %v4365 = vadd.f32 %v4263, %v4333
      %v4366 = vadd.f32 %v4264, %v4334
      %v4367 = vadd.f32 %v4265, %v4335
      %v4368 = vld [vmem:[%s2 + $0x24] sm:$0x1]
      %v4369 = vld [vmem:[%s4267 + $0x1] sm:$0xff]
      %v4370 = vld [vmem:[%s4267 + $0x9] sm:$0xff]
      %v4371 = vld [vmem:[%s4267 + $0x19] sm:$0xff]
      %v4372 = vld [vmem:[%s4267 + $0x21] sm:$0xff]
      %v4373 = vld [vmem:[%s4267 + $0x31] sm:$0xff]
      %v4374 = vld [vmem:[%s4267 + $0x39] sm:$0xff]
      %v4375 = vld [vmem:[%s4267 + $0x49] sm:$0xff]
      %v4376 = vld [vmem:[%s4267 + $0x51] sm:$0xff]
      %v4377 = vld [vmem:[%s4267 + $0x61] sm:$0xff]
      %v4378 = vld [vmem:[%s4267 + $0x69] sm:$0xff]
      %v4379 = vld [vmem:[%s4267 + $0x79] sm:$0xff]
      %v4380 = vld [vmem:[%s4267 + $0x81] sm:$0xff]
      %v4381 = vld [vmem:[%s4267 + $0x91] sm:$0xff]
      %v4382 = vld [vmem:[%s4267 + $0x99] sm:$0xff]
      %v4383 = vld [vmem:[%s4267 + $0xa9] sm:$0xff]
      %v4384 = vld [vmem:[%s4267 + $0xb1] sm:$0xff]
      %v4385 = vld [vmem:[%s4267 + $0xc1] sm:$0xff]
      %v4386 = vld [vmem:[%s4267 + $0xc9] sm:$0xff]
      %v4387 = vld [vmem:[%s4267 + $0xd9] sm:$0xff]
      %v4388 = vld [vmem:[%s4267 + $0xe1] sm:$0xff]
      %v4389 = vld [vmem:[%s4267 + $0xf1] sm:$0xff]
      %v4390 = vld [vmem:[%s4267 + $0xf9] sm:$0xff]
      %v4391 = vld [vmem:[%s4267 + $0x109] sm:$0xff]
      %v4392 = vld [vmem:[%s4267 + $0x111] sm:$0xff]
      %v4393 = vld [vmem:[%s4267 + $0x121] sm:$0xff]
      %v4394 = vld [vmem:[%s4267 + $0x129] sm:$0xff]
      %v4395 = vld [vmem:[%s4267 + $0x139] sm:$0xff]
      %v4396 = vld [vmem:[%s4267 + $0x141] sm:$0xff]
      %v4397 = vld [vmem:[%s4267 + $0x151] sm:$0xff]
      %v4398 = vld [vmem:[%s4267 + $0x159] sm:$0xff]
      %v4399 = vld [vmem:[%s4267 + $0x169] sm:$0xff]
      %v4400 = vld [vmem:[%s4267 + $0x171] sm:$0xff]
      %v4401 = vlaneseq
      %v4402 = vshrl.u32 %v4401, 7
      %v4403 = vsub.s32 0, %v4402
      %v4404 = vrot.slane %v4368, %v4403
      %v4405 = vmul.f32 %v4369, %v4404
      %v4406 = vmul.f32 %v4370, %v4404
      %v4407 = vmul.f32 %v4371, %v4404
      %v4408 = vmul.f32 %v4372, %v4404
      %v4409 = vmul.f32 %v4373, %v4404
      %v4410 = vmul.f32 %v4374, %v4404
      %v4411 = vmul.f32 %v4375, %v4404
      %v4412 = vmul.f32 %v4376, %v4404
      %v4413 = vmul.f32 %v4377, %v4404
      %v4414 = vmul.f32 %v4378, %v4404
      %v4415 = vmul.f32 %v4379, %v4404
      %v4416 = vmul.f32 %v4380, %v4404
      %v4417 = vmul.f32 %v4381, %v4404
      %v4418 = vmul.f32 %v4382, %v4404
      %v4419 = vmul.f32 %v4383, %v4404
      %v4420 = vmul.f32 %v4384, %v4404
      %v4421 = vmul.f32 %v4385, %v4404
      %v4422 = vmul.f32 %v4386, %v4404
      %v4423 = vmul.f32 %v4387, %v4404
      %v4424 = vmul.f32 %v4388, %v4404
      %v4425 = vmul.f32 %v4389, %v4404
      %v4426 = vmul.f32 %v4390, %v4404
      %v4427 = vmul.f32 %v4391, %v4404
      %v4428 = vmul.f32 %v4392, %v4404
      %v4429 = vmul.f32 %v4393, %v4404
      %v4430 = vmul.f32 %v4394, %v4404
      %v4431 = vmul.f32 %v4395, %v4404
      %v4432 = vmul.f32 %v4396, %v4404
      %v4433 = vmul.f32 %v4397, %v4404
      %v4434 = vmul.f32 %v4398, %v4404
      %v4435 = vmul.f32 %v4399, %v4404
      %v4436 = vmul.f32 %v4400, %v4404
      %v4437 = vadd.f32 %v4336, %v4405
      %v4438 = vadd.f32 %v4337, %v4406
      %v4439 = vadd.f32 %v4338, %v4407
      %v4440 = vadd.f32 %v4339, %v4408
      %v4441 = vadd.f32 %v4340, %v4409
      %v4442 = vadd.f32 %v4341, %v4410
      %v4443 = vadd.f32 %v4342, %v4411
      %v4444 = vadd.f32 %v4343, %v4412
      %v4445 = vadd.f32 %v4344, %v4413
      %v4446 = vadd.f32 %v4345, %v4414
      %v4447 = vadd.f32 %v4346, %v4415
      %v4448 = vadd.f32 %v4347, %v4416
      %v4449 = vadd.f32 %v4348, %v4417
      %v4450 = vadd.f32 %v4349, %v4418
      %v4451 = vadd.f32 %v4350, %v4419
      %v4452 = vadd.f32 %v4351, %v4420
      %v4453 = vadd.f32 %v4352, %v4421
      %v4454 = vadd.f32 %v4353, %v4422
      %v4455 = vadd.f32 %v4354, %v4423
      %v4456 = vadd.f32 %v4355, %v4424
      %v4457 = vadd.f32 %v4356, %v4425
      %v4458 = vadd.f32 %v4357, %v4426
      %v4459 = vadd.f32 %v4358, %v4427
      %v4460 = vadd.f32 %v4359, %v4428
      %v4461 = vadd.f32 %v4360, %v4429
      %v4462 = vadd.f32 %v4361, %v4430
      %v4463 = vadd.f32 %v4362, %v4431
      %v4464 = vadd.f32 %v4363, %v4432
      %v4465 = vadd.f32 %v4364, %v4433
      %v4466 = vadd.f32 %v4365, %v4434
      %v4467 = vadd.f32 %v4366, %v4435
      %v4468 = vadd.f32 %v4367, %v4436
      %v4469 = vld [vmem:[%s2 + $0x25] sm:$0x1]
      %v4470 = vld [vmem:[%s4267 + $0x2] sm:$0xff]
      %v4471 = vld [vmem:[%s4267 + $0xa] sm:$0xff]
      %v4472 = vld [vmem:[%s4267 + $0x1a] sm:$0xff]
      %v4473 = vld [vmem:[%s4267 + $0x22] sm:$0xff]
      %v4474 = vld [vmem:[%s4267 + $0x32] sm:$0xff]
      %v4475 = vld [vmem:[%s4267 + $0x3a] sm:$0xff]
      %v4476 = vld [vmem:[%s4267 + $0x4a] sm:$0xff]
      %v4477 = vld [vmem:[%s4267 + $0x52] sm:$0xff]
      %v4478 = vld [vmem:[%s4267 + $0x62] sm:$0xff]
      %v4479 = vld [vmem:[%s4267 + $0x6a] sm:$0xff]
      %v4480 = vld [vmem:[%s4267 + $0x7a] sm:$0xff]
      %v4481 = vld [vmem:[%s4267 + $0x82] sm:$0xff]
      %v4482 = vld [vmem:[%s4267 + $0x92] sm:$0xff]
      %v4483 = vld [vmem:[%s4267 + $0x9a] sm:$0xff]
      %v4484 = vld [vmem:[%s4267 + $0xaa] sm:$0xff]
      %v4485 = vld [vmem:[%s4267 + $0xb2] sm:$0xff]
      %v4486 = vld [vmem:[%s4267 + $0xc2] sm:$0xff]
      %v4487 = vld [vmem:[%s4267 + $0xca] sm:$0xff]
      %v4488 = vld [vmem:[%s4267 + $0xda] sm:$0xff]
      %v4489 = vld [vmem:[%s4267 + $0xe2] sm:$0xff]
      %v4490 = vld [vmem:[%s4267 + $0xf2] sm:$0xff]
      %v4491 = vld [vmem:[%s4267 + $0xfa] sm:$0xff]
      %v4492 = vld [vmem:[%s4267 + $0x10a] sm:$0xff]
      %v4493 = vld [vmem:[%s4267 + $0x112] sm:$0xff]
      %v4494 = vld [vmem:[%s4267 + $0x122] sm:$0xff]
      %v4495 = vld [vmem:[%s4267 + $0x12a] sm:$0xff]
      %v4496 = vld [vmem:[%s4267 + $0x13a] sm:$0xff]
      %v4497 = vld [vmem:[%s4267 + $0x142] sm:$0xff]
      %v4498 = vld [vmem:[%s4267 + $0x152] sm:$0xff]
      %v4499 = vld [vmem:[%s4267 + $0x15a] sm:$0xff]
      %v4500 = vld [vmem:[%s4267 + $0x16a] sm:$0xff]
      %v4501 = vld [vmem:[%s4267 + $0x172] sm:$0xff]
      %v4502 = vlaneseq
      %v4503 = vshrl.u32 %v4502, 7
      %v4504 = vsub.s32 0, %v4503
      %v4505 = vrot.slane %v4469, %v4504
      %v4506 = vmul.f32 %v4470, %v4505
      %v4507 = vmul.f32 %v4471, %v4505
      %v4508 = vmul.f32 %v4472, %v4505
      %v4509 = vmul.f32 %v4473, %v4505
      %v4510 = vmul.f32 %v4474, %v4505
      %v4511 = vmul.f32 %v4475, %v4505
      %v4512 = vmul.f32 %v4476, %v4505
      %v4513 = vmul.f32 %v4477, %v4505
      %v4514 = vmul.f32 %v4478, %v4505
      %v4515 = vmul.f32 %v4479, %v4505
      %v4516 = vmul.f32 %v4480, %v4505
      %v4517 = vmul.f32 %v4481, %v4505
      %v4518 = vmul.f32 %v4482, %v4505
      %v4519 = vmul.f32 %v4483, %v4505
      %v4520 = vmul.f32 %v4484, %v4505
      %v4521 = vmul.f32 %v4485, %v4505
      %v4522 = vmul.f32 %v4486, %v4505
      %v4523 = vmul.f32 %v4487, %v4505
      %v4524 = vmul.f32 %v4488, %v4505
      %v4525 = vmul.f32 %v4489, %v4505
      %v4526 = vmul.f32 %v4490, %v4505
      %v4527 = vmul.f32 %v4491, %v4505
      %v4528 = vmul.f32 %v4492, %v4505
      %v4529 = vmul.f32 %v4493, %v4505
      %v4530 = vmul.f32 %v4494, %v4505
      %v4531 = vmul.f32 %v4495, %v4505
      %v4532 = vmul.f32 %v4496, %v4505
      %v4533 = vmul.f32 %v4497, %v4505
      %v4534 = vmul.f32 %v4498, %v4505
      %v4535 = vmul.f32 %v4499, %v4505
      %v4536 = vmul.f32 %v4500, %v4505
      %v4537 = vmul.f32 %v4501, %v4505
      %v4538 = vadd.f32 %v4437, %v4506
      %v4539 = vadd.f32 %v4438, %v4507
      %v4540 = vadd.f32 %v4439, %v4508
      %v4541 = vadd.f32 %v4440, %v4509
      %v4542 = vadd.f32 %v4441, %v4510
      %v4543 = vadd.f32 %v4442, %v4511
      %v4544 = vadd.f32 %v4443, %v4512
      %v4545 = vadd.f32 %v4444, %v4513
      %v4546 = vadd.f32 %v4445, %v4514
      %v4547 = vadd.f32 %v4446, %v4515
      %v4548 = vadd.f32 %v4447, %v4516
      %v4549 = vadd.f32 %v4448, %v4517
      %v4550 = vadd.f32 %v4449, %v4518
      %v4551 = vadd.f32 %v4450, %v4519
      %v4552 = vadd.f32 %v4451, %v4520
      %v4553 = vadd.f32 %v4452, %v4521
      %v4554 = vadd.f32 %v4453, %v4522
      %v4555 = vadd.f32 %v4454, %v4523
      %v4556 = vadd.f32 %v4455, %v4524
      %v4557 = vadd.f32 %v4456, %v4525
      %v4558 = vadd.f32 %v4457, %v4526
      %v4559 = vadd.f32 %v4458, %v4527
      %v4560 = vadd.f32 %v4459, %v4528
      %v4561 = vadd.f32 %v4460, %v4529
      %v4562 = vadd.f32 %v4461, %v4530
      %v4563 = vadd.f32 %v4462, %v4531
      %v4564 = vadd.f32 %v4463, %v4532
      %v4565 = vadd.f32 %v4464, %v4533
      %v4566 = vadd.f32 %v4465, %v4534
      %v4567 = vadd.f32 %v4466, %v4535
      %v4568 = vadd.f32 %v4467, %v4536
      %v4569 = vadd.f32 %v4468, %v4537
      %v4570 = vld [vmem:[%s2 + $0x26] sm:$0x1]
      %v4571 = vld [vmem:[%s4267 + $0x3] sm:$0xff]
      %v4572 = vld [vmem:[%s4267 + $0xb] sm:$0xff]
      %v4573 = vld [vmem:[%s4267 + $0x1b] sm:$0xff]
      %v4574 = vld [vmem:[%s4267 + $0x23] sm:$0xff]
      %v4575 = vld [vmem:[%s4267 + $0x33] sm:$0xff]
      %v4576 = vld [vmem:[%s4267 + $0x3b] sm:$0xff]
      %v4577 = vld [vmem:[%s4267 + $0x4b] sm:$0xff]
      %v4578 = vld [vmem:[%s4267 + $0x53] sm:$0xff]
      %v4579 = vld [vmem:[%s4267 + $0x63] sm:$0xff]
      %v4580 = vld [vmem:[%s4267 + $0x6b] sm:$0xff]
      %v4581 = vld [vmem:[%s4267 + $0x7b] sm:$0xff]
      %v4582 = vld [vmem:[%s4267 + $0x83] sm:$0xff]
      %v4583 = vld [vmem:[%s4267 + $0x93] sm:$0xff]
      %v4584 = vld [vmem:[%s4267 + $0x9b] sm:$0xff]
      %v4585 = vld [vmem:[%s4267 + $0xab] sm:$0xff]
      %v4586 = vld [vmem:[%s4267 + $0xb3] sm:$0xff]
      %v4587 = vld [vmem:[%s4267 + $0xc3] sm:$0xff]
      %v4588 = vld [vmem:[%s4267 + $0xcb] sm:$0xff]
      %v4589 = vld [vmem:[%s4267 + $0xdb] sm:$0xff]
      %v4590 = vld [vmem:[%s4267 + $0xe3] sm:$0xff]
      %v4591 = vld [vmem:[%s4267 + $0xf3] sm:$0xff]
      %v4592 = vld [vmem:[%s4267 + $0xfb] sm:$0xff]
      %v4593 = vld [vmem:[%s4267 + $0x10b] sm:$0xff]
      %v4594 = vld [vmem:[%s4267 + $0x113] sm:$0xff]
      %v4595 = vld [vmem:[%s4267 + $0x123] sm:$0xff]
      %v4596 = vld [vmem:[%s4267 + $0x12b] sm:$0xff]
      %v4597 = vld [vmem:[%s4267 + $0x13b] sm:$0xff]
      %v4598 = vld [vmem:[%s4267 + $0x143] sm:$0xff]
      %v4599 = vld [vmem:[%s4267 + $0x153] sm:$0xff]
      %v4600 = vld [vmem:[%s4267 + $0x15b] sm:$0xff]
      %v4601 = vld [vmem:[%s4267 + $0x16b] sm:$0xff]
      %v4602 = vld [vmem:[%s4267 + $0x173] sm:$0xff]
      %v4603 = vlaneseq
      %v4604 = vshrl.u32 %v4603, 7
      %v4605 = vsub.s32 0, %v4604
      %v4606 = vrot.slane %v4570, %v4605
      %v4607 = vmul.f32 %v4571, %v4606
      %v4608 = vmul.f32 %v4572, %v4606
      %v4609 = vmul.f32 %v4573, %v4606
      %v4610 = vmul.f32 %v4574, %v4606
      %v4611 = vmul.f32 %v4575, %v4606
      %v4612 = vmul.f32 %v4576, %v4606
      %v4613 = vmul.f32 %v4577, %v4606
      %v4614 = vmul.f32 %v4578, %v4606
      %v4615 = vmul.f32 %v4579, %v4606
      %v4616 = vmul.f32 %v4580, %v4606
      %v4617 = vmul.f32 %v4581, %v4606
      %v4618 = vmul.f32 %v4582, %v4606
      %v4619 = vmul.f32 %v4583, %v4606
      %v4620 = vmul.f32 %v4584, %v4606
      %v4621 = vmul.f32 %v4585, %v4606
      %v4622 = vmul.f32 %v4586, %v4606
      %v4623 = vmul.f32 %v4587, %v4606
      %v4624 = vmul.f32 %v4588, %v4606
      %v4625 = vmul.f32 %v4589, %v4606
      %v4626 = vmul.f32 %v4590, %v4606
      %v4627 = vmul.f32 %v4591, %v4606
      %v4628 = vmul.f32 %v4592, %v4606
      %v4629 = vmul.f32 %v4593, %v4606
      %v4630 = vmul.f32 %v4594, %v4606
      %v4631 = vmul.f32 %v4595, %v4606
      %v4632 = vmul.f32 %v4596, %v4606
      %v4633 = vmul.f32 %v4597, %v4606
      %v4634 = vmul.f32 %v4598, %v4606
      %v4635 = vmul.f32 %v4599, %v4606
      %v4636 = vmul.f32 %v4600, %v4606
      %v4637 = vmul.f32 %v4601, %v4606
      %v4638 = vmul.f32 %v4602, %v4606
      %v4639 = vadd.f32 %v4538, %v4607
      %v4640 = vadd.f32 %v4539, %v4608
      %v4641 = vadd.f32 %v4540, %v4609
      %v4642 = vadd.f32 %v4541, %v4610
      %v4643 = vadd.f32 %v4542, %v4611
      %v4644 = vadd.f32 %v4543, %v4612
      %v4645 = vadd.f32 %v4544, %v4613
      %v4646 = vadd.f32 %v4545, %v4614
      %v4647 = vadd.f32 %v4546, %v4615
      %v4648 = vadd.f32 %v4547, %v4616
      %v4649 = vadd.f32 %v4548, %v4617
      %v4650 = vadd.f32 %v4549, %v4618
      %v4651 = vadd.f32 %v4550, %v4619
      %v4652 = vadd.f32 %v4551, %v4620
      %v4653 = vadd.f32 %v4552, %v4621
      %v4654 = vadd.f32 %v4553, %v4622
      %v4655 = vadd.f32 %v4554, %v4623
      %v4656 = vadd.f32 %v4555, %v4624
      %v4657 = vadd.f32 %v4556, %v4625
      %v4658 = vadd.f32 %v4557, %v4626
      %v4659 = vadd.f32 %v4558, %v4627
      %v4660 = vadd.f32 %v4559, %v4628
      %v4661 = vadd.f32 %v4560, %v4629
      %v4662 = vadd.f32 %v4561, %v4630
      %v4663 = vadd.f32 %v4562, %v4631
      %v4664 = vadd.f32 %v4563, %v4632
      %v4665 = vadd.f32 %v4564, %v4633
      %v4666 = vadd.f32 %v4565, %v4634
      %v4667 = vadd.f32 %v4566, %v4635
      %v4668 = vadd.f32 %v4567, %v4636
      %v4669 = vadd.f32 %v4568, %v4637
      %v4670 = vadd.f32 %v4569, %v4638
      %v4671 = vld [vmem:[%s2 + $0x27] sm:$0x1]
      %v4672 = vld [vmem:[%s4267 + $0x4] sm:$0xff]
      %v4673 = vld [vmem:[%s4267 + $0xc] sm:$0xff]
      %v4674 = vld [vmem:[%s4267 + $0x1c] sm:$0xff]
      %v4675 = vld [vmem:[%s4267 + $0x24] sm:$0xff]
      %v4676 = vld [vmem:[%s4267 + $0x34] sm:$0xff]
      %v4677 = vld [vmem:[%s4267 + $0x3c] sm:$0xff]
      %v4678 = vld [vmem:[%s4267 + $0x4c] sm:$0xff]
      %v4679 = vld [vmem:[%s4267 + $0x54] sm:$0xff]
      %v4680 = vld [vmem:[%s4267 + $0x64] sm:$0xff]
      %v4681 = vld [vmem:[%s4267 + $0x6c] sm:$0xff]
      %v4682 = vld [vmem:[%s4267 + $0x7c] sm:$0xff]
      %v4683 = vld [vmem:[%s4267 + $0x84] sm:$0xff]
      %v4684 = vld [vmem:[%s4267 + $0x94] sm:$0xff]
      %v4685 = vld [vmem:[%s4267 + $0x9c] sm:$0xff]
      %v4686 = vld [vmem:[%s4267 + $0xac] sm:$0xff]
      %v4687 = vld [vmem:[%s4267 + $0xb4] sm:$0xff]
      %v4688 = vld [vmem:[%s4267 + $0xc4] sm:$0xff]
      %v4689 = vld [vmem:[%s4267 + $0xcc] sm:$0xff]
      %v4690 = vld [vmem:[%s4267 + $0xdc] sm:$0xff]
      %v4691 = vld [vmem:[%s4267 + $0xe4] sm:$0xff]
      %v4692 = vld [vmem:[%s4267 + $0xf4] sm:$0xff]
      %v4693 = vld [vmem:[%s4267 + $0xfc] sm:$0xff]
      %v4694 = vld [vmem:[%s4267 + $0x10c] sm:$0xff]
      %v4695 = vld [vmem:[%s4267 + $0x114] sm:$0xff]
      %v4696 = vld [vmem:[%s4267 + $0x124] sm:$0xff]
      %v4697 = vld [vmem:[%s4267 + $0x12c] sm:$0xff]
      %v4698 = vld [vmem:[%s4267 + $0x13c] sm:$0xff]
      %v4699 = vld [vmem:[%s4267 + $0x144] sm:$0xff]
      %v4700 = vld [vmem:[%s4267 + $0x154] sm:$0xff]
      %v4701 = vld [vmem:[%s4267 + $0x15c] sm:$0xff]
      %v4702 = vld [vmem:[%s4267 + $0x16c] sm:$0xff]
      %v4703 = vld [vmem:[%s4267 + $0x174] sm:$0xff]
      %v4704 = vlaneseq
      %v4705 = vshrl.u32 %v4704, 7
      %v4706 = vsub.s32 0, %v4705
      %v4707 = vrot.slane %v4671, %v4706
      %v4708 = vmul.f32 %v4672, %v4707
      %v4709 = vmul.f32 %v4673, %v4707
      %v4710 = vmul.f32 %v4674, %v4707
      %v4711 = vmul.f32 %v4675, %v4707
      %v4712 = vmul.f32 %v4676, %v4707
      %v4713 = vmul.f32 %v4677, %v4707
      %v4714 = vmul.f32 %v4678, %v4707
      %v4715 = vmul.f32 %v4679, %v4707
      %v4716 = vmul.f32 %v4680, %v4707
      %v4717 = vmul.f32 %v4681, %v4707
      %v4718 = vmul.f32 %v4682, %v4707
      %v4719 = vmul.f32 %v4683, %v4707
      %v4720 = vmul.f32 %v4684, %v4707
      %v4721 = vmul.f32 %v4685, %v4707
      %v4722 = vmul.f32 %v4686, %v4707
      %v4723 = vmul.f32 %v4687, %v4707
      %v4724 = vmul.f32 %v4688, %v4707
      %v4725 = vmul.f32 %v4689, %v4707
      %v4726 = vmul.f32 %v4690, %v4707
      %v4727 = vmul.f32 %v4691, %v4707
      %v4728 = vmul.f32 %v4692, %v4707
      %v4729 = vmul.f32 %v4693, %v4707
      %v4730 = vmul.f32 %v4694, %v4707
      %v4731 = vmul.f32 %v4695, %v4707
      %v4732 = vmul.f32 %v4696, %v4707
      %v4733 = vmul.f32 %v4697, %v4707
      %v4734 = vmul.f32 %v4698, %v4707
      %v4735 = vmul.f32 %v4699, %v4707
      %v4736 = vmul.f32 %v4700, %v4707
      %v4737 = vmul.f32 %v4701, %v4707
      %v4738 = vmul.f32 %v4702, %v4707
      %v4739 = vmul.f32 %v4703, %v4707
      %v4740 = vadd.f32 %v4639, %v4708
      %v4741 = vadd.f32 %v4640, %v4709
      %v4742 = vadd.f32 %v4641, %v4710
      %v4743 = vadd.f32 %v4642, %v4711
      %v4744 = vadd.f32 %v4643, %v4712
      %v4745 = vadd.f32 %v4644, %v4713
      %v4746 = vadd.f32 %v4645, %v4714
      %v4747 = vadd.f32 %v4646, %v4715
      %v4748 = vadd.f32 %v4647, %v4716
      %v4749 = vadd.f32 %v4648, %v4717
      %v4750 = vadd.f32 %v4649, %v4718
      %v4751 = vadd.f32 %v4650, %v4719
      %v4752 = vadd.f32 %v4651, %v4720
      %v4753 = vadd.f32 %v4652, %v4721
      %v4754 = vadd.f32 %v4653, %v4722
      %v4755 = vadd.f32 %v4654, %v4723
      %v4756 = vadd.f32 %v4655, %v4724
      %v4757 = vadd.f32 %v4656, %v4725
      %v4758 = vadd.f32 %v4657, %v4726
      %v4759 = vadd.f32 %v4658, %v4727
      %v4760 = vadd.f32 %v4659, %v4728
      %v4761 = vadd.f32 %v4660, %v4729
      %v4762 = vadd.f32 %v4661, %v4730
      %v4763 = vadd.f32 %v4662, %v4731
      %v4764 = vadd.f32 %v4663, %v4732
      %v4765 = vadd.f32 %v4664, %v4733
      %v4766 = vadd.f32 %v4665, %v4734
      %v4767 = vadd.f32 %v4666, %v4735
      %v4768 = vadd.f32 %v4667, %v4736
      %v4769 = vadd.f32 %v4668, %v4737
      %v4770 = vadd.f32 %v4669, %v4738
      %v4771 = vadd.f32 %v4670, %v4739
      %v4772 = vld [vmem:[%s2 + $0x28] sm:$0x1]
      %v4773 = vld [vmem:[%s4267 + $0x5] sm:$0xff]
      %v4774 = vld [vmem:[%s4267 + $0xd] sm:$0xff]
      %v4775 = vld [vmem:[%s4267 + $0x1d] sm:$0xff]
      %v4776 = vld [vmem:[%s4267 + $0x25] sm:$0xff]
      %v4777 = vld [vmem:[%s4267 + $0x35] sm:$0xff]
      %v4778 = vld [vmem:[%s4267 + $0x3d] sm:$0xff]
      %v4779 = vld [vmem:[%s4267 + $0x4d] sm:$0xff]
      %v4780 = vld [vmem:[%s4267 + $0x55] sm:$0xff]
      %v4781 = vld [vmem:[%s4267 + $0x65] sm:$0xff]
      %v4782 = vld [vmem:[%s4267 + $0x6d] sm:$0xff]
      %v4783 = vld [vmem:[%s4267 + $0x7d] sm:$0xff]
      %v4784 = vld [vmem:[%s4267 + $0x85] sm:$0xff]
      %v4785 = vld [vmem:[%s4267 + $0x95] sm:$0xff]
      %v4786 = vld [vmem:[%s4267 + $0x9d] sm:$0xff]
      %v4787 = vld [vmem:[%s4267 + $0xad] sm:$0xff]
      %v4788 = vld [vmem:[%s4267 + $0xb5] sm:$0xff]
      %v4789 = vld [vmem:[%s4267 + $0xc5] sm:$0xff]
      %v4790 = vld [vmem:[%s4267 + $0xcd] sm:$0xff]
      %v4791 = vld [vmem:[%s4267 + $0xdd] sm:$0xff]
      %v4792 = vld [vmem:[%s4267 + $0xe5] sm:$0xff]
      %v4793 = vld [vmem:[%s4267 + $0xf5] sm:$0xff]
      %v4794 = vld [vmem:[%s4267 + $0xfd] sm:$0xff]
      %v4795 = vld [vmem:[%s4267 + $0x10d] sm:$0xff]
      %v4796 = vld [vmem:[%s4267 + $0x115] sm:$0xff]
      %v4797 = vld [vmem:[%s4267 + $0x125] sm:$0xff]
      %v4798 = vld [vmem:[%s4267 + $0x12d] sm:$0xff]
      %v4799 = vld [vmem:[%s4267 + $0x13d] sm:$0xff]
      %v4800 = vld [vmem:[%s4267 + $0x145] sm:$0xff]
      %v4801 = vld [vmem:[%s4267 + $0x155] sm:$0xff]
      %v4802 = vld [vmem:[%s4267 + $0x15d] sm:$0xff]
      %v4803 = vld [vmem:[%s4267 + $0x16d] sm:$0xff]
      %v4804 = vld [vmem:[%s4267 + $0x175] sm:$0xff]
      %v4805 = vlaneseq
      %v4806 = vshrl.u32 %v4805, 7
      %v4807 = vsub.s32 0, %v4806
      %v4808 = vrot.slane %v4772, %v4807
      %v4809 = vmul.f32 %v4773, %v4808
      %v4810 = vmul.f32 %v4774, %v4808
      %v4811 = vmul.f32 %v4775, %v4808
      %v4812 = vmul.f32 %v4776, %v4808
      %v4813 = vmul.f32 %v4777, %v4808
      %v4814 = vmul.f32 %v4778, %v4808
      %v4815 = vmul.f32 %v4779, %v4808
      %v4816 = vmul.f32 %v4780, %v4808
      %v4817 = vmul.f32 %v4781, %v4808
      %v4818 = vmul.f32 %v4782, %v4808
      %v4819 = vmul.f32 %v4783, %v4808
      %v4820 = vmul.f32 %v4784, %v4808
      %v4821 = vmul.f32 %v4785, %v4808
      %v4822 = vmul.f32 %v4786, %v4808
      %v4823 = vmul.f32 %v4787, %v4808
      %v4824 = vmul.f32 %v4788, %v4808
      %v4825 = vmul.f32 %v4789, %v4808
      %v4826 = vmul.f32 %v4790, %v4808
      %v4827 = vmul.f32 %v4791, %v4808
      %v4828 = vmul.f32 %v4792, %v4808
      %v4829 = vmul.f32 %v4793, %v4808
      %v4830 = vmul.f32 %v4794, %v4808
      %v4831 = vmul.f32 %v4795, %v4808
      %v4832 = vmul.f32 %v4796, %v4808
      %v4833 = vmul.f32 %v4797, %v4808
      %v4834 = vmul.f32 %v4798, %v4808
      %v4835 = vmul.f32 %v4799, %v4808
      %v4836 = vmul.f32 %v4800, %v4808
      %v4837 = vmul.f32 %v4801, %v4808
      %v4838 = vmul.f32 %v4802, %v4808
      %v4839 = vmul.f32 %v4803, %v4808
      %v4840 = vmul.f32 %v4804, %v4808
      %v4841 = vadd.f32 %v4740, %v4809
      %v4842 = vadd.f32 %v4741, %v4810
      %v4843 = vadd.f32 %v4742, %v4811
      %v4844 = vadd.f32 %v4743, %v4812
      %v4845 = vadd.f32 %v4744, %v4813
      %v4846 = vadd.f32 %v4745, %v4814
      %v4847 = vadd.f32 %v4746, %v4815
      %v4848 = vadd.f32 %v4747, %v4816
      %v4849 = vadd.f32 %v4748, %v4817
      %v4850 = vadd.f32 %v4749, %v4818
      %v4851 = vadd.f32 %v4750, %v4819
      %v4852 = vadd.f32 %v4751, %v4820
      %v4853 = vadd.f32 %v4752, %v4821
      %v4854 = vadd.f32 %v4753, %v4822
      %v4855 = vadd.f32 %v4754, %v4823
      %v4856 = vadd.f32 %v4755, %v4824
      %v4857 = vadd.f32 %v4756, %v4825
      %v4858 = vadd.f32 %v4757, %v4826
      %v4859 = vadd.f32 %v4758, %v4827
      %v4860 = vadd.f32 %v4759, %v4828
      %v4861 = vadd.f32 %v4760, %v4829
      %v4862 = vadd.f32 %v4761, %v4830
      %v4863 = vadd.f32 %v4762, %v4831
      %v4864 = vadd.f32 %v4763, %v4832
      %v4865 = vadd.f32 %v4764, %v4833
      %v4866 = vadd.f32 %v4765, %v4834
      %v4867 = vadd.f32 %v4766, %v4835
      %v4868 = vadd.f32 %v4767, %v4836
      %v4869 = vadd.f32 %v4768, %v4837
      %v4870 = vadd.f32 %v4769, %v4838
      %v4871 = vadd.f32 %v4770, %v4839
      %v4872 = vadd.f32 %v4771, %v4840
      %v4873 = vld [vmem:[%s2 + $0x29] sm:$0x1]
      %v4874 = vld [vmem:[%s4267 + $0x6] sm:$0xff]
      %v4875 = vld [vmem:[%s4267 + $0xe] sm:$0xff]
      %v4876 = vld [vmem:[%s4267 + $0x1e] sm:$0xff]
      %v4877 = vld [vmem:[%s4267 + $0x26] sm:$0xff]
      %v4878 = vld [vmem:[%s4267 + $0x36] sm:$0xff]
      %v4879 = vld [vmem:[%s4267 + $0x3e] sm:$0xff]
      %v4880 = vld [vmem:[%s4267 + $0x4e] sm:$0xff]
      %v4881 = vld [vmem:[%s4267 + $0x56] sm:$0xff]
      %v4882 = vld [vmem:[%s4267 + $0x66] sm:$0xff]
      %v4883 = vld [vmem:[%s4267 + $0x6e] sm:$0xff]
      %v4884 = vld [vmem:[%s4267 + $0x7e] sm:$0xff]
      %v4885 = vld [vmem:[%s4267 + $0x86] sm:$0xff]
      %v4886 = vld [vmem:[%s4267 + $0x96] sm:$0xff]
      %v4887 = vld [vmem:[%s4267 + $0x9e] sm:$0xff]
      %v4888 = vld [vmem:[%s4267 + $0xae] sm:$0xff]
      %v4889 = vld [vmem:[%s4267 + $0xb6] sm:$0xff]
      %v4890 = vld [vmem:[%s4267 + $0xc6] sm:$0xff]
      %v4891 = vld [vmem:[%s4267 + $0xce] sm:$0xff]
      %v4892 = vld [vmem:[%s4267 + $0xde] sm:$0xff]
      %v4893 = vld [vmem:[%s4267 + $0xe6] sm:$0xff]
      %v4894 = vld [vmem:[%s4267 + $0xf6] sm:$0xff]
      %v4895 = vld [vmem:[%s4267 + $0xfe] sm:$0xff]
      %v4896 = vld [vmem:[%s4267 + $0x10e] sm:$0xff]
      %v4897 = vld [vmem:[%s4267 + $0x116] sm:$0xff]
      %v4898 = vld [vmem:[%s4267 + $0x126] sm:$0xff]
      %v4899 = vld [vmem:[%s4267 + $0x12e] sm:$0xff]
      %v4900 = vld [vmem:[%s4267 + $0x13e] sm:$0xff]
      %v4901 = vld [vmem:[%s4267 + $0x146] sm:$0xff]
      %v4902 = vld [vmem:[%s4267 + $0x156] sm:$0xff]
      %v4903 = vld [vmem:[%s4267 + $0x15e] sm:$0xff]
      %v4904 = vld [vmem:[%s4267 + $0x16e] sm:$0xff]
      %v4905 = vld [vmem:[%s4267 + $0x176] sm:$0xff]
      %v4906 = vlaneseq
      %v4907 = vshrl.u32 %v4906, 7
      %v4908 = vsub.s32 0, %v4907
      %v4909 = vrot.slane %v4873, %v4908
      %v4910 = vmul.f32 %v4874, %v4909
      %v4911 = vmul.f32 %v4875, %v4909
      %v4912 = vmul.f32 %v4876, %v4909
      %v4913 = vmul.f32 %v4877, %v4909
      %v4914 = vmul.f32 %v4878, %v4909
      %v4915 = vmul.f32 %v4879, %v4909
      %v4916 = vmul.f32 %v4880, %v4909
      %v4917 = vmul.f32 %v4881, %v4909
      %v4918 = vmul.f32 %v4882, %v4909
      %v4919 = vmul.f32 %v4883, %v4909
      %v4920 = vmul.f32 %v4884, %v4909
      %v4921 = vmul.f32 %v4885, %v4909
      %v4922 = vmul.f32 %v4886, %v4909
      %v4923 = vmul.f32 %v4887, %v4909
      %v4924 = vmul.f32 %v4888, %v4909
      %v4925 = vmul.f32 %v4889, %v4909
      %v4926 = vmul.f32 %v4890, %v4909
      %v4927 = vmul.f32 %v4891, %v4909
      %v4928 = vmul.f32 %v4892, %v4909
      %v4929 = vmul.f32 %v4893, %v4909
      %v4930 = vmul.f32 %v4894, %v4909
      %v4931 = vmul.f32 %v4895, %v4909
      %v4932 = vmul.f32 %v4896, %v4909
      %v4933 = vmul.f32 %v4897, %v4909
      %v4934 = vmul.f32 %v4898, %v4909
      %v4935 = vmul.f32 %v4899, %v4909
      %v4936 = vmul.f32 %v4900, %v4909
      %v4937 = vmul.f32 %v4901, %v4909
      %v4938 = vmul.f32 %v4902, %v4909
      %v4939 = vmul.f32 %v4903, %v4909
      %v4940 = vmul.f32 %v4904, %v4909
      %v4941 = vmul.f32 %v4905, %v4909
      %v4942 = vadd.f32 %v4841, %v4910
      %v4943 = vadd.f32 %v4842, %v4911
      %v4944 = vadd.f32 %v4843, %v4912
      %v4945 = vadd.f32 %v4844, %v4913
      %v4946 = vadd.f32 %v4845, %v4914
      %v4947 = vadd.f32 %v4846, %v4915
      %v4948 = vadd.f32 %v4847, %v4916
      %v4949 = vadd.f32 %v4848, %v4917
      %v4950 = vadd.f32 %v4849, %v4918
      %v4951 = vadd.f32 %v4850, %v4919
      %v4952 = vadd.f32 %v4851, %v4920
      %v4953 = vadd.f32 %v4852, %v4921
      %v4954 = vadd.f32 %v4853, %v4922
      %v4955 = vadd.f32 %v4854, %v4923
      %v4956 = vadd.f32 %v4855, %v4924
      %v4957 = vadd.f32 %v4856, %v4925
      %v4958 = vadd.f32 %v4857, %v4926
      %v4959 = vadd.f32 %v4858, %v4927
      %v4960 = vadd.f32 %v4859, %v4928
      %v4961 = vadd.f32 %v4860, %v4929
      %v4962 = vadd.f32 %v4861, %v4930
      %v4963 = vadd.f32 %v4862, %v4931
      %v4964 = vadd.f32 %v4863, %v4932
      %v4965 = vadd.f32 %v4864, %v4933
      %v4966 = vadd.f32 %v4865, %v4934
      %v4967 = vadd.f32 %v4866, %v4935
      %v4968 = vadd.f32 %v4867, %v4936
      %v4969 = vadd.f32 %v4868, %v4937
      %v4970 = vadd.f32 %v4869, %v4938
      %v4971 = vadd.f32 %v4870, %v4939
      %v4972 = vadd.f32 %v4871, %v4940
      %v4973 = vadd.f32 %v4872, %v4941
      %v4974 = vld [vmem:[%s2 + $0x2a] sm:$0x1]
      %s4975 = scalar_lea.vmem [#allocation2], 144
      %v4976 = vld [vmem:[%s4975] sm:$0xff]
      %v4977 = vld [vmem:[%s4975 + $0x8] sm:$0xff]
      %v4978 = vld [vmem:[%s4975 + $0x18] sm:$0xff]
      %v4979 = vld [vmem:[%s4975 + $0x20] sm:$0xff]
      %v4980 = vld [vmem:[%s4975 + $0x30] sm:$0xff]
      %v4981 = vld [vmem:[%s4975 + $0x38] sm:$0xff]
      %v4982 = vld [vmem:[%s4975 + $0x48] sm:$0xff]
      %v4983 = vld [vmem:[%s4975 + $0x50] sm:$0xff]
      %v4984 = vld [vmem:[%s4975 + $0x60] sm:$0xff]
      %v4985 = vld [vmem:[%s4975 + $0x68] sm:$0xff]
      %v4986 = vld [vmem:[%s4975 + $0x78] sm:$0xff]
      %v4987 = vld [vmem:[%s4975 + $0x80] sm:$0xff]
      %v4988 = vld [vmem:[%s4975 + $0x90] sm:$0xff]
      %v4989 = vld [vmem:[%s4975 + $0x98] sm:$0xff]
      %v4990 = vld [vmem:[%s4975 + $0xa8] sm:$0xff]
      %v4991 = vld [vmem:[%s4975 + $0xb0] sm:$0xff]
      %v4992 = vld [vmem:[%s4975 + $0xc0] sm:$0xff]
      %v4993 = vld [vmem:[%s4975 + $0xc8] sm:$0xff]
      %v4994 = vld [vmem:[%s4975 + $0xd8] sm:$0xff]
      %v4995 = vld [vmem:[%s4975 + $0xe0] sm:$0xff]
      %v4996 = vld [vmem:[%s4975 + $0xf0] sm:$0xff]
      %v4997 = vld [vmem:[%s4975 + $0xf8] sm:$0xff]
      %v4998 = vld [vmem:[%s4975 + $0x108] sm:$0xff]
      %v4999 = vld [vmem:[%s4975 + $0x110] sm:$0xff]
      %v5000 = vld [vmem:[%s4975 + $0x120] sm:$0xff]
      %v5001 = vld [vmem:[%s4975 + $0x128] sm:$0xff]
      %v5002 = vld [vmem:[%s4975 + $0x138] sm:$0xff]
      %v5003 = vld [vmem:[%s4975 + $0x140] sm:$0xff]
      %v5004 = vld [vmem:[%s4975 + $0x150] sm:$0xff]
      %v5005 = vld [vmem:[%s4975 + $0x158] sm:$0xff]
      %v5006 = vld [vmem:[%s4975 + $0x168] sm:$0xff]
      %v5007 = vld [vmem:[%s4975 + $0x170] sm:$0xff]
      %v5008 = vlaneseq
      %v5009 = vshrl.u32 %v5008, 7
      %v5010 = vsub.s32 0, %v5009
      %v5011 = vrot.slane %v4974, %v5010
      %v5012 = vmul.f32 %v4976, %v5011
      %v5013 = vmul.f32 %v4977, %v5011
      %v5014 = vmul.f32 %v4978, %v5011
      %v5015 = vmul.f32 %v4979, %v5011
      %v5016 = vmul.f32 %v4980, %v5011
      %v5017 = vmul.f32 %v4981, %v5011
      %v5018 = vmul.f32 %v4982, %v5011
      %v5019 = vmul.f32 %v4983, %v5011
      %v5020 = vmul.f32 %v4984, %v5011
      %v5021 = vmul.f32 %v4985, %v5011
      %v5022 = vmul.f32 %v4986, %v5011
      %v5023 = vmul.f32 %v4987, %v5011
      %v5024 = vmul.f32 %v4988, %v5011
      %v5025 = vmul.f32 %v4989, %v5011
      %v5026 = vmul.f32 %v4990, %v5011
      %v5027 = vmul.f32 %v4991, %v5011
      %v5028 = vmul.f32 %v4992, %v5011
      %v5029 = vmul.f32 %v4993, %v5011
      %v5030 = vmul.f32 %v4994, %v5011
      %v5031 = vmul.f32 %v4995, %v5011
      %v5032 = vmul.f32 %v4996, %v5011
      %v5033 = vmul.f32 %v4997, %v5011
      %v5034 = vmul.f32 %v4998, %v5011
      %v5035 = vmul.f32 %v4999, %v5011
      %v5036 = vmul.f32 %v5000, %v5011
      %v5037 = vmul.f32 %v5001, %v5011
      %v5038 = vmul.f32 %v5002, %v5011
      %v5039 = vmul.f32 %v5003, %v5011
      %v5040 = vmul.f32 %v5004, %v5011
      %v5041 = vmul.f32 %v5005, %v5011
      %v5042 = vmul.f32 %v5006, %v5011
      %v5043 = vmul.f32 %v5007, %v5011
      %v5044 = vadd.f32 %v4942, %v5012
      %v5045 = vadd.f32 %v4943, %v5013
      %v5046 = vadd.f32 %v4944, %v5014
      %v5047 = vadd.f32 %v4945, %v5015
      %v5048 = vadd.f32 %v4946, %v5016
      %v5049 = vadd.f32 %v4947, %v5017
      %v5050 = vadd.f32 %v4948, %v5018
      %v5051 = vadd.f32 %v4949, %v5019
      %v5052 = vadd.f32 %v4950, %v5020
      %v5053 = vadd.f32 %v4951, %v5021
      %v5054 = vadd.f32 %v4952, %v5022
      %v5055 = vadd.f32 %v4953, %v5023
      %v5056 = vadd.f32 %v4954, %v5024
      %v5057 = vadd.f32 %v4955, %v5025
      %v5058 = vadd.f32 %v4956, %v5026
      %v5059 = vadd.f32 %v4957, %v5027
      %v5060 = vadd.f32 %v4958, %v5028
      %v5061 = vadd.f32 %v4959, %v5029
      %v5062 = vadd.f32 %v4960, %v5030
      %v5063 = vadd.f32 %v4961, %v5031
      %v5064 = vadd.f32 %v4962, %v5032
      %v5065 = vadd.f32 %v4963, %v5033
      %v5066 = vadd.f32 %v4964, %v5034
      %v5067 = vadd.f32 %v4965, %v5035
      %v5068 = vadd.f32 %v4966, %v5036
      %v5069 = vadd.f32 %v4967, %v5037
      %v5070 = vadd.f32 %v4968, %v5038
      %v5071 = vadd.f32 %v4969, %v5039
      %v5072 = vadd.f32 %v4970, %v5040
      %v5073 = vadd.f32 %v4971, %v5041
      %v5074 = vadd.f32 %v4972, %v5042
      %v5075 = vadd.f32 %v4973, %v5043
      %v5076 = vld [vmem:[%s2 + $0x2b] sm:$0x1]
      %v5077 = vld [vmem:[%s4975 + $0x1] sm:$0xff]
      %v5078 = vld [vmem:[%s4975 + $0x9] sm:$0xff]
      %v5079 = vld [vmem:[%s4975 + $0x19] sm:$0xff]
      %v5080 = vld [vmem:[%s4975 + $0x21] sm:$0xff]
      %v5081 = vld [vmem:[%s4975 + $0x31] sm:$0xff]
      %v5082 = vld [vmem:[%s4975 + $0x39] sm:$0xff]
      %v5083 = vld [vmem:[%s4975 + $0x49] sm:$0xff]
      %v5084 = vld [vmem:[%s4975 + $0x51] sm:$0xff]
      %v5085 = vld [vmem:[%s4975 + $0x61] sm:$0xff]
      %v5086 = vld [vmem:[%s4975 + $0x69] sm:$0xff]
      %v5087 = vld [vmem:[%s4975 + $0x79] sm:$0xff]
      %v5088 = vld [vmem:[%s4975 + $0x81] sm:$0xff]
      %v5089 = vld [vmem:[%s4975 + $0x91] sm:$0xff]
      %v5090 = vld [vmem:[%s4975 + $0x99] sm:$0xff]
      %v5091 = vld [vmem:[%s4975 + $0xa9] sm:$0xff]
      %v5092 = vld [vmem:[%s4975 + $0xb1] sm:$0xff]
      %v5093 = vld [vmem:[%s4975 + $0xc1] sm:$0xff]
      %v5094 = vld [vmem:[%s4975 + $0xc9] sm:$0xff]
      %v5095 = vld [vmem:[%s4975 + $0xd9] sm:$0xff]
      %v5096 = vld [vmem:[%s4975 + $0xe1] sm:$0xff]
      %v5097 = vld [vmem:[%s4975 + $0xf1] sm:$0xff]
      %v5098 = vld [vmem:[%s4975 + $0xf9] sm:$0xff]
      %v5099 = vld [vmem:[%s4975 + $0x109] sm:$0xff]
      %v5100 = vld [vmem:[%s4975 + $0x111] sm:$0xff]
      %v5101 = vld [vmem:[%s4975 + $0x121] sm:$0xff]
      %v5102 = vld [vmem:[%s4975 + $0x129] sm:$0xff]
      %v5103 = vld [vmem:[%s4975 + $0x139] sm:$0xff]
      %v5104 = vld [vmem:[%s4975 + $0x141] sm:$0xff]
      %v5105 = vld [vmem:[%s4975 + $0x151] sm:$0xff]
      %v5106 = vld [vmem:[%s4975 + $0x159] sm:$0xff]
      %v5107 = vld [vmem:[%s4975 + $0x169] sm:$0xff]
      %v5108 = vld [vmem:[%s4975 + $0x171] sm:$0xff]
      %v5109 = vlaneseq
      %v5110 = vshrl.u32 %v5109, 7
      %v5111 = vsub.s32 0, %v5110
      %v5112 = vrot.slane %v5076, %v5111
      %v5113 = vmul.f32 %v5077, %v5112
      %v5114 = vmul.f32 %v5078, %v5112
      %v5115 = vmul.f32 %v5079, %v5112
      %v5116 = vmul.f32 %v5080, %v5112
      %v5117 = vmul.f32 %v5081, %v5112
      %v5118 = vmul.f32 %v5082, %v5112
      %v5119 = vmul.f32 %v5083, %v5112
      %v5120 = vmul.f32 %v5084, %v5112
      %v5121 = vmul.f32 %v5085, %v5112
      %v5122 = vmul.f32 %v5086, %v5112
      %v5123 = vmul.f32 %v5087, %v5112
      %v5124 = vmul.f32 %v5088, %v5112
      %v5125 = vmul.f32 %v5089, %v5112
      %v5126 = vmul.f32 %v5090, %v5112
      %v5127 = vmul.f32 %v5091, %v5112
      %v5128 = vmul.f32 %v5092, %v5112
      %v5129 = vmul.f32 %v5093, %v5112
      %v5130 = vmul.f32 %v5094, %v5112
      %v5131 = vmul.f32 %v5095, %v5112
      %v5132 = vmul.f32 %v5096, %v5112
      %v5133 = vmul.f32 %v5097, %v5112
      %v5134 = vmul.f32 %v5098, %v5112
      %v5135 = vmul.f32 %v5099, %v5112
      %v5136 = vmul.f32 %v5100, %v5112
      %v5137 = vmul.f32 %v5101, %v5112
      %v5138 = vmul.f32 %v5102, %v5112
      %v5139 = vmul.f32 %v5103, %v5112
      %v5140 = vmul.f32 %v5104, %v5112
      %v5141 = vmul.f32 %v5105, %v5112
      %v5142 = vmul.f32 %v5106, %v5112
      %v5143 = vmul.f32 %v5107, %v5112
      %v5144 = vmul.f32 %v5108, %v5112
      %v5145 = vadd.f32 %v5044, %v5113
      %v5146 = vadd.f32 %v5045, %v5114
      %v5147 = vadd.f32 %v5046, %v5115
      %v5148 = vadd.f32 %v5047, %v5116
      %v5149 = vadd.f32 %v5048, %v5117
      %v5150 = vadd.f32 %v5049, %v5118
      %v5151 = vadd.f32 %v5050, %v5119
      %v5152 = vadd.f32 %v5051, %v5120
      %v5153 = vadd.f32 %v5052, %v5121
      %v5154 = vadd.f32 %v5053, %v5122
      %v5155 = vadd.f32 %v5054, %v5123
      %v5156 = vadd.f32 %v5055, %v5124
      %v5157 = vadd.f32 %v5056, %v5125
      %v5158 = vadd.f32 %v5057, %v5126
      %v5159 = vadd.f32 %v5058, %v5127
      %v5160 = vadd.f32 %v5059, %v5128
      %v5161 = vadd.f32 %v5060, %v5129
      %v5162 = vadd.f32 %v5061, %v5130
      %v5163 = vadd.f32 %v5062, %v5131
      %v5164 = vadd.f32 %v5063, %v5132
      %v5165 = vadd.f32 %v5064, %v5133
      %v5166 = vadd.f32 %v5065, %v5134
      %v5167 = vadd.f32 %v5066, %v5135
      %v5168 = vadd.f32 %v5067, %v5136
      %v5169 = vadd.f32 %v5068, %v5137
      %v5170 = vadd.f32 %v5069, %v5138
      %v5171 = vadd.f32 %v5070, %v5139
      %v5172 = vadd.f32 %v5071, %v5140
      %v5173 = vadd.f32 %v5072, %v5141
      %v5174 = vadd.f32 %v5073, %v5142
      %v5175 = vadd.f32 %v5074, %v5143
      %v5176 = vadd.f32 %v5075, %v5144
      %v5177 = vld [vmem:[%s2 + $0x2c] sm:$0x1]
      %v5178 = vld [vmem:[%s4975 + $0x2] sm:$0xff]
      %v5179 = vld [vmem:[%s4975 + $0xa] sm:$0xff]
      %v5180 = vld [vmem:[%s4975 + $0x1a] sm:$0xff]
      %v5181 = vld [vmem:[%s4975 + $0x22] sm:$0xff]
      %v5182 = vld [vmem:[%s4975 + $0x32] sm:$0xff]
      %v5183 = vld [vmem:[%s4975 + $0x3a] sm:$0xff]
      %v5184 = vld [vmem:[%s4975 + $0x4a] sm:$0xff]
      %v5185 = vld [vmem:[%s4975 + $0x52] sm:$0xff]
      %v5186 = vld [vmem:[%s4975 + $0x62] sm:$0xff]
      %v5187 = vld [vmem:[%s4975 + $0x6a] sm:$0xff]
      %v5188 = vld [vmem:[%s4975 + $0x7a] sm:$0xff]
      %v5189 = vld [vmem:[%s4975 + $0x82] sm:$0xff]
      %v5190 = vld [vmem:[%s4975 + $0x92] sm:$0xff]
      %v5191 = vld [vmem:[%s4975 + $0x9a] sm:$0xff]
      %v5192 = vld [vmem:[%s4975 + $0xaa] sm:$0xff]
      %v5193 = vld [vmem:[%s4975 + $0xb2] sm:$0xff]
      %v5194 = vld [vmem:[%s4975 + $0xc2] sm:$0xff]
      %v5195 = vld [vmem:[%s4975 + $0xca] sm:$0xff]
      %v5196 = vld [vmem:[%s4975 + $0xda] sm:$0xff]
      %v5197 = vld [vmem:[%s4975 + $0xe2] sm:$0xff]
      %v5198 = vld [vmem:[%s4975 + $0xf2] sm:$0xff]
      %v5199 = vld [vmem:[%s4975 + $0xfa] sm:$0xff]
      %v5200 = vld [vmem:[%s4975 + $0x10a] sm:$0xff]
      %v5201 = vld [vmem:[%s4975 + $0x112] sm:$0xff]
      %v5202 = vld [vmem:[%s4975 + $0x122] sm:$0xff]
      %v5203 = vld [vmem:[%s4975 + $0x12a] sm:$0xff]
      %v5204 = vld [vmem:[%s4975 + $0x13a] sm:$0xff]
      %v5205 = vld [vmem:[%s4975 + $0x142] sm:$0xff]
      %v5206 = vld [vmem:[%s4975 + $0x152] sm:$0xff]
      %v5207 = vld [vmem:[%s4975 + $0x15a] sm:$0xff]
      %v5208 = vld [vmem:[%s4975 + $0x16a] sm:$0xff]
      %v5209 = vld [vmem:[%s4975 + $0x172] sm:$0xff]
      %v5210 = vlaneseq
      %v5211 = vshrl.u32 %v5210, 7
      %v5212 = vsub.s32 0, %v5211
      %v5213 = vrot.slane %v5177, %v5212
      %v5214 = vmul.f32 %v5178, %v5213
      %v5215 = vmul.f32 %v5179, %v5213
      %v5216 = vmul.f32 %v5180, %v5213
      %v5217 = vmul.f32 %v5181, %v5213
      %v5218 = vmul.f32 %v5182, %v5213
      %v5219 = vmul.f32 %v5183, %v5213
      %v5220 = vmul.f32 %v5184, %v5213
      %v5221 = vmul.f32 %v5185, %v5213
      %v5222 = vmul.f32 %v5186, %v5213
      %v5223 = vmul.f32 %v5187, %v5213
      %v5224 = vmul.f32 %v5188, %v5213
      %v5225 = vmul.f32 %v5189, %v5213
      %v5226 = vmul.f32 %v5190, %v5213
      %v5227 = vmul.f32 %v5191, %v5213
      %v5228 = vmul.f32 %v5192, %v5213
      %v5229 = vmul.f32 %v5193, %v5213
      %v5230 = vmul.f32 %v5194, %v5213
      %v5231 = vmul.f32 %v5195, %v5213
      %v5232 = vmul.f32 %v5196, %v5213
      %v5233 = vmul.f32 %v5197, %v5213
      %v5234 = vmul.f32 %v5198, %v5213
      %v5235 = vmul.f32 %v5199, %v5213
      %v5236 = vmul.f32 %v5200, %v5213
      %v5237 = vmul.f32 %v5201, %v5213
      %v5238 = vmul.f32 %v5202, %v5213
      %v5239 = vmul.f32 %v5203, %v5213
      %v5240 = vmul.f32 %v5204, %v5213
      %v5241 = vmul.f32 %v5205, %v5213
      %v5242 = vmul.f32 %v5206, %v5213
      %v5243 = vmul.f32 %v5207, %v5213
      %v5244 = vmul.f32 %v5208, %v5213
      %v5245 = vmul.f32 %v5209, %v5213
      %v5246 = vadd.f32 %v5145, %v5214
      %v5247 = vadd.f32 %v5146, %v5215
      %v5248 = vadd.f32 %v5147, %v5216
      %v5249 = vadd.f32 %v5148, %v5217
      %v5250 = vadd.f32 %v5149, %v5218
      %v5251 = vadd.f32 %v5150, %v5219
      %v5252 = vadd.f32 %v5151, %v5220
      %v5253 = vadd.f32 %v5152, %v5221
      %v5254 = vadd.f32 %v5153, %v5222
      %v5255 = vadd.f32 %v5154, %v5223
      %v5256 = vadd.f32 %v5155, %v5224
      %v5257 = vadd.f32 %v5156, %v5225
      %v5258 = vadd.f32 %v5157, %v5226
      %v5259 = vadd.f32 %v5158, %v5227
      %v5260 = vadd.f32 %v5159, %v5228
      %v5261 = vadd.f32 %v5160, %v5229
      %v5262 = vadd.f32 %v5161, %v5230
      %v5263 = vadd.f32 %v5162, %v5231
      %v5264 = vadd.f32 %v5163, %v5232
      %v5265 = vadd.f32 %v5164, %v5233
      %v5266 = vadd.f32 %v5165, %v5234
      %v5267 = vadd.f32 %v5166, %v5235
      %v5268 = vadd.f32 %v5167, %v5236
      %v5269 = vadd.f32 %v5168, %v5237
      %v5270 = vadd.f32 %v5169, %v5238
      %v5271 = vadd.f32 %v5170, %v5239
      %v5272 = vadd.f32 %v5171, %v5240
      %v5273 = vadd.f32 %v5172, %v5241
      %v5274 = vadd.f32 %v5173, %v5242
      %v5275 = vadd.f32 %v5174, %v5243
      %v5276 = vadd.f32 %v5175, %v5244
      %v5277 = vadd.f32 %v5176, %v5245
      %v5278 = vld [vmem:[%s2 + $0x2d] sm:$0x1]
      %v5279 = vld [vmem:[%s4975 + $0x3] sm:$0xff]
      %v5280 = vld [vmem:[%s4975 + $0xb] sm:$0xff]
      %v5281 = vld [vmem:[%s4975 + $0x1b] sm:$0xff]
      %v5282 = vld [vmem:[%s4975 + $0x23] sm:$0xff]
      %v5283 = vld [vmem:[%s4975 + $0x33] sm:$0xff]
      %v5284 = vld [vmem:[%s4975 + $0x3b] sm:$0xff]
      %v5285 = vld [vmem:[%s4975 + $0x4b] sm:$0xff]
      %v5286 = vld [vmem:[%s4975 + $0x53] sm:$0xff]
      %v5287 = vld [vmem:[%s4975 + $0x63] sm:$0xff]
      %v5288 = vld [vmem:[%s4975 + $0x6b] sm:$0xff]
      %v5289 = vld [vmem:[%s4975 + $0x7b] sm:$0xff]
      %v5290 = vld [vmem:[%s4975 + $0x83] sm:$0xff]
      %v5291 = vld [vmem:[%s4975 + $0x93] sm:$0xff]
      %v5292 = vld [vmem:[%s4975 + $0x9b] sm:$0xff]
      %v5293 = vld [vmem:[%s4975 + $0xab] sm:$0xff]
      %v5294 = vld [vmem:[%s4975 + $0xb3] sm:$0xff]
      %v5295 = vld [vmem:[%s4975 + $0xc3] sm:$0xff]
      %v5296 = vld [vmem:[%s4975 + $0xcb] sm:$0xff]
      %v5297 = vld [vmem:[%s4975 + $0xdb] sm:$0xff]
      %v5298 = vld [vmem:[%s4975 + $0xe3] sm:$0xff]
      %v5299 = vld [vmem:[%s4975 + $0xf3] sm:$0xff]
      %v5300 = vld [vmem:[%s4975 + $0xfb] sm:$0xff]
      %v5301 = vld [vmem:[%s4975 + $0x10b] sm:$0xff]
      %v5302 = vld [vmem:[%s4975 + $0x113] sm:$0xff]
      %v5303 = vld [vmem:[%s4975 + $0x123] sm:$0xff]
      %v5304 = vld [vmem:[%s4975 + $0x12b] sm:$0xff]
      %v5305 = vld [vmem:[%s4975 + $0x13b] sm:$0xff]
      %v5306 = vld [vmem:[%s4975 + $0x143] sm:$0xff]
      %v5307 = vld [vmem:[%s4975 + $0x153] sm:$0xff]
      %v5308 = vld [vmem:[%s4975 + $0x15b] sm:$0xff]
      %v5309 = vld [vmem:[%s4975 + $0x16b] sm:$0xff]
      %v5310 = vld [vmem:[%s4975 + $0x173] sm:$0xff]
      %v5311 = vlaneseq
      %v5312 = vshrl.u32 %v5311, 7
      %v5313 = vsub.s32 0, %v5312
      %v5314 = vrot.slane %v5278, %v5313
      %v5315 = vmul.f32 %v5279, %v5314
      %v5316 = vmul.f32 %v5280, %v5314
      %v5317 = vmul.f32 %v5281, %v5314
      %v5318 = vmul.f32 %v5282, %v5314
      %v5319 = vmul.f32 %v5283, %v5314
      %v5320 = vmul.f32 %v5284, %v5314
      %v5321 = vmul.f32 %v5285, %v5314
      %v5322 = vmul.f32 %v5286, %v5314
      %v5323 = vmul.f32 %v5287, %v5314
      %v5324 = vmul.f32 %v5288, %v5314
      %v5325 = vmul.f32 %v5289, %v5314
      %v5326 = vmul.f32 %v5290, %v5314
      %v5327 = vmul.f32 %v5291, %v5314
      %v5328 = vmul.f32 %v5292, %v5314
      %v5329 = vmul.f32 %v5293, %v5314
      %v5330 = vmul.f32 %v5294, %v5314
      %v5331 = vmul.f32 %v5295, %v5314
      %v5332 = vmul.f32 %v5296, %v5314
      %v5333 = vmul.f32 %v5297, %v5314
      %v5334 = vmul.f32 %v5298, %v5314
      %v5335 = vmul.f32 %v5299, %v5314
      %v5336 = vmul.f32 %v5300, %v5314
      %v5337 = vmul.f32 %v5301, %v5314
      %v5338 = vmul.f32 %v5302, %v5314
      %v5339 = vmul.f32 %v5303, %v5314
      %v5340 = vmul.f32 %v5304, %v5314
      %v5341 = vmul.f32 %v5305, %v5314
      %v5342 = vmul.f32 %v5306, %v5314
      %v5343 = vmul.f32 %v5307, %v5314
      %v5344 = vmul.f32 %v5308, %v5314
      %v5345 = vmul.f32 %v5309, %v5314
      %v5346 = vmul.f32 %v5310, %v5314
      %v5347 = vadd.f32 %v5246, %v5315
      %v5348 = vadd.f32 %v5247, %v5316
      %v5349 = vadd.f32 %v5248, %v5317
      %v5350 = vadd.f32 %v5249, %v5318
      %v5351 = vadd.f32 %v5250, %v5319
      %v5352 = vadd.f32 %v5251, %v5320
      %v5353 = vadd.f32 %v5252, %v5321
      %v5354 = vadd.f32 %v5253, %v5322
      %v5355 = vadd.f32 %v5254, %v5323
      %v5356 = vadd.f32 %v5255, %v5324
      %v5357 = vadd.f32 %v5256, %v5325
      %v5358 = vadd.f32 %v5257, %v5326
      %v5359 = vadd.f32 %v5258, %v5327
      %v5360 = vadd.f32 %v5259, %v5328
      %v5361 = vadd.f32 %v5260, %v5329
      %v5362 = vadd.f32 %v5261, %v5330
      %v5363 = vadd.f32 %v5262, %v5331
      %v5364 = vadd.f32 %v5263, %v5332
      %v5365 = vadd.f32 %v5264, %v5333
      %v5366 = vadd.f32 %v5265, %v5334
      %v5367 = vadd.f32 %v5266, %v5335
      %v5368 = vadd.f32 %v5267, %v5336
      %v5369 = vadd.f32 %v5268, %v5337
      %v5370 = vadd.f32 %v5269, %v5338
      %v5371 = vadd.f32 %v5270, %v5339
      %v5372 = vadd.f32 %v5271, %v5340
      %v5373 = vadd.f32 %v5272, %v5341
      %v5374 = vadd.f32 %v5273, %v5342
      %v5375 = vadd.f32 %v5274, %v5343
      %v5376 = vadd.f32 %v5275, %v5344
      %v5377 = vadd.f32 %v5276, %v5345
      %v5378 = vadd.f32 %v5277, %v5346
      %v5379 = vld [vmem:[%s2 + $0x2e] sm:$0x1]
      %v5380 = vld [vmem:[%s4975 + $0x4] sm:$0xff]
      %v5381 = vld [vmem:[%s4975 + $0xc] sm:$0xff]
      %v5382 = vld [vmem:[%s4975 + $0x1c] sm:$0xff]
      %v5383 = vld [vmem:[%s4975 + $0x24] sm:$0xff]
      %v5384 = vld [vmem:[%s4975 + $0x34] sm:$0xff]
      %v5385 = vld [vmem:[%s4975 + $0x3c] sm:$0xff]
      %v5386 = vld [vmem:[%s4975 + $0x4c] sm:$0xff]
      %v5387 = vld [vmem:[%s4975 + $0x54] sm:$0xff]
      %v5388 = vld [vmem:[%s4975 + $0x64] sm:$0xff]
      %v5389 = vld [vmem:[%s4975 + $0x6c] sm:$0xff]
      %v5390 = vld [vmem:[%s4975 + $0x7c] sm:$0xff]
      %v5391 = vld [vmem:[%s4975 + $0x84] sm:$0xff]
      %v5392 = vld [vmem:[%s4975 + $0x94] sm:$0xff]
      %v5393 = vld [vmem:[%s4975 + $0x9c] sm:$0xff]
      %v5394 = vld [vmem:[%s4975 + $0xac] sm:$0xff]
      %v5395 = vld [vmem:[%s4975 + $0xb4] sm:$0xff]
      %v5396 = vld [vmem:[%s4975 + $0xc4] sm:$0xff]
      %v5397 = vld [vmem:[%s4975 + $0xcc] sm:$0xff]
      %v5398 = vld [vmem:[%s4975 + $0xdc] sm:$0xff]
      %v5399 = vld [vmem:[%s4975 + $0xe4] sm:$0xff]
      %v5400 = vld [vmem:[%s4975 + $0xf4] sm:$0xff]
      %v5401 = vld [vmem:[%s4975 + $0xfc] sm:$0xff]
      %v5402 = vld [vmem:[%s4975 + $0x10c] sm:$0xff]
      %v5403 = vld [vmem:[%s4975 + $0x114] sm:$0xff]
      %v5404 = vld [vmem:[%s4975 + $0x124] sm:$0xff]
      %v5405 = vld [vmem:[%s4975 + $0x12c] sm:$0xff]
      %v5406 = vld [vmem:[%s4975 + $0x13c] sm:$0xff]
      %v5407 = vld [vmem:[%s4975 + $0x144] sm:$0xff]
      %v5408 = vld [vmem:[%s4975 + $0x154] sm:$0xff]
      %v5409 = vld [vmem:[%s4975 + $0x15c] sm:$0xff]
      %v5410 = vld [vmem:[%s4975 + $0x16c] sm:$0xff]
      %v5411 = vld [vmem:[%s4975 + $0x174] sm:$0xff]
      %v5412 = vlaneseq
      %v5413 = vshrl.u32 %v5412, 7
      %v5414 = vsub.s32 0, %v5413
      %v5415 = vrot.slane %v5379, %v5414
      %v5416 = vmul.f32 %v5380, %v5415
      %v5417 = vmul.f32 %v5381, %v5415
      %v5418 = vmul.f32 %v5382, %v5415
      %v5419 = vmul.f32 %v5383, %v5415
      %v5420 = vmul.f32 %v5384, %v5415
      %v5421 = vmul.f32 %v5385, %v5415
      %v5422 = vmul.f32 %v5386, %v5415
      %v5423 = vmul.f32 %v5387, %v5415
      %v5424 = vmul.f32 %v5388, %v5415
      %v5425 = vmul.f32 %v5389, %v5415
      %v5426 = vmul.f32 %v5390, %v5415
      %v5427 = vmul.f32 %v5391, %v5415
      %v5428 = vmul.f32 %v5392, %v5415
      %v5429 = vmul.f32 %v5393, %v5415
      %v5430 = vmul.f32 %v5394, %v5415
      %v5431 = vmul.f32 %v5395, %v5415
      %v5432 = vmul.f32 %v5396, %v5415
      %v5433 = vmul.f32 %v5397, %v5415
      %v5434 = vmul.f32 %v5398, %v5415
      %v5435 = vmul.f32 %v5399, %v5415
      %v5436 = vmul.f32 %v5400, %v5415
      %v5437 = vmul.f32 %v5401, %v5415
      %v5438 = vmul.f32 %v5402, %v5415
      %v5439 = vmul.f32 %v5403, %v5415
      %v5440 = vmul.f32 %v5404, %v5415
      %v5441 = vmul.f32 %v5405, %v5415
      %v5442 = vmul.f32 %v5406, %v5415
      %v5443 = vmul.f32 %v5407, %v5415
      %v5444 = vmul.f32 %v5408, %v5415
      %v5445 = vmul.f32 %v5409, %v5415
      %v5446 = vmul.f32 %v5410, %v5415
      %v5447 = vmul.f32 %v5411, %v5415
      %v5448 = vadd.f32 %v5347, %v5416
      %v5449 = vadd.f32 %v5348, %v5417
      %v5450 = vadd.f32 %v5349, %v5418
      %v5451 = vadd.f32 %v5350, %v5419
      %v5452 = vadd.f32 %v5351, %v5420
      %v5453 = vadd.f32 %v5352, %v5421
      %v5454 = vadd.f32 %v5353, %v5422
      %v5455 = vadd.f32 %v5354, %v5423
      %v5456 = vadd.f32 %v5355, %v5424
      %v5457 = vadd.f32 %v5356, %v5425
      %v5458 = vadd.f32 %v5357, %v5426
      %v5459 = vadd.f32 %v5358, %v5427
      %v5460 = vadd.f32 %v5359, %v5428
      %v5461 = vadd.f32 %v5360, %v5429
      %v5462 = vadd.f32 %v5361, %v5430
      %v5463 = vadd.f32 %v5362, %v5431
      %v5464 = vadd.f32 %v5363, %v5432
      %v5465 = vadd.f32 %v5364, %v5433
      %v5466 = vadd.f32 %v5365, %v5434
      %v5467 = vadd.f32 %v5366, %v5435
      %v5468 = vadd.f32 %v5367, %v5436
      %v5469 = vadd.f32 %v5368, %v5437
      %v5470 = vadd.f32 %v5369, %v5438
      %v5471 = vadd.f32 %v5370, %v5439
      %v5472 = vadd.f32 %v5371, %v5440
      %v5473 = vadd.f32 %v5372, %v5441
      %v5474 = vadd.f32 %v5373, %v5442
      %v5475 = vadd.f32 %v5374, %v5443
      %v5476 = vadd.f32 %v5375, %v5444
      %v5477 = vadd.f32 %v5376, %v5445
      %v5478 = vadd.f32 %v5377, %v5446
      %v5479 = vadd.f32 %v5378, %v5447
      %v5480 = vld [vmem:[%s2 + $0x2f] sm:$0x1]
      %v5481 = vld [vmem:[%s4975 + $0x5] sm:$0xff]
      %v5482 = vld [vmem:[%s4975 + $0xd] sm:$0xff]
      %v5483 = vld [vmem:[%s4975 + $0x1d] sm:$0xff]
      %v5484 = vld [vmem:[%s4975 + $0x25] sm:$0xff]
      %v5485 = vld [vmem:[%s4975 + $0x35] sm:$0xff]
      %v5486 = vld [vmem:[%s4975 + $0x3d] sm:$0xff]
      %v5487 = vld [vmem:[%s4975 + $0x4d] sm:$0xff]
      %v5488 = vld [vmem:[%s4975 + $0x55] sm:$0xff]
      %v5489 = vld [vmem:[%s4975 + $0x65] sm:$0xff]
      %v5490 = vld [vmem:[%s4975 + $0x6d] sm:$0xff]
      %v5491 = vld [vmem:[%s4975 + $0x7d] sm:$0xff]
      %v5492 = vld [vmem:[%s4975 + $0x85] sm:$0xff]
      %v5493 = vld [vmem:[%s4975 + $0x95] sm:$0xff]
      %v5494 = vld [vmem:[%s4975 + $0x9d] sm:$0xff]
      %v5495 = vld [vmem:[%s4975 + $0xad] sm:$0xff]
      %v5496 = vld [vmem:[%s4975 + $0xb5] sm:$0xff]
      %v5497 = vld [vmem:[%s4975 + $0xc5] sm:$0xff]
      %v5498 = vld [vmem:[%s4975 + $0xcd] sm:$0xff]
      %v5499 = vld [vmem:[%s4975 + $0xdd] sm:$0xff]
      %v5500 = vld [vmem:[%s4975 + $0xe5] sm:$0xff]
      %v5501 = vld [vmem:[%s4975 + $0xf5] sm:$0xff]
      %v5502 = vld [vmem:[%s4975 + $0xfd] sm:$0xff]
      %v5503 = vld [vmem:[%s4975 + $0x10d] sm:$0xff]
      %v5504 = vld [vmem:[%s4975 + $0x115] sm:$0xff]
      %v5505 = vld [vmem:[%s4975 + $0x125] sm:$0xff]
      %v5506 = vld [vmem:[%s4975 + $0x12d] sm:$0xff]
      %v5507 = vld [vmem:[%s4975 + $0x13d] sm:$0xff]
      %v5508 = vld [vmem:[%s4975 + $0x145] sm:$0xff]
      %v5509 = vld [vmem:[%s4975 + $0x155] sm:$0xff]
      %v5510 = vld [vmem:[%s4975 + $0x15d] sm:$0xff]
      %v5511 = vld [vmem:[%s4975 + $0x16d] sm:$0xff]
      %v5512 = vld [vmem:[%s4975 + $0x175] sm:$0xff]
      %v5513 = vlaneseq
      %v5514 = vshrl.u32 %v5513, 7
      %v5515 = vsub.s32 0, %v5514
      %v5516 = vrot.slane %v5480, %v5515
      %v5517 = vmul.f32 %v5481, %v5516
      %v5518 = vmul.f32 %v5482, %v5516
      %v5519 = vmul.f32 %v5483, %v5516
      %v5520 = vmul.f32 %v5484, %v5516
      %v5521 = vmul.f32 %v5485, %v5516
      %v5522 = vmul.f32 %v5486, %v5516
      %v5523 = vmul.f32 %v5487, %v5516
      %v5524 = vmul.f32 %v5488, %v5516
      %v5525 = vmul.f32 %v5489, %v5516
      %v5526 = vmul.f32 %v5490, %v5516
      %v5527 = vmul.f32 %v5491, %v5516
      %v5528 = vmul.f32 %v5492, %v5516
      %v5529 = vmul.f32 %v5493, %v5516
      %v5530 = vmul.f32 %v5494, %v5516
      %v5531 = vmul.f32 %v5495, %v5516
      %v5532 = vmul.f32 %v5496, %v5516
      %v5533 = vmul.f32 %v5497, %v5516
      %v5534 = vmul.f32 %v5498, %v5516
      %v5535 = vmul.f32 %v5499, %v5516
      %v5536 = vmul.f32 %v5500, %v5516
      %v5537 = vmul.f32 %v5501, %v5516
      %v5538 = vmul.f32 %v5502, %v5516
      %v5539 = vmul.f32 %v5503, %v5516
      %v5540 = vmul.f32 %v5504, %v5516
      %v5541 = vmul.f32 %v5505, %v5516
      %v5542 = vmul.f32 %v5506, %v5516
      %v5543 = vmul.f32 %v5507, %v5516
      %v5544 = vmul.f32 %v5508, %v5516
      %v5545 = vmul.f32 %v5509, %v5516
      %v5546 = vmul.f32 %v5510, %v5516
      %v5547 = vmul.f32 %v5511, %v5516
      %v5548 = vmul.f32 %v5512, %v5516
      %v5549 = vadd.f32 %v5448, %v5517
      %v5550 = vadd.f32 %v5449, %v5518
      %v5551 = vadd.f32 %v5450, %v5519
      %v5552 = vadd.f32 %v5451, %v5520
      %v5553 = vadd.f32 %v5452, %v5521
      %v5554 = vadd.f32 %v5453, %v5522
      %v5555 = vadd.f32 %v5454, %v5523
      %v5556 = vadd.f32 %v5455, %v5524
      %v5557 = vadd.f32 %v5456, %v5525
      %v5558 = vadd.f32 %v5457, %v5526
      %v5559 = vadd.f32 %v5458, %v5527
      %v5560 = vadd.f32 %v5459, %v5528
      %v5561 = vadd.f32 %v5460, %v5529
      %v5562 = vadd.f32 %v5461, %v5530
      %v5563 = vadd.f32 %v5462, %v5531
      %v5564 = vadd.f32 %v5463, %v5532
      %v5565 = vadd.f32 %v5464, %v5533
      %v5566 = vadd.f32 %v5465, %v5534
      %v5567 = vadd.f32 %v5466, %v5535
      %v5568 = vadd.f32 %v5467, %v5536
      %v5569 = vadd.f32 %v5468, %v5537
      %v5570 = vadd.f32 %v5469, %v5538
      %v5571 = vadd.f32 %v5470, %v5539
      %v5572 = vadd.f32 %v5471, %v5540
      %v5573 = vadd.f32 %v5472, %v5541
      %v5574 = vadd.f32 %v5473, %v5542
      %v5575 = vadd.f32 %v5474, %v5543
      %v5576 = vadd.f32 %v5475, %v5544
      %v5577 = vadd.f32 %v5476, %v5545
      %v5578 = vadd.f32 %v5477, %v5546
      %v5579 = vadd.f32 %v5478, %v5547
      %v5580 = vadd.f32 %v5479, %v5548
      %v5581 = vld [vmem:[%s2 + $0x30] sm:$0x1]
      %v5582 = vld [vmem:[%s4975 + $0x6] sm:$0xff]
      %v5583 = vld [vmem:[%s4975 + $0xe] sm:$0xff]
      %v5584 = vld [vmem:[%s4975 + $0x1e] sm:$0xff]
      %v5585 = vld [vmem:[%s4975 + $0x26] sm:$0xff]
      %v5586 = vld [vmem:[%s4975 + $0x36] sm:$0xff]
      %v5587 = vld [vmem:[%s4975 + $0x3e] sm:$0xff]
      %v5588 = vld [vmem:[%s4975 + $0x4e] sm:$0xff]
      %v5589 = vld [vmem:[%s4975 + $0x56] sm:$0xff]
      %v5590 = vld [vmem:[%s4975 + $0x66] sm:$0xff]
      %v5591 = vld [vmem:[%s4975 + $0x6e] sm:$0xff]
      %v5592 = vld [vmem:[%s4975 + $0x7e] sm:$0xff]
      %v5593 = vld [vmem:[%s4975 + $0x86] sm:$0xff]
      %v5594 = vld [vmem:[%s4975 + $0x96] sm:$0xff]
      %v5595 = vld [vmem:[%s4975 + $0x9e] sm:$0xff]
      %v5596 = vld [vmem:[%s4975 + $0xae] sm:$0xff]
      %v5597 = vld [vmem:[%s4975 + $0xb6] sm:$0xff]
      %v5598 = vld [vmem:[%s4975 + $0xc6] sm:$0xff]
      %v5599 = vld [vmem:[%s4975 + $0xce] sm:$0xff]
      %v5600 = vld [vmem:[%s4975 + $0xde] sm:$0xff]
      %v5601 = vld [vmem:[%s4975 + $0xe6] sm:$0xff]
      %v5602 = vld [vmem:[%s4975 + $0xf6] sm:$0xff]
      %v5603 = vld [vmem:[%s4975 + $0xfe] sm:$0xff]
      %v5604 = vld [vmem:[%s4975 + $0x10e] sm:$0xff]
      %v5605 = vld [vmem:[%s4975 + $0x116] sm:$0xff]
      %v5606 = vld [vmem:[%s4975 + $0x126] sm:$0xff]
      %v5607 = vld [vmem:[%s4975 + $0x12e] sm:$0xff]
      %v5608 = vld [vmem:[%s4975 + $0x13e] sm:$0xff]
      %v5609 = vld [vmem:[%s4975 + $0x146] sm:$0xff]
      %v5610 = vld [vmem:[%s4975 + $0x156] sm:$0xff]
      %v5611 = vld [vmem:[%s4975 + $0x15e] sm:$0xff]
      %v5612 = vld [vmem:[%s4975 + $0x16e] sm:$0xff]
      %v5613 = vld [vmem:[%s4975 + $0x176] sm:$0xff]
      %v5614 = vlaneseq
      %v5615 = vshrl.u32 %v5614, 7
      %v5616 = vsub.s32 0, %v5615
      %v5617 = vrot.slane %v5581, %v5616
      %v5618 = vmul.f32 %v5582, %v5617
      %v5619 = vmul.f32 %v5583, %v5617
      %v5620 = vmul.f32 %v5584, %v5617
      %v5621 = vmul.f32 %v5585, %v5617
      %v5622 = vmul.f32 %v5586, %v5617
      %v5623 = vmul.f32 %v5587, %v5617
      %v5624 = vmul.f32 %v5588, %v5617
      %v5625 = vmul.f32 %v5589, %v5617
      %v5626 = vmul.f32 %v5590, %v5617
      %v5627 = vmul.f32 %v5591, %v5617
      %v5628 = vmul.f32 %v5592, %v5617
      %v5629 = vmul.f32 %v5593, %v5617
      %v5630 = vmul.f32 %v5594, %v5617
      %v5631 = vmul.f32 %v5595, %v5617
      %v5632 = vmul.f32 %v5596, %v5617
      %v5633 = vmul.f32 %v5597, %v5617
      %v5634 = vmul.f32 %v5598, %v5617
      %v5635 = vmul.f32 %v5599, %v5617
      %v5636 = vmul.f32 %v5600, %v5617
      %v5637 = vmul.f32 %v5601, %v5617
      %v5638 = vmul.f32 %v5602, %v5617
      %v5639 = vmul.f32 %v5603, %v5617
      %v5640 = vmul.f32 %v5604, %v5617
      %v5641 = vmul.f32 %v5605, %v5617
      %v5642 = vmul.f32 %v5606, %v5617
      %v5643 = vmul.f32 %v5607, %v5617
      %v5644 = vmul.f32 %v5608, %v5617
      %v5645 = vmul.f32 %v5609, %v5617
      %v5646 = vmul.f32 %v5610, %v5617
      %v5647 = vmul.f32 %v5611, %v5617
      %v5648 = vmul.f32 %v5612, %v5617
      %v5649 = vmul.f32 %v5613, %v5617
      %v5650 = vadd.f32 %v5549, %v5618
      %v5651 = vadd.f32 %v5550, %v5619
      %v5652 = vadd.f32 %v5551, %v5620
      %v5653 = vadd.f32 %v5552, %v5621
      %v5654 = vadd.f32 %v5553, %v5622
      %v5655 = vadd.f32 %v5554, %v5623
      %v5656 = vadd.f32 %v5555, %v5624
      %v5657 = vadd.f32 %v5556, %v5625
      %v5658 = vadd.f32 %v5557, %v5626
      %v5659 = vadd.f32 %v5558, %v5627
      %v5660 = vadd.f32 %v5559, %v5628
      %v5661 = vadd.f32 %v5560, %v5629
      %v5662 = vadd.f32 %v5561, %v5630
      %v5663 = vadd.f32 %v5562, %v5631
      %v5664 = vadd.f32 %v5563, %v5632
      %v5665 = vadd.f32 %v5564, %v5633
      %v5666 = vadd.f32 %v5565, %v5634
      %v5667 = vadd.f32 %v5566, %v5635
      %v5668 = vadd.f32 %v5567, %v5636
      %v5669 = vadd.f32 %v5568, %v5637
      %v5670 = vadd.f32 %v5569, %v5638
      %v5671 = vadd.f32 %v5570, %v5639
      %v5672 = vadd.f32 %v5571, %v5640
      %v5673 = vadd.f32 %v5572, %v5641
      %v5674 = vadd.f32 %v5573, %v5642
      %v5675 = vadd.f32 %v5574, %v5643
      %v5676 = vadd.f32 %v5575, %v5644
      %v5677 = vadd.f32 %v5576, %v5645
      %v5678 = vadd.f32 %v5577, %v5646
      %v5679 = vadd.f32 %v5578, %v5647
      %v5680 = vadd.f32 %v5579, %v5648
      %v5681 = vadd.f32 %v5580, %v5649
      %v5682 = vpack.c.bf16 %v5651, %v5650
      %v5683 = vpack.c.bf16 %v5653, %v5652
      %v5684 = vpack.c.bf16 %v5655, %v5654
      %v5685 = vpack.c.bf16 %v5657, %v5656
      %v5686 = vpack.c.bf16 %v5659, %v5658
      %v5687 = vpack.c.bf16 %v5661, %v5660
      %v5688 = vpack.c.bf16 %v5663, %v5662
      %v5689 = vpack.c.bf16 %v5665, %v5664
      %v5690 = vpack.c.bf16 %v5667, %v5666
      %v5691 = vpack.c.bf16 %v5669, %v5668
      %v5692 = vpack.c.bf16 %v5671, %v5670
      %v5693 = vpack.c.bf16 %v5673, %v5672
      %v5694 = vpack.c.bf16 %v5675, %v5674
      %v5695 = vpack.c.bf16 %v5677, %v5676
      %v5696 = vpack.c.bf16 %v5679, %v5678
      %v5697 = vpack.c.bf16 %v5681, %v5680
      %v5698 = vld [vmem:[%s3] sm:$0xf]
      %v5700 = vsel %vm695, %v5682, 0
      %v5703 = vsel %vm695, %v5683, 0
      %v5706 = vsel %vm695, %v5684, 0
      %v5709 = vsel %vm695, %v5685, 0
      %v5712 = vsel %vm695, %v5686, 0
      %v5715 = vsel %vm695, %v5687, 0
      %v5718 = vsel %vm695, %v5688, 0
      %v5721 = vsel %vm695, %v5689, 0
      %v5724 = vsel %vm695, %v5690, 0
      %v5727 = vsel %vm695, %v5691, 0
      %v5730 = vsel %vm695, %v5692, 0
      %v5733 = vsel %vm695, %v5693, 0
      %v5736 = vsel %vm695, %v5694, 0
      %v5739 = vsel %vm695, %v5695, 0
      %v5742 = vsel %vm695, %v5696, 0
      %v5745 = vsel %vm695, %v5697, 0
      %vm5747 = vcmask 1043456
      %v5749 = vsel %vm5747, %v5698, 0
      %5751 = vmatprep.subr.bf16.mxu0 0
      %5752 = vmatpush1.bf16.msra.mxu0 0
      %5753 = vmatprep.subr.bf16.mxu0 0
      %5754 = vmatpush1.bf16.msra.mxu0 0
      %5755 = vmatprep.subr.bf16.mxu0 0
      %5756 = vmatpush1.bf16.msra.mxu0 0
      %5757 = vmatprep.subr.bf16.mxu0 0
      %5758 = vmatpush1.bf16.msra.mxu0 0
      %5759 = vmatprep.subr.bf16.mxu0 0
      %5760 = vmatpush1.bf16.msra.mxu0 0
      %5761 = vmatprep.subr.bf16.mxu0 0
      %5762 = vmatpush1.bf16.msra.mxu0 0
      %5763 = vmatprep.subr.bf16.mxu0 0
      %5764 = vmatpush1.bf16.msra.mxu0 0
      %5765 = vmatprep.subr.bf16.mxu0 0
      %5766 = vmatpush1.bf16.msra.mxu0 %v5749
      %5767 = vmatprep.subr.bf16.mxu0 0
      %5768 = vmatpush2.bf16.msra.mxu0 0
      %5769 = vmatprep.subr.bf16.mxu0 0
      %5770 = vmatpush2.bf16.msra.mxu0 0
      %5771 = vmatprep.subr.bf16.mxu0 0
      %5772 = vmatpush2.bf16.msra.mxu0 0
      %5773 = vmatprep.subr.bf16.mxu0 0
      %5774 = vmatpush2.bf16.msra.mxu0 0
      %5775 = vmatprep.subr.bf16.mxu0 0
      %5776 = vmatpush2.bf16.msra.mxu0 0
      %5777 = vmatprep.subr.bf16.mxu0 0
      %5778 = vmatpush2.bf16.msra.mxu0 0
      %5779 = vmatprep.subr.bf16.mxu0 0
      %5780 = vmatpush2.bf16.msra.mxu0 0
      %5781 = vmatprep.subr.bf16.mxu0 0
      %5782 = vmatpush2.bf16.msra.mxu0 0
      %5783 = vmatprep.mubr.bf16.mxu0 0
      %5784 = vmatmul.mubr.bf16.gmra.mxu0 %v5700
      %v5785 = vpop.f32.mrf.mxu0
      %v5786 = vadd.f32 0.0, %v5785
      %v5787 = vpop.f32.mrf.mxu0
      %v5788 = vpop.f32.mrf.mxu0
      %v5789 = vadd.f32 0.0, %v5788
      %v5790 = vpop.f32.mrf.mxu0
      %5791 = vmatprep.mubr.bf16.mxu0 0
      %5792 = vmatmul.mubr.bf16.gmra.mxu0 %v5703
      %v5793 = vpop.f32.mrf.mxu0
      %v5794 = vadd.f32 0.0, %v5793
      %v5795 = vpop.f32.mrf.mxu0
      %v5796 = vpop.f32.mrf.mxu0
      %v5797 = vadd.f32 0.0, %v5796
      %v5798 = vpop.f32.mrf.mxu0
      %5799 = vmatprep.mubr.bf16.mxu0 0
      %5800 = vmatmul.mubr.bf16.gmra.mxu0 %v5706
      %v5801 = vpop.f32.mrf.mxu0
      %v5802 = vadd.f32 0.0, %v5801
      %v5803 = vpop.f32.mrf.mxu0
      %v5804 = vpop.f32.mrf.mxu0
      %v5805 = vadd.f32 0.0, %v5804
      %v5806 = vpop.f32.mrf.mxu0
      %5807 = vmatprep.mubr.bf16.mxu0 0
      %5808 = vmatmul.mubr.bf16.gmra.mxu0 %v5709
      %v5809 = vpop.f32.mrf.mxu0
      %v5810 = vadd.f32 0.0, %v5809
      %v5811 = vpop.f32.mrf.mxu0
      %v5812 = vpop.f32.mrf.mxu0
      %v5813 = vadd.f32 0.0, %v5812
      %v5814 = vpop.f32.mrf.mxu0
      %5815 = vmatprep.mubr.bf16.mxu0 0
      %5816 = vmatmul.mubr.bf16.gmra.mxu0 %v5712
      %v5817 = vpop.f32.mrf.mxu0
      %v5818 = vadd.f32 0.0, %v5817
      %v5819 = vpop.f32.mrf.mxu0
      %v5820 = vpop.f32.mrf.mxu0
      %v5821 = vadd.f32 0.0, %v5820
      %v5822 = vpop.f32.mrf.mxu0
      %5823 = vmatprep.mubr.bf16.mxu0 0
      %5824 = vmatmul.mubr.bf16.gmra.mxu0 %v5715
      %v5825 = vpop.f32.mrf.mxu0
      %v5826 = vadd.f32 0.0, %v5825
      %v5827 = vpop.f32.mrf.mxu0
      %v5828 = vpop.f32.mrf.mxu0
      %v5829 = vadd.f32 0.0, %v5828
      %v5830 = vpop.f32.mrf.mxu0
      %5831 = vmatprep.mubr.bf16.mxu0 0
      %5832 = vmatmul.mubr.bf16.gmra.mxu0 %v5718
      %v5833 = vpop.f32.mrf.mxu0
      %v5834 = vadd.f32 0.0, %v5833
      %v5835 = vpop.f32.mrf.mxu0
      %v5836 = vpop.f32.mrf.mxu0
      %v5837 = vadd.f32 0.0, %v5836
      %v5838 = vpop.f32.mrf.mxu0
      %5839 = vmatprep.mubr.bf16.mxu0 0
      %5840 = vmatmul.mubr.bf16.gmra.mxu0 %v5721
      %v5841 = vpop.f32.mrf.mxu0
      %v5842 = vadd.f32 0.0, %v5841
      %v5843 = vpop.f32.mrf.mxu0
      %v5844 = vpop.f32.mrf.mxu0
      %v5845 = vadd.f32 0.0, %v5844
      %v5846 = vpop.f32.mrf.mxu0
      %5847 = vmatprep.mubr.bf16.mxu0 0
      %5848 = vmatmul.mubr.bf16.gmra.mxu0 %v5724
      %v5849 = vpop.f32.mrf.mxu0
      %v5850 = vadd.f32 0.0, %v5849
      %v5851 = vpop.f32.mrf.mxu0
      %v5852 = vpop.f32.mrf.mxu0
      %v5853 = vadd.f32 0.0, %v5852
      %v5854 = vpop.f32.mrf.mxu0
      %5855 = vmatprep.mubr.bf16.mxu0 0
      %5856 = vmatmul.mubr.bf16.gmra.mxu0 %v5727
      %v5857 = vpop.f32.mrf.mxu0
      %v5858 = vadd.f32 0.0, %v5857
      %v5859 = vpop.f32.mrf.mxu0
      %v5860 = vpop.f32.mrf.mxu0
      %v5861 = vadd.f32 0.0, %v5860
      %v5862 = vpop.f32.mrf.mxu0
      %5863 = vmatprep.mubr.bf16.mxu0 0
      %5864 = vmatmul.mubr.bf16.gmra.mxu0 %v5730
      %v5865 = vpop.f32.mrf.mxu0
      %v5866 = vadd.f32 0.0, %v5865
      %v5867 = vpop.f32.mrf.mxu0
      %v5868 = vpop.f32.mrf.mxu0
      %v5869 = vadd.f32 0.0, %v5868
      %v5870 = vpop.f32.mrf.mxu0
      %5871 = vmatprep.mubr.bf16.mxu0 0
      %5872 = vmatmul.mubr.bf16.gmra.mxu0 %v5733
      %v5873 = vpop.f32.mrf.mxu0
      %v5874 = vadd.f32 0.0, %v5873
      %v5875 = vpop.f32.mrf.mxu0
      %v5876 = vpop.f32.mrf.mxu0
      %v5877 = vadd.f32 0.0, %v5876
      %v5878 = vpop.f32.mrf.mxu0
      %5879 = vmatprep.mubr.bf16.mxu0 0
      %5880 = vmatmul.mubr.bf16.gmra.mxu0 %v5736
      %v5881 = vpop.f32.mrf.mxu0
      %v5882 = vadd.f32 0.0, %v5881
      %v5883 = vpop.f32.mrf.mxu0
      %v5884 = vpop.f32.mrf.mxu0
      %v5885 = vadd.f32 0.0, %v5884
      %v5886 = vpop.f32.mrf.mxu0
      %5887 = vmatprep.mubr.bf16.mxu0 0
      %5888 = vmatmul.mubr.bf16.gmra.mxu0 %v5739
      %v5889 = vpop.f32.mrf.mxu0
      %v5890 = vadd.f32 0.0, %v5889
      %v5891 = vpop.f32.mrf.mxu0
      %v5892 = vpop.f32.mrf.mxu0
      %v5893 = vadd.f32 0.0, %v5892
      %v5894 = vpop.f32.mrf.mxu0
      %5895 = vmatprep.mubr.bf16.mxu0 0
      %5896 = vmatmul.mubr.bf16.gmra.mxu0 %v5742
      %v5897 = vpop.f32.mrf.mxu0
      %v5898 = vadd.f32 0.0, %v5897
      %v5899 = vpop.f32.mrf.mxu0
      %v5900 = vpop.f32.mrf.mxu0
      %v5901 = vadd.f32 0.0, %v5900
      %v5902 = vpop.f32.mrf.mxu0
      %5903 = vmatprep.mubr.bf16.mxu0 0
      %5904 = vmatmul.mubr.bf16.gmra.mxu0 %v5745
      %v5905 = vpop.f32.mrf.mxu0
      %v5906 = vadd.f32 0.0, %v5905
      %v5907 = vpop.f32.mrf.mxu0
      %v5908 = vpop.f32.mrf.mxu0
      %v5909 = vadd.f32 0.0, %v5908
      %v5910 = vpop.f32.mrf.mxu0
      %5911 = vdwg.mxu0
      %5912 = vst.msk [vmem:[%s197] sm:$0xff] %vm320, %v5786
      %5913 = vst.msk [vmem:[%s197 + $0x8] sm:$0xff] %vm320, %v5789
      %5914 = vst.msk [vmem:[%s197 + $0x10] sm:$0xff] %vm320, %v5794
      %5915 = vst.msk [vmem:[%s197 + $0x18] sm:$0xff] %vm320, %v5797
      %5916 = vst.msk [vmem:[%s197 + $0x20] sm:$0xff] %vm320, %v5802
      %5917 = vst.msk [vmem:[%s197 + $0x28] sm:$0xff] %vm320, %v5805
      %5918 = vst.msk [vmem:[%s197 + $0x30] sm:$0xff] %vm320, %v5810
      %5919 = vst.msk [vmem:[%s197 + $0x38] sm:$0xff] %vm320, %v5813
      %5920 = vst.msk [vmem:[%s197 + $0x40] sm:$0xff] %vm320, %v5818
      %5921 = vst.msk [vmem:[%s197 + $0x48] sm:$0xff] %vm320, %v5821
      %5922 = vst.msk [vmem:[%s197 + $0x50] sm:$0xff] %vm320, %v5826
      %5923 = vst.msk [vmem:[%s197 + $0x58] sm:$0xff] %vm320, %v5829
      %5924 = vst.msk [vmem:[%s197 + $0x60] sm:$0xff] %vm320, %v5834
      %5925 = vst.msk [vmem:[%s197 + $0x68] sm:$0xff] %vm320, %v5837
      %5926 = vst.msk [vmem:[%s197 + $0x70] sm:$0xff] %vm320, %v5842
      %5927 = vst.msk [vmem:[%s197 + $0x78] sm:$0xff] %vm320, %v5845
      %5928 = vst.msk [vmem:[%s197 + $0x80] sm:$0xff] %vm320, %v5850
      %5929 = vst.msk [vmem:[%s197 + $0x88] sm:$0xff] %vm320, %v5853
      %5930 = vst.msk [vmem:[%s197 + $0x90] sm:$0xff] %vm320, %v5858
      %5931 = vst.msk [vmem:[%s197 + $0x98] sm:$0xff] %vm320, %v5861
      %5932 = vst.msk [vmem:[%s197 + $0xa0] sm:$0xff] %vm320, %v5866
      %5933 = vst.msk [vmem:[%s197 + $0xa8] sm:$0xff] %vm320, %v5869
      %5934 = vst.msk [vmem:[%s197 + $0xb0] sm:$0xff] %vm320, %v5874
      %5935 = vst.msk [vmem:[%s197 + $0xb8] sm:$0xff] %vm320, %v5877
      %5936 = vst.msk [vmem:[%s197 + $0xc0] sm:$0xff] %vm320, %v5882
      %5937 = vst.msk [vmem:[%s197 + $0xc8] sm:$0xff] %vm320, %v5885
      %5938 = vst.msk [vmem:[%s197 + $0xd0] sm:$0xff] %vm320, %v5890
      %5939 = vst.msk [vmem:[%s197 + $0xd8] sm:$0xff] %vm320, %v5893
      %5940 = vst.msk [vmem:[%s197 + $0xe0] sm:$0xff] %vm320, %v5898
      %5941 = vst.msk [vmem:[%s197 + $0xe8] sm:$0xff] %vm320, %v5901
      %5942 = vst.msk [vmem:[%s197 + $0xf0] sm:$0xff] %vm320, %v5906
      %5943 = vst.msk [vmem:[%s197 + $0xf8] sm:$0xff] %vm320, %v5909
      %p5944 = scmp.lt.s32.totalorder %s15, 1
      %s5945 = scalar_select %p5944, %s15, 1
      %s5946 = smul.addr %s5945, 32
      %s5947 = smul.addr %s5946, 8
      %s5948 = scalar_lea.vmem %s4, %s5947
      // Predicated region
      $region41: #{tpu_custom_call.1} parent=35 // pred_check
        %p5949 = pneg %p122
      $region42: #{tpu_custom_call.1} parent=35 // pred_check_branch
        %5951 = sbr.rel (%p5949) target = $region44
      $region43: #{tpu_custom_call.1} parent=35 // pred_region
        _
      $region44: #{tpu_custom_call.1} parent=35 // pred_fallthru
        _
    $region36: #{tpu_custom_call.1} parent=5 // pred_fallthru
      _
    %p5952 = scmp.le.s32.totalorder 2, %s10
    // Predicated region
    $region45: #{tpu_custom_call.1} parent=5 // pred_check
      %p5953 = pneg %p5952
    $region46: #{tpu_custom_call.1} parent=5 // pred_check_branch
      %5955 = sbr.rel (%p5953) target = $region48
    $region47: #{tpu_custom_call.1} parent=5 // pred_region
      %s5956 = ssub.s32 %s10, 2
      // Predicated region
      $region49: #{tpu_custom_call.1} parent=47 // pred_check
        %p5957 = pneg %p128
      $region50: #{tpu_custom_call.1} parent=47 // pred_check_branch
        %5959 = sbr.rel (%p5957) target = $region52
      $region51: #{tpu_custom_call.1} parent=47 // pred_region
        %p5960 = scmp.lt.s32.totalorder %s16, 1
        %s5961 = scalar_select %p5960, %s16, 1
        %s5962 = smul.addr %s5961, 32
        %s5963 = smul.addr %s5962, 8
        %s5964 = scalar_lea.vmem %s4, %s5963
      $region52: #{tpu_custom_call.1} parent=47 // pred_fallthru
        _
    $region48: #{tpu_custom_call.1} parent=5 // pred_fallthru
      _
  $region6: #{tpu_custom_call.1} parent=0 // loop_footer
    %s14 = sadd.s32 1, %s10
  $region7: #{tpu_custom_call.1} parent=0 // loop_footer_branch
    %9 = sbr.rel target = $region3
  $region8: #{tpu_custom_call.1} parent=0 // loop_exit
    _

</llo_original>
